<compile_context>
chip_gen: v7x
topology: tpu7x:2x2x1
jax: 0.10.0
libtpu: 0.0.40
codegen_flags: <defaults>
</compile_context>

<pallas_src>
import math

import jax
import jax.numpy as jnp
import numpy as np
from jax.experimental import pallas as pl
from jax.experimental.pallas import tpu as pltpu

NEG_SLOPE = 0.01          # torch.nn.LeakyReLU default negative_slope
INV_SQRT_2PI = 0.3989422804014327


def _leaky_relu(x):
    # max(x, a*x) == leaky_relu(x) for 0 < a < 1; 2 VPU ops instead of 3.
    return jnp.maximum(x, NEG_SLOPE * x)


def make_kernel(active):
    """Build a kernel specialized on the static per-layer active coordinate."""
    L = len(active)

    def realnvp_kernel(w1_ref, b1_ref, w2_ref, b2_ref, w3_ref, b3_ref,
                       z_ref, out_ref):
        """One (2, TN) lane-major tile through all (reversed) coupling layers."""
        rows = [z_ref[0:1, :].astype(jnp.float32),      # coordinate 0, (1, TN)
                z_ref[1:2, :].astype(jnp.float32)]      # coordinate 1, (1, TN)
        ld = [jnp.zeros_like(rows[0]), jnp.zeros_like(rows[1])]

        for i in reversed(range(L)):                    # static, unrolled
            a = active[i]                               # masked (kept) coord
            p = 1 - a                                   # updated coord

            # fused s|t layer 1: single outer product with the active row.
            h = w1_ref[i] * rows[a] + b1_ref[i]         # (2H,1)*(1,TN) -> (2H,TN)
            h = _leaky_relu(h)

            # fused s|t layer 2: block-diagonal (2H, 2H) weight -> one matmul.
            h = _leaky_relu(
                jnp.dot(w2_ref[i], h, preferred_element_type=jnp.float32)
                + b2_ref[i])                            # (2H, TN)

            # fused s|t layer 3: (2, 2H) weight -> rows [s_p (pre-tanh); t_p].
            st = (jnp.dot(w3_ref[i], h, preferred_element_type=jnp.float32)
                  + b3_ref[i])                          # (2, TN)
            s = jnp.tanh(st[0:1, :])                    # (1, TN)
            t = st[1:2, :]                              # (1, TN)

            # inverse coupling: only the passive coordinate changes.
            rows[p] = (rows[p] - t) * jnp.exp(-s)
            ld[p] = ld[p] - s

        # TODO(synk): lib_util.gaussian_pdf assumed to be the elementwise
        # standard normal pdf; log_det kept per-coordinate (no feature sum),
        # exactly mirroring the original module's elementwise expression.
        for r in range(2):
            out_ref[r:r + 1, :] = (
                INV_SQRT_2PI
                * jnp.exp(ld[r] - 0.5 * rows[r] * rows[r])
            ).astype(out_ref.dtype)

    return realnvp_kernel


def pack_params(params, mask):
    """Pre-transpose, fuse and mask-specialize the per-layer s/t weights."""
    mask_np = np.asarray(mask)
    L = mask_np.shape[0]
    H = params["sW1"].shape[2]
    active = [int(np.argmax(mask_np[i])) for i in range(L)]   # static 0/1

    # layer 1: only the active input column of the fused s|t weight -> (L, 2H, 1)
    w1 = jnp.stack([
        jnp.concatenate([params["sW1"][i, active[i], :],
                         params["tW1"][i, active[i], :]])[:, None]
        for i in range(L)])
    b1 = jnp.concatenate([params["sb1"], params["tb1"]], axis=1)[..., None]

    # layer 2: block-diagonal of sW2^T / tW2^T -> (L, 2H, 2H)
    sW2T = jnp.transpose(params["sW2"], (0, 2, 1))
    tW2T = jnp.transpose(params["tW2"], (0, 2, 1))
    zer = jnp.zeros_like(sW2T)
    w2 = jnp.concatenate([jnp.concatenate([sW2T, zer], axis=2),
                          jnp.concatenate([zer, tW2T], axis=2)], axis=1)
    b2 = jnp.concatenate([params["sb2"], params["tb2"]], axis=1)[..., None]

    # layer 3: only the passive output row of s and t -> (L, 2, 2H), (L, 2, 1)
    zero_h = jnp.zeros((H,), jnp.float32)
    w3 = jnp.stack([
        jnp.stack([jnp.concatenate([params["sW3"][i, :, 1 - active[i]], zero_h]),
                   jnp.concatenate([zero_h, params["tW3"][i, :, 1 - active[i]]])])
        for i in range(L)])
    b3 = jnp.stack([
        jnp.stack([params["sb3"][i, 1 - active[i]],
                   params["tb3"][i, 1 - active[i]]])[:, None]
        for i in range(L)])
    return active, w1, b1, w2, b2, w3, b3


def realnvp_log_prob(x, params, mask, *, tn=None):
    """Returns the lane-major (2, N) log-prob map (torch order is its transpose)."""
    B = x.shape[0]
    assert B == 2, "RealNVP pairing axis (torch batch dim) must be 2"
    # Feature-major layout: same point ordering as torch's
    # x.permute(3,2,1,0).reshape(-1,2), just transposed to (2, N).
    z0 = jnp.transpose(x, (0, 3, 2, 1)).reshape(2, -1).astype(jnp.float32)
    N = z0.shape[1]

    kind = jax.devices()[0].device_kind.lower()
    two_tc = any(tag in kind for tag in ("v7", "tpu7", "7x"))   # v7x: 2 TCs/chip
    if tn is None:
        if two_tc and N % 256 == 0:
            tn = N // 2            # one lane tile per TensorCore
        else:
            tn = N                 # single-TC chips: one grid step, no overhead
    assert N % tn == 0 and tn % 128 == 0, "lane tile must divide N, mult of 128"
    grid_n = N // tn

    active, w1, b1, w2, b2, w3, b3 = pack_params(params, mask)
    kernel = make_kernel(active)

    if grid_n == 1:
        sem_options = [("arbitrary",)]
    elif two_tc:
        # CORE_PARALLEL shards the axis across both TensorCores; fall back to
        # plain "parallel" if this jax build rejects it.
        sem_options = [(pltpu.CORE_PARALLEL,), ("parallel",)]
    else:
        sem_options = [("parallel",)]

    const3 = lambda a: pl.BlockSpec(a.shape, lambda i: (0, 0, 0))

    def run(sem):
        return pl.pallas_call(
            kernel,
            out_shape=jax.ShapeDtypeStruct((2, N), jnp.float32),
            grid=(grid_n,),
            in_specs=[
                const3(w1), const3(b1),
                const3(w2), const3(b2),
                const3(w3), const3(b3),
                pl.BlockSpec((2, tn), lambda i: (0, i)),
            ],
            out_specs=pl.BlockSpec((2, tn), lambda i: (0, i)),
            compiler_params=pltpu.CompilerParams(dimension_semantics=sem),
        )(w1, b1, w2, b2, w3, b3, z0)

    last_err = None
    for sem in sem_options:
        try:
            return run(sem)
        except Exception as e:                      # pragma: no cover - fallback
            last_err = e
    raise last_err


def _xavier_uniform(key, fan_in, fan_out, gain):
    bound = gain * math.sqrt(6.0 / (fan_in + fan_out))
    return jax.random.uniform(key, (fan_in, fan_out), jnp.float32,
                              -bound, bound)


def _bias(key, fan_in, size):
    bound = 1.0 / math.sqrt(fan_in)
    return jax.random.uniform(key, (size,), jnp.float32, -bound, bound)


def init_params(key, num_coupling, hidden):
    """Stacked weights for all coupling layers, stored as [in, out] (x @ W)."""
    layers = {"sW1": [], "sb1": [], "sW2": [], "sb2": [], "sW3": [], "sb3": [],
              "tW1": [], "tb1": [], "tW2": [], "tb2": [], "tW3": [], "tb3": []}
    dims = [(2, hidden), (hidden, hidden), (hidden, 2)]
    for _ in range(num_coupling):
        for net in ("s", "t"):
            for li, (fi, fo) in enumerate(dims, start=1):
                key, kw, kb = jax.random.split(key, 3)
                layers[f"{net}W{li}"].append(_xavier_uniform(kw, fi, fo, 0.01))
                layers[f"{net}b{li}"].append(_bias(kb, fi, fo))
    return {k: jnp.stack(v) for k, v in layers.items()}


def realnvp_reference(x, params, mask):
    """Pure-JAX reference of RealNVP.forward (log_prob) for verification."""
    z = jnp.transpose(x, (3, 2, 1, 0)).reshape(-1, 2).astype(jnp.float32)
    log_det = jnp.zeros_like(z)
    L = mask.shape[0]
    for i in reversed(range(L)):
        m = mask[i]
        one_m = 1.0 - m
        z_ = m * z
        h = _leaky_relu(z_ @ params["sW1"][i] + params["sb1"][i])
        h = _leaky_relu(h @ params["sW2"][i] + params["sb2"][i])
        s = jnp.tanh(h @ params["sW3"][i] + params["sb3"][i]) * one_m
        h = _leaky_relu(z_ @ params["tW1"][i] + params["tb1"][i])
        h = _leaky_relu(h @ params["tW2"][i] + params["tb2"][i])
        t = (h @ params["tW3"][i] + params["tb3"][i]) * one_m
        z = one_m * (z - t) * jnp.exp(-s) + z_
        log_det = log_det - s
    return INV_SQRT_2PI * jnp.exp(-0.5 * z * z) * jnp.exp(log_det)


if __name__ == "__main__":
    B, C, H, W = 2, 4, 16, 16
    NUM_COUPLING, HIDDEN = 6, 32

    key = jax.random.PRNGKey(0)
    kx, kp = jax.random.split(key)
    x = jax.random.normal(kx, (B, C, H, W), jnp.float32)

    # mask = [[0,1],[1,0]] * 3  (standard RealNVP checkerboard for 2-D data)
    mask = jnp.array([[0.0, 1.0], [1.0, 0.0]] * (NUM_COUPLING // 2),
                     jnp.float32)
    params = init_params(kp, NUM_COUPLING, HIDDEN)

    out = realnvp_log_prob(x, params, mask)          # lane-major (2, N)
    out = jax.block_until_ready(out)

    ref = realnvp_reference(x, params, mask)         # torch-ordered (N, 2)
    np.testing.assert_allclose(np.asarray(out), np.asarray(ref).T,
                               rtol=1e-4, atol=1e-5)
    print("KERNEL_OK")
</pallas_src>

<mosaic_0001>
module attributes {stable_mosaic.version = 11 : i64} {
  func.func @realnvp_kernel(%arg0: i32, %arg1: memref<6x64x1xf32, #tpu.memory_space<vmem>>, %arg2: memref<6x64x1xf32, #tpu.memory_space<vmem>>, %arg3: memref<6x64x64xf32, #tpu.memory_space<vmem>>, %arg4: memref<6x64x1xf32, #tpu.memory_space<vmem>>, %arg5: memref<6x2x64xf32, #tpu.memory_space<vmem>>, %arg6: memref<6x2x1xf32, #tpu.memory_space<vmem>>, %arg7: memref<2x1024xf32, #tpu.memory_space<vmem>>, %arg8: memref<2x1024xf32, #tpu.memory_space<vmem>>) attributes {dimension_semantics = [#tpu.dimension_semantics<arbitrary>], iteration_bounds = array<i64: 1>, scalar_prefetch = 0 : i64, scratch_operands = 0 : i64, tpu.core_type = #tpu.core_type<tc>, window_params = [{pipeline_mode = #tpu.pipeline_mode<synchronous>, transform_indices = @transform_0, window_bounds = array<i64: 6, 64, 1>}, {pipeline_mode = #tpu.pipeline_mode<synchronous>, transform_indices = @transform_1, window_bounds = array<i64: 6, 64, 1>}, {pipeline_mode = #tpu.pipeline_mode<synchronous>, transform_indices = @transform_2, window_bounds = array<i64: 6, 64, 64>}, {pipeline_mode = #tpu.pipeline_mode<synchronous>, transform_indices = @transform_3, window_bounds = array<i64: 6, 64, 1>}, {pipeline_mode = #tpu.pipeline_mode<synchronous>, transform_indices = @transform_4, window_bounds = array<i64: 6, 2, 64>}, {pipeline_mode = #tpu.pipeline_mode<synchronous>, transform_indices = @transform_5, window_bounds = array<i64: 6, 2, 1>}, {transform_indices = @transform_6, window_bounds = array<i64: 2, 1024>}, {transform_indices = @transform_7, window_bounds = array<i64: 2, 1024>}]} {
    %c0 = arith.constant 0 : index
    %c0_0 = arith.constant 0 : index
    %0 = vector.load %arg7[%c0, %c0_0] : memref<2x1024xf32, #tpu.memory_space<vmem>>, vector<1x1024xf32>
    %c1 = arith.constant 1 : index
    %c0_1 = arith.constant 0 : index
    %1 = vector.load %arg7[%c1, %c0_1] : memref<2x1024xf32, #tpu.memory_space<vmem>>, vector<1x1024xf32>
    %cst = arith.constant 0.000000e+00 : f32
    %2 = vector.broadcast %cst : f32 to vector<1x1024xf32>
    %cst_2 = arith.constant 0.000000e+00 : f32
    %3 = vector.broadcast %cst_2 : f32 to vector<1x1024xf32>
    %c5 = arith.constant 5 : index
    %c0_3 = arith.constant 0 : index
    %c0_4 = arith.constant 0 : index
    %4 = vector.load %arg1[%c5, %c0_3, %c0_4] : memref<6x64x1xf32, #tpu.memory_space<vmem>>, vector<1x64x1xf32>
    %5 = vector.shape_cast %4 : vector<1x64x1xf32> to vector<64x1xf32>
    %6 = vector.broadcast %5 : vector<64x1xf32> to vector<64x1024xf32>
    %7 = vector.broadcast %0 : vector<1x1024xf32> to vector<64x1024xf32>
    %8 = arith.mulf %6, %7 : vector<64x1024xf32>
    %c5_5 = arith.constant 5 : index
    %c0_6 = arith.constant 0 : index
    %c0_7 = arith.constant 0 : index
    %9 = vector.load %arg2[%c5_5, %c0_6, %c0_7] : memref<6x64x1xf32, #tpu.memory_space<vmem>>, vector<1x64x1xf32>
    %10 = vector.shape_cast %9 : vector<1x64x1xf32> to vector<64x1xf32>
    %11 = vector.broadcast %10 : vector<64x1xf32> to vector<64x1024xf32>
    %12 = arith.addf %8, %11 : vector<64x1024xf32>
    %cst_8 = arith.constant 0.00999999977 : f32
    %13 = vector.broadcast %cst_8 : f32 to vector<64x1024xf32>
    %14 = arith.mulf %13, %12 : vector<64x1024xf32>
    %15 = arith.maximumf %12, %14 : vector<64x1024xf32>
    %c5_9 = arith.constant 5 : index
    %c0_10 = arith.constant 0 : index
    %c0_11 = arith.constant 0 : index
    %16 = vector.load %arg3[%c5_9, %c0_10, %c0_11] : memref<6x64x64xf32, #tpu.memory_space<vmem>>, vector<1x64x64xf32>
    %17 = vector.shape_cast %16 : vector<1x64x64xf32> to vector<64x64xf32>
    %cst_12 = arith.constant dense<0.000000e+00> : vector<64x1024xf32>
    %18 = tpu.matmul %17, %15, %cst_12 {dimension_numbers = #tpu.dot_dimension_numbers<[1], [0], [0], [1], [0, 0, 1, 1], [], []>} : vector<64x64xf32>, vector<64x1024xf32>, vector<64x1024xf32> -> vector<64x1024xf32>
    %c5_13 = arith.constant 5 : index
    %c0_14 = arith.constant 0 : index
    %c0_15 = arith.constant 0 : index
    %19 = vector.load %arg4[%c5_13, %c0_14, %c0_15] : memref<6x64x1xf32, #tpu.memory_space<vmem>>, vector<1x64x1xf32>
    %20 = vector.shape_cast %19 : vector<1x64x1xf32> to vector<64x1xf32>
    %21 = vector.broadcast %20 : vector<64x1xf32> to vector<64x1024xf32>
    %22 = arith.addf %18, %21 : vector<64x1024xf32>
    %cst_16 = arith.constant 0.00999999977 : f32
    %23 = vector.broadcast %cst_16 : f32 to vector<64x1024xf32>
    %24 = arith.mulf %23, %22 : vector<64x1024xf32>
    %25 = arith.maximumf %22, %24 : vector<64x1024xf32>
    %c5_17 = arith.constant 5 : index
    %c0_18 = arith.constant 0 : index
    %c0_19 = arith.constant 0 : index
    %26 = vector.load %arg5[%c5_17, %c0_18, %c0_19] : memref<6x2x64xf32, #tpu.memory_space<vmem>>, vector<1x2x64xf32>
    %27 = vector.shape_cast %26 : vector<1x2x64xf32> to vector<2x64xf32>
    %cst_20 = arith.constant dense<0.000000e+00> : vector<2x1024xf32>
    %28 = tpu.matmul %27, %25, %cst_20 {dimension_numbers = #tpu.dot_dimension_numbers<[1], [0], [0], [1], [0, 0, 1, 1], [], []>} : vector<2x64xf32>, vector<64x1024xf32>, vector<2x1024xf32> -> vector<2x1024xf32>
    %c5_21 = arith.constant 5 : index
    %c0_22 = arith.constant 0 : index
    %c0_23 = arith.constant 0 : index
    %29 = vector.load %arg6[%c5_21, %c0_22, %c0_23] : memref<6x2x1xf32, #tpu.memory_space<vmem>>, vector<1x2x1xf32>
    %30 = vector.shape_cast %29 : vector<1x2x1xf32> to vector<2x1xf32>
    %31 = vector.broadcast %30 : vector<2x1xf32> to vector<2x1024xf32>
    %32 = arith.addf %28, %31 : vector<2x1024xf32>
    %33 = vector.extract_strided_slice %32 {offsets = [0, 0], sizes = [1, 1024], strides = [1, 1]} : vector<2x1024xf32> to vector<1x1024xf32>
    %34 = math.tanh %33 : vector<1x1024xf32>
    %35 = vector.extract_strided_slice %32 {offsets = [1, 0], sizes = [1, 1024], strides = [1, 1]} : vector<2x1024xf32> to vector<1x1024xf32>
    %36 = arith.subf %1, %35 : vector<1x1024xf32>
    %cst_24 = arith.constant 0.000000e+00 : f32
    %37 = vector.broadcast %cst_24 : f32 to vector<1x1024xf32>
    %38 = arith.subf %37, %34 : vector<1x1024xf32>
    %39 = math.exp %38 : vector<1x1024xf32>
    %40 = arith.mulf %36, %39 : vector<1x1024xf32>
    %41 = arith.subf %3, %34 : vector<1x1024xf32>
    %c4 = arith.constant 4 : index
    %c0_25 = arith.constant 0 : index
    %c0_26 = arith.constant 0 : index
    %42 = vector.load %arg1[%c4, %c0_25, %c0_26] : memref<6x64x1xf32, #tpu.memory_space<vmem>>, vector<1x64x1xf32>
    %43 = vector.shape_cast %42 : vector<1x64x1xf32> to vector<64x1xf32>
    %44 = vector.broadcast %43 : vector<64x1xf32> to vector<64x1024xf32>
    %45 = vector.broadcast %40 : vector<1x1024xf32> to vector<64x1024xf32>
    %46 = arith.mulf %44, %45 : vector<64x1024xf32>
    %c4_27 = arith.constant 4 : index
    %c0_28 = arith.constant 0 : index
    %c0_29 = arith.constant 0 : index
    %47 = vector.load %arg2[%c4_27, %c0_28, %c0_29] : memref<6x64x1xf32, #tpu.memory_space<vmem>>, vector<1x64x1xf32>
    %48 = vector.shape_cast %47 : vector<1x64x1xf32> to vector<64x1xf32>
    %49 = vector.broadcast %48 : vector<64x1xf32> to vector<64x1024xf32>
    %50 = arith.addf %46, %49 : vector<64x1024xf32>
    %cst_30 = arith.constant 0.00999999977 : f32
    %51 = vector.broadcast %cst_30 : f32 to vector<64x1024xf32>
    %52 = arith.mulf %51, %50 : vector<64x1024xf32>
    %53 = arith.maximumf %50, %52 : vector<64x1024xf32>
    %c4_31 = arith.constant 4 : index
    %c0_32 = arith.constant 0 : index
    %c0_33 = arith.constant 0 : index
    %54 = vector.load %arg3[%c4_31, %c0_32, %c0_33] : memref<6x64x64xf32, #tpu.memory_space<vmem>>, vector<1x64x64xf32>
    %55 = vector.shape_cast %54 : vector<1x64x64xf32> to vector<64x64xf32>
    %cst_34 = arith.constant dense<0.000000e+00> : vector<64x1024xf32>
    %56 = tpu.matmul %55, %53, %cst_34 {dimension_numbers = #tpu.dot_dimension_numbers<[1], [0], [0], [1], [0, 0, 1, 1], [], []>} : vector<64x64xf32>, vector<64x1024xf32>, vector<64x1024xf32> -> vector<64x1024xf32>
    %c4_35 = arith.constant 4 : index
    %c0_36 = arith.constant 0 : index
    %c0_37 = arith.constant 0 : index
    %57 = vector.load %arg4[%c4_35, %c0_36, %c0_37] : memref<6x64x1xf32, #tpu.memory_space<vmem>>, vector<1x64x1xf32>
    %58 = vector.shape_cast %57 : vector<1x64x1xf32> to vector<64x1xf32>
    %59 = vector.broadcast %58 : vector<64x1xf32> to vector<64x1024xf32>
    %60 = arith.addf %56, %59 : vector<64x1024xf32>
    %cst_38 = arith.constant 0.00999999977 : f32
    %61 = vector.broadcast %cst_38 : f32 to vector<64x1024xf32>
    %62 = arith.mulf %61, %60 : vector<64x1024xf32>
    %63 = arith.maximumf %60, %62 : vector<64x1024xf32>
    %c4_39 = arith.constant 4 : index
    %c0_40 = arith.constant 0 : index
    %c0_41 = arith.constant 0 : index
    %64 = vector.load %arg5[%c4_39, %c0_40, %c0_41] : memref<6x2x64xf32, #tpu.memory_space<vmem>>, vector<1x2x64xf32>
    %65 = vector.shape_cast %64 : vector<1x2x64xf32> to vector<2x64xf32>
    %cst_42 = arith.constant dense<0.000000e+00> : vector<2x1024xf32>
    %66 = tpu.matmul %65, %63, %cst_42 {dimension_numbers = #tpu.dot_dimension_numbers<[1], [0], [0], [1], [0, 0, 1, 1], [], []>} : vector<2x64xf32>, vector<64x1024xf32>, vector<2x1024xf32> -> vector<2x1024xf32>
    %c4_43 = arith.constant 4 : index
    %c0_44 = arith.constant 0 : index
    %c0_45 = arith.constant 0 : index
    %67 = vector.load %arg6[%c4_43, %c0_44, %c0_45] : memref<6x2x1xf32, #tpu.memory_space<vmem>>, vector<1x2x1xf32>
    %68 = vector.shape_cast %67 : vector<1x2x1xf32> to vector<2x1xf32>
    %69 = vector.broadcast %68 : vector<2x1xf32> to vector<2x1024xf32>
    %70 = arith.addf %66, %69 : vector<2x1024xf32>
    %71 = vector.extract_strided_slice %70 {offsets = [0, 0], sizes = [1, 1024], strides = [1, 1]} : vector<2x1024xf32> to vector<1x1024xf32>
    %72 = math.tanh %71 : vector<1x1024xf32>
    %73 = vector.extract_strided_slice %70 {offsets = [1, 0], sizes = [1, 1024], strides = [1, 1]} : vector<2x1024xf32> to vector<1x1024xf32>
    %74 = arith.subf %0, %73 : vector<1x1024xf32>
    %cst_46 = arith.constant 0.000000e+00 : f32
    %75 = vector.broadcast %cst_46 : f32 to vector<1x1024xf32>
    %76 = arith.subf %75, %72 : vector<1x1024xf32>
    %77 = math.exp %76 : vector<1x1024xf32>
    %78 = arith.mulf %74, %77 : vector<1x1024xf32>
    %79 = arith.subf %2, %72 : vector<1x1024xf32>
    %c3 = arith.constant 3 : index
    %c0_47 = arith.constant 0 : index
    %c0_48 = arith.constant 0 : index
    %80 = vector.load %arg1[%c3, %c0_47, %c0_48] : memref<6x64x1xf32, #tpu.memory_space<vmem>>, vector<1x64x1xf32>
    %81 = vector.shape_cast %80 : vector<1x64x1xf32> to vector<64x1xf32>
    %82 = vector.broadcast %81 : vector<64x1xf32> to vector<64x1024xf32>
    %83 = vector.broadcast %78 : vector<1x1024xf32> to vector<64x1024xf32>
    %84 = arith.mulf %82, %83 : vector<64x1024xf32>
    %c3_49 = arith.constant 3 : index
    %c0_50 = arith.constant 0 : index
    %c0_51 = arith.constant 0 : index
    %85 = vector.load %arg2[%c3_49, %c0_50, %c0_51] : memref<6x64x1xf32, #tpu.memory_space<vmem>>, vector<1x64x1xf32>
    %86 = vector.shape_cast %85 : vector<1x64x1xf32> to vector<64x1xf32>
    %87 = vector.broadcast %86 : vector<64x1xf32> to vector<64x1024xf32>
    %88 = arith.addf %84, %87 : vector<64x1024xf32>
    %cst_52 = arith.constant 0.00999999977 : f32
    %89 = vector.broadcast %cst_52 : f32 to vector<64x1024xf32>
    %90 = arith.mulf %89, %88 : vector<64x1024xf32>
    %91 = arith.maximumf %88, %90 : vector<64x1024xf32>
    %c3_53 = arith.constant 3 : index
    %c0_54 = arith.constant 0 : index
    %c0_55 = arith.constant 0 : index
    %92 = vector.load %arg3[%c3_53, %c0_54, %c0_55] : memref<6x64x64xf32, #tpu.memory_space<vmem>>, vector<1x64x64xf32>
    %93 = vector.shape_cast %92 : vector<1x64x64xf32> to vector<64x64xf32>
    %cst_56 = arith.constant dense<0.000000e+00> : vector<64x1024xf32>
    %94 = tpu.matmul %93, %91, %cst_56 {dimension_numbers = #tpu.dot_dimension_numbers<[1], [0], [0], [1], [0, 0, 1, 1], [], []>} : vector<64x64xf32>, vector<64x1024xf32>, vector<64x1024xf32> -> vector<64x1024xf32>
    %c3_57 = arith.constant 3 : index
    %c0_58 = arith.constant 0 : index
    %c0_59 = arith.constant 0 : index
    %95 = vector.load %arg4[%c3_57, %c0_58, %c0_59] : memref<6x64x1xf32, #tpu.memory_space<vmem>>, vector<1x64x1xf32>
    %96 = vector.shape_cast %95 : vector<1x64x1xf32> to vector<64x1xf32>
    %97 = vector.broadcast %96 : vector<64x1xf32> to vector<64x1024xf32>
    %98 = arith.addf %94, %97 : vector<64x1024xf32>
    %cst_60 = arith.constant 0.00999999977 : f32
    %99 = vector.broadcast %cst_60 : f32 to vector<64x1024xf32>
    %100 = arith.mulf %99, %98 : vector<64x1024xf32>
    %101 = arith.maximumf %98, %100 : vector<64x1024xf32>
    %c3_61 = arith.constant 3 : index
    %c0_62 = arith.constant 0 : index
    %c0_63 = arith.constant 0 : index
    %102 = vector.load %arg5[%c3_61, %c0_62, %c0_63] : memref<6x2x64xf32, #tpu.memory_space<vmem>>, vector<1x2x64xf32>
    %103 = vector.shape_cast %102 : vector<1x2x64xf32> to vector<2x64xf32>
    %cst_64 = arith.constant dense<0.000000e+00> : vector<2x1024xf32>
    %104 = tpu.matmul %103, %101, %cst_64 {dimension_numbers = #tpu.dot_dimension_numbers<[1], [0], [0], [1], [0, 0, 1, 1], [], []>} : vector<2x64xf32>, vector<64x1024xf32>, vector<2x1024xf32> -> vector<2x1024xf32>
    %c3_65 = arith.constant 3 : index
    %c0_66 = arith.constant 0 : index
    %c0_67 = arith.constant 0 : index
    %105 = vector.load %arg6[%c3_65, %c0_66, %c0_67] : memref<6x2x1xf32, #tpu.memory_space<vmem>>, vector<1x2x1xf32>
    %106 = vector.shape_cast %105 : vector<1x2x1xf32> to vector<2x1xf32>
    %107 = vector.broadcast %106 : vector<2x1xf32> to vector<2x1024xf32>
    %108 = arith.addf %104, %107 : vector<2x1024xf32>
    %109 = vector.extract_strided_slice %108 {offsets = [0, 0], sizes = [1, 1024], strides = [1, 1]} : vector<2x1024xf32> to vector<1x1024xf32>
    %110 = math.tanh %109 : vector<1x1024xf32>
    %111 = vector.extract_strided_slice %108 {offsets = [1, 0], sizes = [1, 1024], strides = [1, 1]} : vector<2x1024xf32> to vector<1x1024xf32>
    %112 = arith.subf %40, %111 : vector<1x1024xf32>
    %cst_68 = arith.constant 0.000000e+00 : f32
    %113 = vector.broadcast %cst_68 : f32 to vector<1x1024xf32>
    %114 = arith.subf %113, %110 : vector<1x1024xf32>
    %115 = math.exp %114 : vector<1x1024xf32>
    %116 = arith.mulf %112, %115 : vector<1x1024xf32>
    %117 = arith.subf %41, %110 : vector<1x1024xf32>
    %c2 = arith.constant 2 : index
    %c0_69 = arith.constant 0 : index
    %c0_70 = arith.constant 0 : index
    %118 = vector.load %arg1[%c2, %c0_69, %c0_70] : memref<6x64x1xf32, #tpu.memory_space<vmem>>, vector<1x64x1xf32>
    %119 = vector.shape_cast %118 : vector<1x64x1xf32> to vector<64x1xf32>
    %120 = vector.broadcast %119 : vector<64x1xf32> to vector<64x1024xf32>
    %121 = vector.broadcast %116 : vector<1x1024xf32> to vector<64x1024xf32>
    %122 = arith.mulf %120, %121 : vector<64x1024xf32>
    %c2_71 = arith.constant 2 : index
    %c0_72 = arith.constant 0 : index
    %c0_73 = arith.constant 0 : index
    %123 = vector.load %arg2[%c2_71, %c0_72, %c0_73] : memref<6x64x1xf32, #tpu.memory_space<vmem>>, vector<1x64x1xf32>
    %124 = vector.shape_cast %123 : vector<1x64x1xf32> to vector<64x1xf32>
    %125 = vector.broadcast %124 : vector<64x1xf32> to vector<64x1024xf32>
    %126 = arith.addf %122, %125 : vector<64x1024xf32>
    %cst_74 = arith.constant 0.00999999977 : f32
    %127 = vector.broadcast %cst_74 : f32 to vector<64x1024xf32>
    %128 = arith.mulf %127, %126 : vector<64x1024xf32>
    %129 = arith.maximumf %126, %128 : vector<64x1024xf32>
    %c2_75 = arith.constant 2 : index
    %c0_76 = arith.constant 0 : index
    %c0_77 = arith.constant 0 : index
    %130 = vector.load %arg3[%c2_75, %c0_76, %c0_77] : memref<6x64x64xf32, #tpu.memory_space<vmem>>, vector<1x64x64xf32>
    %131 = vector.shape_cast %130 : vector<1x64x64xf32> to vector<64x64xf32>
    %cst_78 = arith.constant dense<0.000000e+00> : vector<64x1024xf32>
    %132 = tpu.matmul %131, %129, %cst_78 {dimension_numbers = #tpu.dot_dimension_numbers<[1], [0], [0], [1], [0, 0, 1, 1], [], []>} : vector<64x64xf32>, vector<64x1024xf32>, vector<64x1024xf32> -> vector<64x1024xf32>
    %c2_79 = arith.constant 2 : index
    %c0_80 = arith.constant 0 : index
    %c0_81 = arith.constant 0 : index
    %133 = vector.load %arg4[%c2_79, %c0_80, %c0_81] : memref<6x64x1xf32, #tpu.memory_space<vmem>>, vector<1x64x1xf32>
    %134 = vector.shape_cast %133 : vector<1x64x1xf32> to vector<64x1xf32>
    %135 = vector.broadcast %134 : vector<64x1xf32> to vector<64x1024xf32>
    %136 = arith.addf %132, %135 : vector<64x1024xf32>
    %cst_82 = arith.constant 0.00999999977 : f32
    %137 = vector.broadcast %cst_82 : f32 to vector<64x1024xf32>
    %138 = arith.mulf %137, %136 : vector<64x1024xf32>
    %139 = arith.maximumf %136, %138 : vector<64x1024xf32>
    %c2_83 = arith.constant 2 : index
    %c0_84 = arith.constant 0 : index
    %c0_85 = arith.constant 0 : index
    %140 = vector.load %arg5[%c2_83, %c0_84, %c0_85] : memref<6x2x64xf32, #tpu.memory_space<vmem>>, vector<1x2x64xf32>
    %141 = vector.shape_cast %140 : vector<1x2x64xf32> to vector<2x64xf32>
    %cst_86 = arith.constant dense<0.000000e+00> : vector<2x1024xf32>
    %142 = tpu.matmul %141, %139, %cst_86 {dimension_numbers = #tpu.dot_dimension_numbers<[1], [0], [0], [1], [0, 0, 1, 1], [], []>} : vector<2x64xf32>, vector<64x1024xf32>, vector<2x1024xf32> -> vector<2x1024xf32>
    %c2_87 = arith.constant 2 : index
    %c0_88 = arith.constant 0 : index
    %c0_89 = arith.constant 0 : index
    %143 = vector.load %arg6[%c2_87, %c0_88, %c0_89] : memref<6x2x1xf32, #tpu.memory_space<vmem>>, vector<1x2x1xf32>
    %144 = vector.shape_cast %143 : vector<1x2x1xf32> to vector<2x1xf32>
    %145 = vector.broadcast %144 : vector<2x1xf32> to vector<2x1024xf32>
    %146 = arith.addf %142, %145 : vector<2x1024xf32>
    %147 = vector.extract_strided_slice %146 {offsets = [0, 0], sizes = [1, 1024], strides = [1, 1]} : vector<2x1024xf32> to vector<1x1024xf32>
    %148 = math.tanh %147 : vector<1x1024xf32>
    %149 = vector.extract_strided_slice %146 {offsets = [1, 0], sizes = [1, 1024], strides = [1, 1]} : vector<2x1024xf32> to vector<1x1024xf32>
    %150 = arith.subf %78, %149 : vector<1x1024xf32>
    %cst_90 = arith.constant 0.000000e+00 : f32
    %151 = vector.broadcast %cst_90 : f32 to vector<1x1024xf32>
    %152 = arith.subf %151, %148 : vector<1x1024xf32>
    %153 = math.exp %152 : vector<1x1024xf32>
    %154 = arith.mulf %150, %153 : vector<1x1024xf32>
    %155 = arith.subf %79, %148 : vector<1x1024xf32>
    %c1_91 = arith.constant 1 : index
    %c0_92 = arith.constant 0 : index
    %c0_93 = arith.constant 0 : index
    %156 = vector.load %arg1[%c1_91, %c0_92, %c0_93] : memref<6x64x1xf32, #tpu.memory_space<vmem>>, vector<1x64x1xf32>
    %157 = vector.shape_cast %156 : vector<1x64x1xf32> to vector<64x1xf32>
    %158 = vector.broadcast %157 : vector<64x1xf32> to vector<64x1024xf32>
    %159 = vector.broadcast %154 : vector<1x1024xf32> to vector<64x1024xf32>
    %160 = arith.mulf %158, %159 : vector<64x1024xf32>
    %c1_94 = arith.constant 1 : index
    %c0_95 = arith.constant 0 : index
    %c0_96 = arith.constant 0 : index
    %161 = vector.load %arg2[%c1_94, %c0_95, %c0_96] : memref<6x64x1xf32, #tpu.memory_space<vmem>>, vector<1x64x1xf32>
    %162 = vector.shape_cast %161 : vector<1x64x1xf32> to vector<64x1xf32>
    %163 = vector.broadcast %162 : vector<64x1xf32> to vector<64x1024xf32>
    %164 = arith.addf %160, %163 : vector<64x1024xf32>
    %cst_97 = arith.constant 0.00999999977 : f32
    %165 = vector.broadcast %cst_97 : f32 to vector<64x1024xf32>
    %166 = arith.mulf %165, %164 : vector<64x1024xf32>
    %167 = arith.maximumf %164, %166 : vector<64x1024xf32>
    %c1_98 = arith.constant 1 : index
    %c0_99 = arith.constant 0 : index
    %c0_100 = arith.constant 0 : index
    %168 = vector.load %arg3[%c1_98, %c0_99, %c0_100] : memref<6x64x64xf32, #tpu.memory_space<vmem>>, vector<1x64x64xf32>
    %169 = vector.shape_cast %168 : vector<1x64x64xf32> to vector<64x64xf32>
    %cst_101 = arith.constant dense<0.000000e+00> : vector<64x1024xf32>
    %170 = tpu.matmul %169, %167, %cst_101 {dimension_numbers = #tpu.dot_dimension_numbers<[1], [0], [0], [1], [0, 0, 1, 1], [], []>} : vector<64x64xf32>, vector<64x1024xf32>, vector<64x1024xf32> -> vector<64x1024xf32>
    %c1_102 = arith.constant 1 : index
    %c0_103 = arith.constant 0 : index
    %c0_104 = arith.constant 0 : index
    %171 = vector.load %arg4[%c1_102, %c0_103, %c0_104] : memref<6x64x1xf32, #tpu.memory_space<vmem>>, vector<1x64x1xf32>
    %172 = vector.shape_cast %171 : vector<1x64x1xf32> to vector<64x1xf32>
    %173 = vector.broadcast %172 : vector<64x1xf32> to vector<64x1024xf32>
    %174 = arith.addf %170, %173 : vector<64x1024xf32>
    %cst_105 = arith.constant 0.00999999977 : f32
    %175 = vector.broadcast %cst_105 : f32 to vector<64x1024xf32>
    %176 = arith.mulf %175, %174 : vector<64x1024xf32>
    %177 = arith.maximumf %174, %176 : vector<64x1024xf32>
    %c1_106 = arith.constant 1 : index
    %c0_107 = arith.constant 0 : index
    %c0_108 = arith.constant 0 : index
    %178 = vector.load %arg5[%c1_106, %c0_107, %c0_108] : memref<6x2x64xf32, #tpu.memory_space<vmem>>, vector<1x2x64xf32>
    %179 = vector.shape_cast %178 : vector<1x2x64xf32> to vector<2x64xf32>
    %cst_109 = arith.constant dense<0.000000e+00> : vector<2x1024xf32>
    %180 = tpu.matmul %179, %177, %cst_109 {dimension_numbers = #tpu.dot_dimension_numbers<[1], [0], [0], [1], [0, 0, 1, 1], [], []>} : vector<2x64xf32>, vector<64x1024xf32>, vector<2x1024xf32> -> vector<2x1024xf32>
    %c1_110 = arith.constant 1 : index
    %c0_111 = arith.constant 0 : index
    %c0_112 = arith.constant 0 : index
    %181 = vector.load %arg6[%c1_110, %c0_111, %c0_112] : memref<6x2x1xf32, #tpu.memory_space<vmem>>, vector<1x2x1xf32>
    %182 = vector.shape_cast %181 : vector<1x2x1xf32> to vector<2x1xf32>
    %183 = vector.broadcast %182 : vector<2x1xf32> to vector<2x1024xf32>
    %184 = arith.addf %180, %183 : vector<2x1024xf32>
    %185 = vector.extract_strided_slice %184 {offsets = [0, 0], sizes = [1, 1024], strides = [1, 1]} : vector<2x1024xf32> to vector<1x1024xf32>
    %186 = math.tanh %185 : vector<1x1024xf32>
    %187 = vector.extract_strided_slice %184 {offsets = [1, 0], sizes = [1, 1024], strides = [1, 1]} : vector<2x1024xf32> to vector<1x1024xf32>
    %188 = arith.subf %116, %187 : vector<1x1024xf32>
    %cst_113 = arith.constant 0.000000e+00 : f32
    %189 = vector.broadcast %cst_113 : f32 to vector<1x1024xf32>
    %190 = arith.subf %189, %186 : vector<1x1024xf32>
    %191 = math.exp %190 : vector<1x1024xf32>
    %192 = arith.mulf %188, %191 : vector<1x1024xf32>
    %193 = arith.subf %117, %186 : vector<1x1024xf32>
    %c0_114 = arith.constant 0 : index
    %c0_115 = arith.constant 0 : index
    %c0_116 = arith.constant 0 : index
    %194 = vector.load %arg1[%c0_114, %c0_115, %c0_116] : memref<6x64x1xf32, #tpu.memory_space<vmem>>, vector<1x64x1xf32>
    %195 = vector.shape_cast %194 : vector<1x64x1xf32> to vector<64x1xf32>
    %196 = vector.broadcast %195 : vector<64x1xf32> to vector<64x1024xf32>
    %197 = vector.broadcast %192 : vector<1x1024xf32> to vector<64x1024xf32>
    %198 = arith.mulf %196, %197 : vector<64x1024xf32>
    %c0_117 = arith.constant 0 : index
    %c0_118 = arith.constant 0 : index
    %c0_119 = arith.constant 0 : index
    %199 = vector.load %arg2[%c0_117, %c0_118, %c0_119] : memref<6x64x1xf32, #tpu.memory_space<vmem>>, vector<1x64x1xf32>
    %200 = vector.shape_cast %199 : vector<1x64x1xf32> to vector<64x1xf32>
    %201 = vector.broadcast %200 : vector<64x1xf32> to vector<64x1024xf32>
    %202 = arith.addf %198, %201 : vector<64x1024xf32>
    %cst_120 = arith.constant 0.00999999977 : f32
    %203 = vector.broadcast %cst_120 : f32 to vector<64x1024xf32>
    %204 = arith.mulf %203, %202 : vector<64x1024xf32>
    %205 = arith.maximumf %202, %204 : vector<64x1024xf32>
    %c0_121 = arith.constant 0 : index
    %c0_122 = arith.constant 0 : index
    %c0_123 = arith.constant 0 : index
    %206 = vector.load %arg3[%c0_121, %c0_122, %c0_123] : memref<6x64x64xf32, #tpu.memory_space<vmem>>, vector<1x64x64xf32>
    %207 = vector.shape_cast %206 : vector<1x64x64xf32> to vector<64x64xf32>
    %cst_124 = arith.constant dense<0.000000e+00> : vector<64x1024xf32>
    %208 = tpu.matmul %207, %205, %cst_124 {dimension_numbers = #tpu.dot_dimension_numbers<[1], [0], [0], [1], [0, 0, 1, 1], [], []>} : vector<64x64xf32>, vector<64x1024xf32>, vector<64x1024xf32> -> vector<64x1024xf32>
    %c0_125 = arith.constant 0 : index
    %c0_126 = arith.constant 0 : index
    %c0_127 = arith.constant 0 : index
    %209 = vector.load %arg4[%c0_125, %c0_126, %c0_127] : memref<6x64x1xf32, #tpu.memory_space<vmem>>, vector<1x64x1xf32>
    %210 = vector.shape_cast %209 : vector<1x64x1xf32> to vector<64x1xf32>
    %211 = vector.broadcast %210 : vector<64x1xf32> to vector<64x1024xf32>
    %212 = arith.addf %208, %211 : vector<64x1024xf32>
    %cst_128 = arith.constant 0.00999999977 : f32
    %213 = vector.broadcast %cst_128 : f32 to vector<64x1024xf32>
    %214 = arith.mulf %213, %212 : vector<64x1024xf32>
    %215 = arith.maximumf %212, %214 : vector<64x1024xf32>
    %c0_129 = arith.constant 0 : index
    %c0_130 = arith.constant 0 : index
    %c0_131 = arith.constant 0 : index
    %216 = vector.load %arg5[%c0_129, %c0_130, %c0_131] : memref<6x2x64xf32, #tpu.memory_space<vmem>>, vector<1x2x64xf32>
    %217 = vector.shape_cast %216 : vector<1x2x64xf32> to vector<2x64xf32>
    %cst_132 = arith.constant dense<0.000000e+00> : vector<2x1024xf32>
    %218 = tpu.matmul %217, %215, %cst_132 {dimension_numbers = #tpu.dot_dimension_numbers<[1], [0], [0], [1], [0, 0, 1, 1], [], []>} : vector<2x64xf32>, vector<64x1024xf32>, vector<2x1024xf32> -> vector<2x1024xf32>
    %c0_133 = arith.constant 0 : index
    %c0_134 = arith.constant 0 : index
    %c0_135 = arith.constant 0 : index
    %219 = vector.load %arg6[%c0_133, %c0_134, %c0_135] : memref<6x2x1xf32, #tpu.memory_space<vmem>>, vector<1x2x1xf32>
    %220 = vector.shape_cast %219 : vector<1x2x1xf32> to vector<2x1xf32>
    %221 = vector.broadcast %220 : vector<2x1xf32> to vector<2x1024xf32>
    %222 = arith.addf %218, %221 : vector<2x1024xf32>
    %223 = vector.extract_strided_slice %222 {offsets = [0, 0], sizes = [1, 1024], strides = [1, 1]} : vector<2x1024xf32> to vector<1x1024xf32>
    %224 = math.tanh %223 : vector<1x1024xf32>
    %225 = vector.extract_strided_slice %222 {offsets = [1, 0], sizes = [1, 1024], strides = [1, 1]} : vector<2x1024xf32> to vector<1x1024xf32>
    %226 = arith.subf %154, %225 : vector<1x1024xf32>
    %cst_136 = arith.constant 0.000000e+00 : f32
    %227 = vector.broadcast %cst_136 : f32 to vector<1x1024xf32>
    %228 = arith.subf %227, %224 : vector<1x1024xf32>
    %229 = math.exp %228 : vector<1x1024xf32>
    %230 = arith.mulf %226, %229 : vector<1x1024xf32>
    %231 = arith.subf %155, %224 : vector<1x1024xf32>
    %cst_137 = arith.constant 5.000000e-01 : f32
    %232 = vector.broadcast %cst_137 : f32 to vector<1x1024xf32>
    %233 = arith.mulf %232, %230 : vector<1x1024xf32>
    %234 = arith.mulf %233, %230 : vector<1x1024xf32>
    %235 = arith.subf %231, %234 : vector<1x1024xf32>
    %236 = math.exp %235 : vector<1x1024xf32>
    %cst_138 = arith.constant 0.398942292 : f32
    %237 = vector.broadcast %cst_138 : f32 to vector<1x1024xf32>
    %238 = arith.mulf %237, %236 : vector<1x1024xf32>
    %c0_139 = arith.constant 0 : index
    %c0_140 = arith.constant 0 : index
    %239 = vector.load %arg8[%c0_139, %c0_140] : memref<2x1024xf32, #tpu.memory_space<vmem>>, vector<1x1024xf32>
    tpu.vector_store %arg8[%c0_139, %c0_140], %238 {strides = array<i32>} : memref<2x1024xf32, #tpu.memory_space<vmem>>, vector<1x1024xf32>,
    %cst_141 = arith.constant 5.000000e-01 : f32
    %240 = vector.broadcast %cst_141 : f32 to vector<1x1024xf32>
    %241 = arith.mulf %240, %192 : vector<1x1024xf32>
    %242 = arith.mulf %241, %192 : vector<1x1024xf32>
    %243 = arith.subf %193, %242 : vector<1x1024xf32>
    %244 = math.exp %243 : vector<1x1024xf32>
    %cst_142 = arith.constant 0.398942292 : f32
    %245 = vector.broadcast %cst_142 : f32 to vector<1x1024xf32>
    %246 = arith.mulf %245, %244 : vector<1x1024xf32>
    %c1_143 = arith.constant 1 : index
    %c0_144 = arith.constant 0 : index
    %247 = vector.load %arg8[%c1_143, %c0_144] : memref<2x1024xf32, #tpu.memory_space<vmem>>, vector<1x1024xf32>
    tpu.vector_store %arg8[%c1_143, %c0_144], %246 {strides = array<i32>} : memref<2x1024xf32, #tpu.memory_space<vmem>>, vector<1x1024xf32>,
    return
  }
  func.func @transform_0(%arg0: i32) -> (i32, i32, i32) {
    %c0_i32 = arith.constant 0 : i32
    %c0_i32_0 = arith.constant 0 : i32
    %c0_i32_1 = arith.constant 0 : i32
    %c0_i32_2 = arith.constant 0 : i32
    return %c0_i32, %c0_i32_0, %c0_i32_1 : i32, i32, i32
  }
  func.func @transform_1(%arg0: i32) -> (i32, i32, i32) {
    %c0_i32 = arith.constant 0 : i32
    %c0_i32_0 = arith.constant 0 : i32
    %c0_i32_1 = arith.constant 0 : i32
    %c0_i32_2 = arith.constant 0 : i32
    return %c0_i32, %c0_i32_0, %c0_i32_1 : i32, i32, i32
  }
  func.func @transform_2(%arg0: i32) -> (i32, i32, i32) {
    %c0_i32 = arith.constant 0 : i32
    %c0_i32_0 = arith.constant 0 : i32
    %c0_i32_1 = arith.constant 0 : i32
    %c0_i32_2 = arith.constant 0 : i32
    return %c0_i32, %c0_i32_0, %c0_i32_1 : i32, i32, i32
  }
  func.func @transform_3(%arg0: i32) -> (i32, i32, i32) {
    %c0_i32 = arith.constant 0 : i32
    %c0_i32_0 = arith.constant 0 : i32
    %c0_i32_1 = arith.constant 0 : i32
    %c0_i32_2 = arith.constant 0 : i32
    return %c0_i32, %c0_i32_0, %c0_i32_1 : i32, i32, i32
  }
  func.func @transform_4(%arg0: i32) -> (i32, i32, i32) {
    %c0_i32 = arith.constant 0 : i32
    %c0_i32_0 = arith.constant 0 : i32
    %c0_i32_1 = arith.constant 0 : i32
    %c0_i32_2 = arith.constant 0 : i32
    return %c0_i32, %c0_i32_0, %c0_i32_1 : i32, i32, i32
  }
  func.func @transform_5(%arg0: i32) -> (i32, i32, i32) {
    %c0_i32 = arith.constant 0 : i32
    %c0_i32_0 = arith.constant 0 : i32
    %c0_i32_1 = arith.constant 0 : i32
    %c0_i32_2 = arith.constant 0 : i32
    return %c0_i32, %c0_i32_0, %c0_i32_1 : i32, i32, i32
  }
  func.func @transform_6(%arg0: i32) -> (i32, i32) {
    %c0_i32 = arith.constant 0 : i32
    %c0_i32_0 = arith.constant 0 : i32
    return %c0_i32, %arg0 : i32, i32
  }
  func.func @transform_7(%arg0: i32) -> (i32, i32) {
    %c0_i32 = arith.constant 0 : i32
    %c0_i32_0 = arith.constant 0 : i32
    return %c0_i32, %arg0 : i32, i32
  }
}

</mosaic_0001>

<llo_original>
// kernel: tpu_custom_call.1
$region0: #{tpu_custom_call.1}
  #allocation0 [shape = 'u32[]', space=smem, size = 0x4, offset = 0x4, fixed_abs, tag = 'smem constant byte address 0x4 - core index']
  #allocation1 [shape = 'u32[144,128]{1,0:T(1,128)}', space=vmem, size = 0x12000, scoped, tag = 'internal scratch']
  %s0 = inlined_call_operand.vmem [shape: f32[6,64,1], index: 0, kind: input, shape index: {}]
  %s1 = inlined_call_operand.vmem [shape: f32[6,64,1], index: 1, kind: input, shape index: {}]
  %s2 = inlined_call_operand.vmem [shape: f32[6,64,64], index: 2, kind: input, shape index: {}]
  %s3 = inlined_call_operand.vmem [shape: f32[6,64,1], index: 3, kind: input, shape index: {}]
  %s4 = inlined_call_operand.vmem [shape: f32[6,2,64], index: 4, kind: input, shape index: {}]
  %s5 = inlined_call_operand.vmem [shape: f32[6,2,1], index: 5, kind: input, shape index: {}]
  %s6 = inlined_call_operand.vmem [shape: f32[2,1024], index: 6, kind: input, shape index: {}]
  %s7 = inlined_call_operand.hbm [shape: f32[2,1024], index: 7, kind: output, shape index: {}]
  %s8 = sld [smem:[#allocation0]]
  $region38: #{tpu_custom_call.1} parent=0
    _
  %s10 = ssub.s32 1, %s8
  %s11 = scalar_select 0, %s10, %s8
  $region1: #{tpu_custom_call.1} parent=0
    #allocation2 [shape = 'u8[8192]{0}', space=vmem, size = 0x2000, scoped, tag = 'output window, operand 0, single buffered']
    #allocation3 [shape = 's32[1]{0}', space=sflag, size = 0x4, scoped, tag = 'scoped memory for tpu_custom_call.1']
    %12 = vsyncpa [#allocation3], 0
    // Predicated region
    $region2: #{tpu_custom_call.1} parent=1 // pred_check
      _
    $region3: #{tpu_custom_call.1} parent=1 // pred_check_branch
      %14 = sbr.rel (0) target = $region5
    $region4: #{tpu_custom_call.1} parent=1 // pred_region
      _
    $region5: #{tpu_custom_call.1} parent=1 // pred_fallthru
      _
    // Predicated region
    $region6: #{tpu_custom_call.1} parent=1 // pred_check
      _
    $region7: #{tpu_custom_call.1} parent=1 // pred_check_branch
      %16 = sbr.rel (0) target = $region9
    $region8: #{tpu_custom_call.1} parent=1 // pred_region
      _
    $region9: #{tpu_custom_call.1} parent=1 // pred_fallthru
      _
    // Predicated region
    $region10: #{tpu_custom_call.1} parent=1 // pred_check
      _
    $region11: #{tpu_custom_call.1} parent=1 // pred_check_branch
      %18 = sbr.rel (0) target = $region13
    $region12: #{tpu_custom_call.1} parent=1 // pred_region
      _
    $region13: #{tpu_custom_call.1} parent=1 // pred_fallthru
      _
    // Predicated region
    $region14: #{tpu_custom_call.1} parent=1 // pred_check
      _
    $region15: #{tpu_custom_call.1} parent=1 // pred_check_branch
      %20 = sbr.rel (0) target = $region17
    $region16: #{tpu_custom_call.1} parent=1 // pred_region
      _
    $region17: #{tpu_custom_call.1} parent=1 // pred_fallthru
      _
    // Predicated region
    $region18: #{tpu_custom_call.1} parent=1 // pred_check
      _
    $region19: #{tpu_custom_call.1} parent=1 // pred_check_branch
      %22 = sbr.rel (0) target = $region21
    $region20: #{tpu_custom_call.1} parent=1 // pred_region
      _
    $region21: #{tpu_custom_call.1} parent=1 // pred_fallthru
      _
    // Predicated region
    $region22: #{tpu_custom_call.1} parent=1 // pred_check
      _
    $region23: #{tpu_custom_call.1} parent=1 // pred_check_branch
      %24 = sbr.rel (0) target = $region25
    $region24: #{tpu_custom_call.1} parent=1 // pred_region
      _
    $region25: #{tpu_custom_call.1} parent=1 // pred_fallthru
      _
    // Predicated region
    $region26: #{tpu_custom_call.1} parent=1 // pred_check
      _
    $region27: #{tpu_custom_call.1} parent=1 // pred_check_branch
      %26 = sbr.rel (0) target = $region29
    $region28: #{tpu_custom_call.1} parent=1 // pred_region
      _
    $region29: #{tpu_custom_call.1} parent=1 // pred_fallthru
      _
    %v27 = vld [vmem:[%s6] ss:$2 sm:$0xff]
    %s28 = scalar_lea.vmem %s6, 1
    %v29 = vld [vmem:[%s28] ss:$2 sm:$0xff]
    %s30 = scalar_lea.vmem %s0, 320
    %v31 = vld [vmem:[%s30] sm:$0xff]
    %v32 = vld [vmem:[%s30 + $0x8] sm:$0xff]
    %v33 = vld [vmem:[%s30 + $0x10] sm:$0xff]
    %v34 = vld [vmem:[%s30 + $0x18] sm:$0xff]
    %v35 = vld [vmem:[%s30 + $0x20] sm:$0xff]
    %v36 = vld [vmem:[%s30 + $0x28] sm:$0xff]
    %v37 = vld [vmem:[%s30 + $0x30] sm:$0xff]
    %v38 = vld [vmem:[%s30 + $0x38] sm:$0xff]
    %40 = vset.pattern.permute.xlu0 0
    %41 = vperm.xlu0 %40, %v31
    %v42 = vpop.permute.xlu0 %41
    %45 = vset.pattern.permute.xlu0 0
    %46 = vperm.xlu0 %45, %v32
    %v47 = vpop.permute.xlu0 %46
    %50 = vset.pattern.permute.xlu0 0
    %51 = vperm.xlu0 %50, %v33
    %v52 = vpop.permute.xlu0 %51
    %55 = vset.pattern.permute.xlu0 0
    %56 = vperm.xlu0 %55, %v34
    %v57 = vpop.permute.xlu0 %56
    %60 = vset.pattern.permute.xlu0 0
    %61 = vperm.xlu0 %60, %v35
    %v62 = vpop.permute.xlu0 %61
    %65 = vset.pattern.permute.xlu0 0
    %66 = vperm.xlu0 %65, %v36
    %v67 = vpop.permute.xlu0 %66
    %70 = vset.pattern.permute.xlu0 0
    %71 = vperm.xlu0 %70, %v37
    %v72 = vpop.permute.xlu0 %71
    %75 = vset.pattern.permute.xlu0 0
    %76 = vperm.xlu0 %75, %v38
    %v77 = vpop.permute.xlu0 %76
    %v80 = vlaneseq
    %v81 = vshrl.u32 %v80, 7
    %v82 = vsub.s32 0, %v81
    %v83 = vrot.slane %v27, %v82
    %v84 = vlaneseq
    %v85 = vshrl.u32 %v84, 7
    %v86 = vsub.s32 1, %v85
    %v87 = vrot.slane %v27, %v86
    %v88 = vlaneseq
    %v89 = vshrl.u32 %v88, 7
    %v90 = vsub.s32 2, %v89
    %v91 = vrot.slane %v27, %v90
    %v92 = vlaneseq
    %v93 = vshrl.u32 %v92, 7
    %v94 = vsub.s32 3, %v93
    %v95 = vrot.slane %v27, %v94
    %v96 = vlaneseq
    %v97 = vshrl.u32 %v96, 7
    %v98 = vsub.s32 4, %v97
    %v99 = vrot.slane %v27, %v98
    %v100 = vlaneseq
    %v101 = vshrl.u32 %v100, 7
    %v102 = vsub.s32 5, %v101
    %v103 = vrot.slane %v27, %v102
    %v104 = vlaneseq
    %v105 = vshrl.u32 %v104, 7
    %v106 = vsub.s32 6, %v105
    %v107 = vrot.slane %v27, %v106
    %v108 = vlaneseq
    %v109 = vshrl.u32 %v108, 7
    %v110 = vsub.s32 7, %v109
    %v111 = vrot.slane %v27, %v110
    %v120 = vmul.f32 %v42, %v83
    %v121 = vmul.f32 %v42, %v87
    %v122 = vmul.f32 %v42, %v91
    %v123 = vmul.f32 %v42, %v95
    %v124 = vmul.f32 %v42, %v99
    %v125 = vmul.f32 %v42, %v103
    %v126 = vmul.f32 %v42, %v107
    %v127 = vmul.f32 %v42, %v111
    %v128 = vmul.f32 %v47, %v83
    %v129 = vmul.f32 %v47, %v87
    %v130 = vmul.f32 %v47, %v91
    %v131 = vmul.f32 %v47, %v95
    %v132 = vmul.f32 %v47, %v99
    %v133 = vmul.f32 %v47, %v103
    %v134 = vmul.f32 %v47, %v107
    %v135 = vmul.f32 %v47, %v111
    %v136 = vmul.f32 %v52, %v83
    %v137 = vmul.f32 %v52, %v87
    %v138 = vmul.f32 %v52, %v91
    %v139 = vmul.f32 %v52, %v95
    %v140 = vmul.f32 %v52, %v99
    %v141 = vmul.f32 %v52, %v103
    %v142 = vmul.f32 %v52, %v107
    %v143 = vmul.f32 %v52, %v111
    %v144 = vmul.f32 %v57, %v83
    %v145 = vmul.f32 %v57, %v87
    %v146 = vmul.f32 %v57, %v91
    %v147 = vmul.f32 %v57, %v95
    %v148 = vmul.f32 %v57, %v99
    %v149 = vmul.f32 %v57, %v103
    %v150 = vmul.f32 %v57, %v107
    %v151 = vmul.f32 %v57, %v111
    %v152 = vmul.f32 %v62, %v83
    %v153 = vmul.f32 %v62, %v87
    %v154 = vmul.f32 %v62, %v91
    %v155 = vmul.f32 %v62, %v95
    %v156 = vmul.f32 %v62, %v99
    %v157 = vmul.f32 %v62, %v103
    %v158 = vmul.f32 %v62, %v107
    %v159 = vmul.f32 %v62, %v111
    %v160 = vmul.f32 %v67, %v83
    %v161 = vmul.f32 %v67, %v87
    %v162 = vmul.f32 %v67, %v91
    %v163 = vmul.f32 %v67, %v95
    %v164 = vmul.f32 %v67, %v99
    %v165 = vmul.f32 %v67, %v103
    %v166 = vmul.f32 %v67, %v107
    %v167 = vmul.f32 %v67, %v111
    %v168 = vmul.f32 %v72, %v83
    %v169 = vmul.f32 %v72, %v87
    %v170 = vmul.f32 %v72, %v91
    %v171 = vmul.f32 %v72, %v95
    %v172 = vmul.f32 %v72, %v99
    %v173 = vmul.f32 %v72, %v103
    %v174 = vmul.f32 %v72, %v107
    %v175 = vmul.f32 %v72, %v111
    %v176 = vmul.f32 %v77, %v83
    %v177 = vmul.f32 %v77, %v87
    %v178 = vmul.f32 %v77, %v91
    %v179 = vmul.f32 %v77, %v95
    %v180 = vmul.f32 %v77, %v99
    %v181 = vmul.f32 %v77, %v103
    %v182 = vmul.f32 %v77, %v107
    %v183 = vmul.f32 %v77, %v111
    %s184 = scalar_lea.vmem %s1, 320
    %v185 = vld [vmem:[%s184] sm:$0xff]
    %v186 = vld [vmem:[%s184 + $0x8] sm:$0xff]
    %v187 = vld [vmem:[%s184 + $0x10] sm:$0xff]
    %v188 = vld [vmem:[%s184 + $0x18] sm:$0xff]
    %v189 = vld [vmem:[%s184 + $0x20] sm:$0xff]
    %v190 = vld [vmem:[%s184 + $0x28] sm:$0xff]
    %v191 = vld [vmem:[%s184 + $0x30] sm:$0xff]
    %v192 = vld [vmem:[%s184 + $0x38] sm:$0xff]
    %194 = vset.pattern.permute.xlu0 0
    %195 = vperm.xlu0 %194, %v185
    %v196 = vpop.permute.xlu0 %195
    %199 = vset.pattern.permute.xlu0 0
    %200 = vperm.xlu0 %199, %v186
    %v201 = vpop.permute.xlu0 %200
    %204 = vset.pattern.permute.xlu0 0
    %205 = vperm.xlu0 %204, %v187
    %v206 = vpop.permute.xlu0 %205
    %209 = vset.pattern.permute.xlu0 0
    %210 = vperm.xlu0 %209, %v188
    %v211 = vpop.permute.xlu0 %210
    %214 = vset.pattern.permute.xlu0 0
    %215 = vperm.xlu0 %214, %v189
    %v216 = vpop.permute.xlu0 %215
    %219 = vset.pattern.permute.xlu0 0
    %220 = vperm.xlu0 %219, %v190
    %v221 = vpop.permute.xlu0 %220
    %224 = vset.pattern.permute.xlu0 0
    %225 = vperm.xlu0 %224, %v191
    %v226 = vpop.permute.xlu0 %225
    %229 = vset.pattern.permute.xlu0 0
    %230 = vperm.xlu0 %229, %v192
    %v231 = vpop.permute.xlu0 %230
    %v233 = vadd.f32 %v120, %v196
    %v234 = vadd.f32 %v121, %v196
    %v235 = vadd.f32 %v122, %v196
    %v236 = vadd.f32 %v123, %v196
    %v237 = vadd.f32 %v124, %v196
    %v238 = vadd.f32 %v125, %v196
    %v239 = vadd.f32 %v126, %v196
    %v240 = vadd.f32 %v127, %v196
    %v241 = vadd.f32 %v128, %v201
    %v242 = vadd.f32 %v129, %v201
    %v243 = vadd.f32 %v130, %v201
    %v244 = vadd.f32 %v131, %v201
    %v245 = vadd.f32 %v132, %v201
    %v246 = vadd.f32 %v133, %v201
    %v247 = vadd.f32 %v134, %v201
    %v248 = vadd.f32 %v135, %v201
    %v249 = vadd.f32 %v136, %v206
    %v250 = vadd.f32 %v137, %v206
    %v251 = vadd.f32 %v138, %v206
    %v252 = vadd.f32 %v139, %v206
    %v253 = vadd.f32 %v140, %v206
    %v254 = vadd.f32 %v141, %v206
    %v255 = vadd.f32 %v142, %v206
    %v256 = vadd.f32 %v143, %v206
    %v257 = vadd.f32 %v144, %v211
    %v258 = vadd.f32 %v145, %v211
    %v259 = vadd.f32 %v146, %v211
    %v260 = vadd.f32 %v147, %v211
    %v261 = vadd.f32 %v148, %v211
    %v262 = vadd.f32 %v149, %v211
    %v263 = vadd.f32 %v150, %v211
    %v264 = vadd.f32 %v151, %v211
    %v265 = vadd.f32 %v152, %v216
    %v266 = vadd.f32 %v153, %v216
    %v267 = vadd.f32 %v154, %v216
    %v268 = vadd.f32 %v155, %v216
    %v269 = vadd.f32 %v156, %v216
    %v270 = vadd.f32 %v157, %v216
    %v271 = vadd.f32 %v158, %v216
    %v272 = vadd.f32 %v159, %v216
    %v273 = vadd.f32 %v160, %v221
    %v274 = vadd.f32 %v161, %v221
    %v275 = vadd.f32 %v162, %v221
    %v276 = vadd.f32 %v163, %v221
    %v277 = vadd.f32 %v164, %v221
    %v278 = vadd.f32 %v165, %v221
    %v279 = vadd.f32 %v166, %v221
    %v280 = vadd.f32 %v167, %v221
    %v281 = vadd.f32 %v168, %v226
    %v282 = vadd.f32 %v169, %v226
    %v283 = vadd.f32 %v170, %v226
    %v284 = vadd.f32 %v171, %v226
    %v285 = vadd.f32 %v172, %v226
    %v286 = vadd.f32 %v173, %v226
    %v287 = vadd.f32 %v174, %v226
    %v288 = vadd.f32 %v175, %v226
    %v289 = vadd.f32 %v176, %v231
    %v290 = vadd.f32 %v177, %v231
    %v291 = vadd.f32 %v178, %v231
    %v292 = vadd.f32 %v179, %v231
    %v293 = vadd.f32 %v180, %v231
    %v294 = vadd.f32 %v181, %v231
    %v295 = vadd.f32 %v182, %v231
    %v296 = vadd.f32 %v183, %v231
    %v297 = vmul.f32 %v233, 0.01
    %v298 = vmul.f32 %v234, 0.01
    %v299 = vmul.f32 %v235, 0.01
    %v300 = vmul.f32 %v236, 0.01
    %v301 = vmul.f32 %v237, 0.01
    %v302 = vmul.f32 %v238, 0.01
    %v303 = vmul.f32 %v239, 0.01
    %v304 = vmul.f32 %v240, 0.01
    %v305 = vmul.f32 %v241, 0.01
    %v306 = vmul.f32 %v242, 0.01
    %v307 = vmul.f32 %v243, 0.01
    %v308 = vmul.f32 %v244, 0.01
    %v309 = vmul.f32 %v245, 0.01
    %v310 = vmul.f32 %v246, 0.01
    %v311 = vmul.f32 %v247, 0.01
    %v312 = vmul.f32 %v248, 0.01
    %v313 = vmul.f32 %v249, 0.01
    %v314 = vmul.f32 %v250, 0.01
    %v315 = vmul.f32 %v251, 0.01
    %v316 = vmul.f32 %v252, 0.01
    %v317 = vmul.f32 %v253, 0.01
    %v318 = vmul.f32 %v254, 0.01
    %v319 = vmul.f32 %v255, 0.01
    %v320 = vmul.f32 %v256, 0.01
    %v321 = vmul.f32 %v257, 0.01
    %v322 = vmul.f32 %v258, 0.01
    %v323 = vmul.f32 %v259, 0.01
    %v324 = vmul.f32 %v260, 0.01
    %v325 = vmul.f32 %v261, 0.01
    %v326 = vmul.f32 %v262, 0.01
    %v327 = vmul.f32 %v263, 0.01
    %v328 = vmul.f32 %v264, 0.01
    %v329 = vmul.f32 %v265, 0.01
    %v330 = vmul.f32 %v266, 0.01
    %v331 = vmul.f32 %v267, 0.01
    %v332 = vmul.f32 %v268, 0.01
    %v333 = vmul.f32 %v269, 0.01
    %v334 = vmul.f32 %v270, 0.01
    %v335 = vmul.f32 %v271, 0.01
    %v336 = vmul.f32 %v272, 0.01
    %v337 = vmul.f32 %v273, 0.01
    %v338 = vmul.f32 %v274, 0.01
    %v339 = vmul.f32 %v275, 0.01
    %v340 = vmul.f32 %v276, 0.01
    %v341 = vmul.f32 %v277, 0.01
    %v342 = vmul.f32 %v278, 0.01
    %v343 = vmul.f32 %v279, 0.01
    %v344 = vmul.f32 %v280, 0.01
    %v345 = vmul.f32 %v281, 0.01
    %v346 = vmul.f32 %v282, 0.01
    %v347 = vmul.f32 %v283, 0.01
    %v348 = vmul.f32 %v284, 0.01
    %v349 = vmul.f32 %v285, 0.01
    %v350 = vmul.f32 %v286, 0.01
    %v351 = vmul.f32 %v287, 0.01
    %v352 = vmul.f32 %v288, 0.01
    %v353 = vmul.f32 %v289, 0.01
    %v354 = vmul.f32 %v290, 0.01
    %v355 = vmul.f32 %v291, 0.01
    %v356 = vmul.f32 %v292, 0.01
    %v357 = vmul.f32 %v293, 0.01
    %v358 = vmul.f32 %v294, 0.01
    %v359 = vmul.f32 %v295, 0.01
    %v360 = vmul.f32 %v296, 0.01
    %v361 = vmax.f32 %v233, %v297
    %v362 = vmax.f32 %v234, %v298
    %v363 = vmax.f32 %v235, %v299
    %v364 = vmax.f32 %v236, %v300
    %v365 = vmax.f32 %v237, %v301
    %v366 = vmax.f32 %v238, %v302
    %v367 = vmax.f32 %v239, %v303
    %v368 = vmax.f32 %v240, %v304
    %v369 = vmax.f32 %v241, %v305
    %v370 = vmax.f32 %v242, %v306
    %v371 = vmax.f32 %v243, %v307
    %v372 = vmax.f32 %v244, %v308
    %v373 = vmax.f32 %v245, %v309
    %v374 = vmax.f32 %v246, %v310
    %v375 = vmax.f32 %v247, %v311
    %v376 = vmax.f32 %v248, %v312
    %v377 = vmax.f32 %v249, %v313
    %v378 = vmax.f32 %v250, %v314
    %v379 = vmax.f32 %v251, %v315
    %v380 = vmax.f32 %v252, %v316
    %v381 = vmax.f32 %v253, %v317
    %v382 = vmax.f32 %v254, %v318
    %v383 = vmax.f32 %v255, %v319
    %v384 = vmax.f32 %v256, %v320
    %v385 = vmax.f32 %v257, %v321
    %v386 = vmax.f32 %v258, %v322
    %v387 = vmax.f32 %v259, %v323
    %v388 = vmax.f32 %v260, %v324
    %v389 = vmax.f32 %v261, %v325
    %v390 = vmax.f32 %v262, %v326
    %v391 = vmax.f32 %v263, %v327
    %v392 = vmax.f32 %v264, %v328
    %v393 = vmax.f32 %v265, %v329
    %v394 = vmax.f32 %v266, %v330
    %v395 = vmax.f32 %v267, %v331
    %v396 = vmax.f32 %v268, %v332
    %v397 = vmax.f32 %v269, %v333
    %v398 = vmax.f32 %v270, %v334
    %v399 = vmax.f32 %v271, %v335
    %v400 = vmax.f32 %v272, %v336
    %v401 = vmax.f32 %v273, %v337
    %v402 = vmax.f32 %v274, %v338
    %v403 = vmax.f32 %v275, %v339
    %v404 = vmax.f32 %v276, %v340
    %v405 = vmax.f32 %v277, %v341
    %v406 = vmax.f32 %v278, %v342
    %v407 = vmax.f32 %v279, %v343
    %v408 = vmax.f32 %v280, %v344
    %v409 = vmax.f32 %v281, %v345
    %v410 = vmax.f32 %v282, %v346
    %v411 = vmax.f32 %v283, %v347
    %v412 = vmax.f32 %v284, %v348
    %v413 = vmax.f32 %v285, %v349
    %v414 = vmax.f32 %v286, %v350
    %v415 = vmax.f32 %v287, %v351
    %v416 = vmax.f32 %v288, %v352
    %v417 = vmax.f32 %v289, %v353
    %v418 = vmax.f32 %v290, %v354
    %v419 = vmax.f32 %v291, %v355
    %v420 = vmax.f32 %v292, %v356
    %v421 = vmax.f32 %v293, %v357
    %v422 = vmax.f32 %v294, %v358
    %v423 = vmax.f32 %v295, %v359
    %v424 = vmax.f32 %v296, %v360
    %s425 = scalar_lea.vmem %s2, 320
    %v426 = vld [vmem:[%s425] sm:$0xff]
    %v427 = vld [vmem:[%s425 + $0x8] sm:$0xff]
    %v428 = vld [vmem:[%s425 + $0x10] sm:$0xff]
    %v429 = vld [vmem:[%s425 + $0x18] sm:$0xff]
    %v430 = vld [vmem:[%s425 + $0x20] sm:$0xff]
    %v431 = vld [vmem:[%s425 + $0x28] sm:$0xff]
    %v432 = vld [vmem:[%s425 + $0x30] sm:$0xff]
    %v433 = vld [vmem:[%s425 + $0x38] sm:$0xff]
    %s434 = scalar_lea.vmem %s3, 320
    %v435 = vld [vmem:[%s434] sm:$0xff]
    %v436 = vld [vmem:[%s434 + $0x8] sm:$0xff]
    %v437 = vld [vmem:[%s434 + $0x10] sm:$0xff]
    %v438 = vld [vmem:[%s434 + $0x18] sm:$0xff]
    %v439 = vld [vmem:[%s434 + $0x20] sm:$0xff]
    %v440 = vld [vmem:[%s434 + $0x28] sm:$0xff]
    %v441 = vld [vmem:[%s434 + $0x30] sm:$0xff]
    %v442 = vld [vmem:[%s434 + $0x38] sm:$0xff]
    %444 = vset.pattern.permute.xlu0 0
    %445 = vperm.xlu0 %444, %v435
    %v446 = vpop.permute.xlu0 %445
    %449 = vset.pattern.permute.xlu0 0
    %450 = vperm.xlu0 %449, %v436
    %v451 = vpop.permute.xlu0 %450
    %454 = vset.pattern.permute.xlu0 0
    %455 = vperm.xlu0 %454, %v437
    %v456 = vpop.permute.xlu0 %455
    %459 = vset.pattern.permute.xlu0 0
    %460 = vperm.xlu0 %459, %v438
    %v461 = vpop.permute.xlu0 %460
    %464 = vset.pattern.permute.xlu0 0
    %465 = vperm.xlu0 %464, %v439
    %v466 = vpop.permute.xlu0 %465
    %469 = vset.pattern.permute.xlu0 0
    %470 = vperm.xlu0 %469, %v440
    %v471 = vpop.permute.xlu0 %470
    %474 = vset.pattern.permute.xlu0 0
    %475 = vperm.xlu0 %474, %v441
    %v476 = vpop.permute.xlu0 %475
    %479 = vset.pattern.permute.xlu0 0
    %480 = vperm.xlu0 %479, %v442
    %v481 = vpop.permute.xlu0 %480
    %vm483 = vcmask 523264
    %v485 = vsel %vm483, %v426, 0
    %v488 = vsel %vm483, %v427, 0
    %v491 = vsel %vm483, %v428, 0
    %v494 = vsel %vm483, %v429, 0
    %v497 = vsel %vm483, %v430, 0
    %v500 = vsel %vm483, %v431, 0
    %v503 = vsel %vm483, %v432, 0
    %v506 = vsel %vm483, %v433, 0
    %508 = vmatprep.subr.mxu0 %v362
    %509 = vmatpush1.msra.mxu0 %v361
    %510 = vmatprep.subr.mxu0 %v370
    %511 = vmatpush1.msra.mxu0 %v369
    %512 = vmatprep.subr.mxu0 %v378
    %513 = vmatpush1.msra.mxu0 %v377
    %514 = vmatprep.subr.mxu0 %v386
    %515 = vmatpush1.msra.mxu0 %v385
    %516 = vmatprep.subr.mxu0 %v394
    %517 = vmatpush1.msra.mxu0 %v393
    %518 = vmatprep.subr.mxu0 %v402
    %519 = vmatpush1.msra.mxu0 %v401
    %520 = vmatprep.subr.mxu0 %v410
    %521 = vmatpush1.msra.mxu0 %v409
    %522 = vmatprep.subr.mxu0 %v418
    %523 = vmatpush1.msra.mxu0 %v417
    %524 = vmatprep.subr.mxu0 0.0
    %525 = vmatpush1.msra.mxu0 0.0
    %526 = vmatprep.subr.mxu0 0.0
    %527 = vmatpush1.msra.mxu0 0.0
    %528 = vmatprep.subr.mxu0 0.0
    %529 = vmatpush1.msra.mxu0 0.0
    %530 = vmatprep.subr.mxu0 0.0
    %531 = vmatpush1.msra.mxu0 0.0
    %532 = vmatprep.subr.mxu0 0.0
    %533 = vmatpush1.msra.mxu0 0.0
    %534 = vmatprep.subr.mxu0 0.0
    %535 = vmatpush1.msra.mxu0 0.0
    %536 = vmatprep.subr.mxu0 0.0
    %537 = vmatpush1.msra.mxu0 0.0
    %538 = vmatprep.subr.mxu0 0.0
    %539 = vmatpush1.msra.mxu0 0.0
    %540 = vmatprep.subr.mxu0 0.0
    %541 = vmatpush1.msra.mxu0 0.0
    %542 = vmatprep.subr.mxu0 0.0
    %543 = vmatpush1.msra.mxu0 0.0
    %544 = vmatprep.subr.mxu0 0.0
    %545 = vmatpush1.msra.mxu0 0.0
    %546 = vmatprep.subr.mxu0 0.0
    %547 = vmatpush1.msra.mxu0 0.0
    %548 = vmatprep.subr.mxu0 0.0
    %549 = vmatpush1.msra.mxu0 0.0
    %550 = vmatprep.subr.mxu0 0.0
    %551 = vmatpush1.msra.mxu0 0.0
    %552 = vmatprep.subr.mxu0 0.0
    %553 = vmatpush1.msra.mxu0 0.0
    %554 = vmatprep.subr.mxu0 0.0
    %555 = vmatpush1.msra.mxu0 0.0
    %556 = vmatprep.subr.mxu0 0.0
    %557 = vmatpush1.msra.mxu0 0.0
    %558 = vmatprep.subr.mxu0 0.0
    %559 = vmatpush1.msra.mxu0 0.0
    %560 = vmatprep.subr.mxu0 0.0
    %561 = vmatpush1.msra.mxu0 0.0
    %562 = vmatprep.subr.mxu0 0.0
    %563 = vmatpush1.msra.mxu0 0.0
    %564 = vmatprep.subr.mxu0 0.0
    %565 = vmatpush1.msra.mxu0 0.0
    %566 = vmatprep.subr.mxu0 0.0
    %567 = vmatpush1.msra.mxu0 0.0
    %568 = vmatprep.subr.mxu0 0.0
    %569 = vmatpush1.msra.mxu0 0.0
    %570 = vmatprep.subr.mxu0 0.0
    %571 = vmatpush1.msra.mxu0 0.0
    %572 = vmatprep.mubr.f32.mxu0 0.0
    %573 = vmatmul.mubr.f32.gmra.mrb[0].mxu0 %v485
    %v574 = vpop.f32.mrb[0].mxu0
    %v575 = vadd.f32 %v446, %v574
    %v576 = vpop.f32.mrb[0].mxu0
    %v577 = vadd.f32 %v446, %v576
    %578 = vmatprep.mubr.f32.mxu0 0.0
    %579 = vmatmul.mubr.f32.gmra.mrb[0].mxu0 %v488
    %v580 = vpop.f32.mrb[0].mxu0
    %v581 = vadd.f32 %v451, %v580
    %v582 = vpop.f32.mrb[0].mxu0
    %v583 = vadd.f32 %v451, %v582
    %584 = vmatprep.mubr.f32.mxu0 0.0
    %585 = vmatmul.mubr.f32.gmra.mrb[0].mxu0 %v491
    %v586 = vpop.f32.mrb[0].mxu0
    %v587 = vadd.f32 %v456, %v586
    %v588 = vpop.f32.mrb[0].mxu0
    %v589 = vadd.f32 %v456, %v588
    %590 = vmatprep.mubr.f32.mxu0 0.0
    %591 = vmatmul.mubr.f32.gmra.mrb[0].mxu0 %v494
    %v592 = vpop.f32.mrb[0].mxu0
    %v593 = vadd.f32 %v461, %v592
    %v594 = vpop.f32.mrb[0].mxu0
    %v595 = vadd.f32 %v461, %v594
    %596 = vmatprep.mubr.f32.mxu0 0.0
    %597 = vmatmul.mubr.f32.gmra.mrb[0].mxu0 %v497
    %v598 = vpop.f32.mrb[0].mxu0
    %v599 = vadd.f32 %v466, %v598
    %v600 = vpop.f32.mrb[0].mxu0
    %v601 = vadd.f32 %v466, %v600
    %602 = vmatprep.mubr.f32.mxu0 0.0
    %603 = vmatmul.mubr.f32.gmra.mrb[0].mxu0 %v500
    %v604 = vpop.f32.mrb[0].mxu0
    %v605 = vadd.f32 %v471, %v604
    %v606 = vpop.f32.mrb[0].mxu0
    %v607 = vadd.f32 %v471, %v606
    %608 = vmatprep.mubr.f32.mxu0 0.0
    %609 = vmatmul.mubr.f32.gmra.mrb[0].mxu0 %v503
    %v610 = vpop.f32.mrb[0].mxu0
    %v611 = vadd.f32 %v476, %v610
    %v612 = vpop.f32.mrb[0].mxu0
    %v613 = vadd.f32 %v476, %v612
    %614 = vmatprep.mubr.f32.mxu0 0.0
    %615 = vmatmul.mubr.f32.gmra.mrb[0].mxu0 %v506
    %v616 = vpop.f32.mrb[0].mxu0
    %v617 = vadd.f32 %v481, %v616
    %v618 = vpop.f32.mrb[0].mxu0
    %v619 = vadd.f32 %v481, %v618
    %620 = vdwg.mxu0
    %621 = vmatprep.subr.mxu0 %v364
    %622 = vmatpush1.msra.mxu0 %v363
    %623 = vmatprep.subr.mxu0 %v372
    %624 = vmatpush1.msra.mxu0 %v371
    %625 = vmatprep.subr.mxu0 %v380
    %626 = vmatpush1.msra.mxu0 %v379
    %627 = vmatprep.subr.mxu0 %v388
    %628 = vmatpush1.msra.mxu0 %v387
    %629 = vmatprep.subr.mxu0 %v396
    %630 = vmatpush1.msra.mxu0 %v395
    %631 = vmatprep.subr.mxu0 %v404
    %632 = vmatpush1.msra.mxu0 %v403
    %633 = vmatprep.subr.mxu0 %v412
    %634 = vmatpush1.msra.mxu0 %v411
    %635 = vmatprep.subr.mxu0 %v420
    %636 = vmatpush1.msra.mxu0 %v419
    %637 = vmatprep.subr.mxu0 0.0
    %638 = vmatpush1.msra.mxu0 0.0
    %639 = vmatprep.subr.mxu0 0.0
    %640 = vmatpush1.msra.mxu0 0.0
    %641 = vmatprep.subr.mxu0 0.0
    %642 = vmatpush1.msra.mxu0 0.0
    %643 = vmatprep.subr.mxu0 0.0
    %644 = vmatpush1.msra.mxu0 0.0
    %645 = vmatprep.subr.mxu0 0.0
    %646 = vmatpush1.msra.mxu0 0.0
    %647 = vmatprep.subr.mxu0 0.0
    %648 = vmatpush1.msra.mxu0 0.0
    %649 = vmatprep.subr.mxu0 0.0
    %650 = vmatpush1.msra.mxu0 0.0
    %651 = vmatprep.subr.mxu0 0.0
    %652 = vmatpush1.msra.mxu0 0.0
    %653 = vmatprep.subr.mxu0 0.0
    %654 = vmatpush1.msra.mxu0 0.0
    %655 = vmatprep.subr.mxu0 0.0
    %656 = vmatpush1.msra.mxu0 0.0
    %657 = vmatprep.subr.mxu0 0.0
    %658 = vmatpush1.msra.mxu0 0.0
    %659 = vmatprep.subr.mxu0 0.0
    %660 = vmatpush1.msra.mxu0 0.0
    %661 = vmatprep.subr.mxu0 0.0
    %662 = vmatpush1.msra.mxu0 0.0
    %663 = vmatprep.subr.mxu0 0.0
    %664 = vmatpush1.msra.mxu0 0.0
    %665 = vmatprep.subr.mxu0 0.0
    %666 = vmatpush1.msra.mxu0 0.0
    %667 = vmatprep.subr.mxu0 0.0
    %668 = vmatpush1.msra.mxu0 0.0
    %669 = vmatprep.subr.mxu0 0.0
    %670 = vmatpush1.msra.mxu0 0.0
    %671 = vmatprep.subr.mxu0 0.0
    %672 = vmatpush1.msra.mxu0 0.0
    %673 = vmatprep.subr.mxu0 0.0
    %674 = vmatpush1.msra.mxu0 0.0
    %675 = vmatprep.subr.mxu0 0.0
    %676 = vmatpush1.msra.mxu0 0.0
    %677 = vmatprep.subr.mxu0 0.0
    %678 = vmatpush1.msra.mxu0 0.0
    %679 = vmatprep.subr.mxu0 0.0
    %680 = vmatpush1.msra.mxu0 0.0
    %681 = vmatprep.subr.mxu0 0.0
    %682 = vmatpush1.msra.mxu0 0.0
    %683 = vmatprep.subr.mxu0 0.0
    %684 = vmatpush1.msra.mxu0 0.0
    %685 = vmatprep.mubr.f32.mxu0 0.0
    %686 = vmatmul.mubr.f32.gmra.mrb[0].mxu0 %v485
    %v687 = vpop.f32.mrb[0].mxu0
    %v688 = vadd.f32 %v446, %v687
    %v689 = vpop.f32.mrb[0].mxu0
    %v690 = vadd.f32 %v446, %v689
    %691 = vmatprep.mubr.f32.mxu0 0.0
    %692 = vmatmul.mubr.f32.gmra.mrb[0].mxu0 %v488
    %v693 = vpop.f32.mrb[0].mxu0
    %v694 = vadd.f32 %v451, %v693
    %v695 = vpop.f32.mrb[0].mxu0
    %v696 = vadd.f32 %v451, %v695
    %697 = vmatprep.mubr.f32.mxu0 0.0
    %698 = vmatmul.mubr.f32.gmra.mrb[0].mxu0 %v491
    %v699 = vpop.f32.mrb[0].mxu0
    %v700 = vadd.f32 %v456, %v699
    %v701 = vpop.f32.mrb[0].mxu0
    %v702 = vadd.f32 %v456, %v701
    %703 = vmatprep.mubr.f32.mxu0 0.0
    %704 = vmatmul.mubr.f32.gmra.mrb[0].mxu0 %v494
    %v705 = vpop.f32.mrb[0].mxu0
    %v706 = vadd.f32 %v461, %v705
    %v707 = vpop.f32.mrb[0].mxu0
    %v708 = vadd.f32 %v461, %v707
    %709 = vmatprep.mubr.f32.mxu0 0.0
    %710 = vmatmul.mubr.f32.gmra.mrb[0].mxu0 %v497
    %v711 = vpop.f32.mrb[0].mxu0
    %v712 = vadd.f32 %v466, %v711
    %v713 = vpop.f32.mrb[0].mxu0
    %v714 = vadd.f32 %v466, %v713
    %715 = vmatprep.mubr.f32.mxu0 0.0
    %716 = vmatmul.mubr.f32.gmra.mrb[0].mxu0 %v500
    %v717 = vpop.f32.mrb[0].mxu0
    %v718 = vadd.f32 %v471, %v717
    %v719 = vpop.f32.mrb[0].mxu0
    %v720 = vadd.f32 %v471, %v719
    %721 = vmatprep.mubr.f32.mxu0 0.0
    %722 = vmatmul.mubr.f32.gmra.mrb[0].mxu0 %v503
    %v723 = vpop.f32.mrb[0].mxu0
    %v724 = vadd.f32 %v476, %v723
    %v725 = vpop.f32.mrb[0].mxu0
    %v726 = vadd.f32 %v476, %v725
    %727 = vmatprep.mubr.f32.mxu0 0.0
    %728 = vmatmul.mubr.f32.gmra.mrb[0].mxu0 %v506
    %v729 = vpop.f32.mrb[0].mxu0
    %v730 = vadd.f32 %v481, %v729
    %v731 = vpop.f32.mrb[0].mxu0
    %v732 = vadd.f32 %v481, %v731
    %733 = vdwg.mxu0
    %734 = vmatprep.subr.mxu0 %v366
    %735 = vmatpush1.msra.mxu0 %v365
    %736 = vmatprep.subr.mxu0 %v374
    %737 = vmatpush1.msra.mxu0 %v373
    %738 = vmatprep.subr.mxu0 %v382
    %739 = vmatpush1.msra.mxu0 %v381
    %740 = vmatprep.subr.mxu0 %v390
    %741 = vmatpush1.msra.mxu0 %v389
    %742 = vmatprep.subr.mxu0 %v398
    %743 = vmatpush1.msra.mxu0 %v397
    %744 = vmatprep.subr.mxu0 %v406
    %745 = vmatpush1.msra.mxu0 %v405
    %746 = vmatprep.subr.mxu0 %v414
    %747 = vmatpush1.msra.mxu0 %v413
    %748 = vmatprep.subr.mxu0 %v422
    %749 = vmatpush1.msra.mxu0 %v421
    %750 = vmatprep.subr.mxu0 0.0
    %751 = vmatpush1.msra.mxu0 0.0
    %752 = vmatprep.subr.mxu0 0.0
    %753 = vmatpush1.msra.mxu0 0.0
    %754 = vmatprep.subr.mxu0 0.0
    %755 = vmatpush1.msra.mxu0 0.0
    %756 = vmatprep.subr.mxu0 0.0
    %757 = vmatpush1.msra.mxu0 0.0
    %758 = vmatprep.subr.mxu0 0.0
    %759 = vmatpush1.msra.mxu0 0.0
    %760 = vmatprep.subr.mxu0 0.0
    %761 = vmatpush1.msra.mxu0 0.0
    %762 = vmatprep.subr.mxu0 0.0
    %763 = vmatpush1.msra.mxu0 0.0
    %764 = vmatprep.subr.mxu0 0.0
    %765 = vmatpush1.msra.mxu0 0.0
    %766 = vmatprep.subr.mxu0 0.0
    %767 = vmatpush1.msra.mxu0 0.0
    %768 = vmatprep.subr.mxu0 0.0
    %769 = vmatpush1.msra.mxu0 0.0
    %770 = vmatprep.subr.mxu0 0.0
    %771 = vmatpush1.msra.mxu0 0.0
    %772 = vmatprep.subr.mxu0 0.0
    %773 = vmatpush1.msra.mxu0 0.0
    %774 = vmatprep.subr.mxu0 0.0
    %775 = vmatpush1.msra.mxu0 0.0
    %776 = vmatprep.subr.mxu0 0.0
    %777 = vmatpush1.msra.mxu0 0.0
    %778 = vmatprep.subr.mxu0 0.0
    %779 = vmatpush1.msra.mxu0 0.0
    %780 = vmatprep.subr.mxu0 0.0
    %781 = vmatpush1.msra.mxu0 0.0
    %782 = vmatprep.subr.mxu0 0.0
    %783 = vmatpush1.msra.mxu0 0.0
    %784 = vmatprep.subr.mxu0 0.0
    %785 = vmatpush1.msra.mxu0 0.0
    %786 = vmatprep.subr.mxu0 0.0
    %787 = vmatpush1.msra.mxu0 0.0
    %788 = vmatprep.subr.mxu0 0.0
    %789 = vmatpush1.msra.mxu0 0.0
    %790 = vmatprep.subr.mxu0 0.0
    %791 = vmatpush1.msra.mxu0 0.0
    %792 = vmatprep.subr.mxu0 0.0
    %793 = vmatpush1.msra.mxu0 0.0
    %794 = vmatprep.subr.mxu0 0.0
    %795 = vmatpush1.msra.mxu0 0.0
    %796 = vmatprep.subr.mxu0 0.0
    %797 = vmatpush1.msra.mxu0 0.0
    %798 = vmatprep.mubr.f32.mxu0 0.0
    %799 = vmatmul.mubr.f32.gmra.mrb[0].mxu0 %v485
    %v800 = vpop.f32.mrb[0].mxu0
    %v801 = vadd.f32 %v446, %v800
    %v802 = vpop.f32.mrb[0].mxu0
    %v803 = vadd.f32 %v446, %v802
    %804 = vmatprep.mubr.f32.mxu0 0.0
    %805 = vmatmul.mubr.f32.gmra.mrb[0].mxu0 %v488
    %v806 = vpop.f32.mrb[0].mxu0
    %v807 = vadd.f32 %v451, %v806
    %v808 = vpop.f32.mrb[0].mxu0
    %v809 = vadd.f32 %v451, %v808
    %810 = vmatprep.mubr.f32.mxu0 0.0
    %811 = vmatmul.mubr.f32.gmra.mrb[0].mxu0 %v491
    %v812 = vpop.f32.mrb[0].mxu0
    %v813 = vadd.f32 %v456, %v812
    %v814 = vpop.f32.mrb[0].mxu0
    %v815 = vadd.f32 %v456, %v814
    %816 = vmatprep.mubr.f32.mxu0 0.0
    %817 = vmatmul.mubr.f32.gmra.mrb[0].mxu0 %v494
    %v818 = vpop.f32.mrb[0].mxu0
    %v819 = vadd.f32 %v461, %v818
    %v820 = vpop.f32.mrb[0].mxu0
    %v821 = vadd.f32 %v461, %v820
    %822 = vmatprep.mubr.f32.mxu0 0.0
    %823 = vmatmul.mubr.f32.gmra.mrb[0].mxu0 %v497
    %v824 = vpop.f32.mrb[0].mxu0
    %v825 = vadd.f32 %v466, %v824
    %v826 = vpop.f32.mrb[0].mxu0
    %v827 = vadd.f32 %v466, %v826
    %828 = vmatprep.mubr.f32.mxu0 0.0
    %829 = vmatmul.mubr.f32.gmra.mrb[0].mxu0 %v500
    %v830 = vpop.f32.mrb[0].mxu0
    %v831 = vadd.f32 %v471, %v830
    %v832 = vpop.f32.mrb[0].mxu0
    %v833 = vadd.f32 %v471, %v832
    %834 = vmatprep.mubr.f32.mxu0 0.0
    %835 = vmatmul.mubr.f32.gmra.mrb[0].mxu0 %v503
    %v836 = vpop.f32.mrb[0].mxu0
    %v837 = vadd.f32 %v476, %v836
    %v838 = vpop.f32.mrb[0].mxu0
    %v839 = vadd.f32 %v476, %v838
    %840 = vmatprep.mubr.f32.mxu0 0.0
    %841 = vmatmul.mubr.f32.gmra.mrb[0].mxu0 %v506
    %v842 = vpop.f32.mrb[0].mxu0
    %v843 = vadd.f32 %v481, %v842
    %v844 = vpop.f32.mrb[0].mxu0
    %v845 = vadd.f32 %v481, %v844
    %846 = vdwg.mxu0
    %847 = vmatprep.subr.mxu0 %v368
    %848 = vmatpush1.msra.mxu0 %v367
    %849 = vmatprep.subr.mxu0 %v376
    %850 = vmatpush1.msra.mxu0 %v375
    %851 = vmatprep.subr.mxu0 %v384
    %852 = vmatpush1.msra.mxu0 %v383
    %853 = vmatprep.subr.mxu0 %v392
    %854 = vmatpush1.msra.mxu0 %v391
    %855 = vmatprep.subr.mxu0 %v400
    %856 = vmatpush1.msra.mxu0 %v399
    %857 = vmatprep.subr.mxu0 %v408
    %858 = vmatpush1.msra.mxu0 %v407
    %859 = vmatprep.subr.mxu0 %v416
    %860 = vmatpush1.msra.mxu0 %v415
    %861 = vmatprep.subr.mxu0 %v424
    %862 = vmatpush1.msra.mxu0 %v423
    %863 = vmatprep.subr.mxu0 0.0
    %864 = vmatpush1.msra.mxu0 0.0
    %865 = vmatprep.subr.mxu0 0.0
    %866 = vmatpush1.msra.mxu0 0.0
    %867 = vmatprep.subr.mxu0 0.0
    %868 = vmatpush1.msra.mxu0 0.0
    %869 = vmatprep.subr.mxu0 0.0
    %870 = vmatpush1.msra.mxu0 0.0
    %871 = vmatprep.subr.mxu0 0.0
    %872 = vmatpush1.msra.mxu0 0.0
    %873 = vmatprep.subr.mxu0 0.0
    %874 = vmatpush1.msra.mxu0 0.0
    %875 = vmatprep.subr.mxu0 0.0
    %876 = vmatpush1.msra.mxu0 0.0
    %877 = vmatprep.subr.mxu0 0.0
    %878 = vmatpush1.msra.mxu0 0.0
    %879 = vmatprep.subr.mxu0 0.0
    %880 = vmatpush1.msra.mxu0 0.0
    %881 = vmatprep.subr.mxu0 0.0
    %882 = vmatpush1.msra.mxu0 0.0
    %883 = vmatprep.subr.mxu0 0.0
    %884 = vmatpush1.msra.mxu0 0.0
    %885 = vmatprep.subr.mxu0 0.0
    %886 = vmatpush1.msra.mxu0 0.0
    %887 = vmatprep.subr.mxu0 0.0
    %888 = vmatpush1.msra.mxu0 0.0
    %889 = vmatprep.subr.mxu0 0.0
    %890 = vmatpush1.msra.mxu0 0.0
    %891 = vmatprep.subr.mxu0 0.0
    %892 = vmatpush1.msra.mxu0 0.0
    %893 = vmatprep.subr.mxu0 0.0
    %894 = vmatpush1.msra.mxu0 0.0
    %895 = vmatprep.subr.mxu0 0.0
    %896 = vmatpush1.msra.mxu0 0.0
    %897 = vmatprep.subr.mxu0 0.0
    %898 = vmatpush1.msra.mxu0 0.0
    %899 = vmatprep.subr.mxu0 0.0
    %900 = vmatpush1.msra.mxu0 0.0
    %901 = vmatprep.subr.mxu0 0.0
    %902 = vmatpush1.msra.mxu0 0.0
    %903 = vmatprep.subr.mxu0 0.0
    %904 = vmatpush1.msra.mxu0 0.0
    %905 = vmatprep.subr.mxu0 0.0
    %906 = vmatpush1.msra.mxu0 0.0
    %907 = vmatprep.subr.mxu0 0.0
    %908 = vmatpush1.msra.mxu0 0.0
    %909 = vmatprep.subr.mxu0 0.0
    %910 = vmatpush1.msra.mxu0 0.0
    %911 = vmatprep.mubr.f32.mxu0 0.0
    %912 = vmatmul.mubr.f32.gmra.mrb[0].mxu0 %v485
    %v913 = vpop.f32.mrb[0].mxu0
    %v914 = vadd.f32 %v446, %v913
    %v915 = vpop.f32.mrb[0].mxu0
    %v916 = vadd.f32 %v446, %v915
    %917 = vmatprep.mubr.f32.mxu0 0.0
    %918 = vmatmul.mubr.f32.gmra.mrb[0].mxu0 %v488
    %v919 = vpop.f32.mrb[0].mxu0
    %v920 = vadd.f32 %v451, %v919
    %v921 = vpop.f32.mrb[0].mxu0
    %v922 = vadd.f32 %v451, %v921
    %923 = vmatprep.mubr.f32.mxu0 0.0
    %924 = vmatmul.mubr.f32.gmra.mrb[0].mxu0 %v491
    %v925 = vpop.f32.mrb[0].mxu0
    %v926 = vadd.f32 %v456, %v925
    %v927 = vpop.f32.mrb[0].mxu0
    %v928 = vadd.f32 %v456, %v927
    %929 = vmatprep.mubr.f32.mxu0 0.0
    %930 = vmatmul.mubr.f32.gmra.mrb[0].mxu0 %v494
    %v931 = vpop.f32.mrb[0].mxu0
    %v932 = vadd.f32 %v461, %v931
    %v933 = vpop.f32.mrb[0].mxu0
    %v934 = vadd.f32 %v461, %v933
    %935 = vmatprep.mubr.f32.mxu0 0.0
    %936 = vmatmul.mubr.f32.gmra.mrb[0].mxu0 %v497
    %v937 = vpop.f32.mrb[0].mxu0
    %v938 = vadd.f32 %v466, %v937
    %v939 = vpop.f32.mrb[0].mxu0
    %v940 = vadd.f32 %v466, %v939
    %941 = vmatprep.mubr.f32.mxu0 0.0
    %942 = vmatmul.mubr.f32.gmra.mrb[0].mxu0 %v500
    %v943 = vpop.f32.mrb[0].mxu0
    %v944 = vadd.f32 %v471, %v943
    %v945 = vpop.f32.mrb[0].mxu0
    %v946 = vadd.f32 %v471, %v945
    %947 = vmatprep.mubr.f32.mxu0 0.0
    %948 = vmatmul.mubr.f32.gmra.mrb[0].mxu0 %v503
    %v949 = vpop.f32.mrb[0].mxu0
    %v950 = vadd.f32 %v476, %v949
    %v951 = vpop.f32.mrb[0].mxu0
    %v952 = vadd.f32 %v476, %v951
    %953 = vmatprep.mubr.f32.mxu0 0.0
    %954 = vmatmul.mubr.f32.gmra.mrb[0].mxu0 %v506
    %v955 = vpop.f32.mrb[0].mxu0
    %v956 = vadd.f32 %v481, %v955
    %v957 = vpop.f32.mrb[0].mxu0
    %v958 = vadd.f32 %v481, %v957
    %959 = vdwg.mxu0
    %v960 = vmul.f32 %v575, 0.01
    %v961 = vmul.f32 %v577, 0.01
    %v962 = vmul.f32 %v688, 0.01
    %v963 = vmul.f32 %v690, 0.01
    %v964 = vmul.f32 %v801, 0.01
    %v965 = vmul.f32 %v803, 0.01
    %v966 = vmul.f32 %v914, 0.01
    %v967 = vmul.f32 %v916, 0.01
    %v968 = vmul.f32 %v581, 0.01
    %v969 = vmul.f32 %v583, 0.01
    %v970 = vmul.f32 %v694, 0.01
    %v971 = vmul.f32 %v696, 0.01
    %v972 = vmul.f32 %v807, 0.01
    %v973 = vmul.f32 %v809, 0.01
    %v974 = vmul.f32 %v920, 0.01
    %v975 = vmul.f32 %v922, 0.01
    %v976 = vmul.f32 %v587, 0.01
    %v977 = vmul.f32 %v589, 0.01
    %v978 = vmul.f32 %v700, 0.01
    %v979 = vmul.f32 %v702, 0.01
    %v980 = vmul.f32 %v813, 0.01
    %v981 = vmul.f32 %v815, 0.01
    %v982 = vmul.f32 %v926, 0.01
    %v983 = vmul.f32 %v928, 0.01
    %v984 = vmul.f32 %v593, 0.01
    %v985 = vmul.f32 %v595, 0.01
    %v986 = vmul.f32 %v706, 0.01
    %v987 = vmul.f32 %v708, 0.01
    %v988 = vmul.f32 %v819, 0.01
    %v989 = vmul.f32 %v821, 0.01
    %v990 = vmul.f32 %v932, 0.01
    %v991 = vmul.f32 %v934, 0.01
    %v992 = vmul.f32 %v599, 0.01
    %v993 = vmul.f32 %v601, 0.01
    %v994 = vmul.f32 %v712, 0.01
    %v995 = vmul.f32 %v714, 0.01
    %v996 = vmul.f32 %v825, 0.01
    %v997 = vmul.f32 %v827, 0.01
    %v998 = vmul.f32 %v938, 0.01
    %v999 = vmul.f32 %v940, 0.01
    %v1000 = vmul.f32 %v605, 0.01
    %v1001 = vmul.f32 %v607, 0.01
    %v1002 = vmul.f32 %v718, 0.01
    %v1003 = vmul.f32 %v720, 0.01
    %v1004 = vmul.f32 %v831, 0.01
    %v1005 = vmul.f32 %v833, 0.01
    %v1006 = vmul.f32 %v944, 0.01
    %v1007 = vmul.f32 %v946, 0.01
    %v1008 = vmul.f32 %v611, 0.01
    %v1009 = vmul.f32 %v613, 0.01
    %v1010 = vmul.f32 %v724, 0.01
    %v1011 = vmul.f32 %v726, 0.01
    %v1012 = vmul.f32 %v837, 0.01
    %v1013 = vmul.f32 %v839, 0.01
    %v1014 = vmul.f32 %v950, 0.01
    %v1015 = vmul.f32 %v952, 0.01
    %v1016 = vmul.f32 %v617, 0.01
    %v1017 = vmul.f32 %v619, 0.01
    %v1018 = vmul.f32 %v730, 0.01
    %v1019 = vmul.f32 %v732, 0.01
    %v1020 = vmul.f32 %v843, 0.01
    %v1021 = vmul.f32 %v845, 0.01
    %v1022 = vmul.f32 %v956, 0.01
    %v1023 = vmul.f32 %v958, 0.01
    %v1024 = vmax.f32 %v575, %v960
    %v1025 = vmax.f32 %v577, %v961
    %v1026 = vmax.f32 %v688, %v962
    %v1027 = vmax.f32 %v690, %v963
    %v1028 = vmax.f32 %v801, %v964
    %v1029 = vmax.f32 %v803, %v965
    %v1030 = vmax.f32 %v914, %v966
    %v1031 = vmax.f32 %v916, %v967
    %v1032 = vmax.f32 %v581, %v968
    %v1033 = vmax.f32 %v583, %v969
    %v1034 = vmax.f32 %v694, %v970
    %v1035 = vmax.f32 %v696, %v971
    %v1036 = vmax.f32 %v807, %v972
    %v1037 = vmax.f32 %v809, %v973
    %v1038 = vmax.f32 %v920, %v974
    %v1039 = vmax.f32 %v922, %v975
    %v1040 = vmax.f32 %v587, %v976
    %v1041 = vmax.f32 %v589, %v977
    %v1042 = vmax.f32 %v700, %v978
    %v1043 = vmax.f32 %v702, %v979
    %v1044 = vmax.f32 %v813, %v980
    %v1045 = vmax.f32 %v815, %v981
    %v1046 = vmax.f32 %v926, %v982
    %v1047 = vmax.f32 %v928, %v983
    %v1048 = vmax.f32 %v593, %v984
    %v1049 = vmax.f32 %v595, %v985
    %v1050 = vmax.f32 %v706, %v986
    %v1051 = vmax.f32 %v708, %v987
    %v1052 = vmax.f32 %v819, %v988
    %v1053 = vmax.f32 %v821, %v989
    %v1054 = vmax.f32 %v932, %v990
    %v1055 = vmax.f32 %v934, %v991
    %v1056 = vmax.f32 %v599, %v992
    %v1057 = vmax.f32 %v601, %v993
    %v1058 = vmax.f32 %v712, %v994
    %v1059 = vmax.f32 %v714, %v995
    %v1060 = vmax.f32 %v825, %v996
    %v1061 = vmax.f32 %v827, %v997
    %v1062 = vmax.f32 %v938, %v998
    %v1063 = vmax.f32 %v940, %v999
    %v1064 = vmax.f32 %v605, %v1000
    %v1065 = vmax.f32 %v607, %v1001
    %v1066 = vmax.f32 %v718, %v1002
    %v1067 = vmax.f32 %v720, %v1003
    %v1068 = vmax.f32 %v831, %v1004
    %v1069 = vmax.f32 %v833, %v1005
    %v1070 = vmax.f32 %v944, %v1006
    %v1071 = vmax.f32 %v946, %v1007
    %v1072 = vmax.f32 %v611, %v1008
    %v1073 = vmax.f32 %v613, %v1009
    %v1074 = vmax.f32 %v724, %v1010
    %v1075 = vmax.f32 %v726, %v1011
    %v1076 = vmax.f32 %v837, %v1012
    %v1077 = vmax.f32 %v839, %v1013
    %v1078 = vmax.f32 %v950, %v1014
    %v1079 = vmax.f32 %v952, %v1015
    %v1080 = vmax.f32 %v617, %v1016
    %v1081 = vmax.f32 %v619, %v1017
    %v1082 = vmax.f32 %v730, %v1018
    %v1083 = vmax.f32 %v732, %v1019
    %v1084 = vmax.f32 %v843, %v1020
    %v1085 = vmax.f32 %v845, %v1021
    %v1086 = vmax.f32 %v956, %v1022
    %v1087 = vmax.f32 %v958, %v1023
    %s1088 = scalar_lea.vmem %s4, 10
    %v1089 = vld [vmem:[%s1088] sm:$0x3]
    %s1090 = scalar_lea.vmem %s5, 10
    %v1091 = vld [vmem:[%s1090] sm:$0x3]
    %1093 = vset.pattern.permute.xlu0 0
    %1094 = vperm.xlu0 %1093, %v1091
    %v1095 = vpop.permute.xlu0 %1094
    %v1098 = vsel %vm483, %v1089, 0
    %1100 = vmatprep.subr.mxu0 %v1025
    %1101 = vmatpush1.msra.mxu0 %v1024
    %1102 = vmatprep.subr.mxu0 %v1033
    %1103 = vmatpush1.msra.mxu0 %v1032
    %1104 = vmatprep.subr.mxu0 %v1041
    %1105 = vmatpush1.msra.mxu0 %v1040
    %1106 = vmatprep.subr.mxu0 %v1049
    %1107 = vmatpush1.msra.mxu0 %v1048
    %1108 = vmatprep.subr.mxu0 %v1057
    %1109 = vmatpush1.msra.mxu0 %v1056
    %1110 = vmatprep.subr.mxu0 %v1065
    %1111 = vmatpush1.msra.mxu0 %v1064
    %1112 = vmatprep.subr.mxu0 %v1073
    %1113 = vmatpush1.msra.mxu0 %v1072
    %1114 = vmatprep.subr.mxu0 %v1081
    %1115 = vmatpush1.msra.mxu0 %v1080
    %1116 = vmatprep.subr.mxu0 0.0
    %1117 = vmatpush1.msra.mxu0 0.0
    %1118 = vmatprep.subr.mxu0 0.0
    %1119 = vmatpush1.msra.mxu0 0.0
    %1120 = vmatprep.subr.mxu0 0.0
    %1121 = vmatpush1.msra.mxu0 0.0
    %1122 = vmatprep.subr.mxu0 0.0
    %1123 = vmatpush1.msra.mxu0 0.0
    %1124 = vmatprep.subr.mxu0 0.0
    %1125 = vmatpush1.msra.mxu0 0.0
    %1126 = vmatprep.subr.mxu0 0.0
    %1127 = vmatpush1.msra.mxu0 0.0
    %1128 = vmatprep.subr.mxu0 0.0
    %1129 = vmatpush1.msra.mxu0 0.0
    %1130 = vmatprep.subr.mxu0 0.0
    %1131 = vmatpush1.msra.mxu0 0.0
    %1132 = vmatprep.subr.mxu0 0.0
    %1133 = vmatpush1.msra.mxu0 0.0
    %1134 = vmatprep.subr.mxu0 0.0
    %1135 = vmatpush1.msra.mxu0 0.0
    %1136 = vmatprep.subr.mxu0 0.0
    %1137 = vmatpush1.msra.mxu0 0.0
    %1138 = vmatprep.subr.mxu0 0.0
    %1139 = vmatpush1.msra.mxu0 0.0
    %1140 = vmatprep.subr.mxu0 0.0
    %1141 = vmatpush1.msra.mxu0 0.0
    %1142 = vmatprep.subr.mxu0 0.0
    %1143 = vmatpush1.msra.mxu0 0.0
    %1144 = vmatprep.subr.mxu0 0.0
    %1145 = vmatpush1.msra.mxu0 0.0
    %1146 = vmatprep.subr.mxu0 0.0
    %1147 = vmatpush1.msra.mxu0 0.0
    %1148 = vmatprep.subr.mxu0 0.0
    %1149 = vmatpush1.msra.mxu0 0.0
    %1150 = vmatprep.subr.mxu0 0.0
    %1151 = vmatpush1.msra.mxu0 0.0
    %1152 = vmatprep.subr.mxu0 0.0
    %1153 = vmatpush1.msra.mxu0 0.0
    %1154 = vmatprep.subr.mxu0 0.0
    %1155 = vmatpush1.msra.mxu0 0.0
    %1156 = vmatprep.subr.mxu0 0.0
    %1157 = vmatpush1.msra.mxu0 0.0
    %1158 = vmatprep.subr.mxu0 0.0
    %1159 = vmatpush1.msra.mxu0 0.0
    %1160 = vmatprep.subr.mxu0 0.0
    %1161 = vmatpush1.msra.mxu0 0.0
    %1162 = vmatprep.subr.mxu0 0.0
    %1163 = vmatpush1.msra.mxu0 0.0
    %1164 = vmatprep.mubr.f32.mxu0 0.0
    %1165 = vmatmul.mubr.f32.gmra.mrb[0].mxu0 %v1098
    %v1166 = vpop.f32.mrb[0].mxu0
    %v1167 = vadd.f32 %v1095, %v1166
    %v1168 = vpop.f32.mrb[0].mxu0
    %v1169 = vadd.f32 %v1095, %v1168
    %1170 = vdwg.mxu0
    %1171 = vmatprep.subr.mxu0 %v1027
    %1172 = vmatpush1.msra.mxu0 %v1026
    %1173 = vmatprep.subr.mxu0 %v1035
    %1174 = vmatpush1.msra.mxu0 %v1034
    %1175 = vmatprep.subr.mxu0 %v1043
    %1176 = vmatpush1.msra.mxu0 %v1042
    %1177 = vmatprep.subr.mxu0 %v1051
    %1178 = vmatpush1.msra.mxu0 %v1050
    %1179 = vmatprep.subr.mxu0 %v1059
    %1180 = vmatpush1.msra.mxu0 %v1058
    %1181 = vmatprep.subr.mxu0 %v1067
    %1182 = vmatpush1.msra.mxu0 %v1066
    %1183 = vmatprep.subr.mxu0 %v1075
    %1184 = vmatpush1.msra.mxu0 %v1074
    %1185 = vmatprep.subr.mxu0 %v1083
    %1186 = vmatpush1.msra.mxu0 %v1082
    %1187 = vmatprep.subr.mxu0 0.0
    %1188 = vmatpush1.msra.mxu0 0.0
    %1189 = vmatprep.subr.mxu0 0.0
    %1190 = vmatpush1.msra.mxu0 0.0
    %1191 = vmatprep.subr.mxu0 0.0
    %1192 = vmatpush1.msra.mxu0 0.0
    %1193 = vmatprep.subr.mxu0 0.0
    %1194 = vmatpush1.msra.mxu0 0.0
    %1195 = vmatprep.subr.mxu0 0.0
    %1196 = vmatpush1.msra.mxu0 0.0
    %1197 = vmatprep.subr.mxu0 0.0
    %1198 = vmatpush1.msra.mxu0 0.0
    %1199 = vmatprep.subr.mxu0 0.0
    %1200 = vmatpush1.msra.mxu0 0.0
    %1201 = vmatprep.subr.mxu0 0.0
    %1202 = vmatpush1.msra.mxu0 0.0
    %1203 = vmatprep.subr.mxu0 0.0
    %1204 = vmatpush1.msra.mxu0 0.0
    %1205 = vmatprep.subr.mxu0 0.0
    %1206 = vmatpush1.msra.mxu0 0.0
    %1207 = vmatprep.subr.mxu0 0.0
    %1208 = vmatpush1.msra.mxu0 0.0
    %1209 = vmatprep.subr.mxu0 0.0
    %1210 = vmatpush1.msra.mxu0 0.0
    %1211 = vmatprep.subr.mxu0 0.0
    %1212 = vmatpush1.msra.mxu0 0.0
    %1213 = vmatprep.subr.mxu0 0.0
    %1214 = vmatpush1.msra.mxu0 0.0
    %1215 = vmatprep.subr.mxu0 0.0
    %1216 = vmatpush1.msra.mxu0 0.0
    %1217 = vmatprep.subr.mxu0 0.0
    %1218 = vmatpush1.msra.mxu0 0.0
    %1219 = vmatprep.subr.mxu0 0.0
    %1220 = vmatpush1.msra.mxu0 0.0
    %1221 = vmatprep.subr.mxu0 0.0
    %1222 = vmatpush1.msra.mxu0 0.0
    %1223 = vmatprep.subr.mxu0 0.0
    %1224 = vmatpush1.msra.mxu0 0.0
    %1225 = vmatprep.subr.mxu0 0.0
    %1226 = vmatpush1.msra.mxu0 0.0
    %1227 = vmatprep.subr.mxu0 0.0
    %1228 = vmatpush1.msra.mxu0 0.0
    %1229 = vmatprep.subr.mxu0 0.0
    %1230 = vmatpush1.msra.mxu0 0.0
    %1231 = vmatprep.subr.mxu0 0.0
    %1232 = vmatpush1.msra.mxu0 0.0
    %1233 = vmatprep.subr.mxu0 0.0
    %1234 = vmatpush1.msra.mxu0 0.0
    %1235 = vmatprep.mubr.f32.mxu0 0.0
    %1236 = vmatmul.mubr.f32.gmra.mrb[0].mxu0 %v1098
    %v1237 = vpop.f32.mrb[0].mxu0
    %v1238 = vadd.f32 %v1095, %v1237
    %v1239 = vpop.f32.mrb[0].mxu0
    %v1240 = vadd.f32 %v1095, %v1239
    %1241 = vdwg.mxu0
    %1242 = vmatprep.subr.mxu0 %v1029
    %1243 = vmatpush1.msra.mxu0 %v1028
    %1244 = vmatprep.subr.mxu0 %v1037
    %1245 = vmatpush1.msra.mxu0 %v1036
    %1246 = vmatprep.subr.mxu0 %v1045
    %1247 = vmatpush1.msra.mxu0 %v1044
    %1248 = vmatprep.subr.mxu0 %v1053
    %1249 = vmatpush1.msra.mxu0 %v1052
    %1250 = vmatprep.subr.mxu0 %v1061
    %1251 = vmatpush1.msra.mxu0 %v1060
    %1252 = vmatprep.subr.mxu0 %v1069
    %1253 = vmatpush1.msra.mxu0 %v1068
    %1254 = vmatprep.subr.mxu0 %v1077
    %1255 = vmatpush1.msra.mxu0 %v1076
    %1256 = vmatprep.subr.mxu0 %v1085
    %1257 = vmatpush1.msra.mxu0 %v1084
    %1258 = vmatprep.subr.mxu0 0.0
    %1259 = vmatpush1.msra.mxu0 0.0
    %1260 = vmatprep.subr.mxu0 0.0
    %1261 = vmatpush1.msra.mxu0 0.0
    %1262 = vmatprep.subr.mxu0 0.0
    %1263 = vmatpush1.msra.mxu0 0.0
    %1264 = vmatprep.subr.mxu0 0.0
    %1265 = vmatpush1.msra.mxu0 0.0
    %1266 = vmatprep.subr.mxu0 0.0
    %1267 = vmatpush1.msra.mxu0 0.0
    %1268 = vmatprep.subr.mxu0 0.0
    %1269 = vmatpush1.msra.mxu0 0.0
    %1270 = vmatprep.subr.mxu0 0.0
    %1271 = vmatpush1.msra.mxu0 0.0
    %1272 = vmatprep.subr.mxu0 0.0
    %1273 = vmatpush1.msra.mxu0 0.0
    %1274 = vmatprep.subr.mxu0 0.0
    %1275 = vmatpush1.msra.mxu0 0.0
    %1276 = vmatprep.subr.mxu0 0.0
    %1277 = vmatpush1.msra.mxu0 0.0
    %1278 = vmatprep.subr.mxu0 0.0
    %1279 = vmatpush1.msra.mxu0 0.0
    %1280 = vmatprep.subr.mxu0 0.0
    %1281 = vmatpush1.msra.mxu0 0.0
    %1282 = vmatprep.subr.mxu0 0.0
    %1283 = vmatpush1.msra.mxu0 0.0
    %1284 = vmatprep.subr.mxu0 0.0
    %1285 = vmatpush1.msra.mxu0 0.0
    %1286 = vmatprep.subr.mxu0 0.0
    %1287 = vmatpush1.msra.mxu0 0.0
    %1288 = vmatprep.subr.mxu0 0.0
    %1289 = vmatpush1.msra.mxu0 0.0
    %1290 = vmatprep.subr.mxu0 0.0
    %1291 = vmatpush1.msra.mxu0 0.0
    %1292 = vmatprep.subr.mxu0 0.0
    %1293 = vmatpush1.msra.mxu0 0.0
    %1294 = vmatprep.subr.mxu0 0.0
    %1295 = vmatpush1.msra.mxu0 0.0
    %1296 = vmatprep.subr.mxu0 0.0
    %1297 = vmatpush1.msra.mxu0 0.0
    %1298 = vmatprep.subr.mxu0 0.0
    %1299 = vmatpush1.msra.mxu0 0.0
    %1300 = vmatprep.subr.mxu0 0.0
    %1301 = vmatpush1.msra.mxu0 0.0
    %1302 = vmatprep.subr.mxu0 0.0
    %1303 = vmatpush1.msra.mxu0 0.0
    %1304 = vmatprep.subr.mxu0 0.0
    %1305 = vmatpush1.msra.mxu0 0.0
    %1306 = vmatprep.mubr.f32.mxu0 0.0
    %1307 = vmatmul.mubr.f32.gmra.mrb[0].mxu0 %v1098
    %v1308 = vpop.f32.mrb[0].mxu0
    %v1309 = vadd.f32 %v1095, %v1308
    %v1310 = vpop.f32.mrb[0].mxu0
    %v1311 = vadd.f32 %v1095, %v1310
    %1312 = vdwg.mxu0
    %1313 = vmatprep.subr.mxu0 %v1031
    %1314 = vmatpush1.msra.mxu0 %v1030
    %1315 = vmatprep.subr.mxu0 %v1039
    %1316 = vmatpush1.msra.mxu0 %v1038
    %1317 = vmatprep.subr.mxu0 %v1047
    %1318 = vmatpush1.msra.mxu0 %v1046
    %1319 = vmatprep.subr.mxu0 %v1055
    %1320 = vmatpush1.msra.mxu0 %v1054
    %1321 = vmatprep.subr.mxu0 %v1063
    %1322 = vmatpush1.msra.mxu0 %v1062
    %1323 = vmatprep.subr.mxu0 %v1071
    %1324 = vmatpush1.msra.mxu0 %v1070
    %1325 = vmatprep.subr.mxu0 %v1079
    %1326 = vmatpush1.msra.mxu0 %v1078
    %1327 = vmatprep.subr.mxu0 %v1087
    %1328 = vmatpush1.msra.mxu0 %v1086
    %1329 = vmatprep.subr.mxu0 0.0
    %1330 = vmatpush1.msra.mxu0 0.0
    %1331 = vmatprep.subr.mxu0 0.0
    %1332 = vmatpush1.msra.mxu0 0.0
    %1333 = vmatprep.subr.mxu0 0.0
    %1334 = vmatpush1.msra.mxu0 0.0
    %1335 = vmatprep.subr.mxu0 0.0
    %1336 = vmatpush1.msra.mxu0 0.0
    %1337 = vmatprep.subr.mxu0 0.0
    %1338 = vmatpush1.msra.mxu0 0.0
    %1339 = vmatprep.subr.mxu0 0.0
    %1340 = vmatpush1.msra.mxu0 0.0
    %1341 = vmatprep.subr.mxu0 0.0
    %1342 = vmatpush1.msra.mxu0 0.0
    %1343 = vmatprep.subr.mxu0 0.0
    %1344 = vmatpush1.msra.mxu0 0.0
    %1345 = vmatprep.subr.mxu0 0.0
    %1346 = vmatpush1.msra.mxu0 0.0
    %1347 = vmatprep.subr.mxu0 0.0
    %1348 = vmatpush1.msra.mxu0 0.0
    %1349 = vmatprep.subr.mxu0 0.0
    %1350 = vmatpush1.msra.mxu0 0.0
    %1351 = vmatprep.subr.mxu0 0.0
    %1352 = vmatpush1.msra.mxu0 0.0
    %1353 = vmatprep.subr.mxu0 0.0
    %1354 = vmatpush1.msra.mxu0 0.0
    %1355 = vmatprep.subr.mxu0 0.0
    %1356 = vmatpush1.msra.mxu0 0.0
    %1357 = vmatprep.subr.mxu0 0.0
    %1358 = vmatpush1.msra.mxu0 0.0
    %1359 = vmatprep.subr.mxu0 0.0
    %1360 = vmatpush1.msra.mxu0 0.0
    %1361 = vmatprep.subr.mxu0 0.0
    %1362 = vmatpush1.msra.mxu0 0.0
    %1363 = vmatprep.subr.mxu0 0.0
    %1364 = vmatpush1.msra.mxu0 0.0
    %1365 = vmatprep.subr.mxu0 0.0
    %1366 = vmatpush1.msra.mxu0 0.0
    %1367 = vmatprep.subr.mxu0 0.0
    %1368 = vmatpush1.msra.mxu0 0.0
    %1369 = vmatprep.subr.mxu0 0.0
    %1370 = vmatpush1.msra.mxu0 0.0
    %1371 = vmatprep.subr.mxu0 0.0
    %1372 = vmatpush1.msra.mxu0 0.0
    %1373 = vmatprep.subr.mxu0 0.0
    %1374 = vmatpush1.msra.mxu0 0.0
    %1375 = vmatprep.subr.mxu0 0.0
    %1376 = vmatpush1.msra.mxu0 0.0
    %1377 = vmatprep.mubr.f32.mxu0 0.0
    %1378 = vmatmul.mubr.f32.gmra.mrb[0].mxu0 %v1098
    %v1379 = vpop.f32.mrb[0].mxu0
    %v1380 = vadd.f32 %v1095, %v1379
    %v1381 = vpop.f32.mrb[0].mxu0
    %v1382 = vadd.f32 %v1095, %v1381
    %1383 = vdwg.mxu0
    %v1384 = vtanh.pop %v1167
    %v1385 = vtanh.pop %v1169
    %v1386 = vtanh.pop %v1238
    %v1387 = vtanh.pop %v1240
    %v1388 = vtanh.pop %v1309
    %v1389 = vtanh.pop %v1311
    %v1390 = vtanh.pop %v1380
    %v1391 = vtanh.pop %v1382
    %v1400 = vcombine.low %v1167, %v1169
    %v1401 = vcombine.low %v1238, %v1240
    %v1402 = vcombine.low %v1309, %v1311
    %v1403 = vcombine.low %v1380, %v1382
    %v1405 = vunpack.c.l.s4 1966171168
    %v1406 = vunpack.c.0.s8 %v1405
    %v1407 = vlaneseq
    %v1408 = vshrl.u32 %v1407, 7
    %v1409 = vsub.s32 %v1406, %v1408
    %v1410 = vrot.slane %v1400, %v1409
    %v1412 = vunpack.c.l.s4 1966171168
    %v1413 = vunpack.c.0.s8 %v1412
    %v1414 = vlaneseq
    %v1415 = vshrl.u32 %v1414, 7
    %v1416 = vsub.s32 %v1413, %v1415
    %v1417 = vrot.slane %v1401, %v1416
    %v1419 = vunpack.c.l.s4 1966171168
    %v1420 = vunpack.c.0.s8 %v1419
    %v1421 = vlaneseq
    %v1422 = vshrl.u32 %v1421, 7
    %v1423 = vsub.s32 %v1420, %v1422
    %v1424 = vrot.slane %v1402, %v1423
    %v1426 = vunpack.c.l.s4 1966171168
    %v1427 = vunpack.c.0.s8 %v1426
    %v1428 = vlaneseq
    %v1429 = vshrl.u32 %v1428, 7
    %v1430 = vsub.s32 %v1427, %v1429
    %v1431 = vrot.slane %v1403, %v1430
    %v1432 = vcombine.high %v1410, %v1417
    %v1433 = vcombine.high %v1424, %v1431
    %v1435 = vunpack.c.l.s4 1966171168
    %v1436 = vunpack.c.0.s8 %v1435
    %v1437 = vlaneseq
    %v1438 = vshrl.u32 %v1437, 7
    %v1439 = vsub.s32 %v1436, %v1438
    %v1440 = vrot.slane %v1432, %v1439
    %v1442 = vunpack.c.l.s4 1966171168
    %v1443 = vunpack.c.0.s8 %v1442
    %v1444 = vlaneseq
    %v1445 = vshrl.u32 %v1444, 7
    %v1446 = vsub.s32 %v1443, %v1445
    %v1447 = vrot.slane %v1433, %v1446
    %v1448 = vcombine.low %v1440, %v1447
    %v1450 = vsub.f32 %v29, %v1448
    %v1451 = vsub.f32 0.0, %v1384
    %v1452 = vsub.f32 0.0, %v1385
    %v1453 = vsub.f32 0.0, %v1386
    %v1454 = vsub.f32 0.0, %v1387
    %v1455 = vsub.f32 0.0, %v1388
    %v1456 = vsub.f32 0.0, %v1389
    %v1457 = vsub.f32 0.0, %v1390
    %v1458 = vsub.f32 0.0, %v1391
    %v1459 = vmul.f32 %v1451, 1.442695
    %v1460 = vpow.pop %v1459
    %v1461 = vmul.f32 %v1452, 1.442695
    %v1462 = vpow.pop %v1461
    %v1463 = vmul.f32 %v1453, 1.442695
    %v1464 = vpow.pop %v1463
    %v1465 = vmul.f32 %v1454, 1.442695
    %v1466 = vpow.pop %v1465
    %v1467 = vmul.f32 %v1455, 1.442695
    %v1468 = vpow.pop %v1467
    %v1469 = vmul.f32 %v1456, 1.442695
    %v1470 = vpow.pop %v1469
    %v1471 = vmul.f32 %v1457, 1.442695
    %v1472 = vpow.pop %v1471
    %v1473 = vmul.f32 %v1458, 1.442695
    %v1474 = vpow.pop %v1473
    %v1483 = vcombine.low %v1460, %v1462
    %v1484 = vcombine.low %v1464, %v1466
    %v1485 = vcombine.low %v1468, %v1470
    %v1486 = vcombine.low %v1472, %v1474
    %v1488 = vunpack.c.l.s4 1966171168
    %v1489 = vunpack.c.0.s8 %v1488
    %v1490 = vlaneseq
    %v1491 = vshrl.u32 %v1490, 7
    %v1492 = vsub.s32 %v1489, %v1491
    %v1493 = vrot.slane %v1483, %v1492
    %v1495 = vunpack.c.l.s4 1966171168
    %v1496 = vunpack.c.0.s8 %v1495
    %v1497 = vlaneseq
    %v1498 = vshrl.u32 %v1497, 7
    %v1499 = vsub.s32 %v1496, %v1498
    %v1500 = vrot.slane %v1484, %v1499
    %v1502 = vunpack.c.l.s4 1966171168
    %v1503 = vunpack.c.0.s8 %v1502
    %v1504 = vlaneseq
    %v1505 = vshrl.u32 %v1504, 7
    %v1506 = vsub.s32 %v1503, %v1505
    %v1507 = vrot.slane %v1485, %v1506
    %v1509 = vunpack.c.l.s4 1966171168
    %v1510 = vunpack.c.0.s8 %v1509
    %v1511 = vlaneseq
    %v1512 = vshrl.u32 %v1511, 7
    %v1513 = vsub.s32 %v1510, %v1512
    %v1514 = vrot.slane %v1486, %v1513
    %v1515 = vcombine.low %v1493, %v1500
    %v1516 = vcombine.low %v1507, %v1514
    %v1518 = vunpack.c.l.s4 1966171168
    %v1519 = vunpack.c.0.s8 %v1518
    %v1520 = vlaneseq
    %v1521 = vshrl.u32 %v1520, 7
    %v1522 = vsub.s32 %v1519, %v1521
    %v1523 = vrot.slane %v1515, %v1522
    %v1525 = vunpack.c.l.s4 1966171168
    %v1526 = vunpack.c.0.s8 %v1525
    %v1527 = vlaneseq
    %v1528 = vshrl.u32 %v1527, 7
    %v1529 = vsub.s32 %v1526, %v1528
    %v1530 = vrot.slane %v1516, %v1529
    %v1531 = vcombine.low %v1523, %v1530
    %v1533 = vmul.f32 %v1450, %v1531
    %s1534 = scalar_lea.vmem %s0, 256
    %v1535 = vld [vmem:[%s1534] sm:$0xff]
    %v1536 = vld [vmem:[%s1534 + $0x8] sm:$0xff]
    %v1537 = vld [vmem:[%s1534 + $0x10] sm:$0xff]
    %v1538 = vld [vmem:[%s1534 + $0x18] sm:$0xff]
    %v1539 = vld [vmem:[%s1534 + $0x20] sm:$0xff]
    %v1540 = vld [vmem:[%s1534 + $0x28] sm:$0xff]
    %v1541 = vld [vmem:[%s1534 + $0x30] sm:$0xff]
    %v1542 = vld [vmem:[%s1534 + $0x38] sm:$0xff]
    %1544 = vset.pattern.permute.xlu0 0
    %1545 = vperm.xlu0 %1544, %v1535
    %v1546 = vpop.permute.xlu0 %1545
    %1549 = vset.pattern.permute.xlu0 0
    %1550 = vperm.xlu0 %1549, %v1536
    %v1551 = vpop.permute.xlu0 %1550
    %1554 = vset.pattern.permute.xlu0 0
    %1555 = vperm.xlu0 %1554, %v1537
    %v1556 = vpop.permute.xlu0 %1555
    %1559 = vset.pattern.permute.xlu0 0
    %1560 = vperm.xlu0 %1559, %v1538
    %v1561 = vpop.permute.xlu0 %1560
    %1564 = vset.pattern.permute.xlu0 0
    %1565 = vperm.xlu0 %1564, %v1539
    %v1566 = vpop.permute.xlu0 %1565
    %1569 = vset.pattern.permute.xlu0 0
    %1570 = vperm.xlu0 %1569, %v1540
    %v1571 = vpop.permute.xlu0 %1570
    %1574 = vset.pattern.permute.xlu0 0
    %1575 = vperm.xlu0 %1574, %v1541
    %v1576 = vpop.permute.xlu0 %1575
    %1579 = vset.pattern.permute.xlu0 0
    %1580 = vperm.xlu0 %1579, %v1542
    %v1581 = vpop.permute.xlu0 %1580
    %v1584 = vlaneseq
    %v1585 = vshrl.u32 %v1584, 7
    %v1586 = vsub.s32 0, %v1585
    %v1587 = vrot.slane %v1533, %v1586
    %v1588 = vlaneseq
    %v1589 = vshrl.u32 %v1588, 7
    %v1590 = vsub.s32 1, %v1589
    %v1591 = vrot.slane %v1533, %v1590
    %v1592 = vlaneseq
    %v1593 = vshrl.u32 %v1592, 7
    %v1594 = vsub.s32 2, %v1593
    %v1595 = vrot.slane %v1533, %v1594
    %v1596 = vlaneseq
    %v1597 = vshrl.u32 %v1596, 7
    %v1598 = vsub.s32 3, %v1597
    %v1599 = vrot.slane %v1533, %v1598
    %v1600 = vlaneseq
    %v1601 = vshrl.u32 %v1600, 7
    %v1602 = vsub.s32 4, %v1601
    %v1603 = vrot.slane %v1533, %v1602
    %v1604 = vlaneseq
    %v1605 = vshrl.u32 %v1604, 7
    %v1606 = vsub.s32 5, %v1605
    %v1607 = vrot.slane %v1533, %v1606
    %v1608 = vlaneseq
    %v1609 = vshrl.u32 %v1608, 7
    %v1610 = vsub.s32 6, %v1609
    %v1611 = vrot.slane %v1533, %v1610
    %v1612 = vlaneseq
    %v1613 = vshrl.u32 %v1612, 7
    %v1614 = vsub.s32 7, %v1613
    %v1615 = vrot.slane %v1533, %v1614
    %v1624 = vmul.f32 %v1546, %v1587
    %v1625 = vmul.f32 %v1546, %v1591
    %v1626 = vmul.f32 %v1546, %v1595
    %v1627 = vmul.f32 %v1546, %v1599
    %v1628 = vmul.f32 %v1546, %v1603
    %v1629 = vmul.f32 %v1546, %v1607
    %v1630 = vmul.f32 %v1546, %v1611
    %v1631 = vmul.f32 %v1546, %v1615
    %v1632 = vmul.f32 %v1551, %v1587
    %v1633 = vmul.f32 %v1551, %v1591
    %v1634 = vmul.f32 %v1551, %v1595
    %v1635 = vmul.f32 %v1551, %v1599
    %v1636 = vmul.f32 %v1551, %v1603
    %v1637 = vmul.f32 %v1551, %v1607
    %v1638 = vmul.f32 %v1551, %v1611
    %v1639 = vmul.f32 %v1551, %v1615
    %v1640 = vmul.f32 %v1556, %v1587
    %v1641 = vmul.f32 %v1556, %v1591
    %v1642 = vmul.f32 %v1556, %v1595
    %v1643 = vmul.f32 %v1556, %v1599
    %v1644 = vmul.f32 %v1556, %v1603
    %v1645 = vmul.f32 %v1556, %v1607
    %v1646 = vmul.f32 %v1556, %v1611
    %v1647 = vmul.f32 %v1556, %v1615
    %v1648 = vmul.f32 %v1561, %v1587
    %v1649 = vmul.f32 %v1561, %v1591
    %v1650 = vmul.f32 %v1561, %v1595
    %v1651 = vmul.f32 %v1561, %v1599
    %v1652 = vmul.f32 %v1561, %v1603
    %v1653 = vmul.f32 %v1561, %v1607
    %v1654 = vmul.f32 %v1561, %v1611
    %v1655 = vmul.f32 %v1561, %v1615
    %v1656 = vmul.f32 %v1566, %v1587
    %v1657 = vmul.f32 %v1566, %v1591
    %v1658 = vmul.f32 %v1566, %v1595
    %v1659 = vmul.f32 %v1566, %v1599
    %v1660 = vmul.f32 %v1566, %v1603
    %v1661 = vmul.f32 %v1566, %v1607
    %v1662 = vmul.f32 %v1566, %v1611
    %v1663 = vmul.f32 %v1566, %v1615
    %v1664 = vmul.f32 %v1571, %v1587
    %v1665 = vmul.f32 %v1571, %v1591
    %v1666 = vmul.f32 %v1571, %v1595
    %v1667 = vmul.f32 %v1571, %v1599
    %v1668 = vmul.f32 %v1571, %v1603
    %v1669 = vmul.f32 %v1571, %v1607
    %v1670 = vmul.f32 %v1571, %v1611
    %v1671 = vmul.f32 %v1571, %v1615
    %v1672 = vmul.f32 %v1576, %v1587
    %v1673 = vmul.f32 %v1576, %v1591
    %v1674 = vmul.f32 %v1576, %v1595
    %v1675 = vmul.f32 %v1576, %v1599
    %v1676 = vmul.f32 %v1576, %v1603
    %v1677 = vmul.f32 %v1576, %v1607
    %v1678 = vmul.f32 %v1576, %v1611
    %v1679 = vmul.f32 %v1576, %v1615
    %v1680 = vmul.f32 %v1581, %v1587
    %v1681 = vmul.f32 %v1581, %v1591
    %v1682 = vmul.f32 %v1581, %v1595
    %v1683 = vmul.f32 %v1581, %v1599
    %v1684 = vmul.f32 %v1581, %v1603
    %v1685 = vmul.f32 %v1581, %v1607
    %v1686 = vmul.f32 %v1581, %v1611
    %v1687 = vmul.f32 %v1581, %v1615
    %s1688 = scalar_lea.vmem %s1, 256
    %v1689 = vld [vmem:[%s1688] sm:$0xff]
    %v1690 = vld [vmem:[%s1688 + $0x8] sm:$0xff]
    %v1691 = vld [vmem:[%s1688 + $0x10] sm:$0xff]
    %v1692 = vld [vmem:[%s1688 + $0x18] sm:$0xff]
    %v1693 = vld [vmem:[%s1688 + $0x20] sm:$0xff]
    %v1694 = vld [vmem:[%s1688 + $0x28] sm:$0xff]
    %v1695 = vld [vmem:[%s1688 + $0x30] sm:$0xff]
    %v1696 = vld [vmem:[%s1688 + $0x38] sm:$0xff]
    %1698 = vset.pattern.permute.xlu0 0
    %1699 = vperm.xlu0 %1698, %v1689
    %v1700 = vpop.permute.xlu0 %1699
    %1703 = vset.pattern.permute.xlu0 0
    %1704 = vperm.xlu0 %1703, %v1690
    %v1705 = vpop.permute.xlu0 %1704
    %1708 = vset.pattern.permute.xlu0 0
    %1709 = vperm.xlu0 %1708, %v1691
    %v1710 = vpop.permute.xlu0 %1709
    %1713 = vset.pattern.permute.xlu0 0
    %1714 = vperm.xlu0 %1713, %v1692
    %v1715 = vpop.permute.xlu0 %1714
    %1718 = vset.pattern.permute.xlu0 0
    %1719 = vperm.xlu0 %1718, %v1693
    %v1720 = vpop.permute.xlu0 %1719
    %1723 = vset.pattern.permute.xlu0 0
    %1724 = vperm.xlu0 %1723, %v1694
    %v1725 = vpop.permute.xlu0 %1724
    %1728 = vset.pattern.permute.xlu0 0
    %1729 = vperm.xlu0 %1728, %v1695
    %v1730 = vpop.permute.xlu0 %1729
    %1733 = vset.pattern.permute.xlu0 0
    %1734 = vperm.xlu0 %1733, %v1696
    %v1735 = vpop.permute.xlu0 %1734
    %v1737 = vadd.f32 %v1624, %v1700
    %v1738 = vadd.f32 %v1625, %v1700
    %v1739 = vadd.f32 %v1626, %v1700
    %v1740 = vadd.f32 %v1627, %v1700
    %v1741 = vadd.f32 %v1628, %v1700
    %v1742 = vadd.f32 %v1629, %v1700
    %v1743 = vadd.f32 %v1630, %v1700
    %v1744 = vadd.f32 %v1631, %v1700
    %v1745 = vadd.f32 %v1632, %v1705
    %v1746 = vadd.f32 %v1633, %v1705
    %v1747 = vadd.f32 %v1634, %v1705
    %v1748 = vadd.f32 %v1635, %v1705
    %v1749 = vadd.f32 %v1636, %v1705
    %v1750 = vadd.f32 %v1637, %v1705
    %v1751 = vadd.f32 %v1638, %v1705
    %v1752 = vadd.f32 %v1639, %v1705
    %v1753 = vadd.f32 %v1640, %v1710
    %v1754 = vadd.f32 %v1641, %v1710
    %v1755 = vadd.f32 %v1642, %v1710
    %v1756 = vadd.f32 %v1643, %v1710
    %v1757 = vadd.f32 %v1644, %v1710
    %v1758 = vadd.f32 %v1645, %v1710
    %v1759 = vadd.f32 %v1646, %v1710
    %v1760 = vadd.f32 %v1647, %v1710
    %v1761 = vadd.f32 %v1648, %v1715
    %v1762 = vadd.f32 %v1649, %v1715
    %v1763 = vadd.f32 %v1650, %v1715
    %v1764 = vadd.f32 %v1651, %v1715
    %v1765 = vadd.f32 %v1652, %v1715
    %v1766 = vadd.f32 %v1653, %v1715
    %v1767 = vadd.f32 %v1654, %v1715
    %v1768 = vadd.f32 %v1655, %v1715
    %v1769 = vadd.f32 %v1656, %v1720
    %v1770 = vadd.f32 %v1657, %v1720
    %v1771 = vadd.f32 %v1658, %v1720
    %v1772 = vadd.f32 %v1659, %v1720
    %v1773 = vadd.f32 %v1660, %v1720
    %v1774 = vadd.f32 %v1661, %v1720
    %v1775 = vadd.f32 %v1662, %v1720
    %v1776 = vadd.f32 %v1663, %v1720
    %v1777 = vadd.f32 %v1664, %v1725
    %v1778 = vadd.f32 %v1665, %v1725
    %v1779 = vadd.f32 %v1666, %v1725
    %v1780 = vadd.f32 %v1667, %v1725
    %v1781 = vadd.f32 %v1668, %v1725
    %v1782 = vadd.f32 %v1669, %v1725
    %v1783 = vadd.f32 %v1670, %v1725
    %v1784 = vadd.f32 %v1671, %v1725
    %v1785 = vadd.f32 %v1672, %v1730
    %v1786 = vadd.f32 %v1673, %v1730
    %v1787 = vadd.f32 %v1674, %v1730
    %v1788 = vadd.f32 %v1675, %v1730
    %v1789 = vadd.f32 %v1676, %v1730
    %v1790 = vadd.f32 %v1677, %v1730
    %v1791 = vadd.f32 %v1678, %v1730
    %v1792 = vadd.f32 %v1679, %v1730
    %v1793 = vadd.f32 %v1680, %v1735
    %v1794 = vadd.f32 %v1681, %v1735
    %v1795 = vadd.f32 %v1682, %v1735
    %v1796 = vadd.f32 %v1683, %v1735
    %v1797 = vadd.f32 %v1684, %v1735
    %v1798 = vadd.f32 %v1685, %v1735
    %v1799 = vadd.f32 %v1686, %v1735
    %v1800 = vadd.f32 %v1687, %v1735
    %v1801 = vmul.f32 %v1737, 0.01
    %v1802 = vmul.f32 %v1738, 0.01
    %v1803 = vmul.f32 %v1739, 0.01
    %v1804 = vmul.f32 %v1740, 0.01
    %v1805 = vmul.f32 %v1741, 0.01
    %v1806 = vmul.f32 %v1742, 0.01
    %v1807 = vmul.f32 %v1743, 0.01
    %v1808 = vmul.f32 %v1744, 0.01
    %v1809 = vmul.f32 %v1745, 0.01
    %v1810 = vmul.f32 %v1746, 0.01
    %v1811 = vmul.f32 %v1747, 0.01
    %v1812 = vmul.f32 %v1748, 0.01
    %v1813 = vmul.f32 %v1749, 0.01
    %v1814 = vmul.f32 %v1750, 0.01
    %v1815 = vmul.f32 %v1751, 0.01
    %v1816 = vmul.f32 %v1752, 0.01
    %v1817 = vmul.f32 %v1753, 0.01
    %v1818 = vmul.f32 %v1754, 0.01
    %v1819 = vmul.f32 %v1755, 0.01
    %v1820 = vmul.f32 %v1756, 0.01
    %v1821 = vmul.f32 %v1757, 0.01
    %v1822 = vmul.f32 %v1758, 0.01
    %v1823 = vmul.f32 %v1759, 0.01
    %v1824 = vmul.f32 %v1760, 0.01
    %v1825 = vmul.f32 %v1761, 0.01
    %v1826 = vmul.f32 %v1762, 0.01
    %v1827 = vmul.f32 %v1763, 0.01
    %v1828 = vmul.f32 %v1764, 0.01
    %v1829 = vmul.f32 %v1765, 0.01
    %v1830 = vmul.f32 %v1766, 0.01
    %v1831 = vmul.f32 %v1767, 0.01
    %v1832 = vmul.f32 %v1768, 0.01
    %v1833 = vmul.f32 %v1769, 0.01
    %v1834 = vmul.f32 %v1770, 0.01
    %v1835 = vmul.f32 %v1771, 0.01
    %v1836 = vmul.f32 %v1772, 0.01
    %v1837 = vmul.f32 %v1773, 0.01
    %v1838 = vmul.f32 %v1774, 0.01
    %v1839 = vmul.f32 %v1775, 0.01
    %v1840 = vmul.f32 %v1776, 0.01
    %v1841 = vmul.f32 %v1777, 0.01
    %v1842 = vmul.f32 %v1778, 0.01
    %v1843 = vmul.f32 %v1779, 0.01
    %v1844 = vmul.f32 %v1780, 0.01
    %v1845 = vmul.f32 %v1781, 0.01
    %v1846 = vmul.f32 %v1782, 0.01
    %v1847 = vmul.f32 %v1783, 0.01
    %v1848 = vmul.f32 %v1784, 0.01
    %v1849 = vmul.f32 %v1785, 0.01
    %v1850 = vmul.f32 %v1786, 0.01
    %v1851 = vmul.f32 %v1787, 0.01
    %v1852 = vmul.f32 %v1788, 0.01
    %v1853 = vmul.f32 %v1789, 0.01
    %v1854 = vmul.f32 %v1790, 0.01
    %v1855 = vmul.f32 %v1791, 0.01
    %v1856 = vmul.f32 %v1792, 0.01
    %v1857 = vmul.f32 %v1793, 0.01
    %v1858 = vmul.f32 %v1794, 0.01
    %v1859 = vmul.f32 %v1795, 0.01
    %v1860 = vmul.f32 %v1796, 0.01
    %v1861 = vmul.f32 %v1797, 0.01
    %v1862 = vmul.f32 %v1798, 0.01
    %v1863 = vmul.f32 %v1799, 0.01
    %v1864 = vmul.f32 %v1800, 0.01
    %v1865 = vmax.f32 %v1737, %v1801
    %v1866 = vmax.f32 %v1738, %v1802
    %v1867 = vmax.f32 %v1739, %v1803
    %v1868 = vmax.f32 %v1740, %v1804
    %v1869 = vmax.f32 %v1741, %v1805
    %v1870 = vmax.f32 %v1742, %v1806
    %v1871 = vmax.f32 %v1743, %v1807
    %v1872 = vmax.f32 %v1744, %v1808
    %v1873 = vmax.f32 %v1745, %v1809
    %v1874 = vmax.f32 %v1746, %v1810
    %v1875 = vmax.f32 %v1747, %v1811
    %v1876 = vmax.f32 %v1748, %v1812
    %v1877 = vmax.f32 %v1749, %v1813
    %v1878 = vmax.f32 %v1750, %v1814
    %v1879 = vmax.f32 %v1751, %v1815
    %v1880 = vmax.f32 %v1752, %v1816
    %v1881 = vmax.f32 %v1753, %v1817
    %v1882 = vmax.f32 %v1754, %v1818
    %v1883 = vmax.f32 %v1755, %v1819
    %v1884 = vmax.f32 %v1756, %v1820
    %v1885 = vmax.f32 %v1757, %v1821
    %v1886 = vmax.f32 %v1758, %v1822
    %v1887 = vmax.f32 %v1759, %v1823
    %v1888 = vmax.f32 %v1760, %v1824
    %v1889 = vmax.f32 %v1761, %v1825
    %v1890 = vmax.f32 %v1762, %v1826
    %v1891 = vmax.f32 %v1763, %v1827
    %v1892 = vmax.f32 %v1764, %v1828
    %v1893 = vmax.f32 %v1765, %v1829
    %v1894 = vmax.f32 %v1766, %v1830
    %v1895 = vmax.f32 %v1767, %v1831
    %v1896 = vmax.f32 %v1768, %v1832
    %v1897 = vmax.f32 %v1769, %v1833
    %v1898 = vmax.f32 %v1770, %v1834
    %v1899 = vmax.f32 %v1771, %v1835
    %v1900 = vmax.f32 %v1772, %v1836
    %v1901 = vmax.f32 %v1773, %v1837
    %v1902 = vmax.f32 %v1774, %v1838
    %v1903 = vmax.f32 %v1775, %v1839
    %v1904 = vmax.f32 %v1776, %v1840
    %v1905 = vmax.f32 %v1777, %v1841
    %v1906 = vmax.f32 %v1778, %v1842
    %v1907 = vmax.f32 %v1779, %v1843
    %v1908 = vmax.f32 %v1780, %v1844
    %v1909 = vmax.f32 %v1781, %v1845
    %v1910 = vmax.f32 %v1782, %v1846
    %v1911 = vmax.f32 %v1783, %v1847
    %v1912 = vmax.f32 %v1784, %v1848
    %v1913 = vmax.f32 %v1785, %v1849
    %v1914 = vmax.f32 %v1786, %v1850
    %v1915 = vmax.f32 %v1787, %v1851
    %v1916 = vmax.f32 %v1788, %v1852
    %v1917 = vmax.f32 %v1789, %v1853
    %v1918 = vmax.f32 %v1790, %v1854
    %v1919 = vmax.f32 %v1791, %v1855
    %v1920 = vmax.f32 %v1792, %v1856
    %v1921 = vmax.f32 %v1793, %v1857
    %v1922 = vmax.f32 %v1794, %v1858
    %v1923 = vmax.f32 %v1795, %v1859
    %v1924 = vmax.f32 %v1796, %v1860
    %v1925 = vmax.f32 %v1797, %v1861
    %v1926 = vmax.f32 %v1798, %v1862
    %v1927 = vmax.f32 %v1799, %v1863
    %v1928 = vmax.f32 %v1800, %v1864
    %s1929 = scalar_lea.vmem %s2, 256
    %v1930 = vld [vmem:[%s1929] sm:$0xff]
    %v1931 = vld [vmem:[%s1929 + $0x8] sm:$0xff]
    %v1932 = vld [vmem:[%s1929 + $0x10] sm:$0xff]
    %v1933 = vld [vmem:[%s1929 + $0x18] sm:$0xff]
    %v1934 = vld [vmem:[%s1929 + $0x20] sm:$0xff]
    %v1935 = vld [vmem:[%s1929 + $0x28] sm:$0xff]
    %v1936 = vld [vmem:[%s1929 + $0x30] sm:$0xff]
    %v1937 = vld [vmem:[%s1929 + $0x38] sm:$0xff]
    %s1938 = scalar_lea.vmem %s3, 256
    %v1939 = vld [vmem:[%s1938] sm:$0xff]
    %v1940 = vld [vmem:[%s1938 + $0x8] sm:$0xff]
    %v1941 = vld [vmem:[%s1938 + $0x10] sm:$0xff]
    %v1942 = vld [vmem:[%s1938 + $0x18] sm:$0xff]
    %v1943 = vld [vmem:[%s1938 + $0x20] sm:$0xff]
    %v1944 = vld [vmem:[%s1938 + $0x28] sm:$0xff]
    %v1945 = vld [vmem:[%s1938 + $0x30] sm:$0xff]
    %v1946 = vld [vmem:[%s1938 + $0x38] sm:$0xff]
    %1948 = vset.pattern.permute.xlu0 0
    %1949 = vperm.xlu0 %1948, %v1939
    %v1950 = vpop.permute.xlu0 %1949
    %1953 = vset.pattern.permute.xlu0 0
    %1954 = vperm.xlu0 %1953, %v1940
    %v1955 = vpop.permute.xlu0 %1954
    %1958 = vset.pattern.permute.xlu0 0
    %1959 = vperm.xlu0 %1958, %v1941
    %v1960 = vpop.permute.xlu0 %1959
    %1963 = vset.pattern.permute.xlu0 0
    %1964 = vperm.xlu0 %1963, %v1942
    %v1965 = vpop.permute.xlu0 %1964
    %1968 = vset.pattern.permute.xlu0 0
    %1969 = vperm.xlu0 %1968, %v1943
    %v1970 = vpop.permute.xlu0 %1969
    %1973 = vset.pattern.permute.xlu0 0
    %1974 = vperm.xlu0 %1973, %v1944
    %v1975 = vpop.permute.xlu0 %1974
    %1978 = vset.pattern.permute.xlu0 0
    %1979 = vperm.xlu0 %1978, %v1945
    %v1980 = vpop.permute.xlu0 %1979
    %1983 = vset.pattern.permute.xlu0 0
    %1984 = vperm.xlu0 %1983, %v1946
    %v1985 = vpop.permute.xlu0 %1984
    %v1988 = vsel %vm483, %v1930, 0
    %v1991 = vsel %vm483, %v1931, 0
    %v1994 = vsel %vm483, %v1932, 0
    %v1997 = vsel %vm483, %v1933, 0
    %v2000 = vsel %vm483, %v1934, 0
    %v2003 = vsel %vm483, %v1935, 0
    %v2006 = vsel %vm483, %v1936, 0
    %v2009 = vsel %vm483, %v1937, 0
    %2011 = vmatprep.subr.mxu0 %v1866
    %2012 = vmatpush1.msra.mxu0 %v1865
    %2013 = vmatprep.subr.mxu0 %v1874
    %2014 = vmatpush1.msra.mxu0 %v1873
    %2015 = vmatprep.subr.mxu0 %v1882
    %2016 = vmatpush1.msra.mxu0 %v1881
    %2017 = vmatprep.subr.mxu0 %v1890
    %2018 = vmatpush1.msra.mxu0 %v1889
    %2019 = vmatprep.subr.mxu0 %v1898
    %2020 = vmatpush1.msra.mxu0 %v1897
    %2021 = vmatprep.subr.mxu0 %v1906
    %2022 = vmatpush1.msra.mxu0 %v1905
    %2023 = vmatprep.subr.mxu0 %v1914
    %2024 = vmatpush1.msra.mxu0 %v1913
    %2025 = vmatprep.subr.mxu0 %v1922
    %2026 = vmatpush1.msra.mxu0 %v1921
    %2027 = vmatprep.subr.mxu0 0.0
    %2028 = vmatpush1.msra.mxu0 0.0
    %2029 = vmatprep.subr.mxu0 0.0
    %2030 = vmatpush1.msra.mxu0 0.0
    %2031 = vmatprep.subr.mxu0 0.0
    %2032 = vmatpush1.msra.mxu0 0.0
    %2033 = vmatprep.subr.mxu0 0.0
    %2034 = vmatpush1.msra.mxu0 0.0
    %2035 = vmatprep.subr.mxu0 0.0
    %2036 = vmatpush1.msra.mxu0 0.0
    %2037 = vmatprep.subr.mxu0 0.0
    %2038 = vmatpush1.msra.mxu0 0.0
    %2039 = vmatprep.subr.mxu0 0.0
    %2040 = vmatpush1.msra.mxu0 0.0
    %2041 = vmatprep.subr.mxu0 0.0
    %2042 = vmatpush1.msra.mxu0 0.0
    %2043 = vmatprep.subr.mxu0 0.0
    %2044 = vmatpush1.msra.mxu0 0.0
    %2045 = vmatprep.subr.mxu0 0.0
    %2046 = vmatpush1.msra.mxu0 0.0
    %2047 = vmatprep.subr.mxu0 0.0
    %2048 = vmatpush1.msra.mxu0 0.0
    %2049 = vmatprep.subr.mxu0 0.0
    %2050 = vmatpush1.msra.mxu0 0.0
    %2051 = vmatprep.subr.mxu0 0.0
    %2052 = vmatpush1.msra.mxu0 0.0
    %2053 = vmatprep.subr.mxu0 0.0
    %2054 = vmatpush1.msra.mxu0 0.0
    %2055 = vmatprep.subr.mxu0 0.0
    %2056 = vmatpush1.msra.mxu0 0.0
    %2057 = vmatprep.subr.mxu0 0.0
    %2058 = vmatpush1.msra.mxu0 0.0
    %2059 = vmatprep.subr.mxu0 0.0
    %2060 = vmatpush1.msra.mxu0 0.0
    %2061 = vmatprep.subr.mxu0 0.0
    %2062 = vmatpush1.msra.mxu0 0.0
    %2063 = vmatprep.subr.mxu0 0.0
    %2064 = vmatpush1.msra.mxu0 0.0
    %2065 = vmatprep.subr.mxu0 0.0
    %2066 = vmatpush1.msra.mxu0 0.0
    %2067 = vmatprep.subr.mxu0 0.0
    %2068 = vmatpush1.msra.mxu0 0.0
    %2069 = vmatprep.subr.mxu0 0.0
    %2070 = vmatpush1.msra.mxu0 0.0
    %2071 = vmatprep.subr.mxu0 0.0
    %2072 = vmatpush1.msra.mxu0 0.0
    %2073 = vmatprep.subr.mxu0 0.0
    %2074 = vmatpush1.msra.mxu0 0.0
    %2075 = vmatprep.mubr.f32.mxu0 0.0
    %2076 = vmatmul.mubr.f32.gmra.mrb[0].mxu0 %v1988
    %v2077 = vpop.f32.mrb[0].mxu0
    %v2078 = vadd.f32 %v1950, %v2077
    %v2079 = vpop.f32.mrb[0].mxu0
    %v2080 = vadd.f32 %v1950, %v2079
    %2081 = vmatprep.mubr.f32.mxu0 0.0
    %2082 = vmatmul.mubr.f32.gmra.mrb[0].mxu0 %v1991
    %v2083 = vpop.f32.mrb[0].mxu0
    %v2084 = vadd.f32 %v1955, %v2083
    %v2085 = vpop.f32.mrb[0].mxu0
    %v2086 = vadd.f32 %v1955, %v2085
    %2087 = vmatprep.mubr.f32.mxu0 0.0
    %2088 = vmatmul.mubr.f32.gmra.mrb[0].mxu0 %v1994
    %v2089 = vpop.f32.mrb[0].mxu0
    %v2090 = vadd.f32 %v1960, %v2089
    %v2091 = vpop.f32.mrb[0].mxu0
    %v2092 = vadd.f32 %v1960, %v2091
    %2093 = vmatprep.mubr.f32.mxu0 0.0
    %2094 = vmatmul.mubr.f32.gmra.mrb[0].mxu0 %v1997
    %v2095 = vpop.f32.mrb[0].mxu0
    %v2096 = vadd.f32 %v1965, %v2095
    %v2097 = vpop.f32.mrb[0].mxu0
    %v2098 = vadd.f32 %v1965, %v2097
    %2099 = vmatprep.mubr.f32.mxu0 0.0
    %2100 = vmatmul.mubr.f32.gmra.mrb[0].mxu0 %v2000
    %v2101 = vpop.f32.mrb[0].mxu0
    %v2102 = vadd.f32 %v1970, %v2101
    %v2103 = vpop.f32.mrb[0].mxu0
    %v2104 = vadd.f32 %v1970, %v2103
    %2105 = vmatprep.mubr.f32.mxu0 0.0
    %2106 = vmatmul.mubr.f32.gmra.mrb[0].mxu0 %v2003
    %v2107 = vpop.f32.mrb[0].mxu0
    %v2108 = vadd.f32 %v1975, %v2107
    %v2109 = vpop.f32.mrb[0].mxu0
    %v2110 = vadd.f32 %v1975, %v2109
    %2111 = vmatprep.mubr.f32.mxu0 0.0
    %2112 = vmatmul.mubr.f32.gmra.mrb[0].mxu0 %v2006
    %v2113 = vpop.f32.mrb[0].mxu0
    %v2114 = vadd.f32 %v1980, %v2113
    %v2115 = vpop.f32.mrb[0].mxu0
    %v2116 = vadd.f32 %v1980, %v2115
    %2117 = vmatprep.mubr.f32.mxu0 0.0
    %2118 = vmatmul.mubr.f32.gmra.mrb[0].mxu0 %v2009
    %v2119 = vpop.f32.mrb[0].mxu0
    %v2120 = vadd.f32 %v1985, %v2119
    %v2121 = vpop.f32.mrb[0].mxu0
    %v2122 = vadd.f32 %v1985, %v2121
    %2123 = vdwg.mxu0
    %2124 = vmatprep.subr.mxu0 %v1868
    %2125 = vmatpush1.msra.mxu0 %v1867
    %2126 = vmatprep.subr.mxu0 %v1876
    %2127 = vmatpush1.msra.mxu0 %v1875
    %2128 = vmatprep.subr.mxu0 %v1884
    %2129 = vmatpush1.msra.mxu0 %v1883
    %2130 = vmatprep.subr.mxu0 %v1892
    %2131 = vmatpush1.msra.mxu0 %v1891
    %2132 = vmatprep.subr.mxu0 %v1900
    %2133 = vmatpush1.msra.mxu0 %v1899
    %2134 = vmatprep.subr.mxu0 %v1908
    %2135 = vmatpush1.msra.mxu0 %v1907
    %2136 = vmatprep.subr.mxu0 %v1916
    %2137 = vmatpush1.msra.mxu0 %v1915
    %2138 = vmatprep.subr.mxu0 %v1924
    %2139 = vmatpush1.msra.mxu0 %v1923
    %2140 = vmatprep.subr.mxu0 0.0
    %2141 = vmatpush1.msra.mxu0 0.0
    %2142 = vmatprep.subr.mxu0 0.0
    %2143 = vmatpush1.msra.mxu0 0.0
    %2144 = vmatprep.subr.mxu0 0.0
    %2145 = vmatpush1.msra.mxu0 0.0
    %2146 = vmatprep.subr.mxu0 0.0
    %2147 = vmatpush1.msra.mxu0 0.0
    %2148 = vmatprep.subr.mxu0 0.0
    %2149 = vmatpush1.msra.mxu0 0.0
    %2150 = vmatprep.subr.mxu0 0.0
    %2151 = vmatpush1.msra.mxu0 0.0
    %2152 = vmatprep.subr.mxu0 0.0
    %2153 = vmatpush1.msra.mxu0 0.0
    %2154 = vmatprep.subr.mxu0 0.0
    %2155 = vmatpush1.msra.mxu0 0.0
    %2156 = vmatprep.subr.mxu0 0.0
    %2157 = vmatpush1.msra.mxu0 0.0
    %2158 = vmatprep.subr.mxu0 0.0
    %2159 = vmatpush1.msra.mxu0 0.0
    %2160 = vmatprep.subr.mxu0 0.0
    %2161 = vmatpush1.msra.mxu0 0.0
    %2162 = vmatprep.subr.mxu0 0.0
    %2163 = vmatpush1.msra.mxu0 0.0
    %2164 = vmatprep.subr.mxu0 0.0
    %2165 = vmatpush1.msra.mxu0 0.0
    %2166 = vmatprep.subr.mxu0 0.0
    %2167 = vmatpush1.msra.mxu0 0.0
    %2168 = vmatprep.subr.mxu0 0.0
    %2169 = vmatpush1.msra.mxu0 0.0
    %2170 = vmatprep.subr.mxu0 0.0
    %2171 = vmatpush1.msra.mxu0 0.0
    %2172 = vmatprep.subr.mxu0 0.0
    %2173 = vmatpush1.msra.mxu0 0.0
    %2174 = vmatprep.subr.mxu0 0.0
    %2175 = vmatpush1.msra.mxu0 0.0
    %2176 = vmatprep.subr.mxu0 0.0
    %2177 = vmatpush1.msra.mxu0 0.0
    %2178 = vmatprep.subr.mxu0 0.0
    %2179 = vmatpush1.msra.mxu0 0.0
    %2180 = vmatprep.subr.mxu0 0.0
    %2181 = vmatpush1.msra.mxu0 0.0
    %2182 = vmatprep.subr.mxu0 0.0
    %2183 = vmatpush1.msra.mxu0 0.0
    %2184 = vmatprep.subr.mxu0 0.0
    %2185 = vmatpush1.msra.mxu0 0.0
    %2186 = vmatprep.subr.mxu0 0.0
    %2187 = vmatpush1.msra.mxu0 0.0
    %2188 = vmatprep.mubr.f32.mxu0 0.0
    %2189 = vmatmul.mubr.f32.gmra.mrb[0].mxu0 %v1988
    %v2190 = vpop.f32.mrb[0].mxu0
    %v2191 = vadd.f32 %v1950, %v2190
    %v2192 = vpop.f32.mrb[0].mxu0
    %v2193 = vadd.f32 %v1950, %v2192
    %2194 = vmatprep.mubr.f32.mxu0 0.0
    %2195 = vmatmul.mubr.f32.gmra.mrb[0].mxu0 %v1991
    %v2196 = vpop.f32.mrb[0].mxu0
    %v2197 = vadd.f32 %v1955, %v2196
    %v2198 = vpop.f32.mrb[0].mxu0
    %v2199 = vadd.f32 %v1955, %v2198
    %2200 = vmatprep.mubr.f32.mxu0 0.0
    %2201 = vmatmul.mubr.f32.gmra.mrb[0].mxu0 %v1994
    %v2202 = vpop.f32.mrb[0].mxu0
    %v2203 = vadd.f32 %v1960, %v2202
    %v2204 = vpop.f32.mrb[0].mxu0
    %v2205 = vadd.f32 %v1960, %v2204
    %2206 = vmatprep.mubr.f32.mxu0 0.0
    %2207 = vmatmul.mubr.f32.gmra.mrb[0].mxu0 %v1997
    %v2208 = vpop.f32.mrb[0].mxu0
    %v2209 = vadd.f32 %v1965, %v2208
    %v2210 = vpop.f32.mrb[0].mxu0
    %v2211 = vadd.f32 %v1965, %v2210
    %2212 = vmatprep.mubr.f32.mxu0 0.0
    %2213 = vmatmul.mubr.f32.gmra.mrb[0].mxu0 %v2000
    %v2214 = vpop.f32.mrb[0].mxu0
    %v2215 = vadd.f32 %v1970, %v2214
    %v2216 = vpop.f32.mrb[0].mxu0
    %v2217 = vadd.f32 %v1970, %v2216
    %2218 = vmatprep.mubr.f32.mxu0 0.0
    %2219 = vmatmul.mubr.f32.gmra.mrb[0].mxu0 %v2003
    %v2220 = vpop.f32.mrb[0].mxu0
    %v2221 = vadd.f32 %v1975, %v2220
    %v2222 = vpop.f32.mrb[0].mxu0
    %v2223 = vadd.f32 %v1975, %v2222
    %2224 = vmatprep.mubr.f32.mxu0 0.0
    %2225 = vmatmul.mubr.f32.gmra.mrb[0].mxu0 %v2006
    %v2226 = vpop.f32.mrb[0].mxu0
    %v2227 = vadd.f32 %v1980, %v2226
    %v2228 = vpop.f32.mrb[0].mxu0
    %v2229 = vadd.f32 %v1980, %v2228
    %2230 = vmatprep.mubr.f32.mxu0 0.0
    %2231 = vmatmul.mubr.f32.gmra.mrb[0].mxu0 %v2009
    %v2232 = vpop.f32.mrb[0].mxu0
    %v2233 = vadd.f32 %v1985, %v2232
    %v2234 = vpop.f32.mrb[0].mxu0
    %v2235 = vadd.f32 %v1985, %v2234
    %2236 = vdwg.mxu0
    %2237 = vmatprep.subr.mxu0 %v1870
    %2238 = vmatpush1.msra.mxu0 %v1869
    %2239 = vmatprep.subr.mxu0 %v1878
    %2240 = vmatpush1.msra.mxu0 %v1877
    %2241 = vmatprep.subr.mxu0 %v1886
    %2242 = vmatpush1.msra.mxu0 %v1885
    %2243 = vmatprep.subr.mxu0 %v1894
    %2244 = vmatpush1.msra.mxu0 %v1893
    %2245 = vmatprep.subr.mxu0 %v1902
    %2246 = vmatpush1.msra.mxu0 %v1901
    %2247 = vmatprep.subr.mxu0 %v1910
    %2248 = vmatpush1.msra.mxu0 %v1909
    %2249 = vmatprep.subr.mxu0 %v1918
    %2250 = vmatpush1.msra.mxu0 %v1917
    %2251 = vmatprep.subr.mxu0 %v1926
    %2252 = vmatpush1.msra.mxu0 %v1925
    %2253 = vmatprep.subr.mxu0 0.0
    %2254 = vmatpush1.msra.mxu0 0.0
    %2255 = vmatprep.subr.mxu0 0.0
    %2256 = vmatpush1.msra.mxu0 0.0
    %2257 = vmatprep.subr.mxu0 0.0
    %2258 = vmatpush1.msra.mxu0 0.0
    %2259 = vmatprep.subr.mxu0 0.0
    %2260 = vmatpush1.msra.mxu0 0.0
    %2261 = vmatprep.subr.mxu0 0.0
    %2262 = vmatpush1.msra.mxu0 0.0
    %2263 = vmatprep.subr.mxu0 0.0
    %2264 = vmatpush1.msra.mxu0 0.0
    %2265 = vmatprep.subr.mxu0 0.0
    %2266 = vmatpush1.msra.mxu0 0.0
    %2267 = vmatprep.subr.mxu0 0.0
    %2268 = vmatpush1.msra.mxu0 0.0
    %2269 = vmatprep.subr.mxu0 0.0
    %2270 = vmatpush1.msra.mxu0 0.0
    %2271 = vmatprep.subr.mxu0 0.0
    %2272 = vmatpush1.msra.mxu0 0.0
    %2273 = vmatprep.subr.mxu0 0.0
    %2274 = vmatpush1.msra.mxu0 0.0
    %2275 = vmatprep.subr.mxu0 0.0
    %2276 = vmatpush1.msra.mxu0 0.0
    %2277 = vmatprep.subr.mxu0 0.0
    %2278 = vmatpush1.msra.mxu0 0.0
    %2279 = vmatprep.subr.mxu0 0.0
    %2280 = vmatpush1.msra.mxu0 0.0
    %2281 = vmatprep.subr.mxu0 0.0
    %2282 = vmatpush1.msra.mxu0 0.0
    %2283 = vmatprep.subr.mxu0 0.0
    %2284 = vmatpush1.msra.mxu0 0.0
    %2285 = vmatprep.subr.mxu0 0.0
    %2286 = vmatpush1.msra.mxu0 0.0
    %2287 = vmatprep.subr.mxu0 0.0
    %2288 = vmatpush1.msra.mxu0 0.0
    %2289 = vmatprep.subr.mxu0 0.0
    %2290 = vmatpush1.msra.mxu0 0.0
    %2291 = vmatprep.subr.mxu0 0.0
    %2292 = vmatpush1.msra.mxu0 0.0
    %2293 = vmatprep.subr.mxu0 0.0
    %2294 = vmatpush1.msra.mxu0 0.0
    %2295 = vmatprep.subr.mxu0 0.0
    %2296 = vmatpush1.msra.mxu0 0.0
    %2297 = vmatprep.subr.mxu0 0.0
    %2298 = vmatpush1.msra.mxu0 0.0
    %2299 = vmatprep.subr.mxu0 0.0
    %2300 = vmatpush1.msra.mxu0 0.0
    %2301 = vmatprep.mubr.f32.mxu0 0.0
    %2302 = vmatmul.mubr.f32.gmra.mrb[0].mxu0 %v1988
    %v2303 = vpop.f32.mrb[0].mxu0
    %v2304 = vadd.f32 %v1950, %v2303
    %v2305 = vpop.f32.mrb[0].mxu0
    %v2306 = vadd.f32 %v1950, %v2305
    %2307 = vmatprep.mubr.f32.mxu0 0.0
    %2308 = vmatmul.mubr.f32.gmra.mrb[0].mxu0 %v1991
    %v2309 = vpop.f32.mrb[0].mxu0
    %v2310 = vadd.f32 %v1955, %v2309
    %v2311 = vpop.f32.mrb[0].mxu0
    %v2312 = vadd.f32 %v1955, %v2311
    %2313 = vmatprep.mubr.f32.mxu0 0.0
    %2314 = vmatmul.mubr.f32.gmra.mrb[0].mxu0 %v1994
    %v2315 = vpop.f32.mrb[0].mxu0
    %v2316 = vadd.f32 %v1960, %v2315
    %v2317 = vpop.f32.mrb[0].mxu0
    %v2318 = vadd.f32 %v1960, %v2317
    %2319 = vmatprep.mubr.f32.mxu0 0.0
    %2320 = vmatmul.mubr.f32.gmra.mrb[0].mxu0 %v1997
    %v2321 = vpop.f32.mrb[0].mxu0
    %v2322 = vadd.f32 %v1965, %v2321
    %v2323 = vpop.f32.mrb[0].mxu0
    %v2324 = vadd.f32 %v1965, %v2323
    %2325 = vmatprep.mubr.f32.mxu0 0.0
    %2326 = vmatmul.mubr.f32.gmra.mrb[0].mxu0 %v2000
    %v2327 = vpop.f32.mrb[0].mxu0
    %v2328 = vadd.f32 %v1970, %v2327
    %v2329 = vpop.f32.mrb[0].mxu0
    %v2330 = vadd.f32 %v1970, %v2329
    %2331 = vmatprep.mubr.f32.mxu0 0.0
    %2332 = vmatmul.mubr.f32.gmra.mrb[0].mxu0 %v2003
    %v2333 = vpop.f32.mrb[0].mxu0
    %v2334 = vadd.f32 %v1975, %v2333
    %v2335 = vpop.f32.mrb[0].mxu0
    %v2336 = vadd.f32 %v1975, %v2335
    %2337 = vmatprep.mubr.f32.mxu0 0.0
    %2338 = vmatmul.mubr.f32.gmra.mrb[0].mxu0 %v2006
    %v2339 = vpop.f32.mrb[0].mxu0
    %v2340 = vadd.f32 %v1980, %v2339
    %v2341 = vpop.f32.mrb[0].mxu0
    %v2342 = vadd.f32 %v1980, %v2341
    %2343 = vmatprep.mubr.f32.mxu0 0.0
    %2344 = vmatmul.mubr.f32.gmra.mrb[0].mxu0 %v2009
    %v2345 = vpop.f32.mrb[0].mxu0
    %v2346 = vadd.f32 %v1985, %v2345
    %v2347 = vpop.f32.mrb[0].mxu0
    %v2348 = vadd.f32 %v1985, %v2347
    %2349 = vdwg.mxu0
    %2350 = vmatprep.subr.mxu0 %v1872
    %2351 = vmatpush1.msra.mxu0 %v1871
    %2352 = vmatprep.subr.mxu0 %v1880
    %2353 = vmatpush1.msra.mxu0 %v1879
    %2354 = vmatprep.subr.mxu0 %v1888
    %2355 = vmatpush1.msra.mxu0 %v1887
    %2356 = vmatprep.subr.mxu0 %v1896
    %2357 = vmatpush1.msra.mxu0 %v1895
    %2358 = vmatprep.subr.mxu0 %v1904
    %2359 = vmatpush1.msra.mxu0 %v1903
    %2360 = vmatprep.subr.mxu0 %v1912
    %2361 = vmatpush1.msra.mxu0 %v1911
    %2362 = vmatprep.subr.mxu0 %v1920
    %2363 = vmatpush1.msra.mxu0 %v1919
    %2364 = vmatprep.subr.mxu0 %v1928
    %2365 = vmatpush1.msra.mxu0 %v1927
    %2366 = vmatprep.subr.mxu0 0.0
    %2367 = vmatpush1.msra.mxu0 0.0
    %2368 = vmatprep.subr.mxu0 0.0
    %2369 = vmatpush1.msra.mxu0 0.0
    %2370 = vmatprep.subr.mxu0 0.0
    %2371 = vmatpush1.msra.mxu0 0.0
    %2372 = vmatprep.subr.mxu0 0.0
    %2373 = vmatpush1.msra.mxu0 0.0
    %2374 = vmatprep.subr.mxu0 0.0
    %2375 = vmatpush1.msra.mxu0 0.0
    %2376 = vmatprep.subr.mxu0 0.0
    %2377 = vmatpush1.msra.mxu0 0.0
    %2378 = vmatprep.subr.mxu0 0.0
    %2379 = vmatpush1.msra.mxu0 0.0
    %2380 = vmatprep.subr.mxu0 0.0
    %2381 = vmatpush1.msra.mxu0 0.0
    %2382 = vmatprep.subr.mxu0 0.0
    %2383 = vmatpush1.msra.mxu0 0.0
    %2384 = vmatprep.subr.mxu0 0.0
    %2385 = vmatpush1.msra.mxu0 0.0
    %2386 = vmatprep.subr.mxu0 0.0
    %2387 = vmatpush1.msra.mxu0 0.0
    %2388 = vmatprep.subr.mxu0 0.0
    %2389 = vmatpush1.msra.mxu0 0.0
    %2390 = vmatprep.subr.mxu0 0.0
    %2391 = vmatpush1.msra.mxu0 0.0
    %2392 = vmatprep.subr.mxu0 0.0
    %2393 = vmatpush1.msra.mxu0 0.0
    %2394 = vmatprep.subr.mxu0 0.0
    %2395 = vmatpush1.msra.mxu0 0.0
    %2396 = vmatprep.subr.mxu0 0.0
    %2397 = vmatpush1.msra.mxu0 0.0
    %2398 = vmatprep.subr.mxu0 0.0
    %2399 = vmatpush1.msra.mxu0 0.0
    %2400 = vmatprep.subr.mxu0 0.0
    %2401 = vmatpush1.msra.mxu0 0.0
    %2402 = vmatprep.subr.mxu0 0.0
    %2403 = vmatpush1.msra.mxu0 0.0
    %2404 = vmatprep.subr.mxu0 0.0
    %2405 = vmatpush1.msra.mxu0 0.0
    %2406 = vmatprep.subr.mxu0 0.0
    %2407 = vmatpush1.msra.mxu0 0.0
    %2408 = vmatprep.subr.mxu0 0.0
    %2409 = vmatpush1.msra.mxu0 0.0
    %2410 = vmatprep.subr.mxu0 0.0
    %2411 = vmatpush1.msra.mxu0 0.0
    %2412 = vmatprep.subr.mxu0 0.0
    %2413 = vmatpush1.msra.mxu0 0.0
    %2414 = vmatprep.mubr.f32.mxu0 0.0
    %2415 = vmatmul.mubr.f32.gmra.mrb[0].mxu0 %v1988
    %v2416 = vpop.f32.mrb[0].mxu0
    %v2417 = vadd.f32 %v1950, %v2416
    %v2418 = vpop.f32.mrb[0].mxu0
    %v2419 = vadd.f32 %v1950, %v2418
    %2420 = vmatprep.mubr.f32.mxu0 0.0
    %2421 = vmatmul.mubr.f32.gmra.mrb[0].mxu0 %v1991
    %v2422 = vpop.f32.mrb[0].mxu0
    %v2423 = vadd.f32 %v1955, %v2422
    %v2424 = vpop.f32.mrb[0].mxu0
    %v2425 = vadd.f32 %v1955, %v2424
    %2426 = vmatprep.mubr.f32.mxu0 0.0
    %2427 = vmatmul.mubr.f32.gmra.mrb[0].mxu0 %v1994
    %v2428 = vpop.f32.mrb[0].mxu0
    %v2429 = vadd.f32 %v1960, %v2428
    %v2430 = vpop.f32.mrb[0].mxu0
    %v2431 = vadd.f32 %v1960, %v2430
    %2432 = vmatprep.mubr.f32.mxu0 0.0
    %2433 = vmatmul.mubr.f32.gmra.mrb[0].mxu0 %v1997
    %v2434 = vpop.f32.mrb[0].mxu0
    %v2435 = vadd.f32 %v1965, %v2434
    %v2436 = vpop.f32.mrb[0].mxu0
    %v2437 = vadd.f32 %v1965, %v2436
    %2438 = vmatprep.mubr.f32.mxu0 0.0
    %2439 = vmatmul.mubr.f32.gmra.mrb[0].mxu0 %v2000
    %v2440 = vpop.f32.mrb[0].mxu0
    %v2441 = vadd.f32 %v1970, %v2440
    %v2442 = vpop.f32.mrb[0].mxu0
    %v2443 = vadd.f32 %v1970, %v2442
    %2444 = vmatprep.mubr.f32.mxu0 0.0
    %2445 = vmatmul.mubr.f32.gmra.mrb[0].mxu0 %v2003
    %v2446 = vpop.f32.mrb[0].mxu0
    %v2447 = vadd.f32 %v1975, %v2446
    %v2448 = vpop.f32.mrb[0].mxu0
    %v2449 = vadd.f32 %v1975, %v2448
    %2450 = vmatprep.mubr.f32.mxu0 0.0
    %2451 = vmatmul.mubr.f32.gmra.mrb[0].mxu0 %v2006
    %v2452 = vpop.f32.mrb[0].mxu0
    %v2453 = vadd.f32 %v1980, %v2452
    %v2454 = vpop.f32.mrb[0].mxu0
    %v2455 = vadd.f32 %v1980, %v2454
    %2456 = vmatprep.mubr.f32.mxu0 0.0
    %2457 = vmatmul.mubr.f32.gmra.mrb[0].mxu0 %v2009
    %v2458 = vpop.f32.mrb[0].mxu0
    %v2459 = vadd.f32 %v1985, %v2458
    %v2460 = vpop.f32.mrb[0].mxu0
    %v2461 = vadd.f32 %v1985, %v2460
    %2462 = vdwg.mxu0
    %v2463 = vmul.f32 %v2078, 0.01
    %v2464 = vmul.f32 %v2080, 0.01
    %v2465 = vmul.f32 %v2191, 0.01
    %v2466 = vmul.f32 %v2193, 0.01
    %v2467 = vmul.f32 %v2304, 0.01
    %v2468 = vmul.f32 %v2306, 0.01
    %v2469 = vmul.f32 %v2417, 0.01
    %v2470 = vmul.f32 %v2419, 0.01
    %v2471 = vmul.f32 %v2084, 0.01
    %v2472 = vmul.f32 %v2086, 0.01
    %v2473 = vmul.f32 %v2197, 0.01
    %v2474 = vmul.f32 %v2199, 0.01
    %v2475 = vmul.f32 %v2310, 0.01
    %v2476 = vmul.f32 %v2312, 0.01
    %v2477 = vmul.f32 %v2423, 0.01
    %v2478 = vmul.f32 %v2425, 0.01
    %v2479 = vmul.f32 %v2090, 0.01
    %v2480 = vmul.f32 %v2092, 0.01
    %v2481 = vmul.f32 %v2203, 0.01
    %v2482 = vmul.f32 %v2205, 0.01
    %v2483 = vmul.f32 %v2316, 0.01
    %v2484 = vmul.f32 %v2318, 0.01
    %v2485 = vmul.f32 %v2429, 0.01
    %v2486 = vmul.f32 %v2431, 0.01
    %v2487 = vmul.f32 %v2096, 0.01
    %v2488 = vmul.f32 %v2098, 0.01
    %v2489 = vmul.f32 %v2209, 0.01
    %v2490 = vmul.f32 %v2211, 0.01
    %v2491 = vmul.f32 %v2322, 0.01
    %v2492 = vmul.f32 %v2324, 0.01
    %v2493 = vmul.f32 %v2435, 0.01
    %v2494 = vmul.f32 %v2437, 0.01
    %v2495 = vmul.f32 %v2102, 0.01
    %v2496 = vmul.f32 %v2104, 0.01
    %v2497 = vmul.f32 %v2215, 0.01
    %v2498 = vmul.f32 %v2217, 0.01
    %v2499 = vmul.f32 %v2328, 0.01
    %v2500 = vmul.f32 %v2330, 0.01
    %v2501 = vmul.f32 %v2441, 0.01
    %v2502 = vmul.f32 %v2443, 0.01
    %v2503 = vmul.f32 %v2108, 0.01
    %v2504 = vmul.f32 %v2110, 0.01
    %v2505 = vmul.f32 %v2221, 0.01
    %v2506 = vmul.f32 %v2223, 0.01
    %v2507 = vmul.f32 %v2334, 0.01
    %v2508 = vmul.f32 %v2336, 0.01
    %v2509 = vmul.f32 %v2447, 0.01
    %v2510 = vmul.f32 %v2449, 0.01
    %v2511 = vmul.f32 %v2114, 0.01
    %v2512 = vmul.f32 %v2116, 0.01
    %v2513 = vmul.f32 %v2227, 0.01
    %v2514 = vmul.f32 %v2229, 0.01
    %v2515 = vmul.f32 %v2340, 0.01
    %v2516 = vmul.f32 %v2342, 0.01
    %v2517 = vmul.f32 %v2453, 0.01
    %v2518 = vmul.f32 %v2455, 0.01
    %v2519 = vmul.f32 %v2120, 0.01
    %v2520 = vmul.f32 %v2122, 0.01
    %v2521 = vmul.f32 %v2233, 0.01
    %v2522 = vmul.f32 %v2235, 0.01
    %v2523 = vmul.f32 %v2346, 0.01
    %v2524 = vmul.f32 %v2348, 0.01
    %v2525 = vmul.f32 %v2459, 0.01
    %v2526 = vmul.f32 %v2461, 0.01
    %v2527 = vmax.f32 %v2078, %v2463
    %v2528 = vmax.f32 %v2080, %v2464
    %v2529 = vmax.f32 %v2191, %v2465
    %v2530 = vmax.f32 %v2193, %v2466
    %v2531 = vmax.f32 %v2304, %v2467
    %v2532 = vmax.f32 %v2306, %v2468
    %v2533 = vmax.f32 %v2417, %v2469
    %v2534 = vmax.f32 %v2419, %v2470
    %v2535 = vmax.f32 %v2084, %v2471
    %v2536 = vmax.f32 %v2086, %v2472
    %v2537 = vmax.f32 %v2197, %v2473
    %v2538 = vmax.f32 %v2199, %v2474
    %v2539 = vmax.f32 %v2310, %v2475
    %v2540 = vmax.f32 %v2312, %v2476
    %v2541 = vmax.f32 %v2423, %v2477
    %v2542 = vmax.f32 %v2425, %v2478
    %v2543 = vmax.f32 %v2090, %v2479
    %v2544 = vmax.f32 %v2092, %v2480
    %v2545 = vmax.f32 %v2203, %v2481
    %v2546 = vmax.f32 %v2205, %v2482
    %v2547 = vmax.f32 %v2316, %v2483
    %v2548 = vmax.f32 %v2318, %v2484
    %v2549 = vmax.f32 %v2429, %v2485
    %v2550 = vmax.f32 %v2431, %v2486
    %v2551 = vmax.f32 %v2096, %v2487
    %v2552 = vmax.f32 %v2098, %v2488
    %v2553 = vmax.f32 %v2209, %v2489
    %v2554 = vmax.f32 %v2211, %v2490
    %v2555 = vmax.f32 %v2322, %v2491
    %v2556 = vmax.f32 %v2324, %v2492
    %v2557 = vmax.f32 %v2435, %v2493
    %v2558 = vmax.f32 %v2437, %v2494
    %v2559 = vmax.f32 %v2102, %v2495
    %v2560 = vmax.f32 %v2104, %v2496
    %v2561 = vmax.f32 %v2215, %v2497
    %v2562 = vmax.f32 %v2217, %v2498
    %v2563 = vmax.f32 %v2328, %v2499
    %v2564 = vmax.f32 %v2330, %v2500
    %v2565 = vmax.f32 %v2441, %v2501
    %v2566 = vmax.f32 %v2443, %v2502
    %v2567 = vmax.f32 %v2108, %v2503
    %v2568 = vmax.f32 %v2110, %v2504
    %v2569 = vmax.f32 %v2221, %v2505
    %v2570 = vmax.f32 %v2223, %v2506
    %v2571 = vmax.f32 %v2334, %v2507
    %v2572 = vmax.f32 %v2336, %v2508
    %v2573 = vmax.f32 %v2447, %v2509
    %v2574 = vmax.f32 %v2449, %v2510
    %v2575 = vmax.f32 %v2114, %v2511
    %v2576 = vmax.f32 %v2116, %v2512
    %v2577 = vmax.f32 %v2227, %v2513
    %v2578 = vmax.f32 %v2229, %v2514
    %v2579 = vmax.f32 %v2340, %v2515
    %v2580 = vmax.f32 %v2342, %v2516
    %v2581 = vmax.f32 %v2453, %v2517
    %v2582 = vmax.f32 %v2455, %v2518
    %v2583 = vmax.f32 %v2120, %v2519
    %v2584 = vmax.f32 %v2122, %v2520
    %v2585 = vmax.f32 %v2233, %v2521
    %v2586 = vmax.f32 %v2235, %v2522
    %v2587 = vmax.f32 %v2346, %v2523
    %v2588 = vmax.f32 %v2348, %v2524
    %v2589 = vmax.f32 %v2459, %v2525
    %v2590 = vmax.f32 %v2461, %v2526
    %s2591 = scalar_lea.vmem %s4, 8
    %v2592 = vld [vmem:[%s2591] sm:$0x3]
    %s2593 = scalar_lea.vmem %s5, 8
    %v2594 = vld [vmem:[%s2593] sm:$0x3]
    %2596 = vset.pattern.permute.xlu0 0
    %2597 = vperm.xlu0 %2596, %v2594
    %v2598 = vpop.permute.xlu0 %2597
    %v2601 = vsel %vm483, %v2592, 0
    %2603 = vmatprep.subr.mxu0 %v2528
    %2604 = vmatpush1.msra.mxu0 %v2527
    %2605 = vmatprep.subr.mxu0 %v2536
    %2606 = vmatpush1.msra.mxu0 %v2535
    %2607 = vmatprep.subr.mxu0 %v2544
    %2608 = vmatpush1.msra.mxu0 %v2543
    %2609 = vmatprep.subr.mxu0 %v2552
    %2610 = vmatpush1.msra.mxu0 %v2551
    %2611 = vmatprep.subr.mxu0 %v2560
    %2612 = vmatpush1.msra.mxu0 %v2559
    %2613 = vmatprep.subr.mxu0 %v2568
    %2614 = vmatpush1.msra.mxu0 %v2567
    %2615 = vmatprep.subr.mxu0 %v2576
    %2616 = vmatpush1.msra.mxu0 %v2575
    %2617 = vmatprep.subr.mxu0 %v2584
    %2618 = vmatpush1.msra.mxu0 %v2583
    %2619 = vmatprep.subr.mxu0 0.0
    %2620 = vmatpush1.msra.mxu0 0.0
    %2621 = vmatprep.subr.mxu0 0.0
    %2622 = vmatpush1.msra.mxu0 0.0
    %2623 = vmatprep.subr.mxu0 0.0
    %2624 = vmatpush1.msra.mxu0 0.0
    %2625 = vmatprep.subr.mxu0 0.0
    %2626 = vmatpush1.msra.mxu0 0.0
    %2627 = vmatprep.subr.mxu0 0.0
    %2628 = vmatpush1.msra.mxu0 0.0
    %2629 = vmatprep.subr.mxu0 0.0
    %2630 = vmatpush1.msra.mxu0 0.0
    %2631 = vmatprep.subr.mxu0 0.0
    %2632 = vmatpush1.msra.mxu0 0.0
    %2633 = vmatprep.subr.mxu0 0.0
    %2634 = vmatpush1.msra.mxu0 0.0
    %2635 = vmatprep.subr.mxu0 0.0
    %2636 = vmatpush1.msra.mxu0 0.0
    %2637 = vmatprep.subr.mxu0 0.0
    %2638 = vmatpush1.msra.mxu0 0.0
    %2639 = vmatprep.subr.mxu0 0.0
    %2640 = vmatpush1.msra.mxu0 0.0
    %2641 = vmatprep.subr.mxu0 0.0
    %2642 = vmatpush1.msra.mxu0 0.0
    %2643 = vmatprep.subr.mxu0 0.0
    %2644 = vmatpush1.msra.mxu0 0.0
    %2645 = vmatprep.subr.mxu0 0.0
    %2646 = vmatpush1.msra.mxu0 0.0
    %2647 = vmatprep.subr.mxu0 0.0
    %2648 = vmatpush1.msra.mxu0 0.0
    %2649 = vmatprep.subr.mxu0 0.0
    %2650 = vmatpush1.msra.mxu0 0.0
    %2651 = vmatprep.subr.mxu0 0.0
    %2652 = vmatpush1.msra.mxu0 0.0
    %2653 = vmatprep.subr.mxu0 0.0
    %2654 = vmatpush1.msra.mxu0 0.0
    %2655 = vmatprep.subr.mxu0 0.0
    %2656 = vmatpush1.msra.mxu0 0.0
    %2657 = vmatprep.subr.mxu0 0.0
    %2658 = vmatpush1.msra.mxu0 0.0
    %2659 = vmatprep.subr.mxu0 0.0
    %2660 = vmatpush1.msra.mxu0 0.0
    %2661 = vmatprep.subr.mxu0 0.0
    %2662 = vmatpush1.msra.mxu0 0.0
    %2663 = vmatprep.subr.mxu0 0.0
    %2664 = vmatpush1.msra.mxu0 0.0
    %2665 = vmatprep.subr.mxu0 0.0
    %2666 = vmatpush1.msra.mxu0 0.0
    %2667 = vmatprep.mubr.f32.mxu0 0.0
    %2668 = vmatmul.mubr.f32.gmra.mrb[0].mxu0 %v2601
    %v2669 = vpop.f32.mrb[0].mxu0
    %v2670 = vadd.f32 %v2598, %v2669
    %v2671 = vpop.f32.mrb[0].mxu0
    %v2672 = vadd.f32 %v2598, %v2671
    %2673 = vdwg.mxu0
    %2674 = vmatprep.subr.mxu0 %v2530
    %2675 = vmatpush1.msra.mxu0 %v2529
    %2676 = vmatprep.subr.mxu0 %v2538
    %2677 = vmatpush1.msra.mxu0 %v2537
    %2678 = vmatprep.subr.mxu0 %v2546
    %2679 = vmatpush1.msra.mxu0 %v2545
    %2680 = vmatprep.subr.mxu0 %v2554
    %2681 = vmatpush1.msra.mxu0 %v2553
    %2682 = vmatprep.subr.mxu0 %v2562
    %2683 = vmatpush1.msra.mxu0 %v2561
    %2684 = vmatprep.subr.mxu0 %v2570
    %2685 = vmatpush1.msra.mxu0 %v2569
    %2686 = vmatprep.subr.mxu0 %v2578
    %2687 = vmatpush1.msra.mxu0 %v2577
    %2688 = vmatprep.subr.mxu0 %v2586
    %2689 = vmatpush1.msra.mxu0 %v2585
    %2690 = vmatprep.subr.mxu0 0.0
    %2691 = vmatpush1.msra.mxu0 0.0
    %2692 = vmatprep.subr.mxu0 0.0
    %2693 = vmatpush1.msra.mxu0 0.0
    %2694 = vmatprep.subr.mxu0 0.0
    %2695 = vmatpush1.msra.mxu0 0.0
    %2696 = vmatprep.subr.mxu0 0.0
    %2697 = vmatpush1.msra.mxu0 0.0
    %2698 = vmatprep.subr.mxu0 0.0
    %2699 = vmatpush1.msra.mxu0 0.0
    %2700 = vmatprep.subr.mxu0 0.0
    %2701 = vmatpush1.msra.mxu0 0.0
    %2702 = vmatprep.subr.mxu0 0.0
    %2703 = vmatpush1.msra.mxu0 0.0
    %2704 = vmatprep.subr.mxu0 0.0
    %2705 = vmatpush1.msra.mxu0 0.0
    %2706 = vmatprep.subr.mxu0 0.0
    %2707 = vmatpush1.msra.mxu0 0.0
    %2708 = vmatprep.subr.mxu0 0.0
    %2709 = vmatpush1.msra.mxu0 0.0
    %2710 = vmatprep.subr.mxu0 0.0
    %2711 = vmatpush1.msra.mxu0 0.0
    %2712 = vmatprep.subr.mxu0 0.0
    %2713 = vmatpush1.msra.mxu0 0.0
    %2714 = vmatprep.subr.mxu0 0.0
    %2715 = vmatpush1.msra.mxu0 0.0
    %2716 = vmatprep.subr.mxu0 0.0
    %2717 = vmatpush1.msra.mxu0 0.0
    %2718 = vmatprep.subr.mxu0 0.0
    %2719 = vmatpush1.msra.mxu0 0.0
    %2720 = vmatprep.subr.mxu0 0.0
    %2721 = vmatpush1.msra.mxu0 0.0
    %2722 = vmatprep.subr.mxu0 0.0
    %2723 = vmatpush1.msra.mxu0 0.0
    %2724 = vmatprep.subr.mxu0 0.0
    %2725 = vmatpush1.msra.mxu0 0.0
    %2726 = vmatprep.subr.mxu0 0.0
    %2727 = vmatpush1.msra.mxu0 0.0
    %2728 = vmatprep.subr.mxu0 0.0
    %2729 = vmatpush1.msra.mxu0 0.0
    %2730 = vmatprep.subr.mxu0 0.0
    %2731 = vmatpush1.msra.mxu0 0.0
    %2732 = vmatprep.subr.mxu0 0.0
    %2733 = vmatpush1.msra.mxu0 0.0
    %2734 = vmatprep.subr.mxu0 0.0
    %2735 = vmatpush1.msra.mxu0 0.0
    %2736 = vmatprep.subr.mxu0 0.0
    %2737 = vmatpush1.msra.mxu0 0.0
    %2738 = vmatprep.mubr.f32.mxu0 0.0
    %2739 = vmatmul.mubr.f32.gmra.mrb[0].mxu0 %v2601
    %v2740 = vpop.f32.mrb[0].mxu0
    %v2741 = vadd.f32 %v2598, %v2740
    %v2742 = vpop.f32.mrb[0].mxu0
    %v2743 = vadd.f32 %v2598, %v2742
    %2744 = vdwg.mxu0
    %2745 = vmatprep.subr.mxu0 %v2532
    %2746 = vmatpush1.msra.mxu0 %v2531
    %2747 = vmatprep.subr.mxu0 %v2540
    %2748 = vmatpush1.msra.mxu0 %v2539
    %2749 = vmatprep.subr.mxu0 %v2548
    %2750 = vmatpush1.msra.mxu0 %v2547
    %2751 = vmatprep.subr.mxu0 %v2556
    %2752 = vmatpush1.msra.mxu0 %v2555
    %2753 = vmatprep.subr.mxu0 %v2564
    %2754 = vmatpush1.msra.mxu0 %v2563
    %2755 = vmatprep.subr.mxu0 %v2572
    %2756 = vmatpush1.msra.mxu0 %v2571
    %2757 = vmatprep.subr.mxu0 %v2580
    %2758 = vmatpush1.msra.mxu0 %v2579
    %2759 = vmatprep.subr.mxu0 %v2588
    %2760 = vmatpush1.msra.mxu0 %v2587
    %2761 = vmatprep.subr.mxu0 0.0
    %2762 = vmatpush1.msra.mxu0 0.0
    %2763 = vmatprep.subr.mxu0 0.0
    %2764 = vmatpush1.msra.mxu0 0.0
    %2765 = vmatprep.subr.mxu0 0.0
    %2766 = vmatpush1.msra.mxu0 0.0
    %2767 = vmatprep.subr.mxu0 0.0
    %2768 = vmatpush1.msra.mxu0 0.0
    %2769 = vmatprep.subr.mxu0 0.0
    %2770 = vmatpush1.msra.mxu0 0.0
    %2771 = vmatprep.subr.mxu0 0.0
    %2772 = vmatpush1.msra.mxu0 0.0
    %2773 = vmatprep.subr.mxu0 0.0
    %2774 = vmatpush1.msra.mxu0 0.0
    %2775 = vmatprep.subr.mxu0 0.0
    %2776 = vmatpush1.msra.mxu0 0.0
    %2777 = vmatprep.subr.mxu0 0.0
    %2778 = vmatpush1.msra.mxu0 0.0
    %2779 = vmatprep.subr.mxu0 0.0
    %2780 = vmatpush1.msra.mxu0 0.0
    %2781 = vmatprep.subr.mxu0 0.0
    %2782 = vmatpush1.msra.mxu0 0.0
    %2783 = vmatprep.subr.mxu0 0.0
    %2784 = vmatpush1.msra.mxu0 0.0
    %2785 = vmatprep.subr.mxu0 0.0
    %2786 = vmatpush1.msra.mxu0 0.0
    %2787 = vmatprep.subr.mxu0 0.0
    %2788 = vmatpush1.msra.mxu0 0.0
    %2789 = vmatprep.subr.mxu0 0.0
    %2790 = vmatpush1.msra.mxu0 0.0
    %2791 = vmatprep.subr.mxu0 0.0
    %2792 = vmatpush1.msra.mxu0 0.0
    %2793 = vmatprep.subr.mxu0 0.0
    %2794 = vmatpush1.msra.mxu0 0.0
    %2795 = vmatprep.subr.mxu0 0.0
    %2796 = vmatpush1.msra.mxu0 0.0
    %2797 = vmatprep.subr.mxu0 0.0
    %2798 = vmatpush1.msra.mxu0 0.0
    %2799 = vmatprep.subr.mxu0 0.0
    %2800 = vmatpush1.msra.mxu0 0.0
    %2801 = vmatprep.subr.mxu0 0.0
    %2802 = vmatpush1.msra.mxu0 0.0
    %2803 = vmatprep.subr.mxu0 0.0
    %2804 = vmatpush1.msra.mxu0 0.0
    %2805 = vmatprep.subr.mxu0 0.0
    %2806 = vmatpush1.msra.mxu0 0.0
    %2807 = vmatprep.subr.mxu0 0.0
    %2808 = vmatpush1.msra.mxu0 0.0
    %2809 = vmatprep.mubr.f32.mxu0 0.0
    %2810 = vmatmul.mubr.f32.gmra.mrb[0].mxu0 %v2601
    %v2811 = vpop.f32.mrb[0].mxu0
    %v2812 = vadd.f32 %v2598, %v2811
    %v2813 = vpop.f32.mrb[0].mxu0
    %v2814 = vadd.f32 %v2598, %v2813
    %2815 = vdwg.mxu0
    %2816 = vmatprep.subr.mxu0 %v2534
    %2817 = vmatpush1.msra.mxu0 %v2533
    %2818 = vmatprep.subr.mxu0 %v2542
    %2819 = vmatpush1.msra.mxu0 %v2541
    %2820 = vmatprep.subr.mxu0 %v2550
    %2821 = vmatpush1.msra.mxu0 %v2549
    %2822 = vmatprep.subr.mxu0 %v2558
    %2823 = vmatpush1.msra.mxu0 %v2557
    %2824 = vmatprep.subr.mxu0 %v2566
    %2825 = vmatpush1.msra.mxu0 %v2565
    %2826 = vmatprep.subr.mxu0 %v2574
    %2827 = vmatpush1.msra.mxu0 %v2573
    %2828 = vmatprep.subr.mxu0 %v2582
    %2829 = vmatpush1.msra.mxu0 %v2581
    %2830 = vmatprep.subr.mxu0 %v2590
    %2831 = vmatpush1.msra.mxu0 %v2589
    %2832 = vmatprep.subr.mxu0 0.0
    %2833 = vmatpush1.msra.mxu0 0.0
    %2834 = vmatprep.subr.mxu0 0.0
    %2835 = vmatpush1.msra.mxu0 0.0
    %2836 = vmatprep.subr.mxu0 0.0
    %2837 = vmatpush1.msra.mxu0 0.0
    %2838 = vmatprep.subr.mxu0 0.0
    %2839 = vmatpush1.msra.mxu0 0.0
    %2840 = vmatprep.subr.mxu0 0.0
    %2841 = vmatpush1.msra.mxu0 0.0
    %2842 = vmatprep.subr.mxu0 0.0
    %2843 = vmatpush1.msra.mxu0 0.0
    %2844 = vmatprep.subr.mxu0 0.0
    %2845 = vmatpush1.msra.mxu0 0.0
    %2846 = vmatprep.subr.mxu0 0.0
    %2847 = vmatpush1.msra.mxu0 0.0
    %2848 = vmatprep.subr.mxu0 0.0
    %2849 = vmatpush1.msra.mxu0 0.0
    %2850 = vmatprep.subr.mxu0 0.0
    %2851 = vmatpush1.msra.mxu0 0.0
    %2852 = vmatprep.subr.mxu0 0.0
    %2853 = vmatpush1.msra.mxu0 0.0
    %2854 = vmatprep.subr.mxu0 0.0
    %2855 = vmatpush1.msra.mxu0 0.0
    %2856 = vmatprep.subr.mxu0 0.0
    %2857 = vmatpush1.msra.mxu0 0.0
    %2858 = vmatprep.subr.mxu0 0.0
    %2859 = vmatpush1.msra.mxu0 0.0
    %2860 = vmatprep.subr.mxu0 0.0
    %2861 = vmatpush1.msra.mxu0 0.0
    %2862 = vmatprep.subr.mxu0 0.0
    %2863 = vmatpush1.msra.mxu0 0.0
    %2864 = vmatprep.subr.mxu0 0.0
    %2865 = vmatpush1.msra.mxu0 0.0
    %2866 = vmatprep.subr.mxu0 0.0
    %2867 = vmatpush1.msra.mxu0 0.0
    %2868 = vmatprep.subr.mxu0 0.0
    %2869 = vmatpush1.msra.mxu0 0.0
    %2870 = vmatprep.subr.mxu0 0.0
    %2871 = vmatpush1.msra.mxu0 0.0
    %2872 = vmatprep.subr.mxu0 0.0
    %2873 = vmatpush1.msra.mxu0 0.0
    %2874 = vmatprep.subr.mxu0 0.0
    %2875 = vmatpush1.msra.mxu0 0.0
    %2876 = vmatprep.subr.mxu0 0.0
    %2877 = vmatpush1.msra.mxu0 0.0
    %2878 = vmatprep.subr.mxu0 0.0
    %2879 = vmatpush1.msra.mxu0 0.0
    %2880 = vmatprep.mubr.f32.mxu0 0.0
    %2881 = vmatmul.mubr.f32.gmra.mrb[0].mxu0 %v2601
    %v2882 = vpop.f32.mrb[0].mxu0
    %v2883 = vadd.f32 %v2598, %v2882
    %v2884 = vpop.f32.mrb[0].mxu0
    %v2885 = vadd.f32 %v2598, %v2884
    %2886 = vdwg.mxu0
    %v2887 = vtanh.pop %v2670
    %v2888 = vtanh.pop %v2672
    %v2889 = vtanh.pop %v2741
    %v2890 = vtanh.pop %v2743
    %v2891 = vtanh.pop %v2812
    %v2892 = vtanh.pop %v2814
    %v2893 = vtanh.pop %v2883
    %v2894 = vtanh.pop %v2885
    %v2903 = vcombine.low %v2670, %v2672
    %v2904 = vcombine.low %v2741, %v2743
    %v2905 = vcombine.low %v2812, %v2814
    %v2906 = vcombine.low %v2883, %v2885
    %v2908 = vunpack.c.l.s4 1966171168
    %v2909 = vunpack.c.0.s8 %v2908
    %v2910 = vlaneseq
    %v2911 = vshrl.u32 %v2910, 7
    %v2912 = vsub.s32 %v2909, %v2911
    %v2913 = vrot.slane %v2903, %v2912
    %v2915 = vunpack.c.l.s4 1966171168
    %v2916 = vunpack.c.0.s8 %v2915
    %v2917 = vlaneseq
    %v2918 = vshrl.u32 %v2917, 7
    %v2919 = vsub.s32 %v2916, %v2918
    %v2920 = vrot.slane %v2904, %v2919
    %v2922 = vunpack.c.l.s4 1966171168
    %v2923 = vunpack.c.0.s8 %v2922
    %v2924 = vlaneseq
    %v2925 = vshrl.u32 %v2924, 7
    %v2926 = vsub.s32 %v2923, %v2925
    %v2927 = vrot.slane %v2905, %v2926
    %v2929 = vunpack.c.l.s4 1966171168
    %v2930 = vunpack.c.0.s8 %v2929
    %v2931 = vlaneseq
    %v2932 = vshrl.u32 %v2931, 7
    %v2933 = vsub.s32 %v2930, %v2932
    %v2934 = vrot.slane %v2906, %v2933
    %v2935 = vcombine.high %v2913, %v2920
    %v2936 = vcombine.high %v2927, %v2934
    %v2938 = vunpack.c.l.s4 1966171168
    %v2939 = vunpack.c.0.s8 %v2938
    %v2940 = vlaneseq
    %v2941 = vshrl.u32 %v2940, 7
    %v2942 = vsub.s32 %v2939, %v2941
    %v2943 = vrot.slane %v2935, %v2942
    %v2945 = vunpack.c.l.s4 1966171168
    %v2946 = vunpack.c.0.s8 %v2945
    %v2947 = vlaneseq
    %v2948 = vshrl.u32 %v2947, 7
    %v2949 = vsub.s32 %v2946, %v2948
    %v2950 = vrot.slane %v2936, %v2949
    %v2951 = vcombine.low %v2943, %v2950
    %v2953 = vsub.f32 %v27, %v2951
    %v2954 = vsub.f32 0.0, %v2887
    %v2955 = vsub.f32 0.0, %v2888
    %v2956 = vsub.f32 0.0, %v2889
    %v2957 = vsub.f32 0.0, %v2890
    %v2958 = vsub.f32 0.0, %v2891
    %v2959 = vsub.f32 0.0, %v2892
    %v2960 = vsub.f32 0.0, %v2893
    %v2961 = vsub.f32 0.0, %v2894
    %v2962 = vmul.f32 %v2954, 1.442695
    %v2963 = vpow.pop %v2962
    %v2964 = vmul.f32 %v2955, 1.442695
    %v2965 = vpow.pop %v2964
    %v2966 = vmul.f32 %v2956, 1.442695
    %v2967 = vpow.pop %v2966
    %v2968 = vmul.f32 %v2957, 1.442695
    %v2969 = vpow.pop %v2968
    %v2970 = vmul.f32 %v2958, 1.442695
    %v2971 = vpow.pop %v2970
    %v2972 = vmul.f32 %v2959, 1.442695
    %v2973 = vpow.pop %v2972
    %v2974 = vmul.f32 %v2960, 1.442695
    %v2975 = vpow.pop %v2974
    %v2976 = vmul.f32 %v2961, 1.442695
    %v2977 = vpow.pop %v2976
    %v2986 = vcombine.low %v2963, %v2965
    %v2987 = vcombine.low %v2967, %v2969
    %v2988 = vcombine.low %v2971, %v2973
    %v2989 = vcombine.low %v2975, %v2977
    %v2991 = vunpack.c.l.s4 1966171168
    %v2992 = vunpack.c.0.s8 %v2991
    %v2993 = vlaneseq
    %v2994 = vshrl.u32 %v2993, 7
    %v2995 = vsub.s32 %v2992, %v2994
    %v2996 = vrot.slane %v2986, %v2995
    %v2998 = vunpack.c.l.s4 1966171168
    %v2999 = vunpack.c.0.s8 %v2998
    %v3000 = vlaneseq
    %v3001 = vshrl.u32 %v3000, 7
    %v3002 = vsub.s32 %v2999, %v3001
    %v3003 = vrot.slane %v2987, %v3002
    %v3005 = vunpack.c.l.s4 1966171168
    %v3006 = vunpack.c.0.s8 %v3005
    %v3007 = vlaneseq
    %v3008 = vshrl.u32 %v3007, 7
    %v3009 = vsub.s32 %v3006, %v3008
    %v3010 = vrot.slane %v2988, %v3009
    %v3012 = vunpack.c.l.s4 1966171168
    %v3013 = vunpack.c.0.s8 %v3012
    %v3014 = vlaneseq
    %v3015 = vshrl.u32 %v3014, 7
    %v3016 = vsub.s32 %v3013, %v3015
    %v3017 = vrot.slane %v2989, %v3016
    %v3018 = vcombine.low %v2996, %v3003
    %v3019 = vcombine.low %v3010, %v3017
    %v3021 = vunpack.c.l.s4 1966171168
    %v3022 = vunpack.c.0.s8 %v3021
    %v3023 = vlaneseq
    %v3024 = vshrl.u32 %v3023, 7
    %v3025 = vsub.s32 %v3022, %v3024
    %v3026 = vrot.slane %v3018, %v3025
    %v3028 = vunpack.c.l.s4 1966171168
    %v3029 = vunpack.c.0.s8 %v3028
    %v3030 = vlaneseq
    %v3031 = vshrl.u32 %v3030, 7
    %v3032 = vsub.s32 %v3029, %v3031
    %v3033 = vrot.slane %v3019, %v3032
    %v3034 = vcombine.low %v3026, %v3033
    %v3036 = vmul.f32 %v2953, %v3034
    %s3037 = scalar_lea.vmem %s0, 192
    %v3038 = vld [vmem:[%s3037] sm:$0xff]
    %v3039 = vld [vmem:[%s3037 + $0x8] sm:$0xff]
    %v3040 = vld [vmem:[%s3037 + $0x10] sm:$0xff]
    %v3041 = vld [vmem:[%s3037 + $0x18] sm:$0xff]
    %v3042 = vld [vmem:[%s3037 + $0x20] sm:$0xff]
    %v3043 = vld [vmem:[%s3037 + $0x28] sm:$0xff]
    %v3044 = vld [vmem:[%s3037 + $0x30] sm:$0xff]
    %v3045 = vld [vmem:[%s3037 + $0x38] sm:$0xff]
    %3047 = vset.pattern.permute.xlu0 0
    %3048 = vperm.xlu0 %3047, %v3038
    %v3049 = vpop.permute.xlu0 %3048
    %3052 = vset.pattern.permute.xlu0 0
    %3053 = vperm.xlu0 %3052, %v3039
    %v3054 = vpop.permute.xlu0 %3053
    %3057 = vset.pattern.permute.xlu0 0
    %3058 = vperm.xlu0 %3057, %v3040
    %v3059 = vpop.permute.xlu0 %3058
    %3062 = vset.pattern.permute.xlu0 0
    %3063 = vperm.xlu0 %3062, %v3041
    %v3064 = vpop.permute.xlu0 %3063
    %3067 = vset.pattern.permute.xlu0 0
    %3068 = vperm.xlu0 %3067, %v3042
    %v3069 = vpop.permute.xlu0 %3068
    %3072 = vset.pattern.permute.xlu0 0
    %3073 = vperm.xlu0 %3072, %v3043
    %v3074 = vpop.permute.xlu0 %3073
    %3077 = vset.pattern.permute.xlu0 0
    %3078 = vperm.xlu0 %3077, %v3044
    %v3079 = vpop.permute.xlu0 %3078
    %3082 = vset.pattern.permute.xlu0 0
    %3083 = vperm.xlu0 %3082, %v3045
    %v3084 = vpop.permute.xlu0 %3083
    %v3087 = vlaneseq
    %v3088 = vshrl.u32 %v3087, 7
    %v3089 = vsub.s32 0, %v3088
    %v3090 = vrot.slane %v3036, %v3089
    %v3091 = vlaneseq
    %v3092 = vshrl.u32 %v3091, 7
    %v3093 = vsub.s32 1, %v3092
    %v3094 = vrot.slane %v3036, %v3093
    %v3095 = vlaneseq
    %v3096 = vshrl.u32 %v3095, 7
    %v3097 = vsub.s32 2, %v3096
    %v3098 = vrot.slane %v3036, %v3097
    %v3099 = vlaneseq
    %v3100 = vshrl.u32 %v3099, 7
    %v3101 = vsub.s32 3, %v3100
    %v3102 = vrot.slane %v3036, %v3101
    %v3103 = vlaneseq
    %v3104 = vshrl.u32 %v3103, 7
    %v3105 = vsub.s32 4, %v3104
    %v3106 = vrot.slane %v3036, %v3105
    %v3107 = vlaneseq
    %v3108 = vshrl.u32 %v3107, 7
    %v3109 = vsub.s32 5, %v3108
    %v3110 = vrot.slane %v3036, %v3109
    %v3111 = vlaneseq
    %v3112 = vshrl.u32 %v3111, 7
    %v3113 = vsub.s32 6, %v3112
    %v3114 = vrot.slane %v3036, %v3113
    %v3115 = vlaneseq
    %v3116 = vshrl.u32 %v3115, 7
    %v3117 = vsub.s32 7, %v3116
    %v3118 = vrot.slane %v3036, %v3117
    %v3127 = vmul.f32 %v3049, %v3090
    %v3128 = vmul.f32 %v3049, %v3094
    %v3129 = vmul.f32 %v3049, %v3098
    %v3130 = vmul.f32 %v3049, %v3102
    %v3131 = vmul.f32 %v3049, %v3106
    %v3132 = vmul.f32 %v3049, %v3110
    %v3133 = vmul.f32 %v3049, %v3114
    %v3134 = vmul.f32 %v3049, %v3118
    %v3135 = vmul.f32 %v3054, %v3090
    %v3136 = vmul.f32 %v3054, %v3094
    %v3137 = vmul.f32 %v3054, %v3098
    %v3138 = vmul.f32 %v3054, %v3102
    %v3139 = vmul.f32 %v3054, %v3106
    %v3140 = vmul.f32 %v3054, %v3110
    %v3141 = vmul.f32 %v3054, %v3114
    %v3142 = vmul.f32 %v3054, %v3118
    %v3143 = vmul.f32 %v3059, %v3090
    %v3144 = vmul.f32 %v3059, %v3094
    %v3145 = vmul.f32 %v3059, %v3098
    %v3146 = vmul.f32 %v3059, %v3102
    %v3147 = vmul.f32 %v3059, %v3106
    %v3148 = vmul.f32 %v3059, %v3110
    %v3149 = vmul.f32 %v3059, %v3114
    %v3150 = vmul.f32 %v3059, %v3118
    %v3151 = vmul.f32 %v3064, %v3090
    %v3152 = vmul.f32 %v3064, %v3094
    %v3153 = vmul.f32 %v3064, %v3098
    %v3154 = vmul.f32 %v3064, %v3102
    %v3155 = vmul.f32 %v3064, %v3106
    %v3156 = vmul.f32 %v3064, %v3110
    %v3157 = vmul.f32 %v3064, %v3114
    %v3158 = vmul.f32 %v3064, %v3118
    %v3159 = vmul.f32 %v3069, %v3090
    %v3160 = vmul.f32 %v3069, %v3094
    %v3161 = vmul.f32 %v3069, %v3098
    %v3162 = vmul.f32 %v3069, %v3102
    %v3163 = vmul.f32 %v3069, %v3106
    %v3164 = vmul.f32 %v3069, %v3110
    %v3165 = vmul.f32 %v3069, %v3114
    %v3166 = vmul.f32 %v3069, %v3118
    %v3167 = vmul.f32 %v3074, %v3090
    %v3168 = vmul.f32 %v3074, %v3094
    %v3169 = vmul.f32 %v3074, %v3098
    %v3170 = vmul.f32 %v3074, %v3102
    %v3171 = vmul.f32 %v3074, %v3106
    %v3172 = vmul.f32 %v3074, %v3110
    %v3173 = vmul.f32 %v3074, %v3114
    %v3174 = vmul.f32 %v3074, %v3118
    %v3175 = vmul.f32 %v3079, %v3090
    %v3176 = vmul.f32 %v3079, %v3094
    %v3177 = vmul.f32 %v3079, %v3098
    %v3178 = vmul.f32 %v3079, %v3102
    %v3179 = vmul.f32 %v3079, %v3106
    %v3180 = vmul.f32 %v3079, %v3110
    %v3181 = vmul.f32 %v3079, %v3114
    %v3182 = vmul.f32 %v3079, %v3118
    %v3183 = vmul.f32 %v3084, %v3090
    %v3184 = vmul.f32 %v3084, %v3094
    %v3185 = vmul.f32 %v3084, %v3098
    %v3186 = vmul.f32 %v3084, %v3102
    %v3187 = vmul.f32 %v3084, %v3106
    %v3188 = vmul.f32 %v3084, %v3110
    %v3189 = vmul.f32 %v3084, %v3114
    %v3190 = vmul.f32 %v3084, %v3118
    %s3191 = scalar_lea.vmem %s1, 192
    %v3192 = vld [vmem:[%s3191] sm:$0xff]
    %v3193 = vld [vmem:[%s3191 + $0x8] sm:$0xff]
    %v3194 = vld [vmem:[%s3191 + $0x10] sm:$0xff]
    %v3195 = vld [vmem:[%s3191 + $0x18] sm:$0xff]
    %v3196 = vld [vmem:[%s3191 + $0x20] sm:$0xff]
    %v3197 = vld [vmem:[%s3191 + $0x28] sm:$0xff]
    %v3198 = vld [vmem:[%s3191 + $0x30] sm:$0xff]
    %v3199 = vld [vmem:[%s3191 + $0x38] sm:$0xff]
    %3201 = vset.pattern.permute.xlu0 0
    %3202 = vperm.xlu0 %3201, %v3192
    %v3203 = vpop.permute.xlu0 %3202
    %3206 = vset.pattern.permute.xlu0 0
    %3207 = vperm.xlu0 %3206, %v3193
    %v3208 = vpop.permute.xlu0 %3207
    %3211 = vset.pattern.permute.xlu0 0
    %3212 = vperm.xlu0 %3211, %v3194
    %v3213 = vpop.permute.xlu0 %3212
    %3216 = vset.pattern.permute.xlu0 0
    %3217 = vperm.xlu0 %3216, %v3195
    %v3218 = vpop.permute.xlu0 %3217
    %3221 = vset.pattern.permute.xlu0 0
    %3222 = vperm.xlu0 %3221, %v3196
    %v3223 = vpop.permute.xlu0 %3222
    %3226 = vset.pattern.permute.xlu0 0
    %3227 = vperm.xlu0 %3226, %v3197
    %v3228 = vpop.permute.xlu0 %3227
    %3231 = vset.pattern.permute.xlu0 0
    %3232 = vperm.xlu0 %3231, %v3198
    %v3233 = vpop.permute.xlu0 %3232
    %3236 = vset.pattern.permute.xlu0 0
    %3237 = vperm.xlu0 %3236, %v3199
    %v3238 = vpop.permute.xlu0 %3237
    %v3240 = vadd.f32 %v3127, %v3203
    %v3241 = vadd.f32 %v3128, %v3203
    %v3242 = vadd.f32 %v3129, %v3203
    %v3243 = vadd.f32 %v3130, %v3203
    %v3244 = vadd.f32 %v3131, %v3203
    %v3245 = vadd.f32 %v3132, %v3203
    %v3246 = vadd.f32 %v3133, %v3203
    %v3247 = vadd.f32 %v3134, %v3203
    %v3248 = vadd.f32 %v3135, %v3208
    %v3249 = vadd.f32 %v3136, %v3208
    %v3250 = vadd.f32 %v3137, %v3208
    %v3251 = vadd.f32 %v3138, %v3208
    %v3252 = vadd.f32 %v3139, %v3208
    %v3253 = vadd.f32 %v3140, %v3208
    %v3254 = vadd.f32 %v3141, %v3208
    %v3255 = vadd.f32 %v3142, %v3208
    %v3256 = vadd.f32 %v3143, %v3213
    %v3257 = vadd.f32 %v3144, %v3213
    %v3258 = vadd.f32 %v3145, %v3213
    %v3259 = vadd.f32 %v3146, %v3213
    %v3260 = vadd.f32 %v3147, %v3213
    %v3261 = vadd.f32 %v3148, %v3213
    %v3262 = vadd.f32 %v3149, %v3213
    %v3263 = vadd.f32 %v3150, %v3213
    %v3264 = vadd.f32 %v3151, %v3218
    %v3265 = vadd.f32 %v3152, %v3218
    %v3266 = vadd.f32 %v3153, %v3218
    %v3267 = vadd.f32 %v3154, %v3218
    %v3268 = vadd.f32 %v3155, %v3218
    %v3269 = vadd.f32 %v3156, %v3218
    %v3270 = vadd.f32 %v3157, %v3218
    %v3271 = vadd.f32 %v3158, %v3218
    %v3272 = vadd.f32 %v3159, %v3223
    %v3273 = vadd.f32 %v3160, %v3223
    %v3274 = vadd.f32 %v3161, %v3223
    %v3275 = vadd.f32 %v3162, %v3223
    %v3276 = vadd.f32 %v3163, %v3223
    %v3277 = vadd.f32 %v3164, %v3223
    %v3278 = vadd.f32 %v3165, %v3223
    %v3279 = vadd.f32 %v3166, %v3223
    %v3280 = vadd.f32 %v3167, %v3228
    %v3281 = vadd.f32 %v3168, %v3228
    %v3282 = vadd.f32 %v3169, %v3228
    %v3283 = vadd.f32 %v3170, %v3228
    %v3284 = vadd.f32 %v3171, %v3228
    %v3285 = vadd.f32 %v3172, %v3228
    %v3286 = vadd.f32 %v3173, %v3228
    %v3287 = vadd.f32 %v3174, %v3228
    %v3288 = vadd.f32 %v3175, %v3233
    %v3289 = vadd.f32 %v3176, %v3233
    %v3290 = vadd.f32 %v3177, %v3233
    %v3291 = vadd.f32 %v3178, %v3233
    %v3292 = vadd.f32 %v3179, %v3233
    %v3293 = vadd.f32 %v3180, %v3233
    %v3294 = vadd.f32 %v3181, %v3233
    %v3295 = vadd.f32 %v3182, %v3233
    %v3296 = vadd.f32 %v3183, %v3238
    %v3297 = vadd.f32 %v3184, %v3238
    %v3298 = vadd.f32 %v3185, %v3238
    %v3299 = vadd.f32 %v3186, %v3238
    %v3300 = vadd.f32 %v3187, %v3238
    %v3301 = vadd.f32 %v3188, %v3238
    %v3302 = vadd.f32 %v3189, %v3238
    %v3303 = vadd.f32 %v3190, %v3238
    %v3304 = vmul.f32 %v3240, 0.01
    %v3305 = vmul.f32 %v3241, 0.01
    %v3306 = vmul.f32 %v3242, 0.01
    %v3307 = vmul.f32 %v3243, 0.01
    %v3308 = vmul.f32 %v3244, 0.01
    %v3309 = vmul.f32 %v3245, 0.01
    %v3310 = vmul.f32 %v3246, 0.01
    %v3311 = vmul.f32 %v3247, 0.01
    %v3312 = vmul.f32 %v3248, 0.01
    %v3313 = vmul.f32 %v3249, 0.01
    %v3314 = vmul.f32 %v3250, 0.01
    %v3315 = vmul.f32 %v3251, 0.01
    %v3316 = vmul.f32 %v3252, 0.01
    %v3317 = vmul.f32 %v3253, 0.01
    %v3318 = vmul.f32 %v3254, 0.01
    %v3319 = vmul.f32 %v3255, 0.01
    %v3320 = vmul.f32 %v3256, 0.01
    %v3321 = vmul.f32 %v3257, 0.01
    %v3322 = vmul.f32 %v3258, 0.01
    %v3323 = vmul.f32 %v3259, 0.01
    %v3324 = vmul.f32 %v3260, 0.01
    %v3325 = vmul.f32 %v3261, 0.01
    %v3326 = vmul.f32 %v3262, 0.01
    %v3327 = vmul.f32 %v3263, 0.01
    %v3328 = vmul.f32 %v3264, 0.01
    %v3329 = vmul.f32 %v3265, 0.01
    %v3330 = vmul.f32 %v3266, 0.01
    %v3331 = vmul.f32 %v3267, 0.01
    %v3332 = vmul.f32 %v3268, 0.01
    %v3333 = vmul.f32 %v3269, 0.01
    %v3334 = vmul.f32 %v3270, 0.01
    %v3335 = vmul.f32 %v3271, 0.01
    %v3336 = vmul.f32 %v3272, 0.01
    %v3337 = vmul.f32 %v3273, 0.01
    %v3338 = vmul.f32 %v3274, 0.01
    %v3339 = vmul.f32 %v3275, 0.01
    %v3340 = vmul.f32 %v3276, 0.01
    %v3341 = vmul.f32 %v3277, 0.01
    %v3342 = vmul.f32 %v3278, 0.01
    %v3343 = vmul.f32 %v3279, 0.01
    %v3344 = vmul.f32 %v3280, 0.01
    %v3345 = vmul.f32 %v3281, 0.01
    %v3346 = vmul.f32 %v3282, 0.01
    %v3347 = vmul.f32 %v3283, 0.01
    %v3348 = vmul.f32 %v3284, 0.01
    %v3349 = vmul.f32 %v3285, 0.01
    %v3350 = vmul.f32 %v3286, 0.01
    %v3351 = vmul.f32 %v3287, 0.01
    %v3352 = vmul.f32 %v3288, 0.01
    %v3353 = vmul.f32 %v3289, 0.01
    %v3354 = vmul.f32 %v3290, 0.01
    %v3355 = vmul.f32 %v3291, 0.01
    %v3356 = vmul.f32 %v3292, 0.01
    %v3357 = vmul.f32 %v3293, 0.01
    %v3358 = vmul.f32 %v3294, 0.01
    %v3359 = vmul.f32 %v3295, 0.01
    %v3360 = vmul.f32 %v3296, 0.01
    %v3361 = vmul.f32 %v3297, 0.01
    %v3362 = vmul.f32 %v3298, 0.01
    %v3363 = vmul.f32 %v3299, 0.01
    %v3364 = vmul.f32 %v3300, 0.01
    %v3365 = vmul.f32 %v3301, 0.01
    %v3366 = vmul.f32 %v3302, 0.01
    %v3367 = vmul.f32 %v3303, 0.01
    %v3368 = vmax.f32 %v3240, %v3304
    %v3369 = vmax.f32 %v3241, %v3305
    %v3370 = vmax.f32 %v3242, %v3306
    %v3371 = vmax.f32 %v3243, %v3307
    %v3372 = vmax.f32 %v3244, %v3308
    %v3373 = vmax.f32 %v3245, %v3309
    %v3374 = vmax.f32 %v3246, %v3310
    %v3375 = vmax.f32 %v3247, %v3311
    %v3376 = vmax.f32 %v3248, %v3312
    %v3377 = vmax.f32 %v3249, %v3313
    %v3378 = vmax.f32 %v3250, %v3314
    %v3379 = vmax.f32 %v3251, %v3315
    %v3380 = vmax.f32 %v3252, %v3316
    %v3381 = vmax.f32 %v3253, %v3317
    %v3382 = vmax.f32 %v3254, %v3318
    %v3383 = vmax.f32 %v3255, %v3319
    %v3384 = vmax.f32 %v3256, %v3320
    %v3385 = vmax.f32 %v3257, %v3321
    %v3386 = vmax.f32 %v3258, %v3322
    %v3387 = vmax.f32 %v3259, %v3323
    %v3388 = vmax.f32 %v3260, %v3324
    %v3389 = vmax.f32 %v3261, %v3325
    %v3390 = vmax.f32 %v3262, %v3326
    %v3391 = vmax.f32 %v3263, %v3327
    %v3392 = vmax.f32 %v3264, %v3328
    %v3393 = vmax.f32 %v3265, %v3329
    %v3394 = vmax.f32 %v3266, %v3330
    %v3395 = vmax.f32 %v3267, %v3331
    %v3396 = vmax.f32 %v3268, %v3332
    %v3397 = vmax.f32 %v3269, %v3333
    %v3398 = vmax.f32 %v3270, %v3334
    %v3399 = vmax.f32 %v3271, %v3335
    %v3400 = vmax.f32 %v3272, %v3336
    %v3401 = vmax.f32 %v3273, %v3337
    %v3402 = vmax.f32 %v3274, %v3338
    %v3403 = vmax.f32 %v3275, %v3339
    %v3404 = vmax.f32 %v3276, %v3340
    %v3405 = vmax.f32 %v3277, %v3341
    %v3406 = vmax.f32 %v3278, %v3342
    %v3407 = vmax.f32 %v3279, %v3343
    %v3408 = vmax.f32 %v3280, %v3344
    %v3409 = vmax.f32 %v3281, %v3345
    %v3410 = vmax.f32 %v3282, %v3346
    %v3411 = vmax.f32 %v3283, %v3347
    %v3412 = vmax.f32 %v3284, %v3348
    %v3413 = vmax.f32 %v3285, %v3349
    %v3414 = vmax.f32 %v3286, %v3350
    %v3415 = vmax.f32 %v3287, %v3351
    %v3416 = vmax.f32 %v3288, %v3352
    %v3417 = vmax.f32 %v3289, %v3353
    %v3418 = vmax.f32 %v3290, %v3354
    %v3419 = vmax.f32 %v3291, %v3355
    %v3420 = vmax.f32 %v3292, %v3356
    %v3421 = vmax.f32 %v3293, %v3357
    %v3422 = vmax.f32 %v3294, %v3358
    %v3423 = vmax.f32 %v3295, %v3359
    %v3424 = vmax.f32 %v3296, %v3360
    %v3425 = vmax.f32 %v3297, %v3361
    %v3426 = vmax.f32 %v3298, %v3362
    %v3427 = vmax.f32 %v3299, %v3363
    %v3428 = vmax.f32 %v3300, %v3364
    %v3429 = vmax.f32 %v3301, %v3365
    %v3430 = vmax.f32 %v3302, %v3366
    %v3431 = vmax.f32 %v3303, %v3367
    %s3432 = scalar_lea.vmem %s2, 192
    %v3433 = vld [vmem:[%s3432] sm:$0xff]
    %v3434 = vld [vmem:[%s3432 + $0x8] sm:$0xff]
    %v3435 = vld [vmem:[%s3432 + $0x10] sm:$0xff]
    %v3436 = vld [vmem:[%s3432 + $0x18] sm:$0xff]
    %v3437 = vld [vmem:[%s3432 + $0x20] sm:$0xff]
    %v3438 = vld [vmem:[%s3432 + $0x28] sm:$0xff]
    %v3439 = vld [vmem:[%s3432 + $0x30] sm:$0xff]
    %v3440 = vld [vmem:[%s3432 + $0x38] sm:$0xff]
    %s3441 = scalar_lea.vmem %s3, 192
    %v3442 = vld [vmem:[%s3441] sm:$0xff]
    %v3443 = vld [vmem:[%s3441 + $0x8] sm:$0xff]
    %v3444 = vld [vmem:[%s3441 + $0x10] sm:$0xff]
    %v3445 = vld [vmem:[%s3441 + $0x18] sm:$0xff]
    %v3446 = vld [vmem:[%s3441 + $0x20] sm:$0xff]
    %v3447 = vld [vmem:[%s3441 + $0x28] sm:$0xff]
    %v3448 = vld [vmem:[%s3441 + $0x30] sm:$0xff]
    %v3449 = vld [vmem:[%s3441 + $0x38] sm:$0xff]
    %3451 = vset.pattern.permute.xlu0 0
    %3452 = vperm.xlu0 %3451, %v3442
    %v3453 = vpop.permute.xlu0 %3452
    %3456 = vset.pattern.permute.xlu0 0
    %3457 = vperm.xlu0 %3456, %v3443
    %v3458 = vpop.permute.xlu0 %3457
    %3461 = vset.pattern.permute.xlu0 0
    %3462 = vperm.xlu0 %3461, %v3444
    %v3463 = vpop.permute.xlu0 %3462
    %3466 = vset.pattern.permute.xlu0 0
    %3467 = vperm.xlu0 %3466, %v3445
    %v3468 = vpop.permute.xlu0 %3467
    %3471 = vset.pattern.permute.xlu0 0
    %3472 = vperm.xlu0 %3471, %v3446
    %v3473 = vpop.permute.xlu0 %3472
    %3476 = vset.pattern.permute.xlu0 0
    %3477 = vperm.xlu0 %3476, %v3447
    %v3478 = vpop.permute.xlu0 %3477
    %3481 = vset.pattern.permute.xlu0 0
    %3482 = vperm.xlu0 %3481, %v3448
    %v3483 = vpop.permute.xlu0 %3482
    %3486 = vset.pattern.permute.xlu0 0
    %3487 = vperm.xlu0 %3486, %v3449
    %v3488 = vpop.permute.xlu0 %3487
    %v3491 = vsel %vm483, %v3433, 0
    %v3494 = vsel %vm483, %v3434, 0
    %v3497 = vsel %vm483, %v3435, 0
    %v3500 = vsel %vm483, %v3436, 0
    %v3503 = vsel %vm483, %v3437, 0
    %v3506 = vsel %vm483, %v3438, 0
    %v3509 = vsel %vm483, %v3439, 0
    %v3512 = vsel %vm483, %v3440, 0
    %3514 = vmatprep.subr.mxu0 %v3369
    %3515 = vmatpush1.msra.mxu0 %v3368
    %3516 = vmatprep.subr.mxu0 %v3377
    %3517 = vmatpush1.msra.mxu0 %v3376
    %3518 = vmatprep.subr.mxu0 %v3385
    %3519 = vmatpush1.msra.mxu0 %v3384
    %3520 = vmatprep.subr.mxu0 %v3393
    %3521 = vmatpush1.msra.mxu0 %v3392
    %3522 = vmatprep.subr.mxu0 %v3401
    %3523 = vmatpush1.msra.mxu0 %v3400
    %3524 = vmatprep.subr.mxu0 %v3409
    %3525 = vmatpush1.msra.mxu0 %v3408
    %3526 = vmatprep.subr.mxu0 %v3417
    %3527 = vmatpush1.msra.mxu0 %v3416
    %3528 = vmatprep.subr.mxu0 %v3425
    %3529 = vmatpush1.msra.mxu0 %v3424
    %3530 = vmatprep.subr.mxu0 0.0
    %3531 = vmatpush1.msra.mxu0 0.0
    %3532 = vmatprep.subr.mxu0 0.0
    %3533 = vmatpush1.msra.mxu0 0.0
    %3534 = vmatprep.subr.mxu0 0.0
    %3535 = vmatpush1.msra.mxu0 0.0
    %3536 = vmatprep.subr.mxu0 0.0
    %3537 = vmatpush1.msra.mxu0 0.0
    %3538 = vmatprep.subr.mxu0 0.0
    %3539 = vmatpush1.msra.mxu0 0.0
    %3540 = vmatprep.subr.mxu0 0.0
    %3541 = vmatpush1.msra.mxu0 0.0
    %3542 = vmatprep.subr.mxu0 0.0
    %3543 = vmatpush1.msra.mxu0 0.0
    %3544 = vmatprep.subr.mxu0 0.0
    %3545 = vmatpush1.msra.mxu0 0.0
    %3546 = vmatprep.subr.mxu0 0.0
    %3547 = vmatpush1.msra.mxu0 0.0
    %3548 = vmatprep.subr.mxu0 0.0
    %3549 = vmatpush1.msra.mxu0 0.0
    %3550 = vmatprep.subr.mxu0 0.0
    %3551 = vmatpush1.msra.mxu0 0.0
    %3552 = vmatprep.subr.mxu0 0.0
    %3553 = vmatpush1.msra.mxu0 0.0
    %3554 = vmatprep.subr.mxu0 0.0
    %3555 = vmatpush1.msra.mxu0 0.0
    %3556 = vmatprep.subr.mxu0 0.0
    %3557 = vmatpush1.msra.mxu0 0.0
    %3558 = vmatprep.subr.mxu0 0.0
    %3559 = vmatpush1.msra.mxu0 0.0
    %3560 = vmatprep.subr.mxu0 0.0
    %3561 = vmatpush1.msra.mxu0 0.0
    %3562 = vmatprep.subr.mxu0 0.0
    %3563 = vmatpush1.msra.mxu0 0.0
    %3564 = vmatprep.subr.mxu0 0.0
    %3565 = vmatpush1.msra.mxu0 0.0
    %3566 = vmatprep.subr.mxu0 0.0
    %3567 = vmatpush1.msra.mxu0 0.0
    %3568 = vmatprep.subr.mxu0 0.0
    %3569 = vmatpush1.msra.mxu0 0.0
    %3570 = vmatprep.subr.mxu0 0.0
    %3571 = vmatpush1.msra.mxu0 0.0
    %3572 = vmatprep.subr.mxu0 0.0
    %3573 = vmatpush1.msra.mxu0 0.0
    %3574 = vmatprep.subr.mxu0 0.0
    %3575 = vmatpush1.msra.mxu0 0.0
    %3576 = vmatprep.subr.mxu0 0.0
    %3577 = vmatpush1.msra.mxu0 0.0
    %3578 = vmatprep.mubr.f32.mxu0 0.0
    %3579 = vmatmul.mubr.f32.gmra.mrb[0].mxu0 %v3491
    %v3580 = vpop.f32.mrb[0].mxu0
    %v3581 = vadd.f32 %v3453, %v3580
    %v3582 = vpop.f32.mrb[0].mxu0
    %v3583 = vadd.f32 %v3453, %v3582
    %3584 = vmatprep.mubr.f32.mxu0 0.0
    %3585 = vmatmul.mubr.f32.gmra.mrb[0].mxu0 %v3494
    %v3586 = vpop.f32.mrb[0].mxu0
    %v3587 = vadd.f32 %v3458, %v3586
    %v3588 = vpop.f32.mrb[0].mxu0
    %v3589 = vadd.f32 %v3458, %v3588
    %3590 = vmatprep.mubr.f32.mxu0 0.0
    %3591 = vmatmul.mubr.f32.gmra.mrb[0].mxu0 %v3497
    %v3592 = vpop.f32.mrb[0].mxu0
    %v3593 = vadd.f32 %v3463, %v3592
    %v3594 = vpop.f32.mrb[0].mxu0
    %v3595 = vadd.f32 %v3463, %v3594
    %3596 = vmatprep.mubr.f32.mxu0 0.0
    %3597 = vmatmul.mubr.f32.gmra.mrb[0].mxu0 %v3500
    %v3598 = vpop.f32.mrb[0].mxu0
    %v3599 = vadd.f32 %v3468, %v3598
    %v3600 = vpop.f32.mrb[0].mxu0
    %v3601 = vadd.f32 %v3468, %v3600
    %3602 = vmatprep.mubr.f32.mxu0 0.0
    %3603 = vmatmul.mubr.f32.gmra.mrb[0].mxu0 %v3503
    %v3604 = vpop.f32.mrb[0].mxu0
    %v3605 = vadd.f32 %v3473, %v3604
    %v3606 = vpop.f32.mrb[0].mxu0
    %v3607 = vadd.f32 %v3473, %v3606
    %3608 = vmatprep.mubr.f32.mxu0 0.0
    %3609 = vmatmul.mubr.f32.gmra.mrb[0].mxu0 %v3506
    %v3610 = vpop.f32.mrb[0].mxu0
    %v3611 = vadd.f32 %v3478, %v3610
    %v3612 = vpop.f32.mrb[0].mxu0
    %v3613 = vadd.f32 %v3478, %v3612
    %3614 = vmatprep.mubr.f32.mxu0 0.0
    %3615 = vmatmul.mubr.f32.gmra.mrb[0].mxu0 %v3509
    %v3616 = vpop.f32.mrb[0].mxu0
    %v3617 = vadd.f32 %v3483, %v3616
    %v3618 = vpop.f32.mrb[0].mxu0
    %v3619 = vadd.f32 %v3483, %v3618
    %3620 = vmatprep.mubr.f32.mxu0 0.0
    %3621 = vmatmul.mubr.f32.gmra.mrb[0].mxu0 %v3512
    %v3622 = vpop.f32.mrb[0].mxu0
    %v3623 = vadd.f32 %v3488, %v3622
    %v3624 = vpop.f32.mrb[0].mxu0
    %v3625 = vadd.f32 %v3488, %v3624
    %3626 = vdwg.mxu0
    %3627 = vmatprep.subr.mxu0 %v3371
    %3628 = vmatpush1.msra.mxu0 %v3370
    %3629 = vmatprep.subr.mxu0 %v3379
    %3630 = vmatpush1.msra.mxu0 %v3378
    %3631 = vmatprep.subr.mxu0 %v3387
    %3632 = vmatpush1.msra.mxu0 %v3386
    %3633 = vmatprep.subr.mxu0 %v3395
    %3634 = vmatpush1.msra.mxu0 %v3394
    %3635 = vmatprep.subr.mxu0 %v3403
    %3636 = vmatpush1.msra.mxu0 %v3402
    %3637 = vmatprep.subr.mxu0 %v3411
    %3638 = vmatpush1.msra.mxu0 %v3410
    %3639 = vmatprep.subr.mxu0 %v3419
    %3640 = vmatpush1.msra.mxu0 %v3418
    %3641 = vmatprep.subr.mxu0 %v3427
    %3642 = vmatpush1.msra.mxu0 %v3426
    %3643 = vmatprep.subr.mxu0 0.0
    %3644 = vmatpush1.msra.mxu0 0.0
    %3645 = vmatprep.subr.mxu0 0.0
    %3646 = vmatpush1.msra.mxu0 0.0
    %3647 = vmatprep.subr.mxu0 0.0
    %3648 = vmatpush1.msra.mxu0 0.0
    %3649 = vmatprep.subr.mxu0 0.0
    %3650 = vmatpush1.msra.mxu0 0.0
    %3651 = vmatprep.subr.mxu0 0.0
    %3652 = vmatpush1.msra.mxu0 0.0
    %3653 = vmatprep.subr.mxu0 0.0
    %3654 = vmatpush1.msra.mxu0 0.0
    %3655 = vmatprep.subr.mxu0 0.0
    %3656 = vmatpush1.msra.mxu0 0.0
    %3657 = vmatprep.subr.mxu0 0.0
    %3658 = vmatpush1.msra.mxu0 0.0
    %3659 = vmatprep.subr.mxu0 0.0
    %3660 = vmatpush1.msra.mxu0 0.0
    %3661 = vmatprep.subr.mxu0 0.0
    %3662 = vmatpush1.msra.mxu0 0.0
    %3663 = vmatprep.subr.mxu0 0.0
    %3664 = vmatpush1.msra.mxu0 0.0
    %3665 = vmatprep.subr.mxu0 0.0
    %3666 = vmatpush1.msra.mxu0 0.0
    %3667 = vmatprep.subr.mxu0 0.0
    %3668 = vmatpush1.msra.mxu0 0.0
    %3669 = vmatprep.subr.mxu0 0.0
    %3670 = vmatpush1.msra.mxu0 0.0
    %3671 = vmatprep.subr.mxu0 0.0
    %3672 = vmatpush1.msra.mxu0 0.0
    %3673 = vmatprep.subr.mxu0 0.0
    %3674 = vmatpush1.msra.mxu0 0.0
    %3675 = vmatprep.subr.mxu0 0.0
    %3676 = vmatpush1.msra.mxu0 0.0
    %3677 = vmatprep.subr.mxu0 0.0
    %3678 = vmatpush1.msra.mxu0 0.0
    %3679 = vmatprep.subr.mxu0 0.0
    %3680 = vmatpush1.msra.mxu0 0.0
    %3681 = vmatprep.subr.mxu0 0.0
    %3682 = vmatpush1.msra.mxu0 0.0
    %3683 = vmatprep.subr.mxu0 0.0
    %3684 = vmatpush1.msra.mxu0 0.0
    %3685 = vmatprep.subr.mxu0 0.0
    %3686 = vmatpush1.msra.mxu0 0.0
    %3687 = vmatprep.subr.mxu0 0.0
    %3688 = vmatpush1.msra.mxu0 0.0
    %3689 = vmatprep.subr.mxu0 0.0
    %3690 = vmatpush1.msra.mxu0 0.0
    %3691 = vmatprep.mubr.f32.mxu0 0.0
    %3692 = vmatmul.mubr.f32.gmra.mrb[0].mxu0 %v3491
    %v3693 = vpop.f32.mrb[0].mxu0
    %v3694 = vadd.f32 %v3453, %v3693
    %v3695 = vpop.f32.mrb[0].mxu0
    %v3696 = vadd.f32 %v3453, %v3695
    %3697 = vmatprep.mubr.f32.mxu0 0.0
    %3698 = vmatmul.mubr.f32.gmra.mrb[0].mxu0 %v3494
    %v3699 = vpop.f32.mrb[0].mxu0
    %v3700 = vadd.f32 %v3458, %v3699
    %v3701 = vpop.f32.mrb[0].mxu0
    %v3702 = vadd.f32 %v3458, %v3701
    %3703 = vmatprep.mubr.f32.mxu0 0.0
    %3704 = vmatmul.mubr.f32.gmra.mrb[0].mxu0 %v3497
    %v3705 = vpop.f32.mrb[0].mxu0
    %v3706 = vadd.f32 %v3463, %v3705
    %v3707 = vpop.f32.mrb[0].mxu0
    %v3708 = vadd.f32 %v3463, %v3707
    %3709 = vmatprep.mubr.f32.mxu0 0.0
    %3710 = vmatmul.mubr.f32.gmra.mrb[0].mxu0 %v3500
    %v3711 = vpop.f32.mrb[0].mxu0
    %v3712 = vadd.f32 %v3468, %v3711
    %v3713 = vpop.f32.mrb[0].mxu0
    %v3714 = vadd.f32 %v3468, %v3713
    %3715 = vmatprep.mubr.f32.mxu0 0.0
    %3716 = vmatmul.mubr.f32.gmra.mrb[0].mxu0 %v3503
    %v3717 = vpop.f32.mrb[0].mxu0
    %v3718 = vadd.f32 %v3473, %v3717
    %v3719 = vpop.f32.mrb[0].mxu0
    %v3720 = vadd.f32 %v3473, %v3719
    %3721 = vmatprep.mubr.f32.mxu0 0.0
    %3722 = vmatmul.mubr.f32.gmra.mrb[0].mxu0 %v3506
    %v3723 = vpop.f32.mrb[0].mxu0
    %v3724 = vadd.f32 %v3478, %v3723
    %v3725 = vpop.f32.mrb[0].mxu0
    %v3726 = vadd.f32 %v3478, %v3725
    %3727 = vmatprep.mubr.f32.mxu0 0.0
    %3728 = vmatmul.mubr.f32.gmra.mrb[0].mxu0 %v3509
    %v3729 = vpop.f32.mrb[0].mxu0
    %v3730 = vadd.f32 %v3483, %v3729
    %v3731 = vpop.f32.mrb[0].mxu0
    %v3732 = vadd.f32 %v3483, %v3731
    %3733 = vmatprep.mubr.f32.mxu0 0.0
    %3734 = vmatmul.mubr.f32.gmra.mrb[0].mxu0 %v3512
    %v3735 = vpop.f32.mrb[0].mxu0
    %v3736 = vadd.f32 %v3488, %v3735
    %v3737 = vpop.f32.mrb[0].mxu0
    %v3738 = vadd.f32 %v3488, %v3737
    %3739 = vdwg.mxu0
    %3740 = vmatprep.subr.mxu0 %v3373
    %3741 = vmatpush1.msra.mxu0 %v3372
    %3742 = vmatprep.subr.mxu0 %v3381
    %3743 = vmatpush1.msra.mxu0 %v3380
    %3744 = vmatprep.subr.mxu0 %v3389
    %3745 = vmatpush1.msra.mxu0 %v3388
    %3746 = vmatprep.subr.mxu0 %v3397
    %3747 = vmatpush1.msra.mxu0 %v3396
    %3748 = vmatprep.subr.mxu0 %v3405
    %3749 = vmatpush1.msra.mxu0 %v3404
    %3750 = vmatprep.subr.mxu0 %v3413
    %3751 = vmatpush1.msra.mxu0 %v3412
    %3752 = vmatprep.subr.mxu0 %v3421
    %3753 = vmatpush1.msra.mxu0 %v3420
    %3754 = vmatprep.subr.mxu0 %v3429
    %3755 = vmatpush1.msra.mxu0 %v3428
    %3756 = vmatprep.subr.mxu0 0.0
    %3757 = vmatpush1.msra.mxu0 0.0
    %3758 = vmatprep.subr.mxu0 0.0
    %3759 = vmatpush1.msra.mxu0 0.0
    %3760 = vmatprep.subr.mxu0 0.0
    %3761 = vmatpush1.msra.mxu0 0.0
    %3762 = vmatprep.subr.mxu0 0.0
    %3763 = vmatpush1.msra.mxu0 0.0
    %3764 = vmatprep.subr.mxu0 0.0
    %3765 = vmatpush1.msra.mxu0 0.0
    %3766 = vmatprep.subr.mxu0 0.0
    %3767 = vmatpush1.msra.mxu0 0.0
    %3768 = vmatprep.subr.mxu0 0.0
    %3769 = vmatpush1.msra.mxu0 0.0
    %3770 = vmatprep.subr.mxu0 0.0
    %3771 = vmatpush1.msra.mxu0 0.0
    %3772 = vmatprep.subr.mxu0 0.0
    %3773 = vmatpush1.msra.mxu0 0.0
    %3774 = vmatprep.subr.mxu0 0.0
    %3775 = vmatpush1.msra.mxu0 0.0
    %3776 = vmatprep.subr.mxu0 0.0
    %3777 = vmatpush1.msra.mxu0 0.0
    %3778 = vmatprep.subr.mxu0 0.0
    %3779 = vmatpush1.msra.mxu0 0.0
    %3780 = vmatprep.subr.mxu0 0.0
    %3781 = vmatpush1.msra.mxu0 0.0
    %3782 = vmatprep.subr.mxu0 0.0
    %3783 = vmatpush1.msra.mxu0 0.0
    %3784 = vmatprep.subr.mxu0 0.0
    %3785 = vmatpush1.msra.mxu0 0.0
    %3786 = vmatprep.subr.mxu0 0.0
    %3787 = vmatpush1.msra.mxu0 0.0
    %3788 = vmatprep.subr.mxu0 0.0
    %3789 = vmatpush1.msra.mxu0 0.0
    %3790 = vmatprep.subr.mxu0 0.0
    %3791 = vmatpush1.msra.mxu0 0.0
    %3792 = vmatprep.subr.mxu0 0.0
    %3793 = vmatpush1.msra.mxu0 0.0
    %3794 = vmatprep.subr.mxu0 0.0
    %3795 = vmatpush1.msra.mxu0 0.0
    %3796 = vmatprep.subr.mxu0 0.0
    %3797 = vmatpush1.msra.mxu0 0.0
    %3798 = vmatprep.subr.mxu0 0.0
    %3799 = vmatpush1.msra.mxu0 0.0
    %3800 = vmatprep.subr.mxu0 0.0
    %3801 = vmatpush1.msra.mxu0 0.0
    %3802 = vmatprep.subr.mxu0 0.0
    %3803 = vmatpush1.msra.mxu0 0.0
    %3804 = vmatprep.mubr.f32.mxu0 0.0
    %3805 = vmatmul.mubr.f32.gmra.mrb[0].mxu0 %v3491
    %v3806 = vpop.f32.mrb[0].mxu0
    %v3807 = vadd.f32 %v3453, %v3806
    %v3808 = vpop.f32.mrb[0].mxu0
    %v3809 = vadd.f32 %v3453, %v3808
    %3810 = vmatprep.mubr.f32.mxu0 0.0
    %3811 = vmatmul.mubr.f32.gmra.mrb[0].mxu0 %v3494
    %v3812 = vpop.f32.mrb[0].mxu0
    %v3813 = vadd.f32 %v3458, %v3812
    %v3814 = vpop.f32.mrb[0].mxu0
    %v3815 = vadd.f32 %v3458, %v3814
    %3816 = vmatprep.mubr.f32.mxu0 0.0
    %3817 = vmatmul.mubr.f32.gmra.mrb[0].mxu0 %v3497
    %v3818 = vpop.f32.mrb[0].mxu0
    %v3819 = vadd.f32 %v3463, %v3818
    %v3820 = vpop.f32.mrb[0].mxu0
    %v3821 = vadd.f32 %v3463, %v3820
    %3822 = vmatprep.mubr.f32.mxu0 0.0
    %3823 = vmatmul.mubr.f32.gmra.mrb[0].mxu0 %v3500
    %v3824 = vpop.f32.mrb[0].mxu0
    %v3825 = vadd.f32 %v3468, %v3824
    %v3826 = vpop.f32.mrb[0].mxu0
    %v3827 = vadd.f32 %v3468, %v3826
    %3828 = vmatprep.mubr.f32.mxu0 0.0
    %3829 = vmatmul.mubr.f32.gmra.mrb[0].mxu0 %v3503
    %v3830 = vpop.f32.mrb[0].mxu0
    %v3831 = vadd.f32 %v3473, %v3830
    %v3832 = vpop.f32.mrb[0].mxu0
    %v3833 = vadd.f32 %v3473, %v3832
    %3834 = vmatprep.mubr.f32.mxu0 0.0
    %3835 = vmatmul.mubr.f32.gmra.mrb[0].mxu0 %v3506
    %v3836 = vpop.f32.mrb[0].mxu0
    %v3837 = vadd.f32 %v3478, %v3836
    %v3838 = vpop.f32.mrb[0].mxu0
    %v3839 = vadd.f32 %v3478, %v3838
    %3840 = vmatprep.mubr.f32.mxu0 0.0
    %3841 = vmatmul.mubr.f32.gmra.mrb[0].mxu0 %v3509
    %v3842 = vpop.f32.mrb[0].mxu0
    %v3843 = vadd.f32 %v3483, %v3842
    %v3844 = vpop.f32.mrb[0].mxu0
    %v3845 = vadd.f32 %v3483, %v3844
    %3846 = vmatprep.mubr.f32.mxu0 0.0
    %3847 = vmatmul.mubr.f32.gmra.mrb[0].mxu0 %v3512
    %v3848 = vpop.f32.mrb[0].mxu0
    %v3849 = vadd.f32 %v3488, %v3848
    %v3850 = vpop.f32.mrb[0].mxu0
    %v3851 = vadd.f32 %v3488, %v3850
    %3852 = vdwg.mxu0
    %3853 = vmatprep.subr.mxu0 %v3375
    %3854 = vmatpush1.msra.mxu0 %v3374
    %3855 = vmatprep.subr.mxu0 %v3383
    %3856 = vmatpush1.msra.mxu0 %v3382
    %3857 = vmatprep.subr.mxu0 %v3391
    %3858 = vmatpush1.msra.mxu0 %v3390
    %3859 = vmatprep.subr.mxu0 %v3399
    %3860 = vmatpush1.msra.mxu0 %v3398
    %3861 = vmatprep.subr.mxu0 %v3407
    %3862 = vmatpush1.msra.mxu0 %v3406
    %3863 = vmatprep.subr.mxu0 %v3415
    %3864 = vmatpush1.msra.mxu0 %v3414
    %3865 = vmatprep.subr.mxu0 %v3423
    %3866 = vmatpush1.msra.mxu0 %v3422
    %3867 = vmatprep.subr.mxu0 %v3431
    %3868 = vmatpush1.msra.mxu0 %v3430
    %3869 = vmatprep.subr.mxu0 0.0
    %3870 = vmatpush1.msra.mxu0 0.0
    %3871 = vmatprep.subr.mxu0 0.0
    %3872 = vmatpush1.msra.mxu0 0.0
    %3873 = vmatprep.subr.mxu0 0.0
    %3874 = vmatpush1.msra.mxu0 0.0
    %3875 = vmatprep.subr.mxu0 0.0
    %3876 = vmatpush1.msra.mxu0 0.0
    %3877 = vmatprep.subr.mxu0 0.0
    %3878 = vmatpush1.msra.mxu0 0.0
    %3879 = vmatprep.subr.mxu0 0.0
    %3880 = vmatpush1.msra.mxu0 0.0
    %3881 = vmatprep.subr.mxu0 0.0
    %3882 = vmatpush1.msra.mxu0 0.0
    %3883 = vmatprep.subr.mxu0 0.0
    %3884 = vmatpush1.msra.mxu0 0.0
    %3885 = vmatprep.subr.mxu0 0.0
    %3886 = vmatpush1.msra.mxu0 0.0
    %3887 = vmatprep.subr.mxu0 0.0
    %3888 = vmatpush1.msra.mxu0 0.0
    %3889 = vmatprep.subr.mxu0 0.0
    %3890 = vmatpush1.msra.mxu0 0.0
    %3891 = vmatprep.subr.mxu0 0.0
    %3892 = vmatpush1.msra.mxu0 0.0
    %3893 = vmatprep.subr.mxu0 0.0
    %3894 = vmatpush1.msra.mxu0 0.0
    %3895 = vmatprep.subr.mxu0 0.0
    %3896 = vmatpush1.msra.mxu0 0.0
    %3897 = vmatprep.subr.mxu0 0.0
    %3898 = vmatpush1.msra.mxu0 0.0
    %3899 = vmatprep.subr.mxu0 0.0
    %3900 = vmatpush1.msra.mxu0 0.0
    %3901 = vmatprep.subr.mxu0 0.0
    %3902 = vmatpush1.msra.mxu0 0.0
    %3903 = vmatprep.subr.mxu0 0.0
    %3904 = vmatpush1.msra.mxu0 0.0
    %3905 = vmatprep.subr.mxu0 0.0
    %3906 = vmatpush1.msra.mxu0 0.0
    %3907 = vmatprep.subr.mxu0 0.0
    %3908 = vmatpush1.msra.mxu0 0.0
    %3909 = vmatprep.subr.mxu0 0.0
    %3910 = vmatpush1.msra.mxu0 0.0
    %3911 = vmatprep.subr.mxu0 0.0
    %3912 = vmatpush1.msra.mxu0 0.0
    %3913 = vmatprep.subr.mxu0 0.0
    %3914 = vmatpush1.msra.mxu0 0.0
    %3915 = vmatprep.subr.mxu0 0.0
    %3916 = vmatpush1.msra.mxu0 0.0
    %3917 = vmatprep.mubr.f32.mxu0 0.0
    %3918 = vmatmul.mubr.f32.gmra.mrb[0].mxu0 %v3491
    %v3919 = vpop.f32.mrb[0].mxu0
    %v3920 = vadd.f32 %v3453, %v3919
    %v3921 = vpop.f32.mrb[0].mxu0
    %v3922 = vadd.f32 %v3453, %v3921
    %3923 = vmatprep.mubr.f32.mxu0 0.0
    %3924 = vmatmul.mubr.f32.gmra.mrb[0].mxu0 %v3494
    %v3925 = vpop.f32.mrb[0].mxu0
    %v3926 = vadd.f32 %v3458, %v3925
    %v3927 = vpop.f32.mrb[0].mxu0
    %v3928 = vadd.f32 %v3458, %v3927
    %3929 = vmatprep.mubr.f32.mxu0 0.0
    %3930 = vmatmul.mubr.f32.gmra.mrb[0].mxu0 %v3497
    %v3931 = vpop.f32.mrb[0].mxu0
    %v3932 = vadd.f32 %v3463, %v3931
    %v3933 = vpop.f32.mrb[0].mxu0
    %v3934 = vadd.f32 %v3463, %v3933
    %3935 = vmatprep.mubr.f32.mxu0 0.0
    %3936 = vmatmul.mubr.f32.gmra.mrb[0].mxu0 %v3500
    %v3937 = vpop.f32.mrb[0].mxu0
    %v3938 = vadd.f32 %v3468, %v3937
    %v3939 = vpop.f32.mrb[0].mxu0
    %v3940 = vadd.f32 %v3468, %v3939
    %3941 = vmatprep.mubr.f32.mxu0 0.0
    %3942 = vmatmul.mubr.f32.gmra.mrb[0].mxu0 %v3503
    %v3943 = vpop.f32.mrb[0].mxu0
    %v3944 = vadd.f32 %v3473, %v3943
    %v3945 = vpop.f32.mrb[0].mxu0
    %v3946 = vadd.f32 %v3473, %v3945
    %3947 = vmatprep.mubr.f32.mxu0 0.0
    %3948 = vmatmul.mubr.f32.gmra.mrb[0].mxu0 %v3506
    %v3949 = vpop.f32.mrb[0].mxu0
    %v3950 = vadd.f32 %v3478, %v3949
    %v3951 = vpop.f32.mrb[0].mxu0
    %v3952 = vadd.f32 %v3478, %v3951
    %3953 = vmatprep.mubr.f32.mxu0 0.0
    %3954 = vmatmul.mubr.f32.gmra.mrb[0].mxu0 %v3509
    %v3955 = vpop.f32.mrb[0].mxu0
    %v3956 = vadd.f32 %v3483, %v3955
    %v3957 = vpop.f32.mrb[0].mxu0
    %v3958 = vadd.f32 %v3483, %v3957
    %3959 = vmatprep.mubr.f32.mxu0 0.0
    %3960 = vmatmul.mubr.f32.gmra.mrb[0].mxu0 %v3512
    %v3961 = vpop.f32.mrb[0].mxu0
    %v3962 = vadd.f32 %v3488, %v3961
    %v3963 = vpop.f32.mrb[0].mxu0
    %v3964 = vadd.f32 %v3488, %v3963
    %3965 = vdwg.mxu0
    %v3966 = vmul.f32 %v3581, 0.01
    %v3967 = vmul.f32 %v3583, 0.01
    %v3968 = vmul.f32 %v3694, 0.01
    %v3969 = vmul.f32 %v3696, 0.01
    %v3970 = vmul.f32 %v3807, 0.01
    %v3971 = vmul.f32 %v3809, 0.01
    %v3972 = vmul.f32 %v3920, 0.01
    %v3973 = vmul.f32 %v3922, 0.01
    %v3974 = vmul.f32 %v3587, 0.01
    %v3975 = vmul.f32 %v3589, 0.01
    %v3976 = vmul.f32 %v3700, 0.01
    %v3977 = vmul.f32 %v3702, 0.01
    %v3978 = vmul.f32 %v3813, 0.01
    %v3979 = vmul.f32 %v3815, 0.01
    %v3980 = vmul.f32 %v3926, 0.01
    %v3981 = vmul.f32 %v3928, 0.01
    %v3982 = vmul.f32 %v3593, 0.01
    %v3983 = vmul.f32 %v3595, 0.01
    %v3984 = vmul.f32 %v3706, 0.01
    %v3985 = vmul.f32 %v3708, 0.01
    %v3986 = vmul.f32 %v3819, 0.01
    %v3987 = vmul.f32 %v3821, 0.01
    %v3988 = vmul.f32 %v3932, 0.01
    %v3989 = vmul.f32 %v3934, 0.01
    %v3990 = vmul.f32 %v3599, 0.01
    %v3991 = vmul.f32 %v3601, 0.01
    %v3992 = vmul.f32 %v3712, 0.01
    %v3993 = vmul.f32 %v3714, 0.01
    %v3994 = vmul.f32 %v3825, 0.01
    %v3995 = vmul.f32 %v3827, 0.01
    %v3996 = vmul.f32 %v3938, 0.01
    %v3997 = vmul.f32 %v3940, 0.01
    %v3998 = vmul.f32 %v3605, 0.01
    %v3999 = vmul.f32 %v3607, 0.01
    %v4000 = vmul.f32 %v3718, 0.01
    %v4001 = vmul.f32 %v3720, 0.01
    %v4002 = vmul.f32 %v3831, 0.01
    %v4003 = vmul.f32 %v3833, 0.01
    %v4004 = vmul.f32 %v3944, 0.01
    %v4005 = vmul.f32 %v3946, 0.01
    %v4006 = vmul.f32 %v3611, 0.01
    %v4007 = vmul.f32 %v3613, 0.01
    %v4008 = vmul.f32 %v3724, 0.01
    %v4009 = vmul.f32 %v3726, 0.01
    %v4010 = vmul.f32 %v3837, 0.01
    %v4011 = vmul.f32 %v3839, 0.01
    %v4012 = vmul.f32 %v3950, 0.01
    %v4013 = vmul.f32 %v3952, 0.01
    %v4014 = vmul.f32 %v3617, 0.01
    %v4015 = vmul.f32 %v3619, 0.01
    %v4016 = vmul.f32 %v3730, 0.01
    %v4017 = vmul.f32 %v3732, 0.01
    %v4018 = vmul.f32 %v3843, 0.01
    %v4019 = vmul.f32 %v3845, 0.01
    %v4020 = vmul.f32 %v3956, 0.01
    %v4021 = vmul.f32 %v3958, 0.01
    %v4022 = vmul.f32 %v3623, 0.01
    %v4023 = vmul.f32 %v3625, 0.01
    %v4024 = vmul.f32 %v3736, 0.01
    %v4025 = vmul.f32 %v3738, 0.01
    %v4026 = vmul.f32 %v3849, 0.01
    %v4027 = vmul.f32 %v3851, 0.01
    %v4028 = vmul.f32 %v3962, 0.01
    %v4029 = vmul.f32 %v3964, 0.01
    %v4030 = vmax.f32 %v3581, %v3966
    %v4031 = vmax.f32 %v3583, %v3967
    %v4032 = vmax.f32 %v3694, %v3968
    %v4033 = vmax.f32 %v3696, %v3969
    %v4034 = vmax.f32 %v3807, %v3970
    %v4035 = vmax.f32 %v3809, %v3971
    %v4036 = vmax.f32 %v3920, %v3972
    %v4037 = vmax.f32 %v3922, %v3973
    %v4038 = vmax.f32 %v3587, %v3974
    %v4039 = vmax.f32 %v3589, %v3975
    %v4040 = vmax.f32 %v3700, %v3976
    %v4041 = vmax.f32 %v3702, %v3977
    %v4042 = vmax.f32 %v3813, %v3978
    %v4043 = vmax.f32 %v3815, %v3979
    %v4044 = vmax.f32 %v3926, %v3980
    %v4045 = vmax.f32 %v3928, %v3981
    %v4046 = vmax.f32 %v3593, %v3982
    %v4047 = vmax.f32 %v3595, %v3983
    %v4048 = vmax.f32 %v3706, %v3984
    %v4049 = vmax.f32 %v3708, %v3985
    %v4050 = vmax.f32 %v3819, %v3986
    %v4051 = vmax.f32 %v3821, %v3987
    %v4052 = vmax.f32 %v3932, %v3988
    %v4053 = vmax.f32 %v3934, %v3989
    %v4054 = vmax.f32 %v3599, %v3990
    %v4055 = vmax.f32 %v3601, %v3991
    %v4056 = vmax.f32 %v3712, %v3992
    %v4057 = vmax.f32 %v3714, %v3993
    %v4058 = vmax.f32 %v3825, %v3994
    %v4059 = vmax.f32 %v3827, %v3995
    %v4060 = vmax.f32 %v3938, %v3996
    %v4061 = vmax.f32 %v3940, %v3997
    %v4062 = vmax.f32 %v3605, %v3998
    %v4063 = vmax.f32 %v3607, %v3999
    %v4064 = vmax.f32 %v3718, %v4000
    %v4065 = vmax.f32 %v3720, %v4001
    %v4066 = vmax.f32 %v3831, %v4002
    %v4067 = vmax.f32 %v3833, %v4003
    %v4068 = vmax.f32 %v3944, %v4004
    %v4069 = vmax.f32 %v3946, %v4005
    %v4070 = vmax.f32 %v3611, %v4006
    %v4071 = vmax.f32 %v3613, %v4007
    %v4072 = vmax.f32 %v3724, %v4008
    %v4073 = vmax.f32 %v3726, %v4009
    %v4074 = vmax.f32 %v3837, %v4010
    %v4075 = vmax.f32 %v3839, %v4011
    %v4076 = vmax.f32 %v3950, %v4012
    %v4077 = vmax.f32 %v3952, %v4013
    %v4078 = vmax.f32 %v3617, %v4014
    %v4079 = vmax.f32 %v3619, %v4015
    %v4080 = vmax.f32 %v3730, %v4016
    %v4081 = vmax.f32 %v3732, %v4017
    %v4082 = vmax.f32 %v3843, %v4018
    %v4083 = vmax.f32 %v3845, %v4019
    %v4084 = vmax.f32 %v3956, %v4020
    %v4085 = vmax.f32 %v3958, %v4021
    %v4086 = vmax.f32 %v3623, %v4022
    %v4087 = vmax.f32 %v3625, %v4023
    %v4088 = vmax.f32 %v3736, %v4024
    %v4089 = vmax.f32 %v3738, %v4025
    %v4090 = vmax.f32 %v3849, %v4026
    %v4091 = vmax.f32 %v3851, %v4027
    %v4092 = vmax.f32 %v3962, %v4028
    %v4093 = vmax.f32 %v3964, %v4029
    %s4094 = scalar_lea.vmem %s4, 6
    %v4095 = vld [vmem:[%s4094] sm:$0x3]
    %s4096 = scalar_lea.vmem %s5, 6
    %v4097 = vld [vmem:[%s4096] sm:$0x3]
    %4099 = vset.pattern.permute.xlu0 0
    %4100 = vperm.xlu0 %4099, %v4097
    %v4101 = vpop.permute.xlu0 %4100
    %v4104 = vsel %vm483, %v4095, 0
    %4106 = vmatprep.subr.mxu0 %v4031
    %4107 = vmatpush1.msra.mxu0 %v4030
    %4108 = vmatprep.subr.mxu0 %v4039
    %4109 = vmatpush1.msra.mxu0 %v4038
    %4110 = vmatprep.subr.mxu0 %v4047
    %4111 = vmatpush1.msra.mxu0 %v4046
    %4112 = vmatprep.subr.mxu0 %v4055
    %4113 = vmatpush1.msra.mxu0 %v4054
    %4114 = vmatprep.subr.mxu0 %v4063
    %4115 = vmatpush1.msra.mxu0 %v4062
    %4116 = vmatprep.subr.mxu0 %v4071
    %4117 = vmatpush1.msra.mxu0 %v4070
    %4118 = vmatprep.subr.mxu0 %v4079
    %4119 = vmatpush1.msra.mxu0 %v4078
    %4120 = vmatprep.subr.mxu0 %v4087
    %4121 = vmatpush1.msra.mxu0 %v4086
    %4122 = vmatprep.subr.mxu0 0.0
    %4123 = vmatpush1.msra.mxu0 0.0
    %4124 = vmatprep.subr.mxu0 0.0
    %4125 = vmatpush1.msra.mxu0 0.0
    %4126 = vmatprep.subr.mxu0 0.0
    %4127 = vmatpush1.msra.mxu0 0.0
    %4128 = vmatprep.subr.mxu0 0.0
    %4129 = vmatpush1.msra.mxu0 0.0
    %4130 = vmatprep.subr.mxu0 0.0
    %4131 = vmatpush1.msra.mxu0 0.0
    %4132 = vmatprep.subr.mxu0 0.0
    %4133 = vmatpush1.msra.mxu0 0.0
    %4134 = vmatprep.subr.mxu0 0.0
    %4135 = vmatpush1.msra.mxu0 0.0
    %4136 = vmatprep.subr.mxu0 0.0
    %4137 = vmatpush1.msra.mxu0 0.0
    %4138 = vmatprep.subr.mxu0 0.0
    %4139 = vmatpush1.msra.mxu0 0.0
    %4140 = vmatprep.subr.mxu0 0.0
    %4141 = vmatpush1.msra.mxu0 0.0
    %4142 = vmatprep.subr.mxu0 0.0
    %4143 = vmatpush1.msra.mxu0 0.0
    %4144 = vmatprep.subr.mxu0 0.0
    %4145 = vmatpush1.msra.mxu0 0.0
    %4146 = vmatprep.subr.mxu0 0.0
    %4147 = vmatpush1.msra.mxu0 0.0
    %4148 = vmatprep.subr.mxu0 0.0
    %4149 = vmatpush1.msra.mxu0 0.0
    %4150 = vmatprep.subr.mxu0 0.0
    %4151 = vmatpush1.msra.mxu0 0.0
    %4152 = vmatprep.subr.mxu0 0.0
    %4153 = vmatpush1.msra.mxu0 0.0
    %4154 = vmatprep.subr.mxu0 0.0
    %4155 = vmatpush1.msra.mxu0 0.0
    %4156 = vmatprep.subr.mxu0 0.0
    %4157 = vmatpush1.msra.mxu0 0.0
    %4158 = vmatprep.subr.mxu0 0.0
    %4159 = vmatpush1.msra.mxu0 0.0
    %4160 = vmatprep.subr.mxu0 0.0
    %4161 = vmatpush1.msra.mxu0 0.0
    %4162 = vmatprep.subr.mxu0 0.0
    %4163 = vmatpush1.msra.mxu0 0.0
    %4164 = vmatprep.subr.mxu0 0.0
    %4165 = vmatpush1.msra.mxu0 0.0
    %4166 = vmatprep.subr.mxu0 0.0
    %4167 = vmatpush1.msra.mxu0 0.0
    %4168 = vmatprep.subr.mxu0 0.0
    %4169 = vmatpush1.msra.mxu0 0.0
    %4170 = vmatprep.mubr.f32.mxu0 0.0
    %4171 = vmatmul.mubr.f32.gmra.mrb[0].mxu0 %v4104
    %v4172 = vpop.f32.mrb[0].mxu0
    %v4173 = vadd.f32 %v4101, %v4172
    %v4174 = vpop.f32.mrb[0].mxu0
    %v4175 = vadd.f32 %v4101, %v4174
    %4176 = vdwg.mxu0
    %4177 = vmatprep.subr.mxu0 %v4033
    %4178 = vmatpush1.msra.mxu0 %v4032
    %4179 = vmatprep.subr.mxu0 %v4041
    %4180 = vmatpush1.msra.mxu0 %v4040
    %4181 = vmatprep.subr.mxu0 %v4049
    %4182 = vmatpush1.msra.mxu0 %v4048
    %4183 = vmatprep.subr.mxu0 %v4057
    %4184 = vmatpush1.msra.mxu0 %v4056
    %4185 = vmatprep.subr.mxu0 %v4065
    %4186 = vmatpush1.msra.mxu0 %v4064
    %4187 = vmatprep.subr.mxu0 %v4073
    %4188 = vmatpush1.msra.mxu0 %v4072
    %4189 = vmatprep.subr.mxu0 %v4081
    %4190 = vmatpush1.msra.mxu0 %v4080
    %4191 = vmatprep.subr.mxu0 %v4089
    %4192 = vmatpush1.msra.mxu0 %v4088
    %4193 = vmatprep.subr.mxu0 0.0
    %4194 = vmatpush1.msra.mxu0 0.0
    %4195 = vmatprep.subr.mxu0 0.0
    %4196 = vmatpush1.msra.mxu0 0.0
    %4197 = vmatprep.subr.mxu0 0.0
    %4198 = vmatpush1.msra.mxu0 0.0
    %4199 = vmatprep.subr.mxu0 0.0
    %4200 = vmatpush1.msra.mxu0 0.0
    %4201 = vmatprep.subr.mxu0 0.0
    %4202 = vmatpush1.msra.mxu0 0.0
    %4203 = vmatprep.subr.mxu0 0.0
    %4204 = vmatpush1.msra.mxu0 0.0
    %4205 = vmatprep.subr.mxu0 0.0
    %4206 = vmatpush1.msra.mxu0 0.0
    %4207 = vmatprep.subr.mxu0 0.0
    %4208 = vmatpush1.msra.mxu0 0.0
    %4209 = vmatprep.subr.mxu0 0.0
    %4210 = vmatpush1.msra.mxu0 0.0
    %4211 = vmatprep.subr.mxu0 0.0
    %4212 = vmatpush1.msra.mxu0 0.0
    %4213 = vmatprep.subr.mxu0 0.0
    %4214 = vmatpush1.msra.mxu0 0.0
    %4215 = vmatprep.subr.mxu0 0.0
    %4216 = vmatpush1.msra.mxu0 0.0
    %4217 = vmatprep.subr.mxu0 0.0
    %4218 = vmatpush1.msra.mxu0 0.0
    %4219 = vmatprep.subr.mxu0 0.0
    %4220 = vmatpush1.msra.mxu0 0.0
    %4221 = vmatprep.subr.mxu0 0.0
    %4222 = vmatpush1.msra.mxu0 0.0
    %4223 = vmatprep.subr.mxu0 0.0
    %4224 = vmatpush1.msra.mxu0 0.0
    %4225 = vmatprep.subr.mxu0 0.0
    %4226 = vmatpush1.msra.mxu0 0.0
    %4227 = vmatprep.subr.mxu0 0.0
    %4228 = vmatpush1.msra.mxu0 0.0
    %4229 = vmatprep.subr.mxu0 0.0
    %4230 = vmatpush1.msra.mxu0 0.0
    %4231 = vmatprep.subr.mxu0 0.0
    %4232 = vmatpush1.msra.mxu0 0.0
    %4233 = vmatprep.subr.mxu0 0.0
    %4234 = vmatpush1.msra.mxu0 0.0
    %4235 = vmatprep.subr.mxu0 0.0
    %4236 = vmatpush1.msra.mxu0 0.0
    %4237 = vmatprep.subr.mxu0 0.0
    %4238 = vmatpush1.msra.mxu0 0.0
    %4239 = vmatprep.subr.mxu0 0.0
    %4240 = vmatpush1.msra.mxu0 0.0
    %4241 = vmatprep.mubr.f32.mxu0 0.0
    %4242 = vmatmul.mubr.f32.gmra.mrb[0].mxu0 %v4104
    %v4243 = vpop.f32.mrb[0].mxu0
    %v4244 = vadd.f32 %v4101, %v4243
    %v4245 = vpop.f32.mrb[0].mxu0
    %v4246 = vadd.f32 %v4101, %v4245
    %4247 = vdwg.mxu0
    %4248 = vmatprep.subr.mxu0 %v4035
    %4249 = vmatpush1.msra.mxu0 %v4034
    %4250 = vmatprep.subr.mxu0 %v4043
    %4251 = vmatpush1.msra.mxu0 %v4042
    %4252 = vmatprep.subr.mxu0 %v4051
    %4253 = vmatpush1.msra.mxu0 %v4050
    %4254 = vmatprep.subr.mxu0 %v4059
    %4255 = vmatpush1.msra.mxu0 %v4058
    %4256 = vmatprep.subr.mxu0 %v4067
    %4257 = vmatpush1.msra.mxu0 %v4066
    %4258 = vmatprep.subr.mxu0 %v4075
    %4259 = vmatpush1.msra.mxu0 %v4074
    %4260 = vmatprep.subr.mxu0 %v4083
    %4261 = vmatpush1.msra.mxu0 %v4082
    %4262 = vmatprep.subr.mxu0 %v4091
    %4263 = vmatpush1.msra.mxu0 %v4090
    %4264 = vmatprep.subr.mxu0 0.0
    %4265 = vmatpush1.msra.mxu0 0.0
    %4266 = vmatprep.subr.mxu0 0.0
    %4267 = vmatpush1.msra.mxu0 0.0
    %4268 = vmatprep.subr.mxu0 0.0
    %4269 = vmatpush1.msra.mxu0 0.0
    %4270 = vmatprep.subr.mxu0 0.0
    %4271 = vmatpush1.msra.mxu0 0.0
    %4272 = vmatprep.subr.mxu0 0.0
    %4273 = vmatpush1.msra.mxu0 0.0
    %4274 = vmatprep.subr.mxu0 0.0
    %4275 = vmatpush1.msra.mxu0 0.0
    %4276 = vmatprep.subr.mxu0 0.0
    %4277 = vmatpush1.msra.mxu0 0.0
    %4278 = vmatprep.subr.mxu0 0.0
    %4279 = vmatpush1.msra.mxu0 0.0
    %4280 = vmatprep.subr.mxu0 0.0
    %4281 = vmatpush1.msra.mxu0 0.0
    %4282 = vmatprep.subr.mxu0 0.0
    %4283 = vmatpush1.msra.mxu0 0.0
    %4284 = vmatprep.subr.mxu0 0.0
    %4285 = vmatpush1.msra.mxu0 0.0
    %4286 = vmatprep.subr.mxu0 0.0
    %4287 = vmatpush1.msra.mxu0 0.0
    %4288 = vmatprep.subr.mxu0 0.0
    %4289 = vmatpush1.msra.mxu0 0.0
    %4290 = vmatprep.subr.mxu0 0.0
    %4291 = vmatpush1.msra.mxu0 0.0
    %4292 = vmatprep.subr.mxu0 0.0
    %4293 = vmatpush1.msra.mxu0 0.0
    %4294 = vmatprep.subr.mxu0 0.0
    %4295 = vmatpush1.msra.mxu0 0.0
    %4296 = vmatprep.subr.mxu0 0.0
    %4297 = vmatpush1.msra.mxu0 0.0
    %4298 = vmatprep.subr.mxu0 0.0
    %4299 = vmatpush1.msra.mxu0 0.0
    %4300 = vmatprep.subr.mxu0 0.0
    %4301 = vmatpush1.msra.mxu0 0.0
    %4302 = vmatprep.subr.mxu0 0.0
    %4303 = vmatpush1.msra.mxu0 0.0
    %4304 = vmatprep.subr.mxu0 0.0
    %4305 = vmatpush1.msra.mxu0 0.0
    %4306 = vmatprep.subr.mxu0 0.0
    %4307 = vmatpush1.msra.mxu0 0.0
    %4308 = vmatprep.subr.mxu0 0.0
    %4309 = vmatpush1.msra.mxu0 0.0
    %4310 = vmatprep.subr.mxu0 0.0
    %4311 = vmatpush1.msra.mxu0 0.0
    %4312 = vmatprep.mubr.f32.mxu0 0.0
    %4313 = vmatmul.mubr.f32.gmra.mrb[0].mxu0 %v4104
    %v4314 = vpop.f32.mrb[0].mxu0
    %v4315 = vadd.f32 %v4101, %v4314
    %v4316 = vpop.f32.mrb[0].mxu0
    %v4317 = vadd.f32 %v4101, %v4316
    %4318 = vdwg.mxu0
    %4319 = vmatprep.subr.mxu0 %v4037
    %4320 = vmatpush1.msra.mxu0 %v4036
    %4321 = vmatprep.subr.mxu0 %v4045
    %4322 = vmatpush1.msra.mxu0 %v4044
    %4323 = vmatprep.subr.mxu0 %v4053
    %4324 = vmatpush1.msra.mxu0 %v4052
    %4325 = vmatprep.subr.mxu0 %v4061
    %4326 = vmatpush1.msra.mxu0 %v4060
    %4327 = vmatprep.subr.mxu0 %v4069
    %4328 = vmatpush1.msra.mxu0 %v4068
    %4329 = vmatprep.subr.mxu0 %v4077
    %4330 = vmatpush1.msra.mxu0 %v4076
    %4331 = vmatprep.subr.mxu0 %v4085
    %4332 = vmatpush1.msra.mxu0 %v4084
    %4333 = vmatprep.subr.mxu0 %v4093
    %4334 = vmatpush1.msra.mxu0 %v4092
    %4335 = vmatprep.subr.mxu0 0.0
    %4336 = vmatpush1.msra.mxu0 0.0
    %4337 = vmatprep.subr.mxu0 0.0
    %4338 = vmatpush1.msra.mxu0 0.0
    %4339 = vmatprep.subr.mxu0 0.0
    %4340 = vmatpush1.msra.mxu0 0.0
    %4341 = vmatprep.subr.mxu0 0.0
    %4342 = vmatpush1.msra.mxu0 0.0
    %4343 = vmatprep.subr.mxu0 0.0
    %4344 = vmatpush1.msra.mxu0 0.0
    %4345 = vmatprep.subr.mxu0 0.0
    %4346 = vmatpush1.msra.mxu0 0.0
    %4347 = vmatprep.subr.mxu0 0.0
    %4348 = vmatpush1.msra.mxu0 0.0
    %4349 = vmatprep.subr.mxu0 0.0
    %4350 = vmatpush1.msra.mxu0 0.0
    %4351 = vmatprep.subr.mxu0 0.0
    %4352 = vmatpush1.msra.mxu0 0.0
    %4353 = vmatprep.subr.mxu0 0.0
    %4354 = vmatpush1.msra.mxu0 0.0
    %4355 = vmatprep.subr.mxu0 0.0
    %4356 = vmatpush1.msra.mxu0 0.0
    %4357 = vmatprep.subr.mxu0 0.0
    %4358 = vmatpush1.msra.mxu0 0.0
    %4359 = vmatprep.subr.mxu0 0.0
    %4360 = vmatpush1.msra.mxu0 0.0
    %4361 = vmatprep.subr.mxu0 0.0
    %4362 = vmatpush1.msra.mxu0 0.0
    %4363 = vmatprep.subr.mxu0 0.0
    %4364 = vmatpush1.msra.mxu0 0.0
    %4365 = vmatprep.subr.mxu0 0.0
    %4366 = vmatpush1.msra.mxu0 0.0
    %4367 = vmatprep.subr.mxu0 0.0
    %4368 = vmatpush1.msra.mxu0 0.0
    %4369 = vmatprep.subr.mxu0 0.0
    %4370 = vmatpush1.msra.mxu0 0.0
    %4371 = vmatprep.subr.mxu0 0.0
    %4372 = vmatpush1.msra.mxu0 0.0
    %4373 = vmatprep.subr.mxu0 0.0
    %4374 = vmatpush1.msra.mxu0 0.0
    %4375 = vmatprep.subr.mxu0 0.0
    %4376 = vmatpush1.msra.mxu0 0.0
    %4377 = vmatprep.subr.mxu0 0.0
    %4378 = vmatpush1.msra.mxu0 0.0
    %4379 = vmatprep.subr.mxu0 0.0
    %4380 = vmatpush1.msra.mxu0 0.0
    %4381 = vmatprep.subr.mxu0 0.0
    %4382 = vmatpush1.msra.mxu0 0.0
    %4383 = vmatprep.mubr.f32.mxu0 0.0
    %4384 = vmatmul.mubr.f32.gmra.mrb[0].mxu0 %v4104
    %v4385 = vpop.f32.mrb[0].mxu0
    %v4386 = vadd.f32 %v4101, %v4385
    %v4387 = vpop.f32.mrb[0].mxu0
    %v4388 = vadd.f32 %v4101, %v4387
    %4389 = vdwg.mxu0
    %v4390 = vtanh.pop %v4173
    %v4391 = vtanh.pop %v4175
    %v4392 = vtanh.pop %v4244
    %v4393 = vtanh.pop %v4246
    %v4394 = vtanh.pop %v4315
    %v4395 = vtanh.pop %v4317
    %v4396 = vtanh.pop %v4386
    %v4397 = vtanh.pop %v4388
    %v4406 = vcombine.low %v4173, %v4175
    %v4407 = vcombine.low %v4244, %v4246
    %v4408 = vcombine.low %v4315, %v4317
    %v4409 = vcombine.low %v4386, %v4388
    %v4411 = vunpack.c.l.s4 1966171168
    %v4412 = vunpack.c.0.s8 %v4411
    %v4413 = vlaneseq
    %v4414 = vshrl.u32 %v4413, 7
    %v4415 = vsub.s32 %v4412, %v4414
    %v4416 = vrot.slane %v4406, %v4415
    %v4418 = vunpack.c.l.s4 1966171168
    %v4419 = vunpack.c.0.s8 %v4418
    %v4420 = vlaneseq
    %v4421 = vshrl.u32 %v4420, 7
    %v4422 = vsub.s32 %v4419, %v4421
    %v4423 = vrot.slane %v4407, %v4422
    %v4425 = vunpack.c.l.s4 1966171168
    %v4426 = vunpack.c.0.s8 %v4425
    %v4427 = vlaneseq
    %v4428 = vshrl.u32 %v4427, 7
    %v4429 = vsub.s32 %v4426, %v4428
    %v4430 = vrot.slane %v4408, %v4429
    %v4432 = vunpack.c.l.s4 1966171168
    %v4433 = vunpack.c.0.s8 %v4432
    %v4434 = vlaneseq
    %v4435 = vshrl.u32 %v4434, 7
    %v4436 = vsub.s32 %v4433, %v4435
    %v4437 = vrot.slane %v4409, %v4436
    %v4438 = vcombine.high %v4416, %v4423
    %v4439 = vcombine.high %v4430, %v4437
    %v4441 = vunpack.c.l.s4 1966171168
    %v4442 = vunpack.c.0.s8 %v4441
    %v4443 = vlaneseq
    %v4444 = vshrl.u32 %v4443, 7
    %v4445 = vsub.s32 %v4442, %v4444
    %v4446 = vrot.slane %v4438, %v4445
    %v4448 = vunpack.c.l.s4 1966171168
    %v4449 = vunpack.c.0.s8 %v4448
    %v4450 = vlaneseq
    %v4451 = vshrl.u32 %v4450, 7
    %v4452 = vsub.s32 %v4449, %v4451
    %v4453 = vrot.slane %v4439, %v4452
    %v4454 = vcombine.low %v4446, %v4453
    %v4456 = vsub.f32 %v1533, %v4454
    %v4457 = vsub.f32 0.0, %v4390
    %v4458 = vsub.f32 0.0, %v4391
    %v4459 = vsub.f32 0.0, %v4392
    %v4460 = vsub.f32 0.0, %v4393
    %v4461 = vsub.f32 0.0, %v4394
    %v4462 = vsub.f32 0.0, %v4395
    %v4463 = vsub.f32 0.0, %v4396
    %v4464 = vsub.f32 0.0, %v4397
    %v4465 = vmul.f32 %v4457, 1.442695
    %v4466 = vpow.pop %v4465
    %v4467 = vmul.f32 %v4458, 1.442695
    %v4468 = vpow.pop %v4467
    %v4469 = vmul.f32 %v4459, 1.442695
    %v4470 = vpow.pop %v4469
    %v4471 = vmul.f32 %v4460, 1.442695
    %v4472 = vpow.pop %v4471
    %v4473 = vmul.f32 %v4461, 1.442695
    %v4474 = vpow.pop %v4473
    %v4475 = vmul.f32 %v4462, 1.442695
    %v4476 = vpow.pop %v4475
    %v4477 = vmul.f32 %v4463, 1.442695
    %v4478 = vpow.pop %v4477
    %v4479 = vmul.f32 %v4464, 1.442695
    %v4480 = vpow.pop %v4479
    %v4489 = vcombine.low %v4466, %v4468
    %v4490 = vcombine.low %v4470, %v4472
    %v4491 = vcombine.low %v4474, %v4476
    %v4492 = vcombine.low %v4478, %v4480
    %v4494 = vunpack.c.l.s4 1966171168
    %v4495 = vunpack.c.0.s8 %v4494
    %v4496 = vlaneseq
    %v4497 = vshrl.u32 %v4496, 7
    %v4498 = vsub.s32 %v4495, %v4497
    %v4499 = vrot.slane %v4489, %v4498
    %v4501 = vunpack.c.l.s4 1966171168
    %v4502 = vunpack.c.0.s8 %v4501
    %v4503 = vlaneseq
    %v4504 = vshrl.u32 %v4503, 7
    %v4505 = vsub.s32 %v4502, %v4504
    %v4506 = vrot.slane %v4490, %v4505
    %v4508 = vunpack.c.l.s4 1966171168
    %v4509 = vunpack.c.0.s8 %v4508
    %v4510 = vlaneseq
    %v4511 = vshrl.u32 %v4510, 7
    %v4512 = vsub.s32 %v4509, %v4511
    %v4513 = vrot.slane %v4491, %v4512
    %v4515 = vunpack.c.l.s4 1966171168
    %v4516 = vunpack.c.0.s8 %v4515
    %v4517 = vlaneseq
    %v4518 = vshrl.u32 %v4517, 7
    %v4519 = vsub.s32 %v4516, %v4518
    %v4520 = vrot.slane %v4492, %v4519
    %v4521 = vcombine.low %v4499, %v4506
    %v4522 = vcombine.low %v4513, %v4520
    %v4524 = vunpack.c.l.s4 1966171168
    %v4525 = vunpack.c.0.s8 %v4524
    %v4526 = vlaneseq
    %v4527 = vshrl.u32 %v4526, 7
    %v4528 = vsub.s32 %v4525, %v4527
    %v4529 = vrot.slane %v4521, %v4528
    %v4531 = vunpack.c.l.s4 1966171168
    %v4532 = vunpack.c.0.s8 %v4531
    %v4533 = vlaneseq
    %v4534 = vshrl.u32 %v4533, 7
    %v4535 = vsub.s32 %v4532, %v4534
    %v4536 = vrot.slane %v4522, %v4535
    %v4537 = vcombine.low %v4529, %v4536
    %v4539 = vmul.f32 %v4456, %v4537
    %v4540 = vsub.f32 %v1451, %v4390
    %v4541 = vsub.f32 %v1452, %v4391
    %v4542 = vsub.f32 %v1453, %v4392
    %v4543 = vsub.f32 %v1454, %v4393
    %v4544 = vsub.f32 %v1455, %v4394
    %v4545 = vsub.f32 %v1456, %v4395
    %v4546 = vsub.f32 %v1457, %v4396
    %v4547 = vsub.f32 %v1458, %v4397
    %s4548 = scalar_lea.vmem %s0, 128
    %v4549 = vld [vmem:[%s4548] sm:$0xff]
    %v4550 = vld [vmem:[%s4548 + $0x8] sm:$0xff]
    %v4551 = vld [vmem:[%s4548 + $0x10] sm:$0xff]
    %v4552 = vld [vmem:[%s4548 + $0x18] sm:$0xff]
    %v4553 = vld [vmem:[%s4548 + $0x20] sm:$0xff]
    %v4554 = vld [vmem:[%s4548 + $0x28] sm:$0xff]
    %v4555 = vld [vmem:[%s4548 + $0x30] sm:$0xff]
    %v4556 = vld [vmem:[%s4548 + $0x38] sm:$0xff]
    %4558 = vset.pattern.permute.xlu0 0
    %4559 = vperm.xlu0 %4558, %v4549
    %v4560 = vpop.permute.xlu0 %4559
    %4563 = vset.pattern.permute.xlu0 0
    %4564 = vperm.xlu0 %4563, %v4550
    %v4565 = vpop.permute.xlu0 %4564
    %4568 = vset.pattern.permute.xlu0 0
    %4569 = vperm.xlu0 %4568, %v4551
    %v4570 = vpop.permute.xlu0 %4569
    %4573 = vset.pattern.permute.xlu0 0
    %4574 = vperm.xlu0 %4573, %v4552
    %v4575 = vpop.permute.xlu0 %4574
    %4578 = vset.pattern.permute.xlu0 0
    %4579 = vperm.xlu0 %4578, %v4553
    %v4580 = vpop.permute.xlu0 %4579
    %4583 = vset.pattern.permute.xlu0 0
    %4584 = vperm.xlu0 %4583, %v4554
    %v4585 = vpop.permute.xlu0 %4584
    %4588 = vset.pattern.permute.xlu0 0
    %4589 = vperm.xlu0 %4588, %v4555
    %v4590 = vpop.permute.xlu0 %4589
    %4593 = vset.pattern.permute.xlu0 0
    %4594 = vperm.xlu0 %4593, %v4556
    %v4595 = vpop.permute.xlu0 %4594
    %v4598 = vlaneseq
    %v4599 = vshrl.u32 %v4598, 7
    %v4600 = vsub.s32 0, %v4599
    %v4601 = vrot.slane %v4539, %v4600
    %v4602 = vlaneseq
    %v4603 = vshrl.u32 %v4602, 7
    %v4604 = vsub.s32 1, %v4603
    %v4605 = vrot.slane %v4539, %v4604
    %v4606 = vlaneseq
    %v4607 = vshrl.u32 %v4606, 7
    %v4608 = vsub.s32 2, %v4607
    %v4609 = vrot.slane %v4539, %v4608
    %v4610 = vlaneseq
    %v4611 = vshrl.u32 %v4610, 7
    %v4612 = vsub.s32 3, %v4611
    %v4613 = vrot.slane %v4539, %v4612
    %v4614 = vlaneseq
    %v4615 = vshrl.u32 %v4614, 7
    %v4616 = vsub.s32 4, %v4615
    %v4617 = vrot.slane %v4539, %v4616
    %v4618 = vlaneseq
    %v4619 = vshrl.u32 %v4618, 7
    %v4620 = vsub.s32 5, %v4619
    %v4621 = vrot.slane %v4539, %v4620
    %v4622 = vlaneseq
    %v4623 = vshrl.u32 %v4622, 7
    %v4624 = vsub.s32 6, %v4623
    %v4625 = vrot.slane %v4539, %v4624
    %v4626 = vlaneseq
    %v4627 = vshrl.u32 %v4626, 7
    %v4628 = vsub.s32 7, %v4627
    %v4629 = vrot.slane %v4539, %v4628
    %v4638 = vmul.f32 %v4560, %v4601
    %v4639 = vmul.f32 %v4560, %v4605
    %v4640 = vmul.f32 %v4560, %v4609
    %v4641 = vmul.f32 %v4560, %v4613
    %v4642 = vmul.f32 %v4560, %v4617
    %v4643 = vmul.f32 %v4560, %v4621
    %v4644 = vmul.f32 %v4560, %v4625
    %v4645 = vmul.f32 %v4560, %v4629
    %v4646 = vmul.f32 %v4565, %v4601
    %v4647 = vmul.f32 %v4565, %v4605
    %v4648 = vmul.f32 %v4565, %v4609
    %v4649 = vmul.f32 %v4565, %v4613
    %v4650 = vmul.f32 %v4565, %v4617
    %v4651 = vmul.f32 %v4565, %v4621
    %v4652 = vmul.f32 %v4565, %v4625
    %v4653 = vmul.f32 %v4565, %v4629
    %v4654 = vmul.f32 %v4570, %v4601
    %v4655 = vmul.f32 %v4570, %v4605
    %v4656 = vmul.f32 %v4570, %v4609
    %v4657 = vmul.f32 %v4570, %v4613
    %v4658 = vmul.f32 %v4570, %v4617
    %v4659 = vmul.f32 %v4570, %v4621
    %v4660 = vmul.f32 %v4570, %v4625
    %v4661 = vmul.f32 %v4570, %v4629
    %v4662 = vmul.f32 %v4575, %v4601
    %v4663 = vmul.f32 %v4575, %v4605
    %v4664 = vmul.f32 %v4575, %v4609
    %v4665 = vmul.f32 %v4575, %v4613
    %v4666 = vmul.f32 %v4575, %v4617
    %v4667 = vmul.f32 %v4575, %v4621
    %v4668 = vmul.f32 %v4575, %v4625
    %v4669 = vmul.f32 %v4575, %v4629
    %v4670 = vmul.f32 %v4580, %v4601
    %v4671 = vmul.f32 %v4580, %v4605
    %v4672 = vmul.f32 %v4580, %v4609
    %v4673 = vmul.f32 %v4580, %v4613
    %v4674 = vmul.f32 %v4580, %v4617
    %v4675 = vmul.f32 %v4580, %v4621
    %v4676 = vmul.f32 %v4580, %v4625
    %v4677 = vmul.f32 %v4580, %v4629
    %v4678 = vmul.f32 %v4585, %v4601
    %v4679 = vmul.f32 %v4585, %v4605
    %v4680 = vmul.f32 %v4585, %v4609
    %v4681 = vmul.f32 %v4585, %v4613
    %v4682 = vmul.f32 %v4585, %v4617
    %v4683 = vmul.f32 %v4585, %v4621
    %v4684 = vmul.f32 %v4585, %v4625
    %v4685 = vmul.f32 %v4585, %v4629
    %v4686 = vmul.f32 %v4590, %v4601
    %v4687 = vmul.f32 %v4590, %v4605
    %v4688 = vmul.f32 %v4590, %v4609
    %v4689 = vmul.f32 %v4590, %v4613
    %v4690 = vmul.f32 %v4590, %v4617
    %v4691 = vmul.f32 %v4590, %v4621
    %v4692 = vmul.f32 %v4590, %v4625
    %v4693 = vmul.f32 %v4590, %v4629
    %v4694 = vmul.f32 %v4595, %v4601
    %v4695 = vmul.f32 %v4595, %v4605
    %v4696 = vmul.f32 %v4595, %v4609
    %v4697 = vmul.f32 %v4595, %v4613
    %v4698 = vmul.f32 %v4595, %v4617
    %v4699 = vmul.f32 %v4595, %v4621
    %v4700 = vmul.f32 %v4595, %v4625
    %v4701 = vmul.f32 %v4595, %v4629
    %s4702 = scalar_lea.vmem %s1, 128
    %v4703 = vld [vmem:[%s4702] sm:$0xff]
    %v4704 = vld [vmem:[%s4702 + $0x8] sm:$0xff]
    %v4705 = vld [vmem:[%s4702 + $0x10] sm:$0xff]
    %v4706 = vld [vmem:[%s4702 + $0x18] sm:$0xff]
    %v4707 = vld [vmem:[%s4702 + $0x20] sm:$0xff]
    %v4708 = vld [vmem:[%s4702 + $0x28] sm:$0xff]
    %v4709 = vld [vmem:[%s4702 + $0x30] sm:$0xff]
    %v4710 = vld [vmem:[%s4702 + $0x38] sm:$0xff]
    %4712 = vset.pattern.permute.xlu0 0
    %4713 = vperm.xlu0 %4712, %v4703
    %v4714 = vpop.permute.xlu0 %4713
    %4717 = vset.pattern.permute.xlu0 0
    %4718 = vperm.xlu0 %4717, %v4704
    %v4719 = vpop.permute.xlu0 %4718
    %4722 = vset.pattern.permute.xlu0 0
    %4723 = vperm.xlu0 %4722, %v4705
    %v4724 = vpop.permute.xlu0 %4723
    %4727 = vset.pattern.permute.xlu0 0
    %4728 = vperm.xlu0 %4727, %v4706
    %v4729 = vpop.permute.xlu0 %4728
    %4732 = vset.pattern.permute.xlu0 0
    %4733 = vperm.xlu0 %4732, %v4707
    %v4734 = vpop.permute.xlu0 %4733
    %4737 = vset.pattern.permute.xlu0 0
    %4738 = vperm.xlu0 %4737, %v4708
    %v4739 = vpop.permute.xlu0 %4738
    %4742 = vset.pattern.permute.xlu0 0
    %4743 = vperm.xlu0 %4742, %v4709
    %v4744 = vpop.permute.xlu0 %4743
    %4747 = vset.pattern.permute.xlu0 0
    %4748 = vperm.xlu0 %4747, %v4710
    %v4749 = vpop.permute.xlu0 %4748
    %v4751 = vadd.f32 %v4638, %v4714
    %v4752 = vadd.f32 %v4639, %v4714
    %v4753 = vadd.f32 %v4640, %v4714
    %v4754 = vadd.f32 %v4641, %v4714
    %v4755 = vadd.f32 %v4642, %v4714
    %v4756 = vadd.f32 %v4643, %v4714
    %v4757 = vadd.f32 %v4644, %v4714
    %v4758 = vadd.f32 %v4645, %v4714
    %v4759 = vadd.f32 %v4646, %v4719
    %v4760 = vadd.f32 %v4647, %v4719
    %v4761 = vadd.f32 %v4648, %v4719
    %v4762 = vadd.f32 %v4649, %v4719
    %v4763 = vadd.f32 %v4650, %v4719
    %v4764 = vadd.f32 %v4651, %v4719
    %v4765 = vadd.f32 %v4652, %v4719
    %v4766 = vadd.f32 %v4653, %v4719
    %v4767 = vadd.f32 %v4654, %v4724
    %v4768 = vadd.f32 %v4655, %v4724
    %v4769 = vadd.f32 %v4656, %v4724
    %v4770 = vadd.f32 %v4657, %v4724
    %v4771 = vadd.f32 %v4658, %v4724
    %v4772 = vadd.f32 %v4659, %v4724
    %v4773 = vadd.f32 %v4660, %v4724
    %v4774 = vadd.f32 %v4661, %v4724
    %v4775 = vadd.f32 %v4662, %v4729
    %v4776 = vadd.f32 %v4663, %v4729
    %v4777 = vadd.f32 %v4664, %v4729
    %v4778 = vadd.f32 %v4665, %v4729
    %v4779 = vadd.f32 %v4666, %v4729
    %v4780 = vadd.f32 %v4667, %v4729
    %v4781 = vadd.f32 %v4668, %v4729
    %v4782 = vadd.f32 %v4669, %v4729
    %v4783 = vadd.f32 %v4670, %v4734
    %v4784 = vadd.f32 %v4671, %v4734
    %v4785 = vadd.f32 %v4672, %v4734
    %v4786 = vadd.f32 %v4673, %v4734
    %v4787 = vadd.f32 %v4674, %v4734
    %v4788 = vadd.f32 %v4675, %v4734
    %v4789 = vadd.f32 %v4676, %v4734
    %v4790 = vadd.f32 %v4677, %v4734
    %v4791 = vadd.f32 %v4678, %v4739
    %v4792 = vadd.f32 %v4679, %v4739
    %v4793 = vadd.f32 %v4680, %v4739
    %v4794 = vadd.f32 %v4681, %v4739
    %v4795 = vadd.f32 %v4682, %v4739
    %v4796 = vadd.f32 %v4683, %v4739
    %v4797 = vadd.f32 %v4684, %v4739
    %v4798 = vadd.f32 %v4685, %v4739
    %v4799 = vadd.f32 %v4686, %v4744
    %v4800 = vadd.f32 %v4687, %v4744
    %v4801 = vadd.f32 %v4688, %v4744
    %v4802 = vadd.f32 %v4689, %v4744
    %v4803 = vadd.f32 %v4690, %v4744
    %v4804 = vadd.f32 %v4691, %v4744
    %v4805 = vadd.f32 %v4692, %v4744
    %v4806 = vadd.f32 %v4693, %v4744
    %v4807 = vadd.f32 %v4694, %v4749
    %v4808 = vadd.f32 %v4695, %v4749
    %v4809 = vadd.f32 %v4696, %v4749
    %v4810 = vadd.f32 %v4697, %v4749
    %v4811 = vadd.f32 %v4698, %v4749
    %v4812 = vadd.f32 %v4699, %v4749
    %v4813 = vadd.f32 %v4700, %v4749
    %v4814 = vadd.f32 %v4701, %v4749
    %v4815 = vmul.f32 %v4751, 0.01
    %v4816 = vmul.f32 %v4752, 0.01
    %v4817 = vmul.f32 %v4753, 0.01
    %v4818 = vmul.f32 %v4754, 0.01
    %v4819 = vmul.f32 %v4755, 0.01
    %v4820 = vmul.f32 %v4756, 0.01
    %v4821 = vmul.f32 %v4757, 0.01
    %v4822 = vmul.f32 %v4758, 0.01
    %v4823 = vmul.f32 %v4759, 0.01
    %v4824 = vmul.f32 %v4760, 0.01
    %v4825 = vmul.f32 %v4761, 0.01
    %v4826 = vmul.f32 %v4762, 0.01
    %v4827 = vmul.f32 %v4763, 0.01
    %v4828 = vmul.f32 %v4764, 0.01
    %v4829 = vmul.f32 %v4765, 0.01
    %v4830 = vmul.f32 %v4766, 0.01
    %v4831 = vmul.f32 %v4767, 0.01
    %v4832 = vmul.f32 %v4768, 0.01
    %v4833 = vmul.f32 %v4769, 0.01
    %v4834 = vmul.f32 %v4770, 0.01
    %v4835 = vmul.f32 %v4771, 0.01
    %v4836 = vmul.f32 %v4772, 0.01
    %v4837 = vmul.f32 %v4773, 0.01
    %v4838 = vmul.f32 %v4774, 0.01
    %v4839 = vmul.f32 %v4775, 0.01
    %v4840 = vmul.f32 %v4776, 0.01
    %v4841 = vmul.f32 %v4777, 0.01
    %v4842 = vmul.f32 %v4778, 0.01
    %v4843 = vmul.f32 %v4779, 0.01
    %v4844 = vmul.f32 %v4780, 0.01
    %v4845 = vmul.f32 %v4781, 0.01
    %v4846 = vmul.f32 %v4782, 0.01
    %v4847 = vmul.f32 %v4783, 0.01
    %v4848 = vmul.f32 %v4784, 0.01
    %v4849 = vmul.f32 %v4785, 0.01
    %v4850 = vmul.f32 %v4786, 0.01
    %v4851 = vmul.f32 %v4787, 0.01
    %v4852 = vmul.f32 %v4788, 0.01
    %v4853 = vmul.f32 %v4789, 0.01
    %v4854 = vmul.f32 %v4790, 0.01
    %v4855 = vmul.f32 %v4791, 0.01
    %v4856 = vmul.f32 %v4792, 0.01
    %v4857 = vmul.f32 %v4793, 0.01
    %v4858 = vmul.f32 %v4794, 0.01
    %v4859 = vmul.f32 %v4795, 0.01
    %v4860 = vmul.f32 %v4796, 0.01
    %v4861 = vmul.f32 %v4797, 0.01
    %v4862 = vmul.f32 %v4798, 0.01
    %v4863 = vmul.f32 %v4799, 0.01
    %v4864 = vmul.f32 %v4800, 0.01
    %v4865 = vmul.f32 %v4801, 0.01
    %v4866 = vmul.f32 %v4802, 0.01
    %v4867 = vmul.f32 %v4803, 0.01
    %v4868 = vmul.f32 %v4804, 0.01
    %v4869 = vmul.f32 %v4805, 0.01
    %v4870 = vmul.f32 %v4806, 0.01
    %v4871 = vmul.f32 %v4807, 0.01
    %v4872 = vmul.f32 %v4808, 0.01
    %v4873 = vmul.f32 %v4809, 0.01
    %v4874 = vmul.f32 %v4810, 0.01
    %v4875 = vmul.f32 %v4811, 0.01
    %v4876 = vmul.f32 %v4812, 0.01
    %v4877 = vmul.f32 %v4813, 0.01
    %v4878 = vmul.f32 %v4814, 0.01
    %v4879 = vmax.f32 %v4751, %v4815
    %v4880 = vmax.f32 %v4752, %v4816
    %v4881 = vmax.f32 %v4753, %v4817
    %v4882 = vmax.f32 %v4754, %v4818
    %v4883 = vmax.f32 %v4755, %v4819
    %v4884 = vmax.f32 %v4756, %v4820
    %v4885 = vmax.f32 %v4757, %v4821
    %v4886 = vmax.f32 %v4758, %v4822
    %v4887 = vmax.f32 %v4759, %v4823
    %v4888 = vmax.f32 %v4760, %v4824
    %v4889 = vmax.f32 %v4761, %v4825
    %v4890 = vmax.f32 %v4762, %v4826
    %v4891 = vmax.f32 %v4763, %v4827
    %v4892 = vmax.f32 %v4764, %v4828
    %v4893 = vmax.f32 %v4765, %v4829
    %v4894 = vmax.f32 %v4766, %v4830
    %v4895 = vmax.f32 %v4767, %v4831
    %v4896 = vmax.f32 %v4768, %v4832
    %v4897 = vmax.f32 %v4769, %v4833
    %v4898 = vmax.f32 %v4770, %v4834
    %v4899 = vmax.f32 %v4771, %v4835
    %v4900 = vmax.f32 %v4772, %v4836
    %v4901 = vmax.f32 %v4773, %v4837
    %v4902 = vmax.f32 %v4774, %v4838
    %v4903 = vmax.f32 %v4775, %v4839
    %v4904 = vmax.f32 %v4776, %v4840
    %v4905 = vmax.f32 %v4777, %v4841
    %v4906 = vmax.f32 %v4778, %v4842
    %v4907 = vmax.f32 %v4779, %v4843
    %v4908 = vmax.f32 %v4780, %v4844
    %v4909 = vmax.f32 %v4781, %v4845
    %v4910 = vmax.f32 %v4782, %v4846
    %v4911 = vmax.f32 %v4783, %v4847
    %v4912 = vmax.f32 %v4784, %v4848
    %v4913 = vmax.f32 %v4785, %v4849
    %v4914 = vmax.f32 %v4786, %v4850
    %v4915 = vmax.f32 %v4787, %v4851
    %v4916 = vmax.f32 %v4788, %v4852
    %v4917 = vmax.f32 %v4789, %v4853
    %v4918 = vmax.f32 %v4790, %v4854
    %v4919 = vmax.f32 %v4791, %v4855
    %v4920 = vmax.f32 %v4792, %v4856
    %v4921 = vmax.f32 %v4793, %v4857
    %v4922 = vmax.f32 %v4794, %v4858
    %v4923 = vmax.f32 %v4795, %v4859
    %v4924 = vmax.f32 %v4796, %v4860
    %v4925 = vmax.f32 %v4797, %v4861
    %v4926 = vmax.f32 %v4798, %v4862
    %v4927 = vmax.f32 %v4799, %v4863
    %v4928 = vmax.f32 %v4800, %v4864
    %v4929 = vmax.f32 %v4801, %v4865
    %v4930 = vmax.f32 %v4802, %v4866
    %v4931 = vmax.f32 %v4803, %v4867
    %v4932 = vmax.f32 %v4804, %v4868
    %v4933 = vmax.f32 %v4805, %v4869
    %v4934 = vmax.f32 %v4806, %v4870
    %v4935 = vmax.f32 %v4807, %v4871
    %v4936 = vmax.f32 %v4808, %v4872
    %v4937 = vmax.f32 %v4809, %v4873
    %v4938 = vmax.f32 %v4810, %v4874
    %v4939 = vmax.f32 %v4811, %v4875
    %v4940 = vmax.f32 %v4812, %v4876
    %v4941 = vmax.f32 %v4813, %v4877
    %v4942 = vmax.f32 %v4814, %v4878
    %s4943 = scalar_lea.vmem %s2, 128
    %v4944 = vld [vmem:[%s4943] sm:$0xff]
    %v4945 = vld [vmem:[%s4943 + $0x8] sm:$0xff]
    %v4946 = vld [vmem:[%s4943 + $0x10] sm:$0xff]
    %v4947 = vld [vmem:[%s4943 + $0x18] sm:$0xff]
    %v4948 = vld [vmem:[%s4943 + $0x20] sm:$0xff]
    %v4949 = vld [vmem:[%s4943 + $0x28] sm:$0xff]
    %v4950 = vld [vmem:[%s4943 + $0x30] sm:$0xff]
    %v4951 = vld [vmem:[%s4943 + $0x38] sm:$0xff]
    %s4952 = scalar_lea.vmem %s3, 128
    %v4953 = vld [vmem:[%s4952] sm:$0xff]
    %v4954 = vld [vmem:[%s4952 + $0x8] sm:$0xff]
    %v4955 = vld [vmem:[%s4952 + $0x10] sm:$0xff]
    %v4956 = vld [vmem:[%s4952 + $0x18] sm:$0xff]
    %v4957 = vld [vmem:[%s4952 + $0x20] sm:$0xff]
    %v4958 = vld [vmem:[%s4952 + $0x28] sm:$0xff]
    %v4959 = vld [vmem:[%s4952 + $0x30] sm:$0xff]
    %v4960 = vld [vmem:[%s4952 + $0x38] sm:$0xff]
    %4962 = vset.pattern.permute.xlu0 0
    %4963 = vperm.xlu0 %4962, %v4953
    %v4964 = vpop.permute.xlu0 %4963
    %4967 = vset.pattern.permute.xlu0 0
    %4968 = vperm.xlu0 %4967, %v4954
    %v4969 = vpop.permute.xlu0 %4968
    %4972 = vset.pattern.permute.xlu0 0
    %4973 = vperm.xlu0 %4972, %v4955
    %v4974 = vpop.permute.xlu0 %4973
    %4977 = vset.pattern.permute.xlu0 0
    %4978 = vperm.xlu0 %4977, %v4956
    %v4979 = vpop.permute.xlu0 %4978
    %4982 = vset.pattern.permute.xlu0 0
    %4983 = vperm.xlu0 %4982, %v4957
    %v4984 = vpop.permute.xlu0 %4983
    %4987 = vset.pattern.permute.xlu0 0
    %4988 = vperm.xlu0 %4987, %v4958
    %v4989 = vpop.permute.xlu0 %4988
    %4992 = vset.pattern.permute.xlu0 0
    %4993 = vperm.xlu0 %4992, %v4959
    %v4994 = vpop.permute.xlu0 %4993
    %4997 = vset.pattern.permute.xlu0 0
    %4998 = vperm.xlu0 %4997, %v4960
    %v4999 = vpop.permute.xlu0 %4998
    %v5002 = vsel %vm483, %v4944, 0
    %v5005 = vsel %vm483, %v4945, 0
    %v5008 = vsel %vm483, %v4946, 0
    %v5011 = vsel %vm483, %v4947, 0
    %v5014 = vsel %vm483, %v4948, 0
    %v5017 = vsel %vm483, %v4949, 0
    %v5020 = vsel %vm483, %v4950, 0
    %v5023 = vsel %vm483, %v4951, 0
    %5025 = vmatprep.subr.mxu0 %v4880
    %5026 = vmatpush1.msra.mxu0 %v4879
    %5027 = vmatprep.subr.mxu0 %v4888
    %5028 = vmatpush1.msra.mxu0 %v4887
    %5029 = vmatprep.subr.mxu0 %v4896
    %5030 = vmatpush1.msra.mxu0 %v4895
    %5031 = vmatprep.subr.mxu0 %v4904
    %5032 = vmatpush1.msra.mxu0 %v4903
    %5033 = vmatprep.subr.mxu0 %v4912
    %5034 = vmatpush1.msra.mxu0 %v4911
    %5035 = vmatprep.subr.mxu0 %v4920
    %5036 = vmatpush1.msra.mxu0 %v4919
    %5037 = vmatprep.subr.mxu0 %v4928
    %5038 = vmatpush1.msra.mxu0 %v4927
    %5039 = vmatprep.subr.mxu0 %v4936
    %5040 = vmatpush1.msra.mxu0 %v4935
    %5041 = vmatprep.subr.mxu0 0.0
    %5042 = vmatpush1.msra.mxu0 0.0
    %5043 = vmatprep.subr.mxu0 0.0
    %5044 = vmatpush1.msra.mxu0 0.0
    %5045 = vmatprep.subr.mxu0 0.0
    %5046 = vmatpush1.msra.mxu0 0.0
    %5047 = vmatprep.subr.mxu0 0.0
    %5048 = vmatpush1.msra.mxu0 0.0
    %5049 = vmatprep.subr.mxu0 0.0
    %5050 = vmatpush1.msra.mxu0 0.0
    %5051 = vmatprep.subr.mxu0 0.0
    %5052 = vmatpush1.msra.mxu0 0.0
    %5053 = vmatprep.subr.mxu0 0.0
    %5054 = vmatpush1.msra.mxu0 0.0
    %5055 = vmatprep.subr.mxu0 0.0
    %5056 = vmatpush1.msra.mxu0 0.0
    %5057 = vmatprep.subr.mxu0 0.0
    %5058 = vmatpush1.msra.mxu0 0.0
    %5059 = vmatprep.subr.mxu0 0.0
    %5060 = vmatpush1.msra.mxu0 0.0
    %5061 = vmatprep.subr.mxu0 0.0
    %5062 = vmatpush1.msra.mxu0 0.0
    %5063 = vmatprep.subr.mxu0 0.0
    %5064 = vmatpush1.msra.mxu0 0.0
    %5065 = vmatprep.subr.mxu0 0.0
    %5066 = vmatpush1.msra.mxu0 0.0
    %5067 = vmatprep.subr.mxu0 0.0
    %5068 = vmatpush1.msra.mxu0 0.0
    %5069 = vmatprep.subr.mxu0 0.0
    %5070 = vmatpush1.msra.mxu0 0.0
    %5071 = vmatprep.subr.mxu0 0.0
    %5072 = vmatpush1.msra.mxu0 0.0
    %5073 = vmatprep.subr.mxu0 0.0
    %5074 = vmatpush1.msra.mxu0 0.0
    %5075 = vmatprep.subr.mxu0 0.0
    %5076 = vmatpush1.msra.mxu0 0.0
    %5077 = vmatprep.subr.mxu0 0.0
    %5078 = vmatpush1.msra.mxu0 0.0
    %5079 = vmatprep.subr.mxu0 0.0
    %5080 = vmatpush1.msra.mxu0 0.0
    %5081 = vmatprep.subr.mxu0 0.0
    %5082 = vmatpush1.msra.mxu0 0.0
    %5083 = vmatprep.subr.mxu0 0.0
    %5084 = vmatpush1.msra.mxu0 0.0
    %5085 = vmatprep.subr.mxu0 0.0
    %5086 = vmatpush1.msra.mxu0 0.0
    %5087 = vmatprep.subr.mxu0 0.0
    %5088 = vmatpush1.msra.mxu0 0.0
    %5089 = vmatprep.mubr.f32.mxu0 0.0
    %5090 = vmatmul.mubr.f32.gmra.mrb[0].mxu0 %v5002
    %v5091 = vpop.f32.mrb[0].mxu0
    %v5092 = vadd.f32 %v4964, %v5091
    %v5093 = vpop.f32.mrb[0].mxu0
    %v5094 = vadd.f32 %v4964, %v5093
    %5095 = vmatprep.mubr.f32.mxu0 0.0
    %5096 = vmatmul.mubr.f32.gmra.mrb[0].mxu0 %v5005
    %v5097 = vpop.f32.mrb[0].mxu0
    %v5098 = vadd.f32 %v4969, %v5097
    %v5099 = vpop.f32.mrb[0].mxu0
    %v5100 = vadd.f32 %v4969, %v5099
    %5101 = vmatprep.mubr.f32.mxu0 0.0
    %5102 = vmatmul.mubr.f32.gmra.mrb[0].mxu0 %v5008
    %v5103 = vpop.f32.mrb[0].mxu0
    %v5104 = vadd.f32 %v4974, %v5103
    %v5105 = vpop.f32.mrb[0].mxu0
    %v5106 = vadd.f32 %v4974, %v5105
    %5107 = vmatprep.mubr.f32.mxu0 0.0
    %5108 = vmatmul.mubr.f32.gmra.mrb[0].mxu0 %v5011
    %v5109 = vpop.f32.mrb[0].mxu0
    %v5110 = vadd.f32 %v4979, %v5109
    %v5111 = vpop.f32.mrb[0].mxu0
    %v5112 = vadd.f32 %v4979, %v5111
    %5113 = vmatprep.mubr.f32.mxu0 0.0
    %5114 = vmatmul.mubr.f32.gmra.mrb[0].mxu0 %v5014
    %v5115 = vpop.f32.mrb[0].mxu0
    %v5116 = vadd.f32 %v4984, %v5115
    %v5117 = vpop.f32.mrb[0].mxu0
    %v5118 = vadd.f32 %v4984, %v5117
    %5119 = vmatprep.mubr.f32.mxu0 0.0
    %5120 = vmatmul.mubr.f32.gmra.mrb[0].mxu0 %v5017
    %v5121 = vpop.f32.mrb[0].mxu0
    %v5122 = vadd.f32 %v4989, %v5121
    %v5123 = vpop.f32.mrb[0].mxu0
    %v5124 = vadd.f32 %v4989, %v5123
    %5125 = vmatprep.mubr.f32.mxu0 0.0
    %5126 = vmatmul.mubr.f32.gmra.mrb[0].mxu0 %v5020
    %v5127 = vpop.f32.mrb[0].mxu0
    %v5128 = vadd.f32 %v4994, %v5127
    %v5129 = vpop.f32.mrb[0].mxu0
    %v5130 = vadd.f32 %v4994, %v5129
    %5131 = vmatprep.mubr.f32.mxu0 0.0
    %5132 = vmatmul.mubr.f32.gmra.mrb[0].mxu0 %v5023
    %v5133 = vpop.f32.mrb[0].mxu0
    %v5134 = vadd.f32 %v4999, %v5133
    %v5135 = vpop.f32.mrb[0].mxu0
    %v5136 = vadd.f32 %v4999, %v5135
    %5137 = vdwg.mxu0
    %5138 = vmatprep.subr.mxu0 %v4882
    %5139 = vmatpush1.msra.mxu0 %v4881
    %5140 = vmatprep.subr.mxu0 %v4890
    %5141 = vmatpush1.msra.mxu0 %v4889
    %5142 = vmatprep.subr.mxu0 %v4898
    %5143 = vmatpush1.msra.mxu0 %v4897
    %5144 = vmatprep.subr.mxu0 %v4906
    %5145 = vmatpush1.msra.mxu0 %v4905
    %5146 = vmatprep.subr.mxu0 %v4914
    %5147 = vmatpush1.msra.mxu0 %v4913
    %5148 = vmatprep.subr.mxu0 %v4922
    %5149 = vmatpush1.msra.mxu0 %v4921
    %5150 = vmatprep.subr.mxu0 %v4930
    %5151 = vmatpush1.msra.mxu0 %v4929
    %5152 = vmatprep.subr.mxu0 %v4938
    %5153 = vmatpush1.msra.mxu0 %v4937
    %5154 = vmatprep.subr.mxu0 0.0
    %5155 = vmatpush1.msra.mxu0 0.0
    %5156 = vmatprep.subr.mxu0 0.0
    %5157 = vmatpush1.msra.mxu0 0.0
    %5158 = vmatprep.subr.mxu0 0.0
    %5159 = vmatpush1.msra.mxu0 0.0
    %5160 = vmatprep.subr.mxu0 0.0
    %5161 = vmatpush1.msra.mxu0 0.0
    %5162 = vmatprep.subr.mxu0 0.0
    %5163 = vmatpush1.msra.mxu0 0.0
    %5164 = vmatprep.subr.mxu0 0.0
    %5165 = vmatpush1.msra.mxu0 0.0
    %5166 = vmatprep.subr.mxu0 0.0
    %5167 = vmatpush1.msra.mxu0 0.0
    %5168 = vmatprep.subr.mxu0 0.0
    %5169 = vmatpush1.msra.mxu0 0.0
    %5170 = vmatprep.subr.mxu0 0.0
    %5171 = vmatpush1.msra.mxu0 0.0
    %5172 = vmatprep.subr.mxu0 0.0
    %5173 = vmatpush1.msra.mxu0 0.0
    %5174 = vmatprep.subr.mxu0 0.0
    %5175 = vmatpush1.msra.mxu0 0.0
    %5176 = vmatprep.subr.mxu0 0.0
    %5177 = vmatpush1.msra.mxu0 0.0
    %5178 = vmatprep.subr.mxu0 0.0
    %5179 = vmatpush1.msra.mxu0 0.0
    %5180 = vmatprep.subr.mxu0 0.0
    %5181 = vmatpush1.msra.mxu0 0.0
    %5182 = vmatprep.subr.mxu0 0.0
    %5183 = vmatpush1.msra.mxu0 0.0
    %5184 = vmatprep.subr.mxu0 0.0
    %5185 = vmatpush1.msra.mxu0 0.0
    %5186 = vmatprep.subr.mxu0 0.0
    %5187 = vmatpush1.msra.mxu0 0.0
    %5188 = vmatprep.subr.mxu0 0.0
    %5189 = vmatpush1.msra.mxu0 0.0
    %5190 = vmatprep.subr.mxu0 0.0
    %5191 = vmatpush1.msra.mxu0 0.0
    %5192 = vmatprep.subr.mxu0 0.0
    %5193 = vmatpush1.msra.mxu0 0.0
    %5194 = vmatprep.subr.mxu0 0.0
    %5195 = vmatpush1.msra.mxu0 0.0
    %5196 = vmatprep.subr.mxu0 0.0
    %5197 = vmatpush1.msra.mxu0 0.0
    %5198 = vmatprep.subr.mxu0 0.0
    %5199 = vmatpush1.msra.mxu0 0.0
    %5200 = vmatprep.subr.mxu0 0.0
    %5201 = vmatpush1.msra.mxu0 0.0
    %5202 = vmatprep.mubr.f32.mxu0 0.0
    %5203 = vmatmul.mubr.f32.gmra.mrb[0].mxu0 %v5002
    %v5204 = vpop.f32.mrb[0].mxu0
    %v5205 = vadd.f32 %v4964, %v5204
    %v5206 = vpop.f32.mrb[0].mxu0
    %v5207 = vadd.f32 %v4964, %v5206
    %5208 = vmatprep.mubr.f32.mxu0 0.0
    %5209 = vmatmul.mubr.f32.gmra.mrb[0].mxu0 %v5005
    %v5210 = vpop.f32.mrb[0].mxu0
    %v5211 = vadd.f32 %v4969, %v5210
    %v5212 = vpop.f32.mrb[0].mxu0
    %v5213 = vadd.f32 %v4969, %v5212
    %5214 = vmatprep.mubr.f32.mxu0 0.0
    %5215 = vmatmul.mubr.f32.gmra.mrb[0].mxu0 %v5008
    %v5216 = vpop.f32.mrb[0].mxu0
    %v5217 = vadd.f32 %v4974, %v5216
    %v5218 = vpop.f32.mrb[0].mxu0
    %v5219 = vadd.f32 %v4974, %v5218
    %5220 = vmatprep.mubr.f32.mxu0 0.0
    %5221 = vmatmul.mubr.f32.gmra.mrb[0].mxu0 %v5011
    %v5222 = vpop.f32.mrb[0].mxu0
    %v5223 = vadd.f32 %v4979, %v5222
    %v5224 = vpop.f32.mrb[0].mxu0
    %v5225 = vadd.f32 %v4979, %v5224
    %5226 = vmatprep.mubr.f32.mxu0 0.0
    %5227 = vmatmul.mubr.f32.gmra.mrb[0].mxu0 %v5014
    %v5228 = vpop.f32.mrb[0].mxu0
    %v5229 = vadd.f32 %v4984, %v5228
    %v5230 = vpop.f32.mrb[0].mxu0
    %v5231 = vadd.f32 %v4984, %v5230
    %5232 = vmatprep.mubr.f32.mxu0 0.0
    %5233 = vmatmul.mubr.f32.gmra.mrb[0].mxu0 %v5017
    %v5234 = vpop.f32.mrb[0].mxu0
    %v5235 = vadd.f32 %v4989, %v5234
    %v5236 = vpop.f32.mrb[0].mxu0
    %v5237 = vadd.f32 %v4989, %v5236
    %5238 = vmatprep.mubr.f32.mxu0 0.0
    %5239 = vmatmul.mubr.f32.gmra.mrb[0].mxu0 %v5020
    %v5240 = vpop.f32.mrb[0].mxu0
    %v5241 = vadd.f32 %v4994, %v5240
    %v5242 = vpop.f32.mrb[0].mxu0
    %v5243 = vadd.f32 %v4994, %v5242
    %5244 = vmatprep.mubr.f32.mxu0 0.0
    %5245 = vmatmul.mubr.f32.gmra.mrb[0].mxu0 %v5023
    %v5246 = vpop.f32.mrb[0].mxu0
    %v5247 = vadd.f32 %v4999, %v5246
    %v5248 = vpop.f32.mrb[0].mxu0
    %v5249 = vadd.f32 %v4999, %v5248
    %5250 = vdwg.mxu0
    %5251 = vmatprep.subr.mxu0 %v4884
    %5252 = vmatpush1.msra.mxu0 %v4883
    %5253 = vmatprep.subr.mxu0 %v4892
    %5254 = vmatpush1.msra.mxu0 %v4891
    %5255 = vmatprep.subr.mxu0 %v4900
    %5256 = vmatpush1.msra.mxu0 %v4899
    %5257 = vmatprep.subr.mxu0 %v4908
    %5258 = vmatpush1.msra.mxu0 %v4907
    %5259 = vmatprep.subr.mxu0 %v4916
    %5260 = vmatpush1.msra.mxu0 %v4915
    %5261 = vmatprep.subr.mxu0 %v4924
    %5262 = vmatpush1.msra.mxu0 %v4923
    %5263 = vmatprep.subr.mxu0 %v4932
    %5264 = vmatpush1.msra.mxu0 %v4931
    %5265 = vmatprep.subr.mxu0 %v4940
    %5266 = vmatpush1.msra.mxu0 %v4939
    %5267 = vmatprep.subr.mxu0 0.0
    %5268 = vmatpush1.msra.mxu0 0.0
    %5269 = vmatprep.subr.mxu0 0.0
    %5270 = vmatpush1.msra.mxu0 0.0
    %5271 = vmatprep.subr.mxu0 0.0
    %5272 = vmatpush1.msra.mxu0 0.0
    %5273 = vmatprep.subr.mxu0 0.0
    %5274 = vmatpush1.msra.mxu0 0.0
    %5275 = vmatprep.subr.mxu0 0.0
    %5276 = vmatpush1.msra.mxu0 0.0
    %5277 = vmatprep.subr.mxu0 0.0
    %5278 = vmatpush1.msra.mxu0 0.0
    %5279 = vmatprep.subr.mxu0 0.0
    %5280 = vmatpush1.msra.mxu0 0.0
    %5281 = vmatprep.subr.mxu0 0.0
    %5282 = vmatpush1.msra.mxu0 0.0
    %5283 = vmatprep.subr.mxu0 0.0
    %5284 = vmatpush1.msra.mxu0 0.0
    %5285 = vmatprep.subr.mxu0 0.0
    %5286 = vmatpush1.msra.mxu0 0.0
    %5287 = vmatprep.subr.mxu0 0.0
    %5288 = vmatpush1.msra.mxu0 0.0
    %5289 = vmatprep.subr.mxu0 0.0
    %5290 = vmatpush1.msra.mxu0 0.0
    %5291 = vmatprep.subr.mxu0 0.0
    %5292 = vmatpush1.msra.mxu0 0.0
    %5293 = vmatprep.subr.mxu0 0.0
    %5294 = vmatpush1.msra.mxu0 0.0
    %5295 = vmatprep.subr.mxu0 0.0
    %5296 = vmatpush1.msra.mxu0 0.0
    %5297 = vmatprep.subr.mxu0 0.0
    %5298 = vmatpush1.msra.mxu0 0.0
    %5299 = vmatprep.subr.mxu0 0.0
    %5300 = vmatpush1.msra.mxu0 0.0
    %5301 = vmatprep.subr.mxu0 0.0
    %5302 = vmatpush1.msra.mxu0 0.0
    %5303 = vmatprep.subr.mxu0 0.0
    %5304 = vmatpush1.msra.mxu0 0.0
    %5305 = vmatprep.subr.mxu0 0.0
    %5306 = vmatpush1.msra.mxu0 0.0
    %5307 = vmatprep.subr.mxu0 0.0
    %5308 = vmatpush1.msra.mxu0 0.0
    %5309 = vmatprep.subr.mxu0 0.0
    %5310 = vmatpush1.msra.mxu0 0.0
    %5311 = vmatprep.subr.mxu0 0.0
    %5312 = vmatpush1.msra.mxu0 0.0
    %5313 = vmatprep.subr.mxu0 0.0
    %5314 = vmatpush1.msra.mxu0 0.0
    %5315 = vmatprep.mubr.f32.mxu0 0.0
    %5316 = vmatmul.mubr.f32.gmra.mrb[0].mxu0 %v5002
    %v5317 = vpop.f32.mrb[0].mxu0
    %v5318 = vadd.f32 %v4964, %v5317
    %v5319 = vpop.f32.mrb[0].mxu0
    %v5320 = vadd.f32 %v4964, %v5319
    %5321 = vmatprep.mubr.f32.mxu0 0.0
    %5322 = vmatmul.mubr.f32.gmra.mrb[0].mxu0 %v5005
    %v5323 = vpop.f32.mrb[0].mxu0
    %v5324 = vadd.f32 %v4969, %v5323
    %v5325 = vpop.f32.mrb[0].mxu0
    %v5326 = vadd.f32 %v4969, %v5325
    %5327 = vmatprep.mubr.f32.mxu0 0.0
    %5328 = vmatmul.mubr.f32.gmra.mrb[0].mxu0 %v5008
    %v5329 = vpop.f32.mrb[0].mxu0
    %v5330 = vadd.f32 %v4974, %v5329
    %v5331 = vpop.f32.mrb[0].mxu0
    %v5332 = vadd.f32 %v4974, %v5331
    %5333 = vmatprep.mubr.f32.mxu0 0.0
    %5334 = vmatmul.mubr.f32.gmra.mrb[0].mxu0 %v5011
    %v5335 = vpop.f32.mrb[0].mxu0
    %v5336 = vadd.f32 %v4979, %v5335
    %v5337 = vpop.f32.mrb[0].mxu0
    %v5338 = vadd.f32 %v4979, %v5337
    %5339 = vmatprep.mubr.f32.mxu0 0.0
    %5340 = vmatmul.mubr.f32.gmra.mrb[0].mxu0 %v5014
    %v5341 = vpop.f32.mrb[0].mxu0
    %v5342 = vadd.f32 %v4984, %v5341
    %v5343 = vpop.f32.mrb[0].mxu0
    %v5344 = vadd.f32 %v4984, %v5343
    %5345 = vmatprep.mubr.f32.mxu0 0.0
    %5346 = vmatmul.mubr.f32.gmra.mrb[0].mxu0 %v5017
    %v5347 = vpop.f32.mrb[0].mxu0
    %v5348 = vadd.f32 %v4989, %v5347
    %v5349 = vpop.f32.mrb[0].mxu0
    %v5350 = vadd.f32 %v4989, %v5349
    %5351 = vmatprep.mubr.f32.mxu0 0.0
    %5352 = vmatmul.mubr.f32.gmra.mrb[0].mxu0 %v5020
    %v5353 = vpop.f32.mrb[0].mxu0
    %v5354 = vadd.f32 %v4994, %v5353
    %v5355 = vpop.f32.mrb[0].mxu0
    %v5356 = vadd.f32 %v4994, %v5355
    %5357 = vmatprep.mubr.f32.mxu0 0.0
    %5358 = vmatmul.mubr.f32.gmra.mrb[0].mxu0 %v5023
    %v5359 = vpop.f32.mrb[0].mxu0
    %v5360 = vadd.f32 %v4999, %v5359
    %v5361 = vpop.f32.mrb[0].mxu0
    %v5362 = vadd.f32 %v4999, %v5361
    %5363 = vdwg.mxu0
    %5364 = vmatprep.subr.mxu0 %v4886
    %5365 = vmatpush1.msra.mxu0 %v4885
    %5366 = vmatprep.subr.mxu0 %v4894
    %5367 = vmatpush1.msra.mxu0 %v4893
    %5368 = vmatprep.subr.mxu0 %v4902
    %5369 = vmatpush1.msra.mxu0 %v4901
    %5370 = vmatprep.subr.mxu0 %v4910
    %5371 = vmatpush1.msra.mxu0 %v4909
    %5372 = vmatprep.subr.mxu0 %v4918
    %5373 = vmatpush1.msra.mxu0 %v4917
    %5374 = vmatprep.subr.mxu0 %v4926
    %5375 = vmatpush1.msra.mxu0 %v4925
    %5376 = vmatprep.subr.mxu0 %v4934
    %5377 = vmatpush1.msra.mxu0 %v4933
    %5378 = vmatprep.subr.mxu0 %v4942
    %5379 = vmatpush1.msra.mxu0 %v4941
    %5380 = vmatprep.subr.mxu0 0.0
    %5381 = vmatpush1.msra.mxu0 0.0
    %5382 = vmatprep.subr.mxu0 0.0
    %5383 = vmatpush1.msra.mxu0 0.0
    %5384 = vmatprep.subr.mxu0 0.0
    %5385 = vmatpush1.msra.mxu0 0.0
    %5386 = vmatprep.subr.mxu0 0.0
    %5387 = vmatpush1.msra.mxu0 0.0
    %5388 = vmatprep.subr.mxu0 0.0
    %5389 = vmatpush1.msra.mxu0 0.0
    %5390 = vmatprep.subr.mxu0 0.0
    %5391 = vmatpush1.msra.mxu0 0.0
    %5392 = vmatprep.subr.mxu0 0.0
    %5393 = vmatpush1.msra.mxu0 0.0
    %5394 = vmatprep.subr.mxu0 0.0
    %5395 = vmatpush1.msra.mxu0 0.0
    %5396 = vmatprep.subr.mxu0 0.0
    %5397 = vmatpush1.msra.mxu0 0.0
    %5398 = vmatprep.subr.mxu0 0.0
    %5399 = vmatpush1.msra.mxu0 0.0
    %5400 = vmatprep.subr.mxu0 0.0
    %5401 = vmatpush1.msra.mxu0 0.0
    %5402 = vmatprep.subr.mxu0 0.0
    %5403 = vmatpush1.msra.mxu0 0.0
    %5404 = vmatprep.subr.mxu0 0.0
    %5405 = vmatpush1.msra.mxu0 0.0
    %5406 = vmatprep.subr.mxu0 0.0
    %5407 = vmatpush1.msra.mxu0 0.0
    %5408 = vmatprep.subr.mxu0 0.0
    %5409 = vmatpush1.msra.mxu0 0.0
    %5410 = vmatprep.subr.mxu0 0.0
    %5411 = vmatpush1.msra.mxu0 0.0
    %5412 = vmatprep.subr.mxu0 0.0
    %5413 = vmatpush1.msra.mxu0 0.0
    %5414 = vmatprep.subr.mxu0 0.0
    %5415 = vmatpush1.msra.mxu0 0.0
    %5416 = vmatprep.subr.mxu0 0.0
    %5417 = vmatpush1.msra.mxu0 0.0
    %5418 = vmatprep.subr.mxu0 0.0
    %5419 = vmatpush1.msra.mxu0 0.0
    %5420 = vmatprep.subr.mxu0 0.0
    %5421 = vmatpush1.msra.mxu0 0.0
    %5422 = vmatprep.subr.mxu0 0.0
    %5423 = vmatpush1.msra.mxu0 0.0
    %5424 = vmatprep.subr.mxu0 0.0
    %5425 = vmatpush1.msra.mxu0 0.0
    %5426 = vmatprep.subr.mxu0 0.0
    %5427 = vmatpush1.msra.mxu0 0.0
    %5428 = vmatprep.mubr.f32.mxu0 0.0
    %5429 = vmatmul.mubr.f32.gmra.mrb[0].mxu0 %v5002
    %v5430 = vpop.f32.mrb[0].mxu0
    %v5431 = vadd.f32 %v4964, %v5430
    %v5432 = vpop.f32.mrb[0].mxu0
    %v5433 = vadd.f32 %v4964, %v5432
    %5434 = vmatprep.mubr.f32.mxu0 0.0
    %5435 = vmatmul.mubr.f32.gmra.mrb[0].mxu0 %v5005
    %v5436 = vpop.f32.mrb[0].mxu0
    %v5437 = vadd.f32 %v4969, %v5436
    %v5438 = vpop.f32.mrb[0].mxu0
    %v5439 = vadd.f32 %v4969, %v5438
    %5440 = vmatprep.mubr.f32.mxu0 0.0
    %5441 = vmatmul.mubr.f32.gmra.mrb[0].mxu0 %v5008
    %v5442 = vpop.f32.mrb[0].mxu0
    %v5443 = vadd.f32 %v4974, %v5442
    %v5444 = vpop.f32.mrb[0].mxu0
    %v5445 = vadd.f32 %v4974, %v5444
    %5446 = vmatprep.mubr.f32.mxu0 0.0
    %5447 = vmatmul.mubr.f32.gmra.mrb[0].mxu0 %v5011
    %v5448 = vpop.f32.mrb[0].mxu0
    %v5449 = vadd.f32 %v4979, %v5448
    %v5450 = vpop.f32.mrb[0].mxu0
    %v5451 = vadd.f32 %v4979, %v5450
    %5452 = vmatprep.mubr.f32.mxu0 0.0
    %5453 = vmatmul.mubr.f32.gmra.mrb[0].mxu0 %v5014
    %v5454 = vpop.f32.mrb[0].mxu0
    %v5455 = vadd.f32 %v4984, %v5454
    %v5456 = vpop.f32.mrb[0].mxu0
    %v5457 = vadd.f32 %v4984, %v5456
    %5458 = vmatprep.mubr.f32.mxu0 0.0
    %5459 = vmatmul.mubr.f32.gmra.mrb[0].mxu0 %v5017
    %v5460 = vpop.f32.mrb[0].mxu0
    %v5461 = vadd.f32 %v4989, %v5460
    %v5462 = vpop.f32.mrb[0].mxu0
    %v5463 = vadd.f32 %v4989, %v5462
    %5464 = vmatprep.mubr.f32.mxu0 0.0
    %5465 = vmatmul.mubr.f32.gmra.mrb[0].mxu0 %v5020
    %v5466 = vpop.f32.mrb[0].mxu0
    %v5467 = vadd.f32 %v4994, %v5466
    %v5468 = vpop.f32.mrb[0].mxu0
    %v5469 = vadd.f32 %v4994, %v5468
    %5470 = vmatprep.mubr.f32.mxu0 0.0
    %5471 = vmatmul.mubr.f32.gmra.mrb[0].mxu0 %v5023
    %v5472 = vpop.f32.mrb[0].mxu0
    %v5473 = vadd.f32 %v4999, %v5472
    %v5474 = vpop.f32.mrb[0].mxu0
    %v5475 = vadd.f32 %v4999, %v5474
    %5476 = vdwg.mxu0
    %v5477 = vmul.f32 %v5092, 0.01
    %v5478 = vmul.f32 %v5094, 0.01
    %v5479 = vmul.f32 %v5205, 0.01
    %v5480 = vmul.f32 %v5207, 0.01
    %v5481 = vmul.f32 %v5318, 0.01
    %v5482 = vmul.f32 %v5320, 0.01
    %v5483 = vmul.f32 %v5431, 0.01
    %v5484 = vmul.f32 %v5433, 0.01
    %v5485 = vmul.f32 %v5098, 0.01
    %v5486 = vmul.f32 %v5100, 0.01
    %v5487 = vmul.f32 %v5211, 0.01
    %v5488 = vmul.f32 %v5213, 0.01
    %v5489 = vmul.f32 %v5324, 0.01
    %v5490 = vmul.f32 %v5326, 0.01
    %v5491 = vmul.f32 %v5437, 0.01
    %v5492 = vmul.f32 %v5439, 0.01
    %v5493 = vmul.f32 %v5104, 0.01
    %v5494 = vmul.f32 %v5106, 0.01
    %v5495 = vmul.f32 %v5217, 0.01
    %v5496 = vmul.f32 %v5219, 0.01
    %v5497 = vmul.f32 %v5330, 0.01
    %v5498 = vmul.f32 %v5332, 0.01
    %v5499 = vmul.f32 %v5443, 0.01
    %v5500 = vmul.f32 %v5445, 0.01
    %v5501 = vmul.f32 %v5110, 0.01
    %v5502 = vmul.f32 %v5112, 0.01
    %v5503 = vmul.f32 %v5223, 0.01
    %v5504 = vmul.f32 %v5225, 0.01
    %v5505 = vmul.f32 %v5336, 0.01
    %v5506 = vmul.f32 %v5338, 0.01
    %v5507 = vmul.f32 %v5449, 0.01
    %v5508 = vmul.f32 %v5451, 0.01
    %v5509 = vmul.f32 %v5116, 0.01
    %v5510 = vmul.f32 %v5118, 0.01
    %v5511 = vmul.f32 %v5229, 0.01
    %v5512 = vmul.f32 %v5231, 0.01
    %v5513 = vmul.f32 %v5342, 0.01
    %v5514 = vmul.f32 %v5344, 0.01
    %v5515 = vmul.f32 %v5455, 0.01
    %v5516 = vmul.f32 %v5457, 0.01
    %v5517 = vmul.f32 %v5122, 0.01
    %v5518 = vmul.f32 %v5124, 0.01
    %v5519 = vmul.f32 %v5235, 0.01
    %v5520 = vmul.f32 %v5237, 0.01
    %v5521 = vmul.f32 %v5348, 0.01
    %v5522 = vmul.f32 %v5350, 0.01
    %v5523 = vmul.f32 %v5461, 0.01
    %v5524 = vmul.f32 %v5463, 0.01
    %v5525 = vmul.f32 %v5128, 0.01
    %v5526 = vmul.f32 %v5130, 0.01
    %v5527 = vmul.f32 %v5241, 0.01
    %v5528 = vmul.f32 %v5243, 0.01
    %v5529 = vmul.f32 %v5354, 0.01
    %v5530 = vmul.f32 %v5356, 0.01
    %v5531 = vmul.f32 %v5467, 0.01
    %v5532 = vmul.f32 %v5469, 0.01
    %v5533 = vmul.f32 %v5134, 0.01
    %v5534 = vmul.f32 %v5136, 0.01
    %v5535 = vmul.f32 %v5247, 0.01
    %v5536 = vmul.f32 %v5249, 0.01
    %v5537 = vmul.f32 %v5360, 0.01
    %v5538 = vmul.f32 %v5362, 0.01
    %v5539 = vmul.f32 %v5473, 0.01
    %v5540 = vmul.f32 %v5475, 0.01
    %v5541 = vmax.f32 %v5092, %v5477
    %v5542 = vmax.f32 %v5094, %v5478
    %v5543 = vmax.f32 %v5205, %v5479
    %v5544 = vmax.f32 %v5207, %v5480
    %v5545 = vmax.f32 %v5318, %v5481
    %v5546 = vmax.f32 %v5320, %v5482
    %v5547 = vmax.f32 %v5431, %v5483
    %v5548 = vmax.f32 %v5433, %v5484
    %v5549 = vmax.f32 %v5098, %v5485
    %v5550 = vmax.f32 %v5100, %v5486
    %v5551 = vmax.f32 %v5211, %v5487
    %v5552 = vmax.f32 %v5213, %v5488
    %v5553 = vmax.f32 %v5324, %v5489
    %v5554 = vmax.f32 %v5326, %v5490
    %v5555 = vmax.f32 %v5437, %v5491
    %v5556 = vmax.f32 %v5439, %v5492
    %v5557 = vmax.f32 %v5104, %v5493
    %v5558 = vmax.f32 %v5106, %v5494
    %v5559 = vmax.f32 %v5217, %v5495
    %v5560 = vmax.f32 %v5219, %v5496
    %v5561 = vmax.f32 %v5330, %v5497
    %v5562 = vmax.f32 %v5332, %v5498
    %v5563 = vmax.f32 %v5443, %v5499
    %v5564 = vmax.f32 %v5445, %v5500
    %v5565 = vmax.f32 %v5110, %v5501
    %v5566 = vmax.f32 %v5112, %v5502
    %v5567 = vmax.f32 %v5223, %v5503
    %v5568 = vmax.f32 %v5225, %v5504
    %v5569 = vmax.f32 %v5336, %v5505
    %v5570 = vmax.f32 %v5338, %v5506
    %v5571 = vmax.f32 %v5449, %v5507
    %v5572 = vmax.f32 %v5451, %v5508
    %v5573 = vmax.f32 %v5116, %v5509
    %v5574 = vmax.f32 %v5118, %v5510
    %v5575 = vmax.f32 %v5229, %v5511
    %v5576 = vmax.f32 %v5231, %v5512
    %v5577 = vmax.f32 %v5342, %v5513
    %v5578 = vmax.f32 %v5344, %v5514
    %v5579 = vmax.f32 %v5455, %v5515
    %v5580 = vmax.f32 %v5457, %v5516
    %v5581 = vmax.f32 %v5122, %v5517
    %v5582 = vmax.f32 %v5124, %v5518
    %v5583 = vmax.f32 %v5235, %v5519
    %v5584 = vmax.f32 %v5237, %v5520
    %v5585 = vmax.f32 %v5348, %v5521
    %v5586 = vmax.f32 %v5350, %v5522
    %v5587 = vmax.f32 %v5461, %v5523
    %v5588 = vmax.f32 %v5463, %v5524
    %v5589 = vmax.f32 %v5128, %v5525
    %v5590 = vmax.f32 %v5130, %v5526
    %v5591 = vmax.f32 %v5241, %v5527
    %v5592 = vmax.f32 %v5243, %v5528
    %v5593 = vmax.f32 %v5354, %v5529
    %v5594 = vmax.f32 %v5356, %v5530
    %v5595 = vmax.f32 %v5467, %v5531
    %v5596 = vmax.f32 %v5469, %v5532
    %v5597 = vmax.f32 %v5134, %v5533
    %v5598 = vmax.f32 %v5136, %v5534
    %v5599 = vmax.f32 %v5247, %v5535
    %v5600 = vmax.f32 %v5249, %v5536
    %v5601 = vmax.f32 %v5360, %v5537
    %v5602 = vmax.f32 %v5362, %v5538
    %v5603 = vmax.f32 %v5473, %v5539
    %v5604 = vmax.f32 %v5475, %v5540
    %s5605 = scalar_lea.vmem %s4, 4
    %v5606 = vld [vmem:[%s5605] sm:$0x3]
    %s5607 = scalar_lea.vmem %s5, 4
    %v5608 = vld [vmem:[%s5607] sm:$0x3]
    %5610 = vset.pattern.permute.xlu0 0
    %5611 = vperm.xlu0 %5610, %v5608
    %v5612 = vpop.permute.xlu0 %5611
    %v5615 = vsel %vm483, %v5606, 0
    %5617 = vmatprep.subr.mxu0 %v5542
    %5618 = vmatpush1.msra.mxu0 %v5541
    %5619 = vmatprep.subr.mxu0 %v5550
    %5620 = vmatpush1.msra.mxu0 %v5549
    %5621 = vmatprep.subr.mxu0 %v5558
    %5622 = vmatpush1.msra.mxu0 %v5557
    %5623 = vmatprep.subr.mxu0 %v5566
    %5624 = vmatpush1.msra.mxu0 %v5565
    %5625 = vmatprep.subr.mxu0 %v5574
    %5626 = vmatpush1.msra.mxu0 %v5573
    %5627 = vmatprep.subr.mxu0 %v5582
    %5628 = vmatpush1.msra.mxu0 %v5581
    %5629 = vmatprep.subr.mxu0 %v5590
    %5630 = vmatpush1.msra.mxu0 %v5589
    %5631 = vmatprep.subr.mxu0 %v5598
    %5632 = vmatpush1.msra.mxu0 %v5597
    %5633 = vmatprep.subr.mxu0 0.0
    %5634 = vmatpush1.msra.mxu0 0.0
    %5635 = vmatprep.subr.mxu0 0.0
    %5636 = vmatpush1.msra.mxu0 0.0
    %5637 = vmatprep.subr.mxu0 0.0
    %5638 = vmatpush1.msra.mxu0 0.0
    %5639 = vmatprep.subr.mxu0 0.0
    %5640 = vmatpush1.msra.mxu0 0.0
    %5641 = vmatprep.subr.mxu0 0.0
    %5642 = vmatpush1.msra.mxu0 0.0
    %5643 = vmatprep.subr.mxu0 0.0
    %5644 = vmatpush1.msra.mxu0 0.0
    %5645 = vmatprep.subr.mxu0 0.0
    %5646 = vmatpush1.msra.mxu0 0.0
    %5647 = vmatprep.subr.mxu0 0.0
    %5648 = vmatpush1.msra.mxu0 0.0
    %5649 = vmatprep.subr.mxu0 0.0
    %5650 = vmatpush1.msra.mxu0 0.0
    %5651 = vmatprep.subr.mxu0 0.0
    %5652 = vmatpush1.msra.mxu0 0.0
    %5653 = vmatprep.subr.mxu0 0.0
    %5654 = vmatpush1.msra.mxu0 0.0
    %5655 = vmatprep.subr.mxu0 0.0
    %5656 = vmatpush1.msra.mxu0 0.0
    %5657 = vmatprep.subr.mxu0 0.0
    %5658 = vmatpush1.msra.mxu0 0.0
    %5659 = vmatprep.subr.mxu0 0.0
    %5660 = vmatpush1.msra.mxu0 0.0
    %5661 = vmatprep.subr.mxu0 0.0
    %5662 = vmatpush1.msra.mxu0 0.0
    %5663 = vmatprep.subr.mxu0 0.0
    %5664 = vmatpush1.msra.mxu0 0.0
    %5665 = vmatprep.subr.mxu0 0.0
    %5666 = vmatpush1.msra.mxu0 0.0
    %5667 = vmatprep.subr.mxu0 0.0
    %5668 = vmatpush1.msra.mxu0 0.0
    %5669 = vmatprep.subr.mxu0 0.0
    %5670 = vmatpush1.msra.mxu0 0.0
    %5671 = vmatprep.subr.mxu0 0.0
    %5672 = vmatpush1.msra.mxu0 0.0
    %5673 = vmatprep.subr.mxu0 0.0
    %5674 = vmatpush1.msra.mxu0 0.0
    %5675 = vmatprep.subr.mxu0 0.0
    %5676 = vmatpush1.msra.mxu0 0.0
    %5677 = vmatprep.subr.mxu0 0.0
    %5678 = vmatpush1.msra.mxu0 0.0
    %5679 = vmatprep.subr.mxu0 0.0
    %5680 = vmatpush1.msra.mxu0 0.0
    %5681 = vmatprep.mubr.f32.mxu0 0.0
    %5682 = vmatmul.mubr.f32.gmra.mrb[0].mxu0 %v5615
    %v5683 = vpop.f32.mrb[0].mxu0
    %v5684 = vadd.f32 %v5612, %v5683
    %v5685 = vpop.f32.mrb[0].mxu0
    %v5686 = vadd.f32 %v5612, %v5685
    %5687 = vdwg.mxu0
    %5688 = vmatprep.subr.mxu0 %v5544
    %5689 = vmatpush1.msra.mxu0 %v5543
    %5690 = vmatprep.subr.mxu0 %v5552
    %5691 = vmatpush1.msra.mxu0 %v5551
    %5692 = vmatprep.subr.mxu0 %v5560
    %5693 = vmatpush1.msra.mxu0 %v5559
    %5694 = vmatprep.subr.mxu0 %v5568
    %5695 = vmatpush1.msra.mxu0 %v5567
    %5696 = vmatprep.subr.mxu0 %v5576
    %5697 = vmatpush1.msra.mxu0 %v5575
    %5698 = vmatprep.subr.mxu0 %v5584
    %5699 = vmatpush1.msra.mxu0 %v5583
    %5700 = vmatprep.subr.mxu0 %v5592
    %5701 = vmatpush1.msra.mxu0 %v5591
    %5702 = vmatprep.subr.mxu0 %v5600
    %5703 = vmatpush1.msra.mxu0 %v5599
    %5704 = vmatprep.subr.mxu0 0.0
    %5705 = vmatpush1.msra.mxu0 0.0
    %5706 = vmatprep.subr.mxu0 0.0
    %5707 = vmatpush1.msra.mxu0 0.0
    %5708 = vmatprep.subr.mxu0 0.0
    %5709 = vmatpush1.msra.mxu0 0.0
    %5710 = vmatprep.subr.mxu0 0.0
    %5711 = vmatpush1.msra.mxu0 0.0
    %5712 = vmatprep.subr.mxu0 0.0
    %5713 = vmatpush1.msra.mxu0 0.0
    %5714 = vmatprep.subr.mxu0 0.0
    %5715 = vmatpush1.msra.mxu0 0.0
    %5716 = vmatprep.subr.mxu0 0.0
    %5717 = vmatpush1.msra.mxu0 0.0
    %5718 = vmatprep.subr.mxu0 0.0
    %5719 = vmatpush1.msra.mxu0 0.0
    %5720 = vmatprep.subr.mxu0 0.0
    %5721 = vmatpush1.msra.mxu0 0.0
    %5722 = vmatprep.subr.mxu0 0.0
    %5723 = vmatpush1.msra.mxu0 0.0
    %5724 = vmatprep.subr.mxu0 0.0
    %5725 = vmatpush1.msra.mxu0 0.0
    %5726 = vmatprep.subr.mxu0 0.0
    %5727 = vmatpush1.msra.mxu0 0.0
    %5728 = vmatprep.subr.mxu0 0.0
    %5729 = vmatpush1.msra.mxu0 0.0
    %5730 = vmatprep.subr.mxu0 0.0
    %5731 = vmatpush1.msra.mxu0 0.0
    %5732 = vmatprep.subr.mxu0 0.0
    %5733 = vmatpush1.msra.mxu0 0.0
    %5734 = vmatprep.subr.mxu0 0.0
    %5735 = vmatpush1.msra.mxu0 0.0
    %5736 = vmatprep.subr.mxu0 0.0
    %5737 = vmatpush1.msra.mxu0 0.0
    %5738 = vmatprep.subr.mxu0 0.0
    %5739 = vmatpush1.msra.mxu0 0.0
    %5740 = vmatprep.subr.mxu0 0.0
    %5741 = vmatpush1.msra.mxu0 0.0
    %5742 = vmatprep.subr.mxu0 0.0
    %5743 = vmatpush1.msra.mxu0 0.0
    %5744 = vmatprep.subr.mxu0 0.0
    %5745 = vmatpush1.msra.mxu0 0.0
    %5746 = vmatprep.subr.mxu0 0.0
    %5747 = vmatpush1.msra.mxu0 0.0
    %5748 = vmatprep.subr.mxu0 0.0
    %5749 = vmatpush1.msra.mxu0 0.0
    %5750 = vmatprep.subr.mxu0 0.0
    %5751 = vmatpush1.msra.mxu0 0.0
    %5752 = vmatprep.mubr.f32.mxu0 0.0
    %5753 = vmatmul.mubr.f32.gmra.mrb[0].mxu0 %v5615
    %v5754 = vpop.f32.mrb[0].mxu0
    %v5755 = vadd.f32 %v5612, %v5754
    %v5756 = vpop.f32.mrb[0].mxu0
    %v5757 = vadd.f32 %v5612, %v5756
    %5758 = vdwg.mxu0
    %5759 = vmatprep.subr.mxu0 %v5546
    %5760 = vmatpush1.msra.mxu0 %v5545
    %5761 = vmatprep.subr.mxu0 %v5554
    %5762 = vmatpush1.msra.mxu0 %v5553
    %5763 = vmatprep.subr.mxu0 %v5562
    %5764 = vmatpush1.msra.mxu0 %v5561
    %5765 = vmatprep.subr.mxu0 %v5570
    %5766 = vmatpush1.msra.mxu0 %v5569
    %5767 = vmatprep.subr.mxu0 %v5578
    %5768 = vmatpush1.msra.mxu0 %v5577
    %5769 = vmatprep.subr.mxu0 %v5586
    %5770 = vmatpush1.msra.mxu0 %v5585
    %5771 = vmatprep.subr.mxu0 %v5594
    %5772 = vmatpush1.msra.mxu0 %v5593
    %5773 = vmatprep.subr.mxu0 %v5602
    %5774 = vmatpush1.msra.mxu0 %v5601
    %5775 = vmatprep.subr.mxu0 0.0
    %5776 = vmatpush1.msra.mxu0 0.0
    %5777 = vmatprep.subr.mxu0 0.0
    %5778 = vmatpush1.msra.mxu0 0.0
    %5779 = vmatprep.subr.mxu0 0.0
    %5780 = vmatpush1.msra.mxu0 0.0
    %5781 = vmatprep.subr.mxu0 0.0
    %5782 = vmatpush1.msra.mxu0 0.0
    %5783 = vmatprep.subr.mxu0 0.0
    %5784 = vmatpush1.msra.mxu0 0.0
    %5785 = vmatprep.subr.mxu0 0.0
    %5786 = vmatpush1.msra.mxu0 0.0
    %5787 = vmatprep.subr.mxu0 0.0
    %5788 = vmatpush1.msra.mxu0 0.0
    %5789 = vmatprep.subr.mxu0 0.0
    %5790 = vmatpush1.msra.mxu0 0.0
    %5791 = vmatprep.subr.mxu0 0.0
    %5792 = vmatpush1.msra.mxu0 0.0
    %5793 = vmatprep.subr.mxu0 0.0
    %5794 = vmatpush1.msra.mxu0 0.0
    %5795 = vmatprep.subr.mxu0 0.0
    %5796 = vmatpush1.msra.mxu0 0.0
    %5797 = vmatprep.subr.mxu0 0.0
    %5798 = vmatpush1.msra.mxu0 0.0
    %5799 = vmatprep.subr.mxu0 0.0
    %5800 = vmatpush1.msra.mxu0 0.0
    %5801 = vmatprep.subr.mxu0 0.0
    %5802 = vmatpush1.msra.mxu0 0.0
    %5803 = vmatprep.subr.mxu0 0.0
    %5804 = vmatpush1.msra.mxu0 0.0
    %5805 = vmatprep.subr.mxu0 0.0
    %5806 = vmatpush1.msra.mxu0 0.0
    %5807 = vmatprep.subr.mxu0 0.0
    %5808 = vmatpush1.msra.mxu0 0.0
    %5809 = vmatprep.subr.mxu0 0.0
    %5810 = vmatpush1.msra.mxu0 0.0
    %5811 = vmatprep.subr.mxu0 0.0
    %5812 = vmatpush1.msra.mxu0 0.0
    %5813 = vmatprep.subr.mxu0 0.0
    %5814 = vmatpush1.msra.mxu0 0.0
    %5815 = vmatprep.subr.mxu0 0.0
    %5816 = vmatpush1.msra.mxu0 0.0
    %5817 = vmatprep.subr.mxu0 0.0
    %5818 = vmatpush1.msra.mxu0 0.0
    %5819 = vmatprep.subr.mxu0 0.0
    %5820 = vmatpush1.msra.mxu0 0.0
    %5821 = vmatprep.subr.mxu0 0.0
    %5822 = vmatpush1.msra.mxu0 0.0
    %5823 = vmatprep.mubr.f32.mxu0 0.0
    %5824 = vmatmul.mubr.f32.gmra.mrb[0].mxu0 %v5615
    %v5825 = vpop.f32.mrb[0].mxu0
    %v5826 = vadd.f32 %v5612, %v5825
    %v5827 = vpop.f32.mrb[0].mxu0
    %v5828 = vadd.f32 %v5612, %v5827
    %5829 = vdwg.mxu0
    %5830 = vmatprep.subr.mxu0 %v5548
    %5831 = vmatpush1.msra.mxu0 %v5547
    %5832 = vmatprep.subr.mxu0 %v5556
    %5833 = vmatpush1.msra.mxu0 %v5555
    %5834 = vmatprep.subr.mxu0 %v5564
    %5835 = vmatpush1.msra.mxu0 %v5563
    %5836 = vmatprep.subr.mxu0 %v5572
    %5837 = vmatpush1.msra.mxu0 %v5571
    %5838 = vmatprep.subr.mxu0 %v5580
    %5839 = vmatpush1.msra.mxu0 %v5579
    %5840 = vmatprep.subr.mxu0 %v5588
    %5841 = vmatpush1.msra.mxu0 %v5587
    %5842 = vmatprep.subr.mxu0 %v5596
    %5843 = vmatpush1.msra.mxu0 %v5595
    %5844 = vmatprep.subr.mxu0 %v5604
    %5845 = vmatpush1.msra.mxu0 %v5603
    %5846 = vmatprep.subr.mxu0 0.0
    %5847 = vmatpush1.msra.mxu0 0.0
    %5848 = vmatprep.subr.mxu0 0.0
    %5849 = vmatpush1.msra.mxu0 0.0
    %5850 = vmatprep.subr.mxu0 0.0
    %5851 = vmatpush1.msra.mxu0 0.0
    %5852 = vmatprep.subr.mxu0 0.0
    %5853 = vmatpush1.msra.mxu0 0.0
    %5854 = vmatprep.subr.mxu0 0.0
    %5855 = vmatpush1.msra.mxu0 0.0
    %5856 = vmatprep.subr.mxu0 0.0
    %5857 = vmatpush1.msra.mxu0 0.0
    %5858 = vmatprep.subr.mxu0 0.0
    %5859 = vmatpush1.msra.mxu0 0.0
    %5860 = vmatprep.subr.mxu0 0.0
    %5861 = vmatpush1.msra.mxu0 0.0
    %5862 = vmatprep.subr.mxu0 0.0
    %5863 = vmatpush1.msra.mxu0 0.0
    %5864 = vmatprep.subr.mxu0 0.0
    %5865 = vmatpush1.msra.mxu0 0.0
    %5866 = vmatprep.subr.mxu0 0.0
    %5867 = vmatpush1.msra.mxu0 0.0
    %5868 = vmatprep.subr.mxu0 0.0
    %5869 = vmatpush1.msra.mxu0 0.0
    %5870 = vmatprep.subr.mxu0 0.0
    %5871 = vmatpush1.msra.mxu0 0.0
    %5872 = vmatprep.subr.mxu0 0.0
    %5873 = vmatpush1.msra.mxu0 0.0
    %5874 = vmatprep.subr.mxu0 0.0
    %5875 = vmatpush1.msra.mxu0 0.0
    %5876 = vmatprep.subr.mxu0 0.0
    %5877 = vmatpush1.msra.mxu0 0.0
    %5878 = vmatprep.subr.mxu0 0.0
    %5879 = vmatpush1.msra.mxu0 0.0
    %5880 = vmatprep.subr.mxu0 0.0
    %5881 = vmatpush1.msra.mxu0 0.0
    %5882 = vmatprep.subr.mxu0 0.0
    %5883 = vmatpush1.msra.mxu0 0.0
    %5884 = vmatprep.subr.mxu0 0.0
    %5885 = vmatpush1.msra.mxu0 0.0
    %5886 = vmatprep.subr.mxu0 0.0
    %5887 = vmatpush1.msra.mxu0 0.0
    %5888 = vmatprep.subr.mxu0 0.0
    %5889 = vmatpush1.msra.mxu0 0.0
    %5890 = vmatprep.subr.mxu0 0.0
    %5891 = vmatpush1.msra.mxu0 0.0
    %5892 = vmatprep.subr.mxu0 0.0
    %5893 = vmatpush1.msra.mxu0 0.0
    %5894 = vmatprep.mubr.f32.mxu0 0.0
    %5895 = vmatmul.mubr.f32.gmra.mrb[0].mxu0 %v5615
    %v5896 = vpop.f32.mrb[0].mxu0
    %v5897 = vadd.f32 %v5612, %v5896
    %v5898 = vpop.f32.mrb[0].mxu0
    %v5899 = vadd.f32 %v5612, %v5898
    %5900 = vdwg.mxu0
    %v5901 = vtanh.pop %v5684
    %v5902 = vtanh.pop %v5686
    %v5903 = vtanh.pop %v5755
    %v5904 = vtanh.pop %v5757
    %v5905 = vtanh.pop %v5826
    %v5906 = vtanh.pop %v5828
    %v5907 = vtanh.pop %v5897
    %v5908 = vtanh.pop %v5899
    %v5917 = vcombine.low %v5684, %v5686
    %v5918 = vcombine.low %v5755, %v5757
    %v5919 = vcombine.low %v5826, %v5828
    %v5920 = vcombine.low %v5897, %v5899
    %v5922 = vunpack.c.l.s4 1966171168
    %v5923 = vunpack.c.0.s8 %v5922
    %v5924 = vlaneseq
    %v5925 = vshrl.u32 %v5924, 7
    %v5926 = vsub.s32 %v5923, %v5925
    %v5927 = vrot.slane %v5917, %v5926
    %v5929 = vunpack.c.l.s4 1966171168
    %v5930 = vunpack.c.0.s8 %v5929
    %v5931 = vlaneseq
    %v5932 = vshrl.u32 %v5931, 7
    %v5933 = vsub.s32 %v5930, %v5932
    %v5934 = vrot.slane %v5918, %v5933
    %v5936 = vunpack.c.l.s4 1966171168
    %v5937 = vunpack.c.0.s8 %v5936
    %v5938 = vlaneseq
    %v5939 = vshrl.u32 %v5938, 7
    %v5940 = vsub.s32 %v5937, %v5939
    %v5941 = vrot.slane %v5919, %v5940
    %v5943 = vunpack.c.l.s4 1966171168
    %v5944 = vunpack.c.0.s8 %v5943
    %v5945 = vlaneseq
    %v5946 = vshrl.u32 %v5945, 7
    %v5947 = vsub.s32 %v5944, %v5946
    %v5948 = vrot.slane %v5920, %v5947
    %v5949 = vcombine.high %v5927, %v5934
    %v5950 = vcombine.high %v5941, %v5948
    %v5952 = vunpack.c.l.s4 1966171168
    %v5953 = vunpack.c.0.s8 %v5952
    %v5954 = vlaneseq
    %v5955 = vshrl.u32 %v5954, 7
    %v5956 = vsub.s32 %v5953, %v5955
    %v5957 = vrot.slane %v5949, %v5956
    %v5959 = vunpack.c.l.s4 1966171168
    %v5960 = vunpack.c.0.s8 %v5959
    %v5961 = vlaneseq
    %v5962 = vshrl.u32 %v5961, 7
    %v5963 = vsub.s32 %v5960, %v5962
    %v5964 = vrot.slane %v5950, %v5963
    %v5965 = vcombine.low %v5957, %v5964
    %v5967 = vsub.f32 %v3036, %v5965
    %v5968 = vsub.f32 0.0, %v5901
    %v5969 = vsub.f32 0.0, %v5902
    %v5970 = vsub.f32 0.0, %v5903
    %v5971 = vsub.f32 0.0, %v5904
    %v5972 = vsub.f32 0.0, %v5905
    %v5973 = vsub.f32 0.0, %v5906
    %v5974 = vsub.f32 0.0, %v5907
    %v5975 = vsub.f32 0.0, %v5908
    %v5976 = vmul.f32 %v5968, 1.442695
    %v5977 = vpow.pop %v5976
    %v5978 = vmul.f32 %v5969, 1.442695
    %v5979 = vpow.pop %v5978
    %v5980 = vmul.f32 %v5970, 1.442695
    %v5981 = vpow.pop %v5980
    %v5982 = vmul.f32 %v5971, 1.442695
    %v5983 = vpow.pop %v5982
    %v5984 = vmul.f32 %v5972, 1.442695
    %v5985 = vpow.pop %v5984
    %v5986 = vmul.f32 %v5973, 1.442695
    %v5987 = vpow.pop %v5986
    %v5988 = vmul.f32 %v5974, 1.442695
    %v5989 = vpow.pop %v5988
    %v5990 = vmul.f32 %v5975, 1.442695
    %v5991 = vpow.pop %v5990
    %v6000 = vcombine.low %v5977, %v5979
    %v6001 = vcombine.low %v5981, %v5983
    %v6002 = vcombine.low %v5985, %v5987
    %v6003 = vcombine.low %v5989, %v5991
    %v6005 = vunpack.c.l.s4 1966171168
    %v6006 = vunpack.c.0.s8 %v6005
    %v6007 = vlaneseq
    %v6008 = vshrl.u32 %v6007, 7
    %v6009 = vsub.s32 %v6006, %v6008
    %v6010 = vrot.slane %v6000, %v6009
    %v6012 = vunpack.c.l.s4 1966171168
    %v6013 = vunpack.c.0.s8 %v6012
    %v6014 = vlaneseq
    %v6015 = vshrl.u32 %v6014, 7
    %v6016 = vsub.s32 %v6013, %v6015
    %v6017 = vrot.slane %v6001, %v6016
    %v6019 = vunpack.c.l.s4 1966171168
    %v6020 = vunpack.c.0.s8 %v6019
    %v6021 = vlaneseq
    %v6022 = vshrl.u32 %v6021, 7
    %v6023 = vsub.s32 %v6020, %v6022
    %v6024 = vrot.slane %v6002, %v6023
    %v6026 = vunpack.c.l.s4 1966171168
    %v6027 = vunpack.c.0.s8 %v6026
    %v6028 = vlaneseq
    %v6029 = vshrl.u32 %v6028, 7
    %v6030 = vsub.s32 %v6027, %v6029
    %v6031 = vrot.slane %v6003, %v6030
    %v6032 = vcombine.low %v6010, %v6017
    %v6033 = vcombine.low %v6024, %v6031
    %v6035 = vunpack.c.l.s4 1966171168
    %v6036 = vunpack.c.0.s8 %v6035
    %v6037 = vlaneseq
    %v6038 = vshrl.u32 %v6037, 7
    %v6039 = vsub.s32 %v6036, %v6038
    %v6040 = vrot.slane %v6032, %v6039
    %v6042 = vunpack.c.l.s4 1966171168
    %v6043 = vunpack.c.0.s8 %v6042
    %v6044 = vlaneseq
    %v6045 = vshrl.u32 %v6044, 7
    %v6046 = vsub.s32 %v6043, %v6045
    %v6047 = vrot.slane %v6033, %v6046
    %v6048 = vcombine.low %v6040, %v6047
    %v6050 = vmul.f32 %v5967, %v6048
    %v6051 = vsub.f32 %v2954, %v5901
    %v6052 = vsub.f32 %v2955, %v5902
    %v6053 = vsub.f32 %v2956, %v5903
    %v6054 = vsub.f32 %v2957, %v5904
    %v6055 = vsub.f32 %v2958, %v5905
    %v6056 = vsub.f32 %v2959, %v5906
    %v6057 = vsub.f32 %v2960, %v5907
    %v6058 = vsub.f32 %v2961, %v5908
    %s6059 = scalar_lea.vmem %s0, 64
    %v6060 = vld [vmem:[%s6059] sm:$0xff]
    %v6061 = vld [vmem:[%s6059 + $0x8] sm:$0xff]
    %v6062 = vld [vmem:[%s6059 + $0x10] sm:$0xff]
    %v6063 = vld [vmem:[%s6059 + $0x18] sm:$0xff]
    %v6064 = vld [vmem:[%s6059 + $0x20] sm:$0xff]
    %v6065 = vld [vmem:[%s6059 + $0x28] sm:$0xff]
    %v6066 = vld [vmem:[%s6059 + $0x30] sm:$0xff]
    %v6067 = vld [vmem:[%s6059 + $0x38] sm:$0xff]
    %6069 = vset.pattern.permute.xlu0 0
    %6070 = vperm.xlu0 %6069, %v6060
    %v6071 = vpop.permute.xlu0 %6070
    %6074 = vset.pattern.permute.xlu0 0
    %6075 = vperm.xlu0 %6074, %v6061
    %v6076 = vpop.permute.xlu0 %6075
    %6079 = vset.pattern.permute.xlu0 0
    %6080 = vperm.xlu0 %6079, %v6062
    %v6081 = vpop.permute.xlu0 %6080
    %6084 = vset.pattern.permute.xlu0 0
    %6085 = vperm.xlu0 %6084, %v6063
    %v6086 = vpop.permute.xlu0 %6085
    %6089 = vset.pattern.permute.xlu0 0
    %6090 = vperm.xlu0 %6089, %v6064
    %v6091 = vpop.permute.xlu0 %6090
    %6094 = vset.pattern.permute.xlu0 0
    %6095 = vperm.xlu0 %6094, %v6065
    %v6096 = vpop.permute.xlu0 %6095
    %6099 = vset.pattern.permute.xlu0 0
    %6100 = vperm.xlu0 %6099, %v6066
    %v6101 = vpop.permute.xlu0 %6100
    %6104 = vset.pattern.permute.xlu0 0
    %6105 = vperm.xlu0 %6104, %v6067
    %v6106 = vpop.permute.xlu0 %6105
    %v6109 = vlaneseq
    %v6110 = vshrl.u32 %v6109, 7
    %v6111 = vsub.s32 0, %v6110
    %v6112 = vrot.slane %v6050, %v6111
    %v6113 = vlaneseq
    %v6114 = vshrl.u32 %v6113, 7
    %v6115 = vsub.s32 1, %v6114
    %v6116 = vrot.slane %v6050, %v6115
    %v6117 = vlaneseq
    %v6118 = vshrl.u32 %v6117, 7
    %v6119 = vsub.s32 2, %v6118
    %v6120 = vrot.slane %v6050, %v6119
    %v6121 = vlaneseq
    %v6122 = vshrl.u32 %v6121, 7
    %v6123 = vsub.s32 3, %v6122
    %v6124 = vrot.slane %v6050, %v6123
    %v6125 = vlaneseq
    %v6126 = vshrl.u32 %v6125, 7
    %v6127 = vsub.s32 4, %v6126
    %v6128 = vrot.slane %v6050, %v6127
    %v6129 = vlaneseq
    %v6130 = vshrl.u32 %v6129, 7
    %v6131 = vsub.s32 5, %v6130
    %v6132 = vrot.slane %v6050, %v6131
    %v6133 = vlaneseq
    %v6134 = vshrl.u32 %v6133, 7
    %v6135 = vsub.s32 6, %v6134
    %v6136 = vrot.slane %v6050, %v6135
    %v6137 = vlaneseq
    %v6138 = vshrl.u32 %v6137, 7
    %v6139 = vsub.s32 7, %v6138
    %v6140 = vrot.slane %v6050, %v6139
    %v6149 = vmul.f32 %v6071, %v6112
    %v6150 = vmul.f32 %v6071, %v6116
    %v6151 = vmul.f32 %v6071, %v6120
    %v6152 = vmul.f32 %v6071, %v6124
    %v6153 = vmul.f32 %v6071, %v6128
    %v6154 = vmul.f32 %v6071, %v6132
    %v6155 = vmul.f32 %v6071, %v6136
    %v6156 = vmul.f32 %v6071, %v6140
    %v6157 = vmul.f32 %v6076, %v6112
    %v6158 = vmul.f32 %v6076, %v6116
    %v6159 = vmul.f32 %v6076, %v6120
    %v6160 = vmul.f32 %v6076, %v6124
    %v6161 = vmul.f32 %v6076, %v6128
    %v6162 = vmul.f32 %v6076, %v6132
    %v6163 = vmul.f32 %v6076, %v6136
    %v6164 = vmul.f32 %v6076, %v6140
    %v6165 = vmul.f32 %v6081, %v6112
    %v6166 = vmul.f32 %v6081, %v6116
    %v6167 = vmul.f32 %v6081, %v6120
    %v6168 = vmul.f32 %v6081, %v6124
    %v6169 = vmul.f32 %v6081, %v6128
    %v6170 = vmul.f32 %v6081, %v6132
    %v6171 = vmul.f32 %v6081, %v6136
    %v6172 = vmul.f32 %v6081, %v6140
    %v6173 = vmul.f32 %v6086, %v6112
    %v6174 = vmul.f32 %v6086, %v6116
    %v6175 = vmul.f32 %v6086, %v6120
    %v6176 = vmul.f32 %v6086, %v6124
    %v6177 = vmul.f32 %v6086, %v6128
    %v6178 = vmul.f32 %v6086, %v6132
    %v6179 = vmul.f32 %v6086, %v6136
    %v6180 = vmul.f32 %v6086, %v6140
    %v6181 = vmul.f32 %v6091, %v6112
    %v6182 = vmul.f32 %v6091, %v6116
    %v6183 = vmul.f32 %v6091, %v6120
    %v6184 = vmul.f32 %v6091, %v6124
    %v6185 = vmul.f32 %v6091, %v6128
    %v6186 = vmul.f32 %v6091, %v6132
    %v6187 = vmul.f32 %v6091, %v6136
    %v6188 = vmul.f32 %v6091, %v6140
    %v6189 = vmul.f32 %v6096, %v6112
    %v6190 = vmul.f32 %v6096, %v6116
    %v6191 = vmul.f32 %v6096, %v6120
    %v6192 = vmul.f32 %v6096, %v6124
    %v6193 = vmul.f32 %v6096, %v6128
    %v6194 = vmul.f32 %v6096, %v6132
    %v6195 = vmul.f32 %v6096, %v6136
    %v6196 = vmul.f32 %v6096, %v6140
    %v6197 = vmul.f32 %v6101, %v6112
    %v6198 = vmul.f32 %v6101, %v6116
    %v6199 = vmul.f32 %v6101, %v6120
    %v6200 = vmul.f32 %v6101, %v6124
    %v6201 = vmul.f32 %v6101, %v6128
    %v6202 = vmul.f32 %v6101, %v6132
    %v6203 = vmul.f32 %v6101, %v6136
    %v6204 = vmul.f32 %v6101, %v6140
    %v6205 = vmul.f32 %v6106, %v6112
    %v6206 = vmul.f32 %v6106, %v6116
    %v6207 = vmul.f32 %v6106, %v6120
    %v6208 = vmul.f32 %v6106, %v6124
    %v6209 = vmul.f32 %v6106, %v6128
    %v6210 = vmul.f32 %v6106, %v6132
    %v6211 = vmul.f32 %v6106, %v6136
    %v6212 = vmul.f32 %v6106, %v6140
    %s6213 = scalar_lea.vmem %s1, 64
    %v6214 = vld [vmem:[%s6213] sm:$0xff]
    %v6215 = vld [vmem:[%s6213 + $0x8] sm:$0xff]
    %v6216 = vld [vmem:[%s6213 + $0x10] sm:$0xff]
    %v6217 = vld [vmem:[%s6213 + $0x18] sm:$0xff]
    %v6218 = vld [vmem:[%s6213 + $0x20] sm:$0xff]
    %v6219 = vld [vmem:[%s6213 + $0x28] sm:$0xff]
    %v6220 = vld [vmem:[%s6213 + $0x30] sm:$0xff]
    %v6221 = vld [vmem:[%s6213 + $0x38] sm:$0xff]
    %6223 = vset.pattern.permute.xlu0 0
    %6224 = vperm.xlu0 %6223, %v6214
    %v6225 = vpop.permute.xlu0 %6224
    %6228 = vset.pattern.permute.xlu0 0
    %6229 = vperm.xlu0 %6228, %v6215
    %v6230 = vpop.permute.xlu0 %6229
    %6233 = vset.pattern.permute.xlu0 0
    %6234 = vperm.xlu0 %6233, %v6216
    %v6235 = vpop.permute.xlu0 %6234
    %6238 = vset.pattern.permute.xlu0 0
    %6239 = vperm.xlu0 %6238, %v6217
    %v6240 = vpop.permute.xlu0 %6239
    %6243 = vset.pattern.permute.xlu0 0
    %6244 = vperm.xlu0 %6243, %v6218
    %v6245 = vpop.permute.xlu0 %6244
    %6248 = vset.pattern.permute.xlu0 0
    %6249 = vperm.xlu0 %6248, %v6219
    %v6250 = vpop.permute.xlu0 %6249
    %6253 = vset.pattern.permute.xlu0 0
    %6254 = vperm.xlu0 %6253, %v6220
    %v6255 = vpop.permute.xlu0 %6254
    %6258 = vset.pattern.permute.xlu0 0
    %6259 = vperm.xlu0 %6258, %v6221
    %v6260 = vpop.permute.xlu0 %6259
    %v6262 = vadd.f32 %v6149, %v6225
    %v6263 = vadd.f32 %v6150, %v6225
    %v6264 = vadd.f32 %v6151, %v6225
    %v6265 = vadd.f32 %v6152, %v6225
    %v6266 = vadd.f32 %v6153, %v6225
    %v6267 = vadd.f32 %v6154, %v6225
    %v6268 = vadd.f32 %v6155, %v6225
    %v6269 = vadd.f32 %v6156, %v6225
    %v6270 = vadd.f32 %v6157, %v6230
    %v6271 = vadd.f32 %v6158, %v6230
    %v6272 = vadd.f32 %v6159, %v6230
    %v6273 = vadd.f32 %v6160, %v6230
    %v6274 = vadd.f32 %v6161, %v6230
    %v6275 = vadd.f32 %v6162, %v6230
    %v6276 = vadd.f32 %v6163, %v6230
    %v6277 = vadd.f32 %v6164, %v6230
    %v6278 = vadd.f32 %v6165, %v6235
    %v6279 = vadd.f32 %v6166, %v6235
    %v6280 = vadd.f32 %v6167, %v6235
    %v6281 = vadd.f32 %v6168, %v6235
    %v6282 = vadd.f32 %v6169, %v6235
    %v6283 = vadd.f32 %v6170, %v6235
    %v6284 = vadd.f32 %v6171, %v6235
    %v6285 = vadd.f32 %v6172, %v6235
    %v6286 = vadd.f32 %v6173, %v6240
    %v6287 = vadd.f32 %v6174, %v6240
    %v6288 = vadd.f32 %v6175, %v6240
    %v6289 = vadd.f32 %v6176, %v6240
    %v6290 = vadd.f32 %v6177, %v6240
    %v6291 = vadd.f32 %v6178, %v6240
    %v6292 = vadd.f32 %v6179, %v6240
    %v6293 = vadd.f32 %v6180, %v6240
    %v6294 = vadd.f32 %v6181, %v6245
    %v6295 = vadd.f32 %v6182, %v6245
    %v6296 = vadd.f32 %v6183, %v6245
    %v6297 = vadd.f32 %v6184, %v6245
    %v6298 = vadd.f32 %v6185, %v6245
    %v6299 = vadd.f32 %v6186, %v6245
    %v6300 = vadd.f32 %v6187, %v6245
    %v6301 = vadd.f32 %v6188, %v6245
    %v6302 = vadd.f32 %v6189, %v6250
    %v6303 = vadd.f32 %v6190, %v6250
    %v6304 = vadd.f32 %v6191, %v6250
    %v6305 = vadd.f32 %v6192, %v6250
    %v6306 = vadd.f32 %v6193, %v6250
    %v6307 = vadd.f32 %v6194, %v6250
    %v6308 = vadd.f32 %v6195, %v6250
    %v6309 = vadd.f32 %v6196, %v6250
    %v6310 = vadd.f32 %v6197, %v6255
    %v6311 = vadd.f32 %v6198, %v6255
    %v6312 = vadd.f32 %v6199, %v6255
    %v6313 = vadd.f32 %v6200, %v6255
    %v6314 = vadd.f32 %v6201, %v6255
    %v6315 = vadd.f32 %v6202, %v6255
    %v6316 = vadd.f32 %v6203, %v6255
    %v6317 = vadd.f32 %v6204, %v6255
    %v6318 = vadd.f32 %v6205, %v6260
    %v6319 = vadd.f32 %v6206, %v6260
    %v6320 = vadd.f32 %v6207, %v6260
    %v6321 = vadd.f32 %v6208, %v6260
    %v6322 = vadd.f32 %v6209, %v6260
    %v6323 = vadd.f32 %v6210, %v6260
    %v6324 = vadd.f32 %v6211, %v6260
    %v6325 = vadd.f32 %v6212, %v6260
    %v6326 = vmul.f32 %v6262, 0.01
    %v6327 = vmul.f32 %v6263, 0.01
    %v6328 = vmul.f32 %v6264, 0.01
    %v6329 = vmul.f32 %v6265, 0.01
    %v6330 = vmul.f32 %v6266, 0.01
    %v6331 = vmul.f32 %v6267, 0.01
    %v6332 = vmul.f32 %v6268, 0.01
    %v6333 = vmul.f32 %v6269, 0.01
    %v6334 = vmul.f32 %v6270, 0.01
    %v6335 = vmul.f32 %v6271, 0.01
    %v6336 = vmul.f32 %v6272, 0.01
    %v6337 = vmul.f32 %v6273, 0.01
    %v6338 = vmul.f32 %v6274, 0.01
    %v6339 = vmul.f32 %v6275, 0.01
    %v6340 = vmul.f32 %v6276, 0.01
    %v6341 = vmul.f32 %v6277, 0.01
    %v6342 = vmul.f32 %v6278, 0.01
    %v6343 = vmul.f32 %v6279, 0.01
    %v6344 = vmul.f32 %v6280, 0.01
    %v6345 = vmul.f32 %v6281, 0.01
    %v6346 = vmul.f32 %v6282, 0.01
    %v6347 = vmul.f32 %v6283, 0.01
    %v6348 = vmul.f32 %v6284, 0.01
    %v6349 = vmul.f32 %v6285, 0.01
    %v6350 = vmul.f32 %v6286, 0.01
    %v6351 = vmul.f32 %v6287, 0.01
    %v6352 = vmul.f32 %v6288, 0.01
    %v6353 = vmul.f32 %v6289, 0.01
    %v6354 = vmul.f32 %v6290, 0.01
    %v6355 = vmul.f32 %v6291, 0.01
    %v6356 = vmul.f32 %v6292, 0.01
    %v6357 = vmul.f32 %v6293, 0.01
    %v6358 = vmul.f32 %v6294, 0.01
    %v6359 = vmul.f32 %v6295, 0.01
    %v6360 = vmul.f32 %v6296, 0.01
    %v6361 = vmul.f32 %v6297, 0.01
    %v6362 = vmul.f32 %v6298, 0.01
    %v6363 = vmul.f32 %v6299, 0.01
    %v6364 = vmul.f32 %v6300, 0.01
    %v6365 = vmul.f32 %v6301, 0.01
    %v6366 = vmul.f32 %v6302, 0.01
    %v6367 = vmul.f32 %v6303, 0.01
    %v6368 = vmul.f32 %v6304, 0.01
    %v6369 = vmul.f32 %v6305, 0.01
    %v6370 = vmul.f32 %v6306, 0.01
    %v6371 = vmul.f32 %v6307, 0.01
    %v6372 = vmul.f32 %v6308, 0.01
    %v6373 = vmul.f32 %v6309, 0.01
    %v6374 = vmul.f32 %v6310, 0.01
    %v6375 = vmul.f32 %v6311, 0.01
    %v6376 = vmul.f32 %v6312, 0.01
    %v6377 = vmul.f32 %v6313, 0.01
    %v6378 = vmul.f32 %v6314, 0.01
    %v6379 = vmul.f32 %v6315, 0.01
    %v6380 = vmul.f32 %v6316, 0.01
    %v6381 = vmul.f32 %v6317, 0.01
    %v6382 = vmul.f32 %v6318, 0.01
    %v6383 = vmul.f32 %v6319, 0.01
    %v6384 = vmul.f32 %v6320, 0.01
    %v6385 = vmul.f32 %v6321, 0.01
    %v6386 = vmul.f32 %v6322, 0.01
    %v6387 = vmul.f32 %v6323, 0.01
    %v6388 = vmul.f32 %v6324, 0.01
    %v6389 = vmul.f32 %v6325, 0.01
    %v6390 = vmax.f32 %v6262, %v6326
    %v6391 = vmax.f32 %v6263, %v6327
    %v6392 = vmax.f32 %v6264, %v6328
    %v6393 = vmax.f32 %v6265, %v6329
    %v6394 = vmax.f32 %v6266, %v6330
    %v6395 = vmax.f32 %v6267, %v6331
    %v6396 = vmax.f32 %v6268, %v6332
    %v6397 = vmax.f32 %v6269, %v6333
    %v6398 = vmax.f32 %v6270, %v6334
    %v6399 = vmax.f32 %v6271, %v6335
    %v6400 = vmax.f32 %v6272, %v6336
    %v6401 = vmax.f32 %v6273, %v6337
    %v6402 = vmax.f32 %v6274, %v6338
    %v6403 = vmax.f32 %v6275, %v6339
    %v6404 = vmax.f32 %v6276, %v6340
    %v6405 = vmax.f32 %v6277, %v6341
    %v6406 = vmax.f32 %v6278, %v6342
    %v6407 = vmax.f32 %v6279, %v6343
    %v6408 = vmax.f32 %v6280, %v6344
    %v6409 = vmax.f32 %v6281, %v6345
    %v6410 = vmax.f32 %v6282, %v6346
    %v6411 = vmax.f32 %v6283, %v6347
    %v6412 = vmax.f32 %v6284, %v6348
    %v6413 = vmax.f32 %v6285, %v6349
    %v6414 = vmax.f32 %v6286, %v6350
    %v6415 = vmax.f32 %v6287, %v6351
    %v6416 = vmax.f32 %v6288, %v6352
    %v6417 = vmax.f32 %v6289, %v6353
    %v6418 = vmax.f32 %v6290, %v6354
    %v6419 = vmax.f32 %v6291, %v6355
    %v6420 = vmax.f32 %v6292, %v6356
    %v6421 = vmax.f32 %v6293, %v6357
    %v6422 = vmax.f32 %v6294, %v6358
    %v6423 = vmax.f32 %v6295, %v6359
    %v6424 = vmax.f32 %v6296, %v6360
    %v6425 = vmax.f32 %v6297, %v6361
    %v6426 = vmax.f32 %v6298, %v6362
    %v6427 = vmax.f32 %v6299, %v6363
    %v6428 = vmax.f32 %v6300, %v6364
    %v6429 = vmax.f32 %v6301, %v6365
    %v6430 = vmax.f32 %v6302, %v6366
    %v6431 = vmax.f32 %v6303, %v6367
    %v6432 = vmax.f32 %v6304, %v6368
    %v6433 = vmax.f32 %v6305, %v6369
    %v6434 = vmax.f32 %v6306, %v6370
    %v6435 = vmax.f32 %v6307, %v6371
    %v6436 = vmax.f32 %v6308, %v6372
    %v6437 = vmax.f32 %v6309, %v6373
    %v6438 = vmax.f32 %v6310, %v6374
    %v6439 = vmax.f32 %v6311, %v6375
    %v6440 = vmax.f32 %v6312, %v6376
    %v6441 = vmax.f32 %v6313, %v6377
    %v6442 = vmax.f32 %v6314, %v6378
    %v6443 = vmax.f32 %v6315, %v6379
    %v6444 = vmax.f32 %v6316, %v6380
    %v6445 = vmax.f32 %v6317, %v6381
    %v6446 = vmax.f32 %v6318, %v6382
    %v6447 = vmax.f32 %v6319, %v6383
    %v6448 = vmax.f32 %v6320, %v6384
    %v6449 = vmax.f32 %v6321, %v6385
    %v6450 = vmax.f32 %v6322, %v6386
    %v6451 = vmax.f32 %v6323, %v6387
    %v6452 = vmax.f32 %v6324, %v6388
    %v6453 = vmax.f32 %v6325, %v6389
    %s6454 = scalar_lea.vmem %s2, 64
    %v6455 = vld [vmem:[%s6454] sm:$0xff]
    %v6456 = vld [vmem:[%s6454 + $0x8] sm:$0xff]
    %v6457 = vld [vmem:[%s6454 + $0x10] sm:$0xff]
    %v6458 = vld [vmem:[%s6454 + $0x18] sm:$0xff]
    %v6459 = vld [vmem:[%s6454 + $0x20] sm:$0xff]
    %v6460 = vld [vmem:[%s6454 + $0x28] sm:$0xff]
    %v6461 = vld [vmem:[%s6454 + $0x30] sm:$0xff]
    %v6462 = vld [vmem:[%s6454 + $0x38] sm:$0xff]
    %s6463 = scalar_lea.vmem %s3, 64
    %v6464 = vld [vmem:[%s6463] sm:$0xff]
    %v6465 = vld [vmem:[%s6463 + $0x8] sm:$0xff]
    %v6466 = vld [vmem:[%s6463 + $0x10] sm:$0xff]
    %v6467 = vld [vmem:[%s6463 + $0x18] sm:$0xff]
    %v6468 = vld [vmem:[%s6463 + $0x20] sm:$0xff]
    %v6469 = vld [vmem:[%s6463 + $0x28] sm:$0xff]
    %v6470 = vld [vmem:[%s6463 + $0x30] sm:$0xff]
    %v6471 = vld [vmem:[%s6463 + $0x38] sm:$0xff]
    %6473 = vset.pattern.permute.xlu0 0
    %6474 = vperm.xlu0 %6473, %v6464
    %v6475 = vpop.permute.xlu0 %6474
    %6478 = vset.pattern.permute.xlu0 0
    %6479 = vperm.xlu0 %6478, %v6465
    %v6480 = vpop.permute.xlu0 %6479
    %6483 = vset.pattern.permute.xlu0 0
    %6484 = vperm.xlu0 %6483, %v6466
    %v6485 = vpop.permute.xlu0 %6484
    %6488 = vset.pattern.permute.xlu0 0
    %6489 = vperm.xlu0 %6488, %v6467
    %v6490 = vpop.permute.xlu0 %6489
    %6493 = vset.pattern.permute.xlu0 0
    %6494 = vperm.xlu0 %6493, %v6468
    %v6495 = vpop.permute.xlu0 %6494
    %6498 = vset.pattern.permute.xlu0 0
    %6499 = vperm.xlu0 %6498, %v6469
    %v6500 = vpop.permute.xlu0 %6499
    %6503 = vset.pattern.permute.xlu0 0
    %6504 = vperm.xlu0 %6503, %v6470
    %v6505 = vpop.permute.xlu0 %6504
    %6508 = vset.pattern.permute.xlu0 0
    %6509 = vperm.xlu0 %6508, %v6471
    %v6510 = vpop.permute.xlu0 %6509
    %v6513 = vsel %vm483, %v6455, 0
    %v6516 = vsel %vm483, %v6456, 0
    %v6519 = vsel %vm483, %v6457, 0
    %v6522 = vsel %vm483, %v6458, 0
    %v6525 = vsel %vm483, %v6459, 0
    %v6528 = vsel %vm483, %v6460, 0
    %v6531 = vsel %vm483, %v6461, 0
    %v6534 = vsel %vm483, %v6462, 0
    %6536 = vmatprep.subr.mxu0 %v6391
    %6537 = vmatpush1.msra.mxu0 %v6390
    %6538 = vmatprep.subr.mxu0 %v6399
    %6539 = vmatpush1.msra.mxu0 %v6398
    %6540 = vmatprep.subr.mxu0 %v6407
    %6541 = vmatpush1.msra.mxu0 %v6406
    %6542 = vmatprep.subr.mxu0 %v6415
    %6543 = vmatpush1.msra.mxu0 %v6414
    %6544 = vmatprep.subr.mxu0 %v6423
    %6545 = vmatpush1.msra.mxu0 %v6422
    %6546 = vmatprep.subr.mxu0 %v6431
    %6547 = vmatpush1.msra.mxu0 %v6430
    %6548 = vmatprep.subr.mxu0 %v6439
    %6549 = vmatpush1.msra.mxu0 %v6438
    %6550 = vmatprep.subr.mxu0 %v6447
    %6551 = vmatpush1.msra.mxu0 %v6446
    %6552 = vmatprep.subr.mxu0 0.0
    %6553 = vmatpush1.msra.mxu0 0.0
    %6554 = vmatprep.subr.mxu0 0.0
    %6555 = vmatpush1.msra.mxu0 0.0
    %6556 = vmatprep.subr.mxu0 0.0
    %6557 = vmatpush1.msra.mxu0 0.0
    %6558 = vmatprep.subr.mxu0 0.0
    %6559 = vmatpush1.msra.mxu0 0.0
    %6560 = vmatprep.subr.mxu0 0.0
    %6561 = vmatpush1.msra.mxu0 0.0
    %6562 = vmatprep.subr.mxu0 0.0
    %6563 = vmatpush1.msra.mxu0 0.0
    %6564 = vmatprep.subr.mxu0 0.0
    %6565 = vmatpush1.msra.mxu0 0.0
    %6566 = vmatprep.subr.mxu0 0.0
    %6567 = vmatpush1.msra.mxu0 0.0
    %6568 = vmatprep.subr.mxu0 0.0
    %6569 = vmatpush1.msra.mxu0 0.0
    %6570 = vmatprep.subr.mxu0 0.0
    %6571 = vmatpush1.msra.mxu0 0.0
    %6572 = vmatprep.subr.mxu0 0.0
    %6573 = vmatpush1.msra.mxu0 0.0
    %6574 = vmatprep.subr.mxu0 0.0
    %6575 = vmatpush1.msra.mxu0 0.0
    %6576 = vmatprep.subr.mxu0 0.0
    %6577 = vmatpush1.msra.mxu0 0.0
    %6578 = vmatprep.subr.mxu0 0.0
    %6579 = vmatpush1.msra.mxu0 0.0
    %6580 = vmatprep.subr.mxu0 0.0
    %6581 = vmatpush1.msra.mxu0 0.0
    %6582 = vmatprep.subr.mxu0 0.0
    %6583 = vmatpush1.msra.mxu0 0.0
    %6584 = vmatprep.subr.mxu0 0.0
    %6585 = vmatpush1.msra.mxu0 0.0
    %6586 = vmatprep.subr.mxu0 0.0
    %6587 = vmatpush1.msra.mxu0 0.0
    %6588 = vmatprep.subr.mxu0 0.0
    %6589 = vmatpush1.msra.mxu0 0.0
    %6590 = vmatprep.subr.mxu0 0.0
    %6591 = vmatpush1.msra.mxu0 0.0
    %6592 = vmatprep.subr.mxu0 0.0
    %6593 = vmatpush1.msra.mxu0 0.0
    %6594 = vmatprep.subr.mxu0 0.0
    %6595 = vmatpush1.msra.mxu0 0.0
    %6596 = vmatprep.subr.mxu0 0.0
    %6597 = vmatpush1.msra.mxu0 0.0
    %6598 = vmatprep.subr.mxu0 0.0
    %6599 = vmatpush1.msra.mxu0 0.0
    %6600 = vmatprep.mubr.f32.mxu0 0.0
    %6601 = vmatmul.mubr.f32.gmra.mrb[0].mxu0 %v6513
    %v6602 = vpop.f32.mrb[0].mxu0
    %v6603 = vadd.f32 %v6475, %v6602
    %v6604 = vpop.f32.mrb[0].mxu0
    %v6605 = vadd.f32 %v6475, %v6604
    %6606 = vmatprep.mubr.f32.mxu0 0.0
    %6607 = vmatmul.mubr.f32.gmra.mrb[0].mxu0 %v6516
    %v6608 = vpop.f32.mrb[0].mxu0
    %v6609 = vadd.f32 %v6480, %v6608
    %v6610 = vpop.f32.mrb[0].mxu0
    %v6611 = vadd.f32 %v6480, %v6610
    %6612 = vmatprep.mubr.f32.mxu0 0.0
    %6613 = vmatmul.mubr.f32.gmra.mrb[0].mxu0 %v6519
    %v6614 = vpop.f32.mrb[0].mxu0
    %v6615 = vadd.f32 %v6485, %v6614
    %v6616 = vpop.f32.mrb[0].mxu0
    %v6617 = vadd.f32 %v6485, %v6616
    %6618 = vmatprep.mubr.f32.mxu0 0.0
    %6619 = vmatmul.mubr.f32.gmra.mrb[0].mxu0 %v6522
    %v6620 = vpop.f32.mrb[0].mxu0
    %v6621 = vadd.f32 %v6490, %v6620
    %v6622 = vpop.f32.mrb[0].mxu0
    %v6623 = vadd.f32 %v6490, %v6622
    %6624 = vmatprep.mubr.f32.mxu0 0.0
    %6625 = vmatmul.mubr.f32.gmra.mrb[0].mxu0 %v6525
    %v6626 = vpop.f32.mrb[0].mxu0
    %v6627 = vadd.f32 %v6495, %v6626
    %v6628 = vpop.f32.mrb[0].mxu0
    %v6629 = vadd.f32 %v6495, %v6628
    %6630 = vmatprep.mubr.f32.mxu0 0.0
    %6631 = vmatmul.mubr.f32.gmra.mrb[0].mxu0 %v6528
    %v6632 = vpop.f32.mrb[0].mxu0
    %v6633 = vadd.f32 %v6500, %v6632
    %v6634 = vpop.f32.mrb[0].mxu0
    %v6635 = vadd.f32 %v6500, %v6634
    %6636 = vmatprep.mubr.f32.mxu0 0.0
    %6637 = vmatmul.mubr.f32.gmra.mrb[0].mxu0 %v6531
    %v6638 = vpop.f32.mrb[0].mxu0
    %v6639 = vadd.f32 %v6505, %v6638
    %v6640 = vpop.f32.mrb[0].mxu0
    %v6641 = vadd.f32 %v6505, %v6640
    %6642 = vmatprep.mubr.f32.mxu0 0.0
    %6643 = vmatmul.mubr.f32.gmra.mrb[0].mxu0 %v6534
    %v6644 = vpop.f32.mrb[0].mxu0
    %v6645 = vadd.f32 %v6510, %v6644
    %v6646 = vpop.f32.mrb[0].mxu0
    %v6647 = vadd.f32 %v6510, %v6646
    %6648 = vdwg.mxu0
    %6649 = vmatprep.subr.mxu0 %v6393
    %6650 = vmatpush1.msra.mxu0 %v6392
    %6651 = vmatprep.subr.mxu0 %v6401
    %6652 = vmatpush1.msra.mxu0 %v6400
    %6653 = vmatprep.subr.mxu0 %v6409
    %6654 = vmatpush1.msra.mxu0 %v6408
    %6655 = vmatprep.subr.mxu0 %v6417
    %6656 = vmatpush1.msra.mxu0 %v6416
    %6657 = vmatprep.subr.mxu0 %v6425
    %6658 = vmatpush1.msra.mxu0 %v6424
    %6659 = vmatprep.subr.mxu0 %v6433
    %6660 = vmatpush1.msra.mxu0 %v6432
    %6661 = vmatprep.subr.mxu0 %v6441
    %6662 = vmatpush1.msra.mxu0 %v6440
    %6663 = vmatprep.subr.mxu0 %v6449
    %6664 = vmatpush1.msra.mxu0 %v6448
    %6665 = vmatprep.subr.mxu0 0.0
    %6666 = vmatpush1.msra.mxu0 0.0
    %6667 = vmatprep.subr.mxu0 0.0
    %6668 = vmatpush1.msra.mxu0 0.0
    %6669 = vmatprep.subr.mxu0 0.0
    %6670 = vmatpush1.msra.mxu0 0.0
    %6671 = vmatprep.subr.mxu0 0.0
    %6672 = vmatpush1.msra.mxu0 0.0
    %6673 = vmatprep.subr.mxu0 0.0
    %6674 = vmatpush1.msra.mxu0 0.0
    %6675 = vmatprep.subr.mxu0 0.0
    %6676 = vmatpush1.msra.mxu0 0.0
    %6677 = vmatprep.subr.mxu0 0.0
    %6678 = vmatpush1.msra.mxu0 0.0
    %6679 = vmatprep.subr.mxu0 0.0
    %6680 = vmatpush1.msra.mxu0 0.0
    %6681 = vmatprep.subr.mxu0 0.0
    %6682 = vmatpush1.msra.mxu0 0.0
    %6683 = vmatprep.subr.mxu0 0.0
    %6684 = vmatpush1.msra.mxu0 0.0
    %6685 = vmatprep.subr.mxu0 0.0
    %6686 = vmatpush1.msra.mxu0 0.0
    %6687 = vmatprep.subr.mxu0 0.0
    %6688 = vmatpush1.msra.mxu0 0.0
    %6689 = vmatprep.subr.mxu0 0.0
    %6690 = vmatpush1.msra.mxu0 0.0
    %6691 = vmatprep.subr.mxu0 0.0
    %6692 = vmatpush1.msra.mxu0 0.0
    %6693 = vmatprep.subr.mxu0 0.0
    %6694 = vmatpush1.msra.mxu0 0.0
    %6695 = vmatprep.subr.mxu0 0.0
    %6696 = vmatpush1.msra.mxu0 0.0
    %6697 = vmatprep.subr.mxu0 0.0
    %6698 = vmatpush1.msra.mxu0 0.0
    %6699 = vmatprep.subr.mxu0 0.0
    %6700 = vmatpush1.msra.mxu0 0.0
    %6701 = vmatprep.subr.mxu0 0.0
    %6702 = vmatpush1.msra.mxu0 0.0
    %6703 = vmatprep.subr.mxu0 0.0
    %6704 = vmatpush1.msra.mxu0 0.0
    %6705 = vmatprep.subr.mxu0 0.0
    %6706 = vmatpush1.msra.mxu0 0.0
    %6707 = vmatprep.subr.mxu0 0.0
    %6708 = vmatpush1.msra.mxu0 0.0
    %6709 = vmatprep.subr.mxu0 0.0
    %6710 = vmatpush1.msra.mxu0 0.0
    %6711 = vmatprep.subr.mxu0 0.0
    %6712 = vmatpush1.msra.mxu0 0.0
    %6713 = vmatprep.mubr.f32.mxu0 0.0
    %6714 = vmatmul.mubr.f32.gmra.mrb[0].mxu0 %v6513
    %v6715 = vpop.f32.mrb[0].mxu0
    %v6716 = vadd.f32 %v6475, %v6715
    %v6717 = vpop.f32.mrb[0].mxu0
    %v6718 = vadd.f32 %v6475, %v6717
    %6719 = vmatprep.mubr.f32.mxu0 0.0
    %6720 = vmatmul.mubr.f32.gmra.mrb[0].mxu0 %v6516
    %v6721 = vpop.f32.mrb[0].mxu0
    %v6722 = vadd.f32 %v6480, %v6721
    %v6723 = vpop.f32.mrb[0].mxu0
    %v6724 = vadd.f32 %v6480, %v6723
    %6725 = vmatprep.mubr.f32.mxu0 0.0
    %6726 = vmatmul.mubr.f32.gmra.mrb[0].mxu0 %v6519
    %v6727 = vpop.f32.mrb[0].mxu0
    %v6728 = vadd.f32 %v6485, %v6727
    %v6729 = vpop.f32.mrb[0].mxu0
    %v6730 = vadd.f32 %v6485, %v6729
    %6731 = vmatprep.mubr.f32.mxu0 0.0
    %6732 = vmatmul.mubr.f32.gmra.mrb[0].mxu0 %v6522
    %v6733 = vpop.f32.mrb[0].mxu0
    %v6734 = vadd.f32 %v6490, %v6733
    %v6735 = vpop.f32.mrb[0].mxu0
    %v6736 = vadd.f32 %v6490, %v6735
    %6737 = vmatprep.mubr.f32.mxu0 0.0
    %6738 = vmatmul.mubr.f32.gmra.mrb[0].mxu0 %v6525
    %v6739 = vpop.f32.mrb[0].mxu0
    %v6740 = vadd.f32 %v6495, %v6739
    %v6741 = vpop.f32.mrb[0].mxu0
    %v6742 = vadd.f32 %v6495, %v6741
    %6743 = vmatprep.mubr.f32.mxu0 0.0
    %6744 = vmatmul.mubr.f32.gmra.mrb[0].mxu0 %v6528
    %v6745 = vpop.f32.mrb[0].mxu0
    %v6746 = vadd.f32 %v6500, %v6745
    %v6747 = vpop.f32.mrb[0].mxu0
    %v6748 = vadd.f32 %v6500, %v6747
    %6749 = vmatprep.mubr.f32.mxu0 0.0
    %6750 = vmatmul.mubr.f32.gmra.mrb[0].mxu0 %v6531
    %v6751 = vpop.f32.mrb[0].mxu0
    %v6752 = vadd.f32 %v6505, %v6751
    %v6753 = vpop.f32.mrb[0].mxu0
    %v6754 = vadd.f32 %v6505, %v6753
    %6755 = vmatprep.mubr.f32.mxu0 0.0
    %6756 = vmatmul.mubr.f32.gmra.mrb[0].mxu0 %v6534
    %v6757 = vpop.f32.mrb[0].mxu0
    %v6758 = vadd.f32 %v6510, %v6757
    %v6759 = vpop.f32.mrb[0].mxu0
    %v6760 = vadd.f32 %v6510, %v6759
    %6761 = vdwg.mxu0
    %6762 = vmatprep.subr.mxu0 %v6395
    %6763 = vmatpush1.msra.mxu0 %v6394
    %6764 = vmatprep.subr.mxu0 %v6403
    %6765 = vmatpush1.msra.mxu0 %v6402
    %6766 = vmatprep.subr.mxu0 %v6411
    %6767 = vmatpush1.msra.mxu0 %v6410
    %6768 = vmatprep.subr.mxu0 %v6419
    %6769 = vmatpush1.msra.mxu0 %v6418
    %6770 = vmatprep.subr.mxu0 %v6427
    %6771 = vmatpush1.msra.mxu0 %v6426
    %6772 = vmatprep.subr.mxu0 %v6435
    %6773 = vmatpush1.msra.mxu0 %v6434
    %6774 = vmatprep.subr.mxu0 %v6443
    %6775 = vmatpush1.msra.mxu0 %v6442
    %6776 = vmatprep.subr.mxu0 %v6451
    %6777 = vmatpush1.msra.mxu0 %v6450
    %6778 = vmatprep.subr.mxu0 0.0
    %6779 = vmatpush1.msra.mxu0 0.0
    %6780 = vmatprep.subr.mxu0 0.0
    %6781 = vmatpush1.msra.mxu0 0.0
    %6782 = vmatprep.subr.mxu0 0.0
    %6783 = vmatpush1.msra.mxu0 0.0
    %6784 = vmatprep.subr.mxu0 0.0
    %6785 = vmatpush1.msra.mxu0 0.0
    %6786 = vmatprep.subr.mxu0 0.0
    %6787 = vmatpush1.msra.mxu0 0.0
    %6788 = vmatprep.subr.mxu0 0.0
    %6789 = vmatpush1.msra.mxu0 0.0
    %6790 = vmatprep.subr.mxu0 0.0
    %6791 = vmatpush1.msra.mxu0 0.0
    %6792 = vmatprep.subr.mxu0 0.0
    %6793 = vmatpush1.msra.mxu0 0.0
    %6794 = vmatprep.subr.mxu0 0.0
    %6795 = vmatpush1.msra.mxu0 0.0
    %6796 = vmatprep.subr.mxu0 0.0
    %6797 = vmatpush1.msra.mxu0 0.0
    %6798 = vmatprep.subr.mxu0 0.0
    %6799 = vmatpush1.msra.mxu0 0.0
    %6800 = vmatprep.subr.mxu0 0.0
    %6801 = vmatpush1.msra.mxu0 0.0
    %6802 = vmatprep.subr.mxu0 0.0
    %6803 = vmatpush1.msra.mxu0 0.0
    %6804 = vmatprep.subr.mxu0 0.0
    %6805 = vmatpush1.msra.mxu0 0.0
    %6806 = vmatprep.subr.mxu0 0.0
    %6807 = vmatpush1.msra.mxu0 0.0
    %6808 = vmatprep.subr.mxu0 0.0
    %6809 = vmatpush1.msra.mxu0 0.0
    %6810 = vmatprep.subr.mxu0 0.0
    %6811 = vmatpush1.msra.mxu0 0.0
    %6812 = vmatprep.subr.mxu0 0.0
    %6813 = vmatpush1.msra.mxu0 0.0
    %6814 = vmatprep.subr.mxu0 0.0
    %6815 = vmatpush1.msra.mxu0 0.0
    %6816 = vmatprep.subr.mxu0 0.0
    %6817 = vmatpush1.msra.mxu0 0.0
    %6818 = vmatprep.subr.mxu0 0.0
    %6819 = vmatpush1.msra.mxu0 0.0
    %6820 = vmatprep.subr.mxu0 0.0
    %6821 = vmatpush1.msra.mxu0 0.0
    %6822 = vmatprep.subr.mxu0 0.0
    %6823 = vmatpush1.msra.mxu0 0.0
    %6824 = vmatprep.subr.mxu0 0.0
    %6825 = vmatpush1.msra.mxu0 0.0
    %6826 = vmatprep.mubr.f32.mxu0 0.0
    %6827 = vmatmul.mubr.f32.gmra.mrb[0].mxu0 %v6513
    %v6828 = vpop.f32.mrb[0].mxu0
    %v6829 = vadd.f32 %v6475, %v6828
    %v6830 = vpop.f32.mrb[0].mxu0
    %v6831 = vadd.f32 %v6475, %v6830
    %6832 = vmatprep.mubr.f32.mxu0 0.0
    %6833 = vmatmul.mubr.f32.gmra.mrb[0].mxu0 %v6516
    %v6834 = vpop.f32.mrb[0].mxu0
    %v6835 = vadd.f32 %v6480, %v6834
    %v6836 = vpop.f32.mrb[0].mxu0
    %v6837 = vadd.f32 %v6480, %v6836
    %6838 = vmatprep.mubr.f32.mxu0 0.0
    %6839 = vmatmul.mubr.f32.gmra.mrb[0].mxu0 %v6519
    %v6840 = vpop.f32.mrb[0].mxu0
    %v6841 = vadd.f32 %v6485, %v6840
    %v6842 = vpop.f32.mrb[0].mxu0
    %v6843 = vadd.f32 %v6485, %v6842
    %6844 = vmatprep.mubr.f32.mxu0 0.0
    %6845 = vmatmul.mubr.f32.gmra.mrb[0].mxu0 %v6522
    %v6846 = vpop.f32.mrb[0].mxu0
    %v6847 = vadd.f32 %v6490, %v6846
    %v6848 = vpop.f32.mrb[0].mxu0
    %v6849 = vadd.f32 %v6490, %v6848
    %6850 = vmatprep.mubr.f32.mxu0 0.0
    %6851 = vmatmul.mubr.f32.gmra.mrb[0].mxu0 %v6525
    %v6852 = vpop.f32.mrb[0].mxu0
    %v6853 = vadd.f32 %v6495, %v6852
    %v6854 = vpop.f32.mrb[0].mxu0
    %v6855 = vadd.f32 %v6495, %v6854
    %6856 = vmatprep.mubr.f32.mxu0 0.0
    %6857 = vmatmul.mubr.f32.gmra.mrb[0].mxu0 %v6528
    %v6858 = vpop.f32.mrb[0].mxu0
    %v6859 = vadd.f32 %v6500, %v6858
    %v6860 = vpop.f32.mrb[0].mxu0
    %v6861 = vadd.f32 %v6500, %v6860
    %6862 = vmatprep.mubr.f32.mxu0 0.0
    %6863 = vmatmul.mubr.f32.gmra.mrb[0].mxu0 %v6531
    %v6864 = vpop.f32.mrb[0].mxu0
    %v6865 = vadd.f32 %v6505, %v6864
    %v6866 = vpop.f32.mrb[0].mxu0
    %v6867 = vadd.f32 %v6505, %v6866
    %6868 = vmatprep.mubr.f32.mxu0 0.0
    %6869 = vmatmul.mubr.f32.gmra.mrb[0].mxu0 %v6534
    %v6870 = vpop.f32.mrb[0].mxu0
    %v6871 = vadd.f32 %v6510, %v6870
    %v6872 = vpop.f32.mrb[0].mxu0
    %v6873 = vadd.f32 %v6510, %v6872
    %6874 = vdwg.mxu0
    %6875 = vmatprep.subr.mxu0 %v6397
    %6876 = vmatpush1.msra.mxu0 %v6396
    %6877 = vmatprep.subr.mxu0 %v6405
    %6878 = vmatpush1.msra.mxu0 %v6404
    %6879 = vmatprep.subr.mxu0 %v6413
    %6880 = vmatpush1.msra.mxu0 %v6412
    %6881 = vmatprep.subr.mxu0 %v6421
    %6882 = vmatpush1.msra.mxu0 %v6420
    %6883 = vmatprep.subr.mxu0 %v6429
    %6884 = vmatpush1.msra.mxu0 %v6428
    %6885 = vmatprep.subr.mxu0 %v6437
    %6886 = vmatpush1.msra.mxu0 %v6436
    %6887 = vmatprep.subr.mxu0 %v6445
    %6888 = vmatpush1.msra.mxu0 %v6444
    %6889 = vmatprep.subr.mxu0 %v6453
    %6890 = vmatpush1.msra.mxu0 %v6452
    %6891 = vmatprep.subr.mxu0 0.0
    %6892 = vmatpush1.msra.mxu0 0.0
    %6893 = vmatprep.subr.mxu0 0.0
    %6894 = vmatpush1.msra.mxu0 0.0
    %6895 = vmatprep.subr.mxu0 0.0
    %6896 = vmatpush1.msra.mxu0 0.0
    %6897 = vmatprep.subr.mxu0 0.0
    %6898 = vmatpush1.msra.mxu0 0.0
    %6899 = vmatprep.subr.mxu0 0.0
    %6900 = vmatpush1.msra.mxu0 0.0
    %6901 = vmatprep.subr.mxu0 0.0
    %6902 = vmatpush1.msra.mxu0 0.0
    %6903 = vmatprep.subr.mxu0 0.0
    %6904 = vmatpush1.msra.mxu0 0.0
    %6905 = vmatprep.subr.mxu0 0.0
    %6906 = vmatpush1.msra.mxu0 0.0
    %6907 = vmatprep.subr.mxu0 0.0
    %6908 = vmatpush1.msra.mxu0 0.0
    %6909 = vmatprep.subr.mxu0 0.0
    %6910 = vmatpush1.msra.mxu0 0.0
    %6911 = vmatprep.subr.mxu0 0.0
    %6912 = vmatpush1.msra.mxu0 0.0
    %6913 = vmatprep.subr.mxu0 0.0
    %6914 = vmatpush1.msra.mxu0 0.0
    %6915 = vmatprep.subr.mxu0 0.0
    %6916 = vmatpush1.msra.mxu0 0.0
    %6917 = vmatprep.subr.mxu0 0.0
    %6918 = vmatpush1.msra.mxu0 0.0
    %6919 = vmatprep.subr.mxu0 0.0
    %6920 = vmatpush1.msra.mxu0 0.0
    %6921 = vmatprep.subr.mxu0 0.0
    %6922 = vmatpush1.msra.mxu0 0.0
    %6923 = vmatprep.subr.mxu0 0.0
    %6924 = vmatpush1.msra.mxu0 0.0
    %6925 = vmatprep.subr.mxu0 0.0
    %6926 = vmatpush1.msra.mxu0 0.0
    %6927 = vmatprep.subr.mxu0 0.0
    %6928 = vmatpush1.msra.mxu0 0.0
    %6929 = vmatprep.subr.mxu0 0.0
    %6930 = vmatpush1.msra.mxu0 0.0
    %6931 = vmatprep.subr.mxu0 0.0
    %6932 = vmatpush1.msra.mxu0 0.0
    %6933 = vmatprep.subr.mxu0 0.0
    %6934 = vmatpush1.msra.mxu0 0.0
    %6935 = vmatprep.subr.mxu0 0.0
    %6936 = vmatpush1.msra.mxu0 0.0
    %6937 = vmatprep.subr.mxu0 0.0
    %6938 = vmatpush1.msra.mxu0 0.0
    %6939 = vmatprep.mubr.f32.mxu0 0.0
    %6940 = vmatmul.mubr.f32.gmra.mrb[0].mxu0 %v6513
    %v6941 = vpop.f32.mrb[0].mxu0
    %v6942 = vadd.f32 %v6475, %v6941
    %v6943 = vpop.f32.mrb[0].mxu0
    %v6944 = vadd.f32 %v6475, %v6943
    %6945 = vmatprep.mubr.f32.mxu0 0.0
    %6946 = vmatmul.mubr.f32.gmra.mrb[0].mxu0 %v6516
    %v6947 = vpop.f32.mrb[0].mxu0
    %v6948 = vadd.f32 %v6480, %v6947
    %v6949 = vpop.f32.mrb[0].mxu0
    %v6950 = vadd.f32 %v6480, %v6949
    %6951 = vmatprep.mubr.f32.mxu0 0.0
    %6952 = vmatmul.mubr.f32.gmra.mrb[0].mxu0 %v6519
    %v6953 = vpop.f32.mrb[0].mxu0
    %v6954 = vadd.f32 %v6485, %v6953
    %v6955 = vpop.f32.mrb[0].mxu0
    %v6956 = vadd.f32 %v6485, %v6955
    %6957 = vmatprep.mubr.f32.mxu0 0.0
    %6958 = vmatmul.mubr.f32.gmra.mrb[0].mxu0 %v6522
    %v6959 = vpop.f32.mrb[0].mxu0
    %v6960 = vadd.f32 %v6490, %v6959
    %v6961 = vpop.f32.mrb[0].mxu0
    %v6962 = vadd.f32 %v6490, %v6961
    %6963 = vmatprep.mubr.f32.mxu0 0.0
    %6964 = vmatmul.mubr.f32.gmra.mrb[0].mxu0 %v6525
    %v6965 = vpop.f32.mrb[0].mxu0
    %v6966 = vadd.f32 %v6495, %v6965
    %v6967 = vpop.f32.mrb[0].mxu0
    %v6968 = vadd.f32 %v6495, %v6967
    %6969 = vmatprep.mubr.f32.mxu0 0.0
    %6970 = vmatmul.mubr.f32.gmra.mrb[0].mxu0 %v6528
    %v6971 = vpop.f32.mrb[0].mxu0
    %v6972 = vadd.f32 %v6500, %v6971
    %v6973 = vpop.f32.mrb[0].mxu0
    %v6974 = vadd.f32 %v6500, %v6973
    %6975 = vmatprep.mubr.f32.mxu0 0.0
    %6976 = vmatmul.mubr.f32.gmra.mrb[0].mxu0 %v6531
    %v6977 = vpop.f32.mrb[0].mxu0
    %v6978 = vadd.f32 %v6505, %v6977
    %v6979 = vpop.f32.mrb[0].mxu0
    %v6980 = vadd.f32 %v6505, %v6979
    %6981 = vmatprep.mubr.f32.mxu0 0.0
    %6982 = vmatmul.mubr.f32.gmra.mrb[0].mxu0 %v6534
    %v6983 = vpop.f32.mrb[0].mxu0
    %v6984 = vadd.f32 %v6510, %v6983
    %v6985 = vpop.f32.mrb[0].mxu0
    %v6986 = vadd.f32 %v6510, %v6985
    %6987 = vdwg.mxu0
    %v6988 = vmul.f32 %v6603, 0.01
    %v6989 = vmul.f32 %v6605, 0.01
    %v6990 = vmul.f32 %v6716, 0.01
    %v6991 = vmul.f32 %v6718, 0.01
    %v6992 = vmul.f32 %v6829, 0.01
    %v6993 = vmul.f32 %v6831, 0.01
    %v6994 = vmul.f32 %v6942, 0.01
    %v6995 = vmul.f32 %v6944, 0.01
    %v6996 = vmul.f32 %v6609, 0.01
    %v6997 = vmul.f32 %v6611, 0.01
    %v6998 = vmul.f32 %v6722, 0.01
    %v6999 = vmul.f32 %v6724, 0.01
    %v7000 = vmul.f32 %v6835, 0.01
    %v7001 = vmul.f32 %v6837, 0.01
    %v7002 = vmul.f32 %v6948, 0.01
    %v7003 = vmul.f32 %v6950, 0.01
    %v7004 = vmul.f32 %v6615, 0.01
    %v7005 = vmul.f32 %v6617, 0.01
    %v7006 = vmul.f32 %v6728, 0.01
    %v7007 = vmul.f32 %v6730, 0.01
    %v7008 = vmul.f32 %v6841, 0.01
    %v7009 = vmul.f32 %v6843, 0.01
    %v7010 = vmul.f32 %v6954, 0.01
    %v7011 = vmul.f32 %v6956, 0.01
    %v7012 = vmul.f32 %v6621, 0.01
    %v7013 = vmul.f32 %v6623, 0.01
    %v7014 = vmul.f32 %v6734, 0.01
    %v7015 = vmul.f32 %v6736, 0.01
    %v7016 = vmul.f32 %v6847, 0.01
    %v7017 = vmul.f32 %v6849, 0.01
    %v7018 = vmul.f32 %v6960, 0.01
    %v7019 = vmul.f32 %v6962, 0.01
    %v7020 = vmul.f32 %v6627, 0.01
    %v7021 = vmul.f32 %v6629, 0.01
    %v7022 = vmul.f32 %v6740, 0.01
    %v7023 = vmul.f32 %v6742, 0.01
    %v7024 = vmul.f32 %v6853, 0.01
    %v7025 = vmul.f32 %v6855, 0.01
    %v7026 = vmul.f32 %v6966, 0.01
    %v7027 = vmul.f32 %v6968, 0.01
    %v7028 = vmul.f32 %v6633, 0.01
    %v7029 = vmul.f32 %v6635, 0.01
    %v7030 = vmul.f32 %v6746, 0.01
    %v7031 = vmul.f32 %v6748, 0.01
    %v7032 = vmul.f32 %v6859, 0.01
    %v7033 = vmul.f32 %v6861, 0.01
    %v7034 = vmul.f32 %v6972, 0.01
    %v7035 = vmul.f32 %v6974, 0.01
    %v7036 = vmul.f32 %v6639, 0.01
    %v7037 = vmul.f32 %v6641, 0.01
    %v7038 = vmul.f32 %v6752, 0.01
    %v7039 = vmul.f32 %v6754, 0.01
    %v7040 = vmul.f32 %v6865, 0.01
    %v7041 = vmul.f32 %v6867, 0.01
    %v7042 = vmul.f32 %v6978, 0.01
    %v7043 = vmul.f32 %v6980, 0.01
    %v7044 = vmul.f32 %v6645, 0.01
    %v7045 = vmul.f32 %v6647, 0.01
    %v7046 = vmul.f32 %v6758, 0.01
    %v7047 = vmul.f32 %v6760, 0.01
    %v7048 = vmul.f32 %v6871, 0.01
    %v7049 = vmul.f32 %v6873, 0.01
    %v7050 = vmul.f32 %v6984, 0.01
    %v7051 = vmul.f32 %v6986, 0.01
    %v7052 = vmax.f32 %v6603, %v6988
    %v7053 = vmax.f32 %v6605, %v6989
    %v7054 = vmax.f32 %v6716, %v6990
    %v7055 = vmax.f32 %v6718, %v6991
    %v7056 = vmax.f32 %v6829, %v6992
    %v7057 = vmax.f32 %v6831, %v6993
    %v7058 = vmax.f32 %v6942, %v6994
    %v7059 = vmax.f32 %v6944, %v6995
    %v7060 = vmax.f32 %v6609, %v6996
    %v7061 = vmax.f32 %v6611, %v6997
    %v7062 = vmax.f32 %v6722, %v6998
    %v7063 = vmax.f32 %v6724, %v6999
    %v7064 = vmax.f32 %v6835, %v7000
    %v7065 = vmax.f32 %v6837, %v7001
    %v7066 = vmax.f32 %v6948, %v7002
    %v7067 = vmax.f32 %v6950, %v7003
    %v7068 = vmax.f32 %v6615, %v7004
    %v7069 = vmax.f32 %v6617, %v7005
    %v7070 = vmax.f32 %v6728, %v7006
    %v7071 = vmax.f32 %v6730, %v7007
    %v7072 = vmax.f32 %v6841, %v7008
    %v7073 = vmax.f32 %v6843, %v7009
    %v7074 = vmax.f32 %v6954, %v7010
    %v7075 = vmax.f32 %v6956, %v7011
    %v7076 = vmax.f32 %v6621, %v7012
    %v7077 = vmax.f32 %v6623, %v7013
    %v7078 = vmax.f32 %v6734, %v7014
    %v7079 = vmax.f32 %v6736, %v7015
    %v7080 = vmax.f32 %v6847, %v7016
    %v7081 = vmax.f32 %v6849, %v7017
    %v7082 = vmax.f32 %v6960, %v7018
    %v7083 = vmax.f32 %v6962, %v7019
    %v7084 = vmax.f32 %v6627, %v7020
    %v7085 = vmax.f32 %v6629, %v7021
    %v7086 = vmax.f32 %v6740, %v7022
    %v7087 = vmax.f32 %v6742, %v7023
    %v7088 = vmax.f32 %v6853, %v7024
    %v7089 = vmax.f32 %v6855, %v7025
    %v7090 = vmax.f32 %v6966, %v7026
    %v7091 = vmax.f32 %v6968, %v7027
    %v7092 = vmax.f32 %v6633, %v7028
    %v7093 = vmax.f32 %v6635, %v7029
    %v7094 = vmax.f32 %v6746, %v7030
    %v7095 = vmax.f32 %v6748, %v7031
    %v7096 = vmax.f32 %v6859, %v7032
    %v7097 = vmax.f32 %v6861, %v7033
    %v7098 = vmax.f32 %v6972, %v7034
    %v7099 = vmax.f32 %v6974, %v7035
    %v7100 = vmax.f32 %v6639, %v7036
    %v7101 = vmax.f32 %v6641, %v7037
    %v7102 = vmax.f32 %v6752, %v7038
    %v7103 = vmax.f32 %v6754, %v7039
    %v7104 = vmax.f32 %v6865, %v7040
    %v7105 = vmax.f32 %v6867, %v7041
    %v7106 = vmax.f32 %v6978, %v7042
    %v7107 = vmax.f32 %v6980, %v7043
    %v7108 = vmax.f32 %v6645, %v7044
    %v7109 = vmax.f32 %v6647, %v7045
    %v7110 = vmax.f32 %v6758, %v7046
    %v7111 = vmax.f32 %v6760, %v7047
    %v7112 = vmax.f32 %v6871, %v7048
    %v7113 = vmax.f32 %v6873, %v7049
    %v7114 = vmax.f32 %v6984, %v7050
    %v7115 = vmax.f32 %v6986, %v7051
    %s7116 = scalar_lea.vmem %s4, 2
    %v7117 = vld [vmem:[%s7116] sm:$0x3]
    %s7118 = scalar_lea.vmem %s5, 2
    %v7119 = vld [vmem:[%s7118] sm:$0x3]
    %7121 = vset.pattern.permute.xlu0 0
    %7122 = vperm.xlu0 %7121, %v7119
    %v7123 = vpop.permute.xlu0 %7122
    %v7126 = vsel %vm483, %v7117, 0
    %7128 = vmatprep.subr.mxu0 %v7053
    %7129 = vmatpush1.msra.mxu0 %v7052
    %7130 = vmatprep.subr.mxu0 %v7061
    %7131 = vmatpush1.msra.mxu0 %v7060
    %7132 = vmatprep.subr.mxu0 %v7069
    %7133 = vmatpush1.msra.mxu0 %v7068
    %7134 = vmatprep.subr.mxu0 %v7077
    %7135 = vmatpush1.msra.mxu0 %v7076
    %7136 = vmatprep.subr.mxu0 %v7085
    %7137 = vmatpush1.msra.mxu0 %v7084
    %7138 = vmatprep.subr.mxu0 %v7093
    %7139 = vmatpush1.msra.mxu0 %v7092
    %7140 = vmatprep.subr.mxu0 %v7101
    %7141 = vmatpush1.msra.mxu0 %v7100
    %7142 = vmatprep.subr.mxu0 %v7109
    %7143 = vmatpush1.msra.mxu0 %v7108
    %7144 = vmatprep.subr.mxu0 0.0
    %7145 = vmatpush1.msra.mxu0 0.0
    %7146 = vmatprep.subr.mxu0 0.0
    %7147 = vmatpush1.msra.mxu0 0.0
    %7148 = vmatprep.subr.mxu0 0.0
    %7149 = vmatpush1.msra.mxu0 0.0
    %7150 = vmatprep.subr.mxu0 0.0
    %7151 = vmatpush1.msra.mxu0 0.0
    %7152 = vmatprep.subr.mxu0 0.0
    %7153 = vmatpush1.msra.mxu0 0.0
    %7154 = vmatprep.subr.mxu0 0.0
    %7155 = vmatpush1.msra.mxu0 0.0
    %7156 = vmatprep.subr.mxu0 0.0
    %7157 = vmatpush1.msra.mxu0 0.0
    %7158 = vmatprep.subr.mxu0 0.0
    %7159 = vmatpush1.msra.mxu0 0.0
    %7160 = vmatprep.subr.mxu0 0.0
    %7161 = vmatpush1.msra.mxu0 0.0
    %7162 = vmatprep.subr.mxu0 0.0
    %7163 = vmatpush1.msra.mxu0 0.0
    %7164 = vmatprep.subr.mxu0 0.0
    %7165 = vmatpush1.msra.mxu0 0.0
    %7166 = vmatprep.subr.mxu0 0.0
    %7167 = vmatpush1.msra.mxu0 0.0
    %7168 = vmatprep.subr.mxu0 0.0
    %7169 = vmatpush1.msra.mxu0 0.0
    %7170 = vmatprep.subr.mxu0 0.0
    %7171 = vmatpush1.msra.mxu0 0.0
    %7172 = vmatprep.subr.mxu0 0.0
    %7173 = vmatpush1.msra.mxu0 0.0
    %7174 = vmatprep.subr.mxu0 0.0
    %7175 = vmatpush1.msra.mxu0 0.0
    %7176 = vmatprep.subr.mxu0 0.0
    %7177 = vmatpush1.msra.mxu0 0.0
    %7178 = vmatprep.subr.mxu0 0.0
    %7179 = vmatpush1.msra.mxu0 0.0
    %7180 = vmatprep.subr.mxu0 0.0
    %7181 = vmatpush1.msra.mxu0 0.0
    %7182 = vmatprep.subr.mxu0 0.0
    %7183 = vmatpush1.msra.mxu0 0.0
    %7184 = vmatprep.subr.mxu0 0.0
    %7185 = vmatpush1.msra.mxu0 0.0
    %7186 = vmatprep.subr.mxu0 0.0
    %7187 = vmatpush1.msra.mxu0 0.0
    %7188 = vmatprep.subr.mxu0 0.0
    %7189 = vmatpush1.msra.mxu0 0.0
    %7190 = vmatprep.subr.mxu0 0.0
    %7191 = vmatpush1.msra.mxu0 0.0
    %7192 = vmatprep.mubr.f32.mxu0 0.0
    %7193 = vmatmul.mubr.f32.gmra.mrb[0].mxu0 %v7126
    %v7194 = vpop.f32.mrb[0].mxu0
    %v7195 = vadd.f32 %v7123, %v7194
    %v7196 = vpop.f32.mrb[0].mxu0
    %v7197 = vadd.f32 %v7123, %v7196
    %7198 = vdwg.mxu0
    %7199 = vmatprep.subr.mxu0 %v7055
    %7200 = vmatpush1.msra.mxu0 %v7054
    %7201 = vmatprep.subr.mxu0 %v7063
    %7202 = vmatpush1.msra.mxu0 %v7062
    %7203 = vmatprep.subr.mxu0 %v7071
    %7204 = vmatpush1.msra.mxu0 %v7070
    %7205 = vmatprep.subr.mxu0 %v7079
    %7206 = vmatpush1.msra.mxu0 %v7078
    %7207 = vmatprep.subr.mxu0 %v7087
    %7208 = vmatpush1.msra.mxu0 %v7086
    %7209 = vmatprep.subr.mxu0 %v7095
    %7210 = vmatpush1.msra.mxu0 %v7094
    %7211 = vmatprep.subr.mxu0 %v7103
    %7212 = vmatpush1.msra.mxu0 %v7102
    %7213 = vmatprep.subr.mxu0 %v7111
    %7214 = vmatpush1.msra.mxu0 %v7110
    %7215 = vmatprep.subr.mxu0 0.0
    %7216 = vmatpush1.msra.mxu0 0.0
    %7217 = vmatprep.subr.mxu0 0.0
    %7218 = vmatpush1.msra.mxu0 0.0
    %7219 = vmatprep.subr.mxu0 0.0
    %7220 = vmatpush1.msra.mxu0 0.0
    %7221 = vmatprep.subr.mxu0 0.0
    %7222 = vmatpush1.msra.mxu0 0.0
    %7223 = vmatprep.subr.mxu0 0.0
    %7224 = vmatpush1.msra.mxu0 0.0
    %7225 = vmatprep.subr.mxu0 0.0
    %7226 = vmatpush1.msra.mxu0 0.0
    %7227 = vmatprep.subr.mxu0 0.0
    %7228 = vmatpush1.msra.mxu0 0.0
    %7229 = vmatprep.subr.mxu0 0.0
    %7230 = vmatpush1.msra.mxu0 0.0
    %7231 = vmatprep.subr.mxu0 0.0
    %7232 = vmatpush1.msra.mxu0 0.0
    %7233 = vmatprep.subr.mxu0 0.0
    %7234 = vmatpush1.msra.mxu0 0.0
    %7235 = vmatprep.subr.mxu0 0.0
    %7236 = vmatpush1.msra.mxu0 0.0
    %7237 = vmatprep.subr.mxu0 0.0
    %7238 = vmatpush1.msra.mxu0 0.0
    %7239 = vmatprep.subr.mxu0 0.0
    %7240 = vmatpush1.msra.mxu0 0.0
    %7241 = vmatprep.subr.mxu0 0.0
    %7242 = vmatpush1.msra.mxu0 0.0
    %7243 = vmatprep.subr.mxu0 0.0
    %7244 = vmatpush1.msra.mxu0 0.0
    %7245 = vmatprep.subr.mxu0 0.0
    %7246 = vmatpush1.msra.mxu0 0.0
    %7247 = vmatprep.subr.mxu0 0.0
    %7248 = vmatpush1.msra.mxu0 0.0
    %7249 = vmatprep.subr.mxu0 0.0
    %7250 = vmatpush1.msra.mxu0 0.0
    %7251 = vmatprep.subr.mxu0 0.0
    %7252 = vmatpush1.msra.mxu0 0.0
    %7253 = vmatprep.subr.mxu0 0.0
    %7254 = vmatpush1.msra.mxu0 0.0
    %7255 = vmatprep.subr.mxu0 0.0
    %7256 = vmatpush1.msra.mxu0 0.0
    %7257 = vmatprep.subr.mxu0 0.0
    %7258 = vmatpush1.msra.mxu0 0.0
    %7259 = vmatprep.subr.mxu0 0.0
    %7260 = vmatpush1.msra.mxu0 0.0
    %7261 = vmatprep.subr.mxu0 0.0
    %7262 = vmatpush1.msra.mxu0 0.0
    %7263 = vmatprep.mubr.f32.mxu0 0.0
    %7264 = vmatmul.mubr.f32.gmra.mrb[0].mxu0 %v7126
    %v7265 = vpop.f32.mrb[0].mxu0
    %v7266 = vadd.f32 %v7123, %v7265
    %v7267 = vpop.f32.mrb[0].mxu0
    %v7268 = vadd.f32 %v7123, %v7267
    %7269 = vdwg.mxu0
    %7270 = vmatprep.subr.mxu0 %v7057
    %7271 = vmatpush1.msra.mxu0 %v7056
    %7272 = vmatprep.subr.mxu0 %v7065
    %7273 = vmatpush1.msra.mxu0 %v7064
    %7274 = vmatprep.subr.mxu0 %v7073
    %7275 = vmatpush1.msra.mxu0 %v7072
    %7276 = vmatprep.subr.mxu0 %v7081
    %7277 = vmatpush1.msra.mxu0 %v7080
    %7278 = vmatprep.subr.mxu0 %v7089
    %7279 = vmatpush1.msra.mxu0 %v7088
    %7280 = vmatprep.subr.mxu0 %v7097
    %7281 = vmatpush1.msra.mxu0 %v7096
    %7282 = vmatprep.subr.mxu0 %v7105
    %7283 = vmatpush1.msra.mxu0 %v7104
    %7284 = vmatprep.subr.mxu0 %v7113
    %7285 = vmatpush1.msra.mxu0 %v7112
    %7286 = vmatprep.subr.mxu0 0.0
    %7287 = vmatpush1.msra.mxu0 0.0
    %7288 = vmatprep.subr.mxu0 0.0
    %7289 = vmatpush1.msra.mxu0 0.0
    %7290 = vmatprep.subr.mxu0 0.0
    %7291 = vmatpush1.msra.mxu0 0.0
    %7292 = vmatprep.subr.mxu0 0.0
    %7293 = vmatpush1.msra.mxu0 0.0
    %7294 = vmatprep.subr.mxu0 0.0
    %7295 = vmatpush1.msra.mxu0 0.0
    %7296 = vmatprep.subr.mxu0 0.0
    %7297 = vmatpush1.msra.mxu0 0.0
    %7298 = vmatprep.subr.mxu0 0.0
    %7299 = vmatpush1.msra.mxu0 0.0
    %7300 = vmatprep.subr.mxu0 0.0
    %7301 = vmatpush1.msra.mxu0 0.0
    %7302 = vmatprep.subr.mxu0 0.0
    %7303 = vmatpush1.msra.mxu0 0.0
    %7304 = vmatprep.subr.mxu0 0.0
    %7305 = vmatpush1.msra.mxu0 0.0
    %7306 = vmatprep.subr.mxu0 0.0
    %7307 = vmatpush1.msra.mxu0 0.0
    %7308 = vmatprep.subr.mxu0 0.0
    %7309 = vmatpush1.msra.mxu0 0.0
    %7310 = vmatprep.subr.mxu0 0.0
    %7311 = vmatpush1.msra.mxu0 0.0
    %7312 = vmatprep.subr.mxu0 0.0
    %7313 = vmatpush1.msra.mxu0 0.0
    %7314 = vmatprep.subr.mxu0 0.0
    %7315 = vmatpush1.msra.mxu0 0.0
    %7316 = vmatprep.subr.mxu0 0.0
    %7317 = vmatpush1.msra.mxu0 0.0
    %7318 = vmatprep.subr.mxu0 0.0
    %7319 = vmatpush1.msra.mxu0 0.0
    %7320 = vmatprep.subr.mxu0 0.0
    %7321 = vmatpush1.msra.mxu0 0.0
    %7322 = vmatprep.subr.mxu0 0.0
    %7323 = vmatpush1.msra.mxu0 0.0
    %7324 = vmatprep.subr.mxu0 0.0
    %7325 = vmatpush1.msra.mxu0 0.0
    %7326 = vmatprep.subr.mxu0 0.0
    %7327 = vmatpush1.msra.mxu0 0.0
    %7328 = vmatprep.subr.mxu0 0.0
    %7329 = vmatpush1.msra.mxu0 0.0
    %7330 = vmatprep.subr.mxu0 0.0
    %7331 = vmatpush1.msra.mxu0 0.0
    %7332 = vmatprep.subr.mxu0 0.0
    %7333 = vmatpush1.msra.mxu0 0.0
    %7334 = vmatprep.mubr.f32.mxu0 0.0
    %7335 = vmatmul.mubr.f32.gmra.mrb[0].mxu0 %v7126
    %v7336 = vpop.f32.mrb[0].mxu0
    %v7337 = vadd.f32 %v7123, %v7336
    %v7338 = vpop.f32.mrb[0].mxu0
    %v7339 = vadd.f32 %v7123, %v7338
    %7340 = vdwg.mxu0
    %7341 = vmatprep.subr.mxu0 %v7059
    %7342 = vmatpush1.msra.mxu0 %v7058
    %7343 = vmatprep.subr.mxu0 %v7067
    %7344 = vmatpush1.msra.mxu0 %v7066
    %7345 = vmatprep.subr.mxu0 %v7075
    %7346 = vmatpush1.msra.mxu0 %v7074
    %7347 = vmatprep.subr.mxu0 %v7083
    %7348 = vmatpush1.msra.mxu0 %v7082
    %7349 = vmatprep.subr.mxu0 %v7091
    %7350 = vmatpush1.msra.mxu0 %v7090
    %7351 = vmatprep.subr.mxu0 %v7099
    %7352 = vmatpush1.msra.mxu0 %v7098
    %7353 = vmatprep.subr.mxu0 %v7107
    %7354 = vmatpush1.msra.mxu0 %v7106
    %7355 = vmatprep.subr.mxu0 %v7115
    %7356 = vmatpush1.msra.mxu0 %v7114
    %7357 = vmatprep.subr.mxu0 0.0
    %7358 = vmatpush1.msra.mxu0 0.0
    %7359 = vmatprep.subr.mxu0 0.0
    %7360 = vmatpush1.msra.mxu0 0.0
    %7361 = vmatprep.subr.mxu0 0.0
    %7362 = vmatpush1.msra.mxu0 0.0
    %7363 = vmatprep.subr.mxu0 0.0
    %7364 = vmatpush1.msra.mxu0 0.0
    %7365 = vmatprep.subr.mxu0 0.0
    %7366 = vmatpush1.msra.mxu0 0.0
    %7367 = vmatprep.subr.mxu0 0.0
    %7368 = vmatpush1.msra.mxu0 0.0
    %7369 = vmatprep.subr.mxu0 0.0
    %7370 = vmatpush1.msra.mxu0 0.0
    %7371 = vmatprep.subr.mxu0 0.0
    %7372 = vmatpush1.msra.mxu0 0.0
    %7373 = vmatprep.subr.mxu0 0.0
    %7374 = vmatpush1.msra.mxu0 0.0
    %7375 = vmatprep.subr.mxu0 0.0
    %7376 = vmatpush1.msra.mxu0 0.0
    %7377 = vmatprep.subr.mxu0 0.0
    %7378 = vmatpush1.msra.mxu0 0.0
    %7379 = vmatprep.subr.mxu0 0.0
    %7380 = vmatpush1.msra.mxu0 0.0
    %7381 = vmatprep.subr.mxu0 0.0
    %7382 = vmatpush1.msra.mxu0 0.0
    %7383 = vmatprep.subr.mxu0 0.0
    %7384 = vmatpush1.msra.mxu0 0.0
    %7385 = vmatprep.subr.mxu0 0.0
    %7386 = vmatpush1.msra.mxu0 0.0
    %7387 = vmatprep.subr.mxu0 0.0
    %7388 = vmatpush1.msra.mxu0 0.0
    %7389 = vmatprep.subr.mxu0 0.0
    %7390 = vmatpush1.msra.mxu0 0.0
    %7391 = vmatprep.subr.mxu0 0.0
    %7392 = vmatpush1.msra.mxu0 0.0
    %7393 = vmatprep.subr.mxu0 0.0
    %7394 = vmatpush1.msra.mxu0 0.0
    %7395 = vmatprep.subr.mxu0 0.0
    %7396 = vmatpush1.msra.mxu0 0.0
    %7397 = vmatprep.subr.mxu0 0.0
    %7398 = vmatpush1.msra.mxu0 0.0
    %7399 = vmatprep.subr.mxu0 0.0
    %7400 = vmatpush1.msra.mxu0 0.0
    %7401 = vmatprep.subr.mxu0 0.0
    %7402 = vmatpush1.msra.mxu0 0.0
    %7403 = vmatprep.subr.mxu0 0.0
    %7404 = vmatpush1.msra.mxu0 0.0
    %7405 = vmatprep.mubr.f32.mxu0 0.0
    %7406 = vmatmul.mubr.f32.gmra.mrb[0].mxu0 %v7126
    %v7407 = vpop.f32.mrb[0].mxu0
    %v7408 = vadd.f32 %v7123, %v7407
    %v7409 = vpop.f32.mrb[0].mxu0
    %v7410 = vadd.f32 %v7123, %v7409
    %7411 = vdwg.mxu0
    %v7412 = vtanh.pop %v7195
    %v7413 = vtanh.pop %v7197
    %v7414 = vtanh.pop %v7266
    %v7415 = vtanh.pop %v7268
    %v7416 = vtanh.pop %v7337
    %v7417 = vtanh.pop %v7339
    %v7418 = vtanh.pop %v7408
    %v7419 = vtanh.pop %v7410
    %v7428 = vcombine.low %v7195, %v7197
    %v7429 = vcombine.low %v7266, %v7268
    %v7430 = vcombine.low %v7337, %v7339
    %v7431 = vcombine.low %v7408, %v7410
    %v7433 = vunpack.c.l.s4 1966171168
    %v7434 = vunpack.c.0.s8 %v7433
    %v7435 = vlaneseq
    %v7436 = vshrl.u32 %v7435, 7
    %v7437 = vsub.s32 %v7434, %v7436
    %v7438 = vrot.slane %v7428, %v7437
    %v7440 = vunpack.c.l.s4 1966171168
    %v7441 = vunpack.c.0.s8 %v7440
    %v7442 = vlaneseq
    %v7443 = vshrl.u32 %v7442, 7
    %v7444 = vsub.s32 %v7441, %v7443
    %v7445 = vrot.slane %v7429, %v7444
    %v7447 = vunpack.c.l.s4 1966171168
    %v7448 = vunpack.c.0.s8 %v7447
    %v7449 = vlaneseq
    %v7450 = vshrl.u32 %v7449, 7
    %v7451 = vsub.s32 %v7448, %v7450
    %v7452 = vrot.slane %v7430, %v7451
    %v7454 = vunpack.c.l.s4 1966171168
    %v7455 = vunpack.c.0.s8 %v7454
    %v7456 = vlaneseq
    %v7457 = vshrl.u32 %v7456, 7
    %v7458 = vsub.s32 %v7455, %v7457
    %v7459 = vrot.slane %v7431, %v7458
    %v7460 = vcombine.high %v7438, %v7445
    %v7461 = vcombine.high %v7452, %v7459
    %v7463 = vunpack.c.l.s4 1966171168
    %v7464 = vunpack.c.0.s8 %v7463
    %v7465 = vlaneseq
    %v7466 = vshrl.u32 %v7465, 7
    %v7467 = vsub.s32 %v7464, %v7466
    %v7468 = vrot.slane %v7460, %v7467
    %v7470 = vunpack.c.l.s4 1966171168
    %v7471 = vunpack.c.0.s8 %v7470
    %v7472 = vlaneseq
    %v7473 = vshrl.u32 %v7472, 7
    %v7474 = vsub.s32 %v7471, %v7473
    %v7475 = vrot.slane %v7461, %v7474
    %v7476 = vcombine.low %v7468, %v7475
    %v7478 = vsub.f32 %v4539, %v7476
    %v7479 = vsub.f32 0.0, %v7412
    %v7480 = vsub.f32 0.0, %v7413
    %v7481 = vsub.f32 0.0, %v7414
    %v7482 = vsub.f32 0.0, %v7415
    %v7483 = vsub.f32 0.0, %v7416
    %v7484 = vsub.f32 0.0, %v7417
    %v7485 = vsub.f32 0.0, %v7418
    %v7486 = vsub.f32 0.0, %v7419
    %v7487 = vmul.f32 %v7479, 1.442695
    %v7488 = vpow.pop %v7487
    %v7489 = vmul.f32 %v7480, 1.442695
    %v7490 = vpow.pop %v7489
    %v7491 = vmul.f32 %v7481, 1.442695
    %v7492 = vpow.pop %v7491
    %v7493 = vmul.f32 %v7482, 1.442695
    %v7494 = vpow.pop %v7493
    %v7495 = vmul.f32 %v7483, 1.442695
    %v7496 = vpow.pop %v7495
    %v7497 = vmul.f32 %v7484, 1.442695
    %v7498 = vpow.pop %v7497
    %v7499 = vmul.f32 %v7485, 1.442695
    %v7500 = vpow.pop %v7499
    %v7501 = vmul.f32 %v7486, 1.442695
    %v7502 = vpow.pop %v7501
    %v7511 = vcombine.low %v7488, %v7490
    %v7512 = vcombine.low %v7492, %v7494
    %v7513 = vcombine.low %v7496, %v7498
    %v7514 = vcombine.low %v7500, %v7502
    %v7516 = vunpack.c.l.s4 1966171168
    %v7517 = vunpack.c.0.s8 %v7516
    %v7518 = vlaneseq
    %v7519 = vshrl.u32 %v7518, 7
    %v7520 = vsub.s32 %v7517, %v7519
    %v7521 = vrot.slane %v7511, %v7520
    %v7523 = vunpack.c.l.s4 1966171168
    %v7524 = vunpack.c.0.s8 %v7523
    %v7525 = vlaneseq
    %v7526 = vshrl.u32 %v7525, 7
    %v7527 = vsub.s32 %v7524, %v7526
    %v7528 = vrot.slane %v7512, %v7527
    %v7530 = vunpack.c.l.s4 1966171168
    %v7531 = vunpack.c.0.s8 %v7530
    %v7532 = vlaneseq
    %v7533 = vshrl.u32 %v7532, 7
    %v7534 = vsub.s32 %v7531, %v7533
    %v7535 = vrot.slane %v7513, %v7534
    %v7537 = vunpack.c.l.s4 1966171168
    %v7538 = vunpack.c.0.s8 %v7537
    %v7539 = vlaneseq
    %v7540 = vshrl.u32 %v7539, 7
    %v7541 = vsub.s32 %v7538, %v7540
    %v7542 = vrot.slane %v7514, %v7541
    %v7543 = vcombine.low %v7521, %v7528
    %v7544 = vcombine.low %v7535, %v7542
    %v7546 = vunpack.c.l.s4 1966171168
    %v7547 = vunpack.c.0.s8 %v7546
    %v7548 = vlaneseq
    %v7549 = vshrl.u32 %v7548, 7
    %v7550 = vsub.s32 %v7547, %v7549
    %v7551 = vrot.slane %v7543, %v7550
    %v7553 = vunpack.c.l.s4 1966171168
    %v7554 = vunpack.c.0.s8 %v7553
    %v7555 = vlaneseq
    %v7556 = vshrl.u32 %v7555, 7
    %v7557 = vsub.s32 %v7554, %v7556
    %v7558 = vrot.slane %v7544, %v7557
    %v7559 = vcombine.low %v7551, %v7558
    %v7561 = vmul.f32 %v7478, %v7559
    %v7562 = vsub.f32 %v4540, %v7412
    %v7563 = vsub.f32 %v4541, %v7413
    %v7564 = vsub.f32 %v4542, %v7414
    %v7565 = vsub.f32 %v4543, %v7415
    %v7566 = vsub.f32 %v4544, %v7416
    %v7567 = vsub.f32 %v4545, %v7417
    %v7568 = vsub.f32 %v4546, %v7418
    %v7569 = vsub.f32 %v4547, %v7419
    %v7570 = vld [vmem:[%s0] sm:$0xff]
    %v7571 = vld [vmem:[%s0 + $0x8] sm:$0xff]
    %v7572 = vld [vmem:[%s0 + $0x10] sm:$0xff]
    %v7573 = vld [vmem:[%s0 + $0x18] sm:$0xff]
    %v7574 = vld [vmem:[%s0 + $0x20] sm:$0xff]
    %v7575 = vld [vmem:[%s0 + $0x28] sm:$0xff]
    %v7576 = vld [vmem:[%s0 + $0x30] sm:$0xff]
    %v7577 = vld [vmem:[%s0 + $0x38] sm:$0xff]
    %7579 = vset.pattern.permute.xlu0 0
    %7580 = vperm.xlu0 %7579, %v7570
    %v7581 = vpop.permute.xlu0 %7580
    %7584 = vset.pattern.permute.xlu0 0
    %7585 = vperm.xlu0 %7584, %v7571
    %v7586 = vpop.permute.xlu0 %7585
    %7589 = vset.pattern.permute.xlu0 0
    %7590 = vperm.xlu0 %7589, %v7572
    %v7591 = vpop.permute.xlu0 %7590
    %7594 = vset.pattern.permute.xlu0 0
    %7595 = vperm.xlu0 %7594, %v7573
    %v7596 = vpop.permute.xlu0 %7595
    %7599 = vset.pattern.permute.xlu0 0
    %7600 = vperm.xlu0 %7599, %v7574
    %v7601 = vpop.permute.xlu0 %7600
    %7604 = vset.pattern.permute.xlu0 0
    %7605 = vperm.xlu0 %7604, %v7575
    %v7606 = vpop.permute.xlu0 %7605
    %7609 = vset.pattern.permute.xlu0 0
    %7610 = vperm.xlu0 %7609, %v7576
    %v7611 = vpop.permute.xlu0 %7610
    %7614 = vset.pattern.permute.xlu0 0
    %7615 = vperm.xlu0 %7614, %v7577
    %v7616 = vpop.permute.xlu0 %7615
    %v7619 = vlaneseq
    %v7620 = vshrl.u32 %v7619, 7
    %v7621 = vsub.s32 0, %v7620
    %v7622 = vrot.slane %v7561, %v7621
    %v7623 = vlaneseq
    %v7624 = vshrl.u32 %v7623, 7
    %v7625 = vsub.s32 1, %v7624
    %v7626 = vrot.slane %v7561, %v7625
    %v7627 = vlaneseq
    %v7628 = vshrl.u32 %v7627, 7
    %v7629 = vsub.s32 2, %v7628
    %v7630 = vrot.slane %v7561, %v7629
    %v7631 = vlaneseq
    %v7632 = vshrl.u32 %v7631, 7
    %v7633 = vsub.s32 3, %v7632
    %v7634 = vrot.slane %v7561, %v7633
    %v7635 = vlaneseq
    %v7636 = vshrl.u32 %v7635, 7
    %v7637 = vsub.s32 4, %v7636
    %v7638 = vrot.slane %v7561, %v7637
    %v7639 = vlaneseq
    %v7640 = vshrl.u32 %v7639, 7
    %v7641 = vsub.s32 5, %v7640
    %v7642 = vrot.slane %v7561, %v7641
    %v7643 = vlaneseq
    %v7644 = vshrl.u32 %v7643, 7
    %v7645 = vsub.s32 6, %v7644
    %v7646 = vrot.slane %v7561, %v7645
    %v7647 = vlaneseq
    %v7648 = vshrl.u32 %v7647, 7
    %v7649 = vsub.s32 7, %v7648
    %v7650 = vrot.slane %v7561, %v7649
    %v7659 = vmul.f32 %v7581, %v7622
    %v7660 = vmul.f32 %v7581, %v7626
    %v7661 = vmul.f32 %v7581, %v7630
    %v7662 = vmul.f32 %v7581, %v7634
    %v7663 = vmul.f32 %v7581, %v7638
    %v7664 = vmul.f32 %v7581, %v7642
    %v7665 = vmul.f32 %v7581, %v7646
    %v7666 = vmul.f32 %v7581, %v7650
    %v7667 = vmul.f32 %v7586, %v7622
    %v7668 = vmul.f32 %v7586, %v7626
    %v7669 = vmul.f32 %v7586, %v7630
    %v7670 = vmul.f32 %v7586, %v7634
    %v7671 = vmul.f32 %v7586, %v7638
    %v7672 = vmul.f32 %v7586, %v7642
    %v7673 = vmul.f32 %v7586, %v7646
    %v7674 = vmul.f32 %v7586, %v7650
    %v7675 = vmul.f32 %v7591, %v7622
    %v7676 = vmul.f32 %v7591, %v7626
    %v7677 = vmul.f32 %v7591, %v7630
    %v7678 = vmul.f32 %v7591, %v7634
    %v7679 = vmul.f32 %v7591, %v7638
    %v7680 = vmul.f32 %v7591, %v7642
    %v7681 = vmul.f32 %v7591, %v7646
    %v7682 = vmul.f32 %v7591, %v7650
    %v7683 = vmul.f32 %v7596, %v7622
    %v7684 = vmul.f32 %v7596, %v7626
    %v7685 = vmul.f32 %v7596, %v7630
    %v7686 = vmul.f32 %v7596, %v7634
    %v7687 = vmul.f32 %v7596, %v7638
    %v7688 = vmul.f32 %v7596, %v7642
    %v7689 = vmul.f32 %v7596, %v7646
    %v7690 = vmul.f32 %v7596, %v7650
    %v7691 = vmul.f32 %v7601, %v7622
    %v7692 = vmul.f32 %v7601, %v7626
    %v7693 = vmul.f32 %v7601, %v7630
    %v7694 = vmul.f32 %v7601, %v7634
    %v7695 = vmul.f32 %v7601, %v7638
    %v7696 = vmul.f32 %v7601, %v7642
    %v7697 = vmul.f32 %v7601, %v7646
    %v7698 = vmul.f32 %v7601, %v7650
    %v7699 = vmul.f32 %v7606, %v7622
    %v7700 = vmul.f32 %v7606, %v7626
    %v7701 = vmul.f32 %v7606, %v7630
    %v7702 = vmul.f32 %v7606, %v7634
    %v7703 = vmul.f32 %v7606, %v7638
    %v7704 = vmul.f32 %v7606, %v7642
    %v7705 = vmul.f32 %v7606, %v7646
    %v7706 = vmul.f32 %v7606, %v7650
    %v7707 = vmul.f32 %v7611, %v7622
    %v7708 = vmul.f32 %v7611, %v7626
    %v7709 = vmul.f32 %v7611, %v7630
    %v7710 = vmul.f32 %v7611, %v7634
    %v7711 = vmul.f32 %v7611, %v7638
    %v7712 = vmul.f32 %v7611, %v7642
    %v7713 = vmul.f32 %v7611, %v7646
    %v7714 = vmul.f32 %v7611, %v7650
    %v7715 = vmul.f32 %v7616, %v7622
    %v7716 = vmul.f32 %v7616, %v7626
    %v7717 = vmul.f32 %v7616, %v7630
    %v7718 = vmul.f32 %v7616, %v7634
    %v7719 = vmul.f32 %v7616, %v7638
    %v7720 = vmul.f32 %v7616, %v7642
    %v7721 = vmul.f32 %v7616, %v7646
    %v7722 = vmul.f32 %v7616, %v7650
    %v7723 = vld [vmem:[%s1] sm:$0xff]
    %v7724 = vld [vmem:[%s1 + $0x8] sm:$0xff]
    %v7725 = vld [vmem:[%s1 + $0x10] sm:$0xff]
    %v7726 = vld [vmem:[%s1 + $0x18] sm:$0xff]
    %v7727 = vld [vmem:[%s1 + $0x20] sm:$0xff]
    %v7728 = vld [vmem:[%s1 + $0x28] sm:$0xff]
    %v7729 = vld [vmem:[%s1 + $0x30] sm:$0xff]
    %v7730 = vld [vmem:[%s1 + $0x38] sm:$0xff]
    %7732 = vset.pattern.permute.xlu0 0
    %7733 = vperm.xlu0 %7732, %v7723
    %v7734 = vpop.permute.xlu0 %7733
    %7737 = vset.pattern.permute.xlu0 0
    %7738 = vperm.xlu0 %7737, %v7724
    %v7739 = vpop.permute.xlu0 %7738
    %7742 = vset.pattern.permute.xlu0 0
    %7743 = vperm.xlu0 %7742, %v7725
    %v7744 = vpop.permute.xlu0 %7743
    %7747 = vset.pattern.permute.xlu0 0
    %7748 = vperm.xlu0 %7747, %v7726
    %v7749 = vpop.permute.xlu0 %7748
    %7752 = vset.pattern.permute.xlu0 0
    %7753 = vperm.xlu0 %7752, %v7727
    %v7754 = vpop.permute.xlu0 %7753
    %7757 = vset.pattern.permute.xlu0 0
    %7758 = vperm.xlu0 %7757, %v7728
    %v7759 = vpop.permute.xlu0 %7758
    %7762 = vset.pattern.permute.xlu0 0
    %7763 = vperm.xlu0 %7762, %v7729
    %v7764 = vpop.permute.xlu0 %7763
    %7767 = vset.pattern.permute.xlu0 0
    %7768 = vperm.xlu0 %7767, %v7730
    %v7769 = vpop.permute.xlu0 %7768
    %v7771 = vadd.f32 %v7659, %v7734
    %v7772 = vadd.f32 %v7660, %v7734
    %v7773 = vadd.f32 %v7661, %v7734
    %v7774 = vadd.f32 %v7662, %v7734
    %v7775 = vadd.f32 %v7663, %v7734
    %v7776 = vadd.f32 %v7664, %v7734
    %v7777 = vadd.f32 %v7665, %v7734
    %v7778 = vadd.f32 %v7666, %v7734
    %v7779 = vadd.f32 %v7667, %v7739
    %v7780 = vadd.f32 %v7668, %v7739
    %v7781 = vadd.f32 %v7669, %v7739
    %v7782 = vadd.f32 %v7670, %v7739
    %v7783 = vadd.f32 %v7671, %v7739
    %v7784 = vadd.f32 %v7672, %v7739
    %v7785 = vadd.f32 %v7673, %v7739
    %v7786 = vadd.f32 %v7674, %v7739
    %v7787 = vadd.f32 %v7675, %v7744
    %v7788 = vadd.f32 %v7676, %v7744
    %v7789 = vadd.f32 %v7677, %v7744
    %v7790 = vadd.f32 %v7678, %v7744
    %v7791 = vadd.f32 %v7679, %v7744
    %v7792 = vadd.f32 %v7680, %v7744
    %v7793 = vadd.f32 %v7681, %v7744
    %v7794 = vadd.f32 %v7682, %v7744
    %v7795 = vadd.f32 %v7683, %v7749
    %v7796 = vadd.f32 %v7684, %v7749
    %v7797 = vadd.f32 %v7685, %v7749
    %v7798 = vadd.f32 %v7686, %v7749
    %v7799 = vadd.f32 %v7687, %v7749
    %v7800 = vadd.f32 %v7688, %v7749
    %v7801 = vadd.f32 %v7689, %v7749
    %v7802 = vadd.f32 %v7690, %v7749
    %v7803 = vadd.f32 %v7691, %v7754
    %v7804 = vadd.f32 %v7692, %v7754
    %v7805 = vadd.f32 %v7693, %v7754
    %v7806 = vadd.f32 %v7694, %v7754
    %v7807 = vadd.f32 %v7695, %v7754
    %v7808 = vadd.f32 %v7696, %v7754
    %v7809 = vadd.f32 %v7697, %v7754
    %v7810 = vadd.f32 %v7698, %v7754
    %v7811 = vadd.f32 %v7699, %v7759
    %v7812 = vadd.f32 %v7700, %v7759
    %v7813 = vadd.f32 %v7701, %v7759
    %v7814 = vadd.f32 %v7702, %v7759
    %v7815 = vadd.f32 %v7703, %v7759
    %v7816 = vadd.f32 %v7704, %v7759
    %v7817 = vadd.f32 %v7705, %v7759
    %v7818 = vadd.f32 %v7706, %v7759
    %v7819 = vadd.f32 %v7707, %v7764
    %v7820 = vadd.f32 %v7708, %v7764
    %v7821 = vadd.f32 %v7709, %v7764
    %v7822 = vadd.f32 %v7710, %v7764
    %v7823 = vadd.f32 %v7711, %v7764
    %v7824 = vadd.f32 %v7712, %v7764
    %v7825 = vadd.f32 %v7713, %v7764
    %v7826 = vadd.f32 %v7714, %v7764
    %v7827 = vadd.f32 %v7715, %v7769
    %v7828 = vadd.f32 %v7716, %v7769
    %v7829 = vadd.f32 %v7717, %v7769
    %v7830 = vadd.f32 %v7718, %v7769
    %v7831 = vadd.f32 %v7719, %v7769
    %v7832 = vadd.f32 %v7720, %v7769
    %v7833 = vadd.f32 %v7721, %v7769
    %v7834 = vadd.f32 %v7722, %v7769
    %v7835 = vmul.f32 %v7771, 0.01
    %v7836 = vmul.f32 %v7772, 0.01
    %v7837 = vmul.f32 %v7773, 0.01
    %v7838 = vmul.f32 %v7774, 0.01
    %v7839 = vmul.f32 %v7775, 0.01
    %v7840 = vmul.f32 %v7776, 0.01
    %v7841 = vmul.f32 %v7777, 0.01
    %v7842 = vmul.f32 %v7778, 0.01
    %v7843 = vmul.f32 %v7779, 0.01
    %v7844 = vmul.f32 %v7780, 0.01
    %v7845 = vmul.f32 %v7781, 0.01
    %v7846 = vmul.f32 %v7782, 0.01
    %v7847 = vmul.f32 %v7783, 0.01
    %v7848 = vmul.f32 %v7784, 0.01
    %v7849 = vmul.f32 %v7785, 0.01
    %v7850 = vmul.f32 %v7786, 0.01
    %v7851 = vmul.f32 %v7787, 0.01
    %v7852 = vmul.f32 %v7788, 0.01
    %v7853 = vmul.f32 %v7789, 0.01
    %v7854 = vmul.f32 %v7790, 0.01
    %v7855 = vmul.f32 %v7791, 0.01
    %v7856 = vmul.f32 %v7792, 0.01
    %v7857 = vmul.f32 %v7793, 0.01
    %v7858 = vmul.f32 %v7794, 0.01
    %v7859 = vmul.f32 %v7795, 0.01
    %v7860 = vmul.f32 %v7796, 0.01
    %v7861 = vmul.f32 %v7797, 0.01
    %v7862 = vmul.f32 %v7798, 0.01
    %v7863 = vmul.f32 %v7799, 0.01
    %v7864 = vmul.f32 %v7800, 0.01
    %v7865 = vmul.f32 %v7801, 0.01
    %v7866 = vmul.f32 %v7802, 0.01
    %v7867 = vmul.f32 %v7803, 0.01
    %v7868 = vmul.f32 %v7804, 0.01
    %v7869 = vmul.f32 %v7805, 0.01
    %v7870 = vmul.f32 %v7806, 0.01
    %v7871 = vmul.f32 %v7807, 0.01
    %v7872 = vmul.f32 %v7808, 0.01
    %v7873 = vmul.f32 %v7809, 0.01
    %v7874 = vmul.f32 %v7810, 0.01
    %v7875 = vmul.f32 %v7811, 0.01
    %v7876 = vmul.f32 %v7812, 0.01
    %v7877 = vmul.f32 %v7813, 0.01
    %v7878 = vmul.f32 %v7814, 0.01
    %v7879 = vmul.f32 %v7815, 0.01
    %v7880 = vmul.f32 %v7816, 0.01
    %v7881 = vmul.f32 %v7817, 0.01
    %v7882 = vmul.f32 %v7818, 0.01
    %v7883 = vmul.f32 %v7819, 0.01
    %v7884 = vmul.f32 %v7820, 0.01
    %v7885 = vmul.f32 %v7821, 0.01
    %v7886 = vmul.f32 %v7822, 0.01
    %v7887 = vmul.f32 %v7823, 0.01
    %v7888 = vmul.f32 %v7824, 0.01
    %v7889 = vmul.f32 %v7825, 0.01
    %v7890 = vmul.f32 %v7826, 0.01
    %v7891 = vmul.f32 %v7827, 0.01
    %v7892 = vmul.f32 %v7828, 0.01
    %v7893 = vmul.f32 %v7829, 0.01
    %v7894 = vmul.f32 %v7830, 0.01
    %v7895 = vmul.f32 %v7831, 0.01
    %v7896 = vmul.f32 %v7832, 0.01
    %v7897 = vmul.f32 %v7833, 0.01
    %v7898 = vmul.f32 %v7834, 0.01
    %v7899 = vmax.f32 %v7771, %v7835
    %v7900 = vmax.f32 %v7772, %v7836
    %v7901 = vmax.f32 %v7773, %v7837
    %v7902 = vmax.f32 %v7774, %v7838
    %v7903 = vmax.f32 %v7775, %v7839
    %v7904 = vmax.f32 %v7776, %v7840
    %v7905 = vmax.f32 %v7777, %v7841
    %v7906 = vmax.f32 %v7778, %v7842
    %v7907 = vmax.f32 %v7779, %v7843
    %v7908 = vmax.f32 %v7780, %v7844
    %v7909 = vmax.f32 %v7781, %v7845
    %v7910 = vmax.f32 %v7782, %v7846
    %v7911 = vmax.f32 %v7783, %v7847
    %v7912 = vmax.f32 %v7784, %v7848
    %v7913 = vmax.f32 %v7785, %v7849
    %v7914 = vmax.f32 %v7786, %v7850
    %v7915 = vmax.f32 %v7787, %v7851
    %v7916 = vmax.f32 %v7788, %v7852
    %v7917 = vmax.f32 %v7789, %v7853
    %v7918 = vmax.f32 %v7790, %v7854
    %v7919 = vmax.f32 %v7791, %v7855
    %v7920 = vmax.f32 %v7792, %v7856
    %v7921 = vmax.f32 %v7793, %v7857
    %v7922 = vmax.f32 %v7794, %v7858
    %v7923 = vmax.f32 %v7795, %v7859
    %v7924 = vmax.f32 %v7796, %v7860
    %v7925 = vmax.f32 %v7797, %v7861
    %v7926 = vmax.f32 %v7798, %v7862
    %v7927 = vmax.f32 %v7799, %v7863
    %v7928 = vmax.f32 %v7800, %v7864
    %v7929 = vmax.f32 %v7801, %v7865
    %v7930 = vmax.f32 %v7802, %v7866
    %v7931 = vmax.f32 %v7803, %v7867
    %v7932 = vmax.f32 %v7804, %v7868
    %v7933 = vmax.f32 %v7805, %v7869
    %v7934 = vmax.f32 %v7806, %v7870
    %v7935 = vmax.f32 %v7807, %v7871
    %v7936 = vmax.f32 %v7808, %v7872
    %v7937 = vmax.f32 %v7809, %v7873
    %v7938 = vmax.f32 %v7810, %v7874
    %v7939 = vmax.f32 %v7811, %v7875
    %v7940 = vmax.f32 %v7812, %v7876
    %v7941 = vmax.f32 %v7813, %v7877
    %v7942 = vmax.f32 %v7814, %v7878
    %v7943 = vmax.f32 %v7815, %v7879
    %v7944 = vmax.f32 %v7816, %v7880
    %v7945 = vmax.f32 %v7817, %v7881
    %v7946 = vmax.f32 %v7818, %v7882
    %v7947 = vmax.f32 %v7819, %v7883
    %v7948 = vmax.f32 %v7820, %v7884
    %v7949 = vmax.f32 %v7821, %v7885
    %v7950 = vmax.f32 %v7822, %v7886
    %v7951 = vmax.f32 %v7823, %v7887
    %v7952 = vmax.f32 %v7824, %v7888
    %v7953 = vmax.f32 %v7825, %v7889
    %v7954 = vmax.f32 %v7826, %v7890
    %v7955 = vmax.f32 %v7827, %v7891
    %v7956 = vmax.f32 %v7828, %v7892
    %v7957 = vmax.f32 %v7829, %v7893
    %v7958 = vmax.f32 %v7830, %v7894
    %v7959 = vmax.f32 %v7831, %v7895
    %v7960 = vmax.f32 %v7832, %v7896
    %v7961 = vmax.f32 %v7833, %v7897
    %v7962 = vmax.f32 %v7834, %v7898
    %v7963 = vld [vmem:[%s2] sm:$0xff]
    %v7964 = vld [vmem:[%s2 + $0x8] sm:$0xff]
    %v7965 = vld [vmem:[%s2 + $0x10] sm:$0xff]
    %v7966 = vld [vmem:[%s2 + $0x18] sm:$0xff]
    %v7967 = vld [vmem:[%s2 + $0x20] sm:$0xff]
    %v7968 = vld [vmem:[%s2 + $0x28] sm:$0xff]
    %v7969 = vld [vmem:[%s2 + $0x30] sm:$0xff]
    %v7970 = vld [vmem:[%s2 + $0x38] sm:$0xff]
    %v7971 = vld [vmem:[%s3] sm:$0xff]
    %v7972 = vld [vmem:[%s3 + $0x8] sm:$0xff]
    %v7973 = vld [vmem:[%s3 + $0x10] sm:$0xff]
    %v7974 = vld [vmem:[%s3 + $0x18] sm:$0xff]
    %v7975 = vld [vmem:[%s3 + $0x20] sm:$0xff]
    %v7976 = vld [vmem:[%s3 + $0x28] sm:$0xff]
    %v7977 = vld [vmem:[%s3 + $0x30] sm:$0xff]
    %v7978 = vld [vmem:[%s3 + $0x38] sm:$0xff]
    %7980 = vset.pattern.permute.xlu0 0
    %7981 = vperm.xlu0 %7980, %v7971
    %v7982 = vpop.permute.xlu0 %7981
    %7985 = vset.pattern.permute.xlu0 0
    %7986 = vperm.xlu0 %7985, %v7972
    %v7987 = vpop.permute.xlu0 %7986
    %7990 = vset.pattern.permute.xlu0 0
    %7991 = vperm.xlu0 %7990, %v7973
    %v7992 = vpop.permute.xlu0 %7991
    %7995 = vset.pattern.permute.xlu0 0
    %7996 = vperm.xlu0 %7995, %v7974
    %v7997 = vpop.permute.xlu0 %7996
    %8000 = vset.pattern.permute.xlu0 0
    %8001 = vperm.xlu0 %8000, %v7975
    %v8002 = vpop.permute.xlu0 %8001
    %8005 = vset.pattern.permute.xlu0 0
    %8006 = vperm.xlu0 %8005, %v7976
    %v8007 = vpop.permute.xlu0 %8006
    %8010 = vset.pattern.permute.xlu0 0
    %8011 = vperm.xlu0 %8010, %v7977
    %v8012 = vpop.permute.xlu0 %8011
    %8015 = vset.pattern.permute.xlu0 0
    %8016 = vperm.xlu0 %8015, %v7978
    %v8017 = vpop.permute.xlu0 %8016
    %v8020 = vsel %vm483, %v7963, 0
    %v8023 = vsel %vm483, %v7964, 0
    %v8026 = vsel %vm483, %v7965, 0
    %v8029 = vsel %vm483, %v7966, 0
    %v8032 = vsel %vm483, %v7967, 0
    %v8035 = vsel %vm483, %v7968, 0
    %v8038 = vsel %vm483, %v7969, 0
    %v8041 = vsel %vm483, %v7970, 0
    %8043 = vmatprep.subr.mxu0 %v7900
    %8044 = vmatpush1.msra.mxu0 %v7899
    %8045 = vmatprep.subr.mxu0 %v7908
    %8046 = vmatpush1.msra.mxu0 %v7907
    %8047 = vmatprep.subr.mxu0 %v7916
    %8048 = vmatpush1.msra.mxu0 %v7915
    %8049 = vmatprep.subr.mxu0 %v7924
    %8050 = vmatpush1.msra.mxu0 %v7923
    %8051 = vmatprep.subr.mxu0 %v7932
    %8052 = vmatpush1.msra.mxu0 %v7931
    %8053 = vmatprep.subr.mxu0 %v7940
    %8054 = vmatpush1.msra.mxu0 %v7939
    %8055 = vmatprep.subr.mxu0 %v7948
    %8056 = vmatpush1.msra.mxu0 %v7947
    %8057 = vmatprep.subr.mxu0 %v7956
    %8058 = vmatpush1.msra.mxu0 %v7955
    %8059 = vmatprep.subr.mxu0 0.0
    %8060 = vmatpush1.msra.mxu0 0.0
    %8061 = vmatprep.subr.mxu0 0.0
    %8062 = vmatpush1.msra.mxu0 0.0
    %8063 = vmatprep.subr.mxu0 0.0
    %8064 = vmatpush1.msra.mxu0 0.0
    %8065 = vmatprep.subr.mxu0 0.0
    %8066 = vmatpush1.msra.mxu0 0.0
    %8067 = vmatprep.subr.mxu0 0.0
    %8068 = vmatpush1.msra.mxu0 0.0
    %8069 = vmatprep.subr.mxu0 0.0
    %8070 = vmatpush1.msra.mxu0 0.0
    %8071 = vmatprep.subr.mxu0 0.0
    %8072 = vmatpush1.msra.mxu0 0.0
    %8073 = vmatprep.subr.mxu0 0.0
    %8074 = vmatpush1.msra.mxu0 0.0
    %8075 = vmatprep.subr.mxu0 0.0
    %8076 = vmatpush1.msra.mxu0 0.0
    %8077 = vmatprep.subr.mxu0 0.0
    %8078 = vmatpush1.msra.mxu0 0.0
    %8079 = vmatprep.subr.mxu0 0.0
    %8080 = vmatpush1.msra.mxu0 0.0
    %8081 = vmatprep.subr.mxu0 0.0
    %8082 = vmatpush1.msra.mxu0 0.0
    %8083 = vmatprep.subr.mxu0 0.0
    %8084 = vmatpush1.msra.mxu0 0.0
    %8085 = vmatprep.subr.mxu0 0.0
    %8086 = vmatpush1.msra.mxu0 0.0
    %8087 = vmatprep.subr.mxu0 0.0
    %8088 = vmatpush1.msra.mxu0 0.0
    %8089 = vmatprep.subr.mxu0 0.0
    %8090 = vmatpush1.msra.mxu0 0.0
    %8091 = vmatprep.subr.mxu0 0.0
    %8092 = vmatpush1.msra.mxu0 0.0
    %8093 = vmatprep.subr.mxu0 0.0
    %8094 = vmatpush1.msra.mxu0 0.0
    %8095 = vmatprep.subr.mxu0 0.0
    %8096 = vmatpush1.msra.mxu0 0.0
    %8097 = vmatprep.subr.mxu0 0.0
    %8098 = vmatpush1.msra.mxu0 0.0
    %8099 = vmatprep.subr.mxu0 0.0
    %8100 = vmatpush1.msra.mxu0 0.0
    %8101 = vmatprep.subr.mxu0 0.0
    %8102 = vmatpush1.msra.mxu0 0.0
    %8103 = vmatprep.subr.mxu0 0.0
    %8104 = vmatpush1.msra.mxu0 0.0
    %8105 = vmatprep.subr.mxu0 0.0
    %8106 = vmatpush1.msra.mxu0 0.0
    %8107 = vmatprep.mubr.f32.mxu0 0.0
    %8108 = vmatmul.mubr.f32.gmra.mrb[0].mxu0 %v8020
    %v8109 = vpop.f32.mrb[0].mxu0
    %v8110 = vadd.f32 %v7982, %v8109
    %v8111 = vpop.f32.mrb[0].mxu0
    %v8112 = vadd.f32 %v7982, %v8111
    %8113 = vmatprep.mubr.f32.mxu0 0.0
    %8114 = vmatmul.mubr.f32.gmra.mrb[0].mxu0 %v8023
    %v8115 = vpop.f32.mrb[0].mxu0
    %v8116 = vadd.f32 %v7987, %v8115
    %v8117 = vpop.f32.mrb[0].mxu0
    %v8118 = vadd.f32 %v7987, %v8117
    %8119 = vmatprep.mubr.f32.mxu0 0.0
    %8120 = vmatmul.mubr.f32.gmra.mrb[0].mxu0 %v8026
    %v8121 = vpop.f32.mrb[0].mxu0
    %v8122 = vadd.f32 %v7992, %v8121
    %v8123 = vpop.f32.mrb[0].mxu0
    %v8124 = vadd.f32 %v7992, %v8123
    %8125 = vmatprep.mubr.f32.mxu0 0.0
    %8126 = vmatmul.mubr.f32.gmra.mrb[0].mxu0 %v8029
    %v8127 = vpop.f32.mrb[0].mxu0
    %v8128 = vadd.f32 %v7997, %v8127
    %v8129 = vpop.f32.mrb[0].mxu0
    %v8130 = vadd.f32 %v7997, %v8129
    %8131 = vmatprep.mubr.f32.mxu0 0.0
    %8132 = vmatmul.mubr.f32.gmra.mrb[0].mxu0 %v8032
    %v8133 = vpop.f32.mrb[0].mxu0
    %v8134 = vadd.f32 %v8002, %v8133
    %v8135 = vpop.f32.mrb[0].mxu0
    %v8136 = vadd.f32 %v8002, %v8135
    %8137 = vmatprep.mubr.f32.mxu0 0.0
    %8138 = vmatmul.mubr.f32.gmra.mrb[0].mxu0 %v8035
    %v8139 = vpop.f32.mrb[0].mxu0
    %v8140 = vadd.f32 %v8007, %v8139
    %v8141 = vpop.f32.mrb[0].mxu0
    %v8142 = vadd.f32 %v8007, %v8141
    %8143 = vmatprep.mubr.f32.mxu0 0.0
    %8144 = vmatmul.mubr.f32.gmra.mrb[0].mxu0 %v8038
    %v8145 = vpop.f32.mrb[0].mxu0
    %v8146 = vadd.f32 %v8012, %v8145
    %v8147 = vpop.f32.mrb[0].mxu0
    %v8148 = vadd.f32 %v8012, %v8147
    %8149 = vmatprep.mubr.f32.mxu0 0.0
    %8150 = vmatmul.mubr.f32.gmra.mrb[0].mxu0 %v8041
    %v8151 = vpop.f32.mrb[0].mxu0
    %v8152 = vadd.f32 %v8017, %v8151
    %v8153 = vpop.f32.mrb[0].mxu0
    %v8154 = vadd.f32 %v8017, %v8153
    %8155 = vdwg.mxu0
    %8156 = vmatprep.subr.mxu0 %v7902
    %8157 = vmatpush1.msra.mxu0 %v7901
    %8158 = vmatprep.subr.mxu0 %v7910
    %8159 = vmatpush1.msra.mxu0 %v7909
    %8160 = vmatprep.subr.mxu0 %v7918
    %8161 = vmatpush1.msra.mxu0 %v7917
    %8162 = vmatprep.subr.mxu0 %v7926
    %8163 = vmatpush1.msra.mxu0 %v7925
    %8164 = vmatprep.subr.mxu0 %v7934
    %8165 = vmatpush1.msra.mxu0 %v7933
    %8166 = vmatprep.subr.mxu0 %v7942
    %8167 = vmatpush1.msra.mxu0 %v7941
    %8168 = vmatprep.subr.mxu0 %v7950
    %8169 = vmatpush1.msra.mxu0 %v7949
    %8170 = vmatprep.subr.mxu0 %v7958
    %8171 = vmatpush1.msra.mxu0 %v7957
    %8172 = vmatprep.subr.mxu0 0.0
    %8173 = vmatpush1.msra.mxu0 0.0
    %8174 = vmatprep.subr.mxu0 0.0
    %8175 = vmatpush1.msra.mxu0 0.0
    %8176 = vmatprep.subr.mxu0 0.0
    %8177 = vmatpush1.msra.mxu0 0.0
    %8178 = vmatprep.subr.mxu0 0.0
    %8179 = vmatpush1.msra.mxu0 0.0
    %8180 = vmatprep.subr.mxu0 0.0
    %8181 = vmatpush1.msra.mxu0 0.0
    %8182 = vmatprep.subr.mxu0 0.0
    %8183 = vmatpush1.msra.mxu0 0.0
    %8184 = vmatprep.subr.mxu0 0.0
    %8185 = vmatpush1.msra.mxu0 0.0
    %8186 = vmatprep.subr.mxu0 0.0
    %8187 = vmatpush1.msra.mxu0 0.0
    %8188 = vmatprep.subr.mxu0 0.0
    %8189 = vmatpush1.msra.mxu0 0.0
    %8190 = vmatprep.subr.mxu0 0.0
    %8191 = vmatpush1.msra.mxu0 0.0
    %8192 = vmatprep.subr.mxu0 0.0
    %8193 = vmatpush1.msra.mxu0 0.0
    %8194 = vmatprep.subr.mxu0 0.0
    %8195 = vmatpush1.msra.mxu0 0.0
    %8196 = vmatprep.subr.mxu0 0.0
    %8197 = vmatpush1.msra.mxu0 0.0
    %8198 = vmatprep.subr.mxu0 0.0
    %8199 = vmatpush1.msra.mxu0 0.0
    %8200 = vmatprep.subr.mxu0 0.0
    %8201 = vmatpush1.msra.mxu0 0.0
    %8202 = vmatprep.subr.mxu0 0.0
    %8203 = vmatpush1.msra.mxu0 0.0
    %8204 = vmatprep.subr.mxu0 0.0
    %8205 = vmatpush1.msra.mxu0 0.0
    %8206 = vmatprep.subr.mxu0 0.0
    %8207 = vmatpush1.msra.mxu0 0.0
    %8208 = vmatprep.subr.mxu0 0.0
    %8209 = vmatpush1.msra.mxu0 0.0
    %8210 = vmatprep.subr.mxu0 0.0
    %8211 = vmatpush1.msra.mxu0 0.0
    %8212 = vmatprep.subr.mxu0 0.0
    %8213 = vmatpush1.msra.mxu0 0.0
    %8214 = vmatprep.subr.mxu0 0.0
    %8215 = vmatpush1.msra.mxu0 0.0
    %8216 = vmatprep.subr.mxu0 0.0
    %8217 = vmatpush1.msra.mxu0 0.0
    %8218 = vmatprep.subr.mxu0 0.0
    %8219 = vmatpush1.msra.mxu0 0.0
    %8220 = vmatprep.mubr.f32.mxu0 0.0
    %8221 = vmatmul.mubr.f32.gmra.mrb[0].mxu0 %v8020
    %v8222 = vpop.f32.mrb[0].mxu0
    %v8223 = vadd.f32 %v7982, %v8222
    %v8224 = vpop.f32.mrb[0].mxu0
    %v8225 = vadd.f32 %v7982, %v8224
    %8226 = vmatprep.mubr.f32.mxu0 0.0
    %8227 = vmatmul.mubr.f32.gmra.mrb[0].mxu0 %v8023
    %v8228 = vpop.f32.mrb[0].mxu0
    %v8229 = vadd.f32 %v7987, %v8228
    %v8230 = vpop.f32.mrb[0].mxu0
    %v8231 = vadd.f32 %v7987, %v8230
    %8232 = vmatprep.mubr.f32.mxu0 0.0
    %8233 = vmatmul.mubr.f32.gmra.mrb[0].mxu0 %v8026
    %v8234 = vpop.f32.mrb[0].mxu0
    %v8235 = vadd.f32 %v7992, %v8234
    %v8236 = vpop.f32.mrb[0].mxu0
    %v8237 = vadd.f32 %v7992, %v8236
    %8238 = vmatprep.mubr.f32.mxu0 0.0
    %8239 = vmatmul.mubr.f32.gmra.mrb[0].mxu0 %v8029
    %v8240 = vpop.f32.mrb[0].mxu0
    %v8241 = vadd.f32 %v7997, %v8240
    %v8242 = vpop.f32.mrb[0].mxu0
    %v8243 = vadd.f32 %v7997, %v8242
    %8244 = vmatprep.mubr.f32.mxu0 0.0
    %8245 = vmatmul.mubr.f32.gmra.mrb[0].mxu0 %v8032
    %v8246 = vpop.f32.mrb[0].mxu0
    %v8247 = vadd.f32 %v8002, %v8246
    %v8248 = vpop.f32.mrb[0].mxu0
    %v8249 = vadd.f32 %v8002, %v8248
    %8250 = vmatprep.mubr.f32.mxu0 0.0
    %8251 = vmatmul.mubr.f32.gmra.mrb[0].mxu0 %v8035
    %v8252 = vpop.f32.mrb[0].mxu0
    %v8253 = vadd.f32 %v8007, %v8252
    %v8254 = vpop.f32.mrb[0].mxu0
    %v8255 = vadd.f32 %v8007, %v8254
    %8256 = vmatprep.mubr.f32.mxu0 0.0
    %8257 = vmatmul.mubr.f32.gmra.mrb[0].mxu0 %v8038
    %v8258 = vpop.f32.mrb[0].mxu0
    %v8259 = vadd.f32 %v8012, %v8258
    %v8260 = vpop.f32.mrb[0].mxu0
    %v8261 = vadd.f32 %v8012, %v8260
    %8262 = vmatprep.mubr.f32.mxu0 0.0
    %8263 = vmatmul.mubr.f32.gmra.mrb[0].mxu0 %v8041
    %v8264 = vpop.f32.mrb[0].mxu0
    %v8265 = vadd.f32 %v8017, %v8264
    %v8266 = vpop.f32.mrb[0].mxu0
    %v8267 = vadd.f32 %v8017, %v8266
    %8268 = vdwg.mxu0
    %8269 = vmatprep.subr.mxu0 %v7904
    %8270 = vmatpush1.msra.mxu0 %v7903
    %8271 = vmatprep.subr.mxu0 %v7912
    %8272 = vmatpush1.msra.mxu0 %v7911
    %8273 = vmatprep.subr.mxu0 %v7920
    %8274 = vmatpush1.msra.mxu0 %v7919
    %8275 = vmatprep.subr.mxu0 %v7928
    %8276 = vmatpush1.msra.mxu0 %v7927
    %8277 = vmatprep.subr.mxu0 %v7936
    %8278 = vmatpush1.msra.mxu0 %v7935
    %8279 = vmatprep.subr.mxu0 %v7944
    %8280 = vmatpush1.msra.mxu0 %v7943
    %8281 = vmatprep.subr.mxu0 %v7952
    %8282 = vmatpush1.msra.mxu0 %v7951
    %8283 = vmatprep.subr.mxu0 %v7960
    %8284 = vmatpush1.msra.mxu0 %v7959
    %8285 = vmatprep.subr.mxu0 0.0
    %8286 = vmatpush1.msra.mxu0 0.0
    %8287 = vmatprep.subr.mxu0 0.0
    %8288 = vmatpush1.msra.mxu0 0.0
    %8289 = vmatprep.subr.mxu0 0.0
    %8290 = vmatpush1.msra.mxu0 0.0
    %8291 = vmatprep.subr.mxu0 0.0
    %8292 = vmatpush1.msra.mxu0 0.0
    %8293 = vmatprep.subr.mxu0 0.0
    %8294 = vmatpush1.msra.mxu0 0.0
    %8295 = vmatprep.subr.mxu0 0.0
    %8296 = vmatpush1.msra.mxu0 0.0
    %8297 = vmatprep.subr.mxu0 0.0
    %8298 = vmatpush1.msra.mxu0 0.0
    %8299 = vmatprep.subr.mxu0 0.0
    %8300 = vmatpush1.msra.mxu0 0.0
    %8301 = vmatprep.subr.mxu0 0.0
    %8302 = vmatpush1.msra.mxu0 0.0
    %8303 = vmatprep.subr.mxu0 0.0
    %8304 = vmatpush1.msra.mxu0 0.0
    %8305 = vmatprep.subr.mxu0 0.0
    %8306 = vmatpush1.msra.mxu0 0.0
    %8307 = vmatprep.subr.mxu0 0.0
    %8308 = vmatpush1.msra.mxu0 0.0
    %8309 = vmatprep.subr.mxu0 0.0
    %8310 = vmatpush1.msra.mxu0 0.0
    %8311 = vmatprep.subr.mxu0 0.0
    %8312 = vmatpush1.msra.mxu0 0.0
    %8313 = vmatprep.subr.mxu0 0.0
    %8314 = vmatpush1.msra.mxu0 0.0
    %8315 = vmatprep.subr.mxu0 0.0
    %8316 = vmatpush1.msra.mxu0 0.0
    %8317 = vmatprep.subr.mxu0 0.0
    %8318 = vmatpush1.msra.mxu0 0.0
    %8319 = vmatprep.subr.mxu0 0.0
    %8320 = vmatpush1.msra.mxu0 0.0
    %8321 = vmatprep.subr.mxu0 0.0
    %8322 = vmatpush1.msra.mxu0 0.0
    %8323 = vmatprep.subr.mxu0 0.0
    %8324 = vmatpush1.msra.mxu0 0.0
    %8325 = vmatprep.subr.mxu0 0.0
    %8326 = vmatpush1.msra.mxu0 0.0
    %8327 = vmatprep.subr.mxu0 0.0
    %8328 = vmatpush1.msra.mxu0 0.0
    %8329 = vmatprep.subr.mxu0 0.0
    %8330 = vmatpush1.msra.mxu0 0.0
    %8331 = vmatprep.subr.mxu0 0.0
    %8332 = vmatpush1.msra.mxu0 0.0
    %8333 = vmatprep.mubr.f32.mxu0 0.0
    %8334 = vmatmul.mubr.f32.gmra.mrb[0].mxu0 %v8020
    %v8335 = vpop.f32.mrb[0].mxu0
    %v8336 = vadd.f32 %v7982, %v8335
    %v8337 = vpop.f32.mrb[0].mxu0
    %v8338 = vadd.f32 %v7982, %v8337
    %8339 = vmatprep.mubr.f32.mxu0 0.0
    %8340 = vmatmul.mubr.f32.gmra.mrb[0].mxu0 %v8023
    %v8341 = vpop.f32.mrb[0].mxu0
    %v8342 = vadd.f32 %v7987, %v8341
    %v8343 = vpop.f32.mrb[0].mxu0
    %v8344 = vadd.f32 %v7987, %v8343
    %8345 = vmatprep.mubr.f32.mxu0 0.0
    %8346 = vmatmul.mubr.f32.gmra.mrb[0].mxu0 %v8026
    %v8347 = vpop.f32.mrb[0].mxu0
    %v8348 = vadd.f32 %v7992, %v8347
    %v8349 = vpop.f32.mrb[0].mxu0
    %v8350 = vadd.f32 %v7992, %v8349
    %8351 = vmatprep.mubr.f32.mxu0 0.0
    %8352 = vmatmul.mubr.f32.gmra.mrb[0].mxu0 %v8029
    %v8353 = vpop.f32.mrb[0].mxu0
    %v8354 = vadd.f32 %v7997, %v8353
    %v8355 = vpop.f32.mrb[0].mxu0
    %v8356 = vadd.f32 %v7997, %v8355
    %8357 = vmatprep.mubr.f32.mxu0 0.0
    %8358 = vmatmul.mubr.f32.gmra.mrb[0].mxu0 %v8032
    %v8359 = vpop.f32.mrb[0].mxu0
    %v8360 = vadd.f32 %v8002, %v8359
    %v8361 = vpop.f32.mrb[0].mxu0
    %v8362 = vadd.f32 %v8002, %v8361
    %8363 = vmatprep.mubr.f32.mxu0 0.0
    %8364 = vmatmul.mubr.f32.gmra.mrb[0].mxu0 %v8035
    %v8365 = vpop.f32.mrb[0].mxu0
    %v8366 = vadd.f32 %v8007, %v8365
    %v8367 = vpop.f32.mrb[0].mxu0
    %v8368 = vadd.f32 %v8007, %v8367
    %8369 = vmatprep.mubr.f32.mxu0 0.0
    %8370 = vmatmul.mubr.f32.gmra.mrb[0].mxu0 %v8038
    %v8371 = vpop.f32.mrb[0].mxu0
    %v8372 = vadd.f32 %v8012, %v8371
    %v8373 = vpop.f32.mrb[0].mxu0
    %v8374 = vadd.f32 %v8012, %v8373
    %8375 = vmatprep.mubr.f32.mxu0 0.0
    %8376 = vmatmul.mubr.f32.gmra.mrb[0].mxu0 %v8041
    %v8377 = vpop.f32.mrb[0].mxu0
    %v8378 = vadd.f32 %v8017, %v8377
    %v8379 = vpop.f32.mrb[0].mxu0
    %v8380 = vadd.f32 %v8017, %v8379
    %8381 = vdwg.mxu0
    %8382 = vmatprep.subr.mxu0 %v7906
    %8383 = vmatpush1.msra.mxu0 %v7905
    %8384 = vmatprep.subr.mxu0 %v7914
    %8385 = vmatpush1.msra.mxu0 %v7913
    %8386 = vmatprep.subr.mxu0 %v7922
    %8387 = vmatpush1.msra.mxu0 %v7921
    %8388 = vmatprep.subr.mxu0 %v7930
    %8389 = vmatpush1.msra.mxu0 %v7929
    %8390 = vmatprep.subr.mxu0 %v7938
    %8391 = vmatpush1.msra.mxu0 %v7937
    %8392 = vmatprep.subr.mxu0 %v7946
    %8393 = vmatpush1.msra.mxu0 %v7945
    %8394 = vmatprep.subr.mxu0 %v7954
    %8395 = vmatpush1.msra.mxu0 %v7953
    %8396 = vmatprep.subr.mxu0 %v7962
    %8397 = vmatpush1.msra.mxu0 %v7961
    %8398 = vmatprep.subr.mxu0 0.0
    %8399 = vmatpush1.msra.mxu0 0.0
    %8400 = vmatprep.subr.mxu0 0.0
    %8401 = vmatpush1.msra.mxu0 0.0
    %8402 = vmatprep.subr.mxu0 0.0
    %8403 = vmatpush1.msra.mxu0 0.0
    %8404 = vmatprep.subr.mxu0 0.0
    %8405 = vmatpush1.msra.mxu0 0.0
    %8406 = vmatprep.subr.mxu0 0.0
    %8407 = vmatpush1.msra.mxu0 0.0
    %8408 = vmatprep.subr.mxu0 0.0
    %8409 = vmatpush1.msra.mxu0 0.0
    %8410 = vmatprep.subr.mxu0 0.0
    %8411 = vmatpush1.msra.mxu0 0.0
    %8412 = vmatprep.subr.mxu0 0.0
    %8413 = vmatpush1.msra.mxu0 0.0
    %8414 = vmatprep.subr.mxu0 0.0
    %8415 = vmatpush1.msra.mxu0 0.0
    %8416 = vmatprep.subr.mxu0 0.0
    %8417 = vmatpush1.msra.mxu0 0.0
    %8418 = vmatprep.subr.mxu0 0.0
    %8419 = vmatpush1.msra.mxu0 0.0
    %8420 = vmatprep.subr.mxu0 0.0
    %8421 = vmatpush1.msra.mxu0 0.0
    %8422 = vmatprep.subr.mxu0 0.0
    %8423 = vmatpush1.msra.mxu0 0.0
    %8424 = vmatprep.subr.mxu0 0.0
    %8425 = vmatpush1.msra.mxu0 0.0
    %8426 = vmatprep.subr.mxu0 0.0
    %8427 = vmatpush1.msra.mxu0 0.0
    %8428 = vmatprep.subr.mxu0 0.0
    %8429 = vmatpush1.msra.mxu0 0.0
    %8430 = vmatprep.subr.mxu0 0.0
    %8431 = vmatpush1.msra.mxu0 0.0
    %8432 = vmatprep.subr.mxu0 0.0
    %8433 = vmatpush1.msra.mxu0 0.0
    %8434 = vmatprep.subr.mxu0 0.0
    %8435 = vmatpush1.msra.mxu0 0.0
    %8436 = vmatprep.subr.mxu0 0.0
    %8437 = vmatpush1.msra.mxu0 0.0
    %8438 = vmatprep.subr.mxu0 0.0
    %8439 = vmatpush1.msra.mxu0 0.0
    %8440 = vmatprep.subr.mxu0 0.0
    %8441 = vmatpush1.msra.mxu0 0.0
    %8442 = vmatprep.subr.mxu0 0.0
    %8443 = vmatpush1.msra.mxu0 0.0
    %8444 = vmatprep.subr.mxu0 0.0
    %8445 = vmatpush1.msra.mxu0 0.0
    %8446 = vmatprep.mubr.f32.mxu0 0.0
    %8447 = vmatmul.mubr.f32.gmra.mrb[0].mxu0 %v8020
    %v8448 = vpop.f32.mrb[0].mxu0
    %v8449 = vadd.f32 %v7982, %v8448
    %v8450 = vpop.f32.mrb[0].mxu0
    %v8451 = vadd.f32 %v7982, %v8450
    %8452 = vmatprep.mubr.f32.mxu0 0.0
    %8453 = vmatmul.mubr.f32.gmra.mrb[0].mxu0 %v8023
    %v8454 = vpop.f32.mrb[0].mxu0
    %v8455 = vadd.f32 %v7987, %v8454
    %v8456 = vpop.f32.mrb[0].mxu0
    %v8457 = vadd.f32 %v7987, %v8456
    %8458 = vmatprep.mubr.f32.mxu0 0.0
    %8459 = vmatmul.mubr.f32.gmra.mrb[0].mxu0 %v8026
    %v8460 = vpop.f32.mrb[0].mxu0
    %v8461 = vadd.f32 %v7992, %v8460
    %v8462 = vpop.f32.mrb[0].mxu0
    %v8463 = vadd.f32 %v7992, %v8462
    %8464 = vmatprep.mubr.f32.mxu0 0.0
    %8465 = vmatmul.mubr.f32.gmra.mrb[0].mxu0 %v8029
    %v8466 = vpop.f32.mrb[0].mxu0
    %v8467 = vadd.f32 %v7997, %v8466
    %v8468 = vpop.f32.mrb[0].mxu0
    %v8469 = vadd.f32 %v7997, %v8468
    %8470 = vmatprep.mubr.f32.mxu0 0.0
    %8471 = vmatmul.mubr.f32.gmra.mrb[0].mxu0 %v8032
    %v8472 = vpop.f32.mrb[0].mxu0
    %v8473 = vadd.f32 %v8002, %v8472
    %v8474 = vpop.f32.mrb[0].mxu0
    %v8475 = vadd.f32 %v8002, %v8474
    %8476 = vmatprep.mubr.f32.mxu0 0.0
    %8477 = vmatmul.mubr.f32.gmra.mrb[0].mxu0 %v8035
    %v8478 = vpop.f32.mrb[0].mxu0
    %v8479 = vadd.f32 %v8007, %v8478
    %v8480 = vpop.f32.mrb[0].mxu0
    %v8481 = vadd.f32 %v8007, %v8480
    %8482 = vmatprep.mubr.f32.mxu0 0.0
    %8483 = vmatmul.mubr.f32.gmra.mrb[0].mxu0 %v8038
    %v8484 = vpop.f32.mrb[0].mxu0
    %v8485 = vadd.f32 %v8012, %v8484
    %v8486 = vpop.f32.mrb[0].mxu0
    %v8487 = vadd.f32 %v8012, %v8486
    %8488 = vmatprep.mubr.f32.mxu0 0.0
    %8489 = vmatmul.mubr.f32.gmra.mrb[0].mxu0 %v8041
    %v8490 = vpop.f32.mrb[0].mxu0
    %v8491 = vadd.f32 %v8017, %v8490
    %v8492 = vpop.f32.mrb[0].mxu0
    %v8493 = vadd.f32 %v8017, %v8492
    %8494 = vdwg.mxu0
    %v8495 = vmul.f32 %v8110, 0.01
    %v8496 = vmul.f32 %v8112, 0.01
    %v8497 = vmul.f32 %v8223, 0.01
    %v8498 = vmul.f32 %v8225, 0.01
    %v8499 = vmul.f32 %v8336, 0.01
    %v8500 = vmul.f32 %v8338, 0.01
    %v8501 = vmul.f32 %v8449, 0.01
    %v8502 = vmul.f32 %v8451, 0.01
    %v8503 = vmul.f32 %v8116, 0.01
    %v8504 = vmul.f32 %v8118, 0.01
    %v8505 = vmul.f32 %v8229, 0.01
    %v8506 = vmul.f32 %v8231, 0.01
    %v8507 = vmul.f32 %v8342, 0.01
    %v8508 = vmul.f32 %v8344, 0.01
    %v8509 = vmul.f32 %v8455, 0.01
    %v8510 = vmul.f32 %v8457, 0.01
    %v8511 = vmul.f32 %v8122, 0.01
    %v8512 = vmul.f32 %v8124, 0.01
    %v8513 = vmul.f32 %v8235, 0.01
    %v8514 = vmul.f32 %v8237, 0.01
    %v8515 = vmul.f32 %v8348, 0.01
    %v8516 = vmul.f32 %v8350, 0.01
    %v8517 = vmul.f32 %v8461, 0.01
    %v8518 = vmul.f32 %v8463, 0.01
    %v8519 = vmul.f32 %v8128, 0.01
    %v8520 = vmul.f32 %v8130, 0.01
    %v8521 = vmul.f32 %v8241, 0.01
    %v8522 = vmul.f32 %v8243, 0.01
    %v8523 = vmul.f32 %v8354, 0.01
    %v8524 = vmul.f32 %v8356, 0.01
    %v8525 = vmul.f32 %v8467, 0.01
    %v8526 = vmul.f32 %v8469, 0.01
    %v8527 = vmul.f32 %v8134, 0.01
    %v8528 = vmul.f32 %v8136, 0.01
    %v8529 = vmul.f32 %v8247, 0.01
    %v8530 = vmul.f32 %v8249, 0.01
    %v8531 = vmul.f32 %v8360, 0.01
    %v8532 = vmul.f32 %v8362, 0.01
    %v8533 = vmul.f32 %v8473, 0.01
    %v8534 = vmul.f32 %v8475, 0.01
    %v8535 = vmul.f32 %v8140, 0.01
    %v8536 = vmul.f32 %v8142, 0.01
    %v8537 = vmul.f32 %v8253, 0.01
    %v8538 = vmul.f32 %v8255, 0.01
    %v8539 = vmul.f32 %v8366, 0.01
    %v8540 = vmul.f32 %v8368, 0.01
    %v8541 = vmul.f32 %v8479, 0.01
    %v8542 = vmul.f32 %v8481, 0.01
    %v8543 = vmul.f32 %v8146, 0.01
    %v8544 = vmul.f32 %v8148, 0.01
    %v8545 = vmul.f32 %v8259, 0.01
    %v8546 = vmul.f32 %v8261, 0.01
    %v8547 = vmul.f32 %v8372, 0.01
    %v8548 = vmul.f32 %v8374, 0.01
    %v8549 = vmul.f32 %v8485, 0.01
    %v8550 = vmul.f32 %v8487, 0.01
    %v8551 = vmul.f32 %v8152, 0.01
    %v8552 = vmul.f32 %v8154, 0.01
    %v8553 = vmul.f32 %v8265, 0.01
    %v8554 = vmul.f32 %v8267, 0.01
    %v8555 = vmul.f32 %v8378, 0.01
    %v8556 = vmul.f32 %v8380, 0.01
    %v8557 = vmul.f32 %v8491, 0.01
    %v8558 = vmul.f32 %v8493, 0.01
    %v8559 = vmax.f32 %v8110, %v8495
    %v8560 = vmax.f32 %v8112, %v8496
    %v8561 = vmax.f32 %v8223, %v8497
    %v8562 = vmax.f32 %v8225, %v8498
    %v8563 = vmax.f32 %v8336, %v8499
    %v8564 = vmax.f32 %v8338, %v8500
    %v8565 = vmax.f32 %v8449, %v8501
    %v8566 = vmax.f32 %v8451, %v8502
    %v8567 = vmax.f32 %v8116, %v8503
    %v8568 = vmax.f32 %v8118, %v8504
    %v8569 = vmax.f32 %v8229, %v8505
    %v8570 = vmax.f32 %v8231, %v8506
    %v8571 = vmax.f32 %v8342, %v8507
    %v8572 = vmax.f32 %v8344, %v8508
    %v8573 = vmax.f32 %v8455, %v8509
    %v8574 = vmax.f32 %v8457, %v8510
    %v8575 = vmax.f32 %v8122, %v8511
    %v8576 = vmax.f32 %v8124, %v8512
    %v8577 = vmax.f32 %v8235, %v8513
    %v8578 = vmax.f32 %v8237, %v8514
    %v8579 = vmax.f32 %v8348, %v8515
    %v8580 = vmax.f32 %v8350, %v8516
    %v8581 = vmax.f32 %v8461, %v8517
    %v8582 = vmax.f32 %v8463, %v8518
    %v8583 = vmax.f32 %v8128, %v8519
    %v8584 = vmax.f32 %v8130, %v8520
    %v8585 = vmax.f32 %v8241, %v8521
    %v8586 = vmax.f32 %v8243, %v8522
    %v8587 = vmax.f32 %v8354, %v8523
    %v8588 = vmax.f32 %v8356, %v8524
    %v8589 = vmax.f32 %v8467, %v8525
    %v8590 = vmax.f32 %v8469, %v8526
    %v8591 = vmax.f32 %v8134, %v8527
    %v8592 = vmax.f32 %v8136, %v8528
    %v8593 = vmax.f32 %v8247, %v8529
    %v8594 = vmax.f32 %v8249, %v8530
    %v8595 = vmax.f32 %v8360, %v8531
    %v8596 = vmax.f32 %v8362, %v8532
    %v8597 = vmax.f32 %v8473, %v8533
    %v8598 = vmax.f32 %v8475, %v8534
    %v8599 = vmax.f32 %v8140, %v8535
    %v8600 = vmax.f32 %v8142, %v8536
    %v8601 = vmax.f32 %v8253, %v8537
    %v8602 = vmax.f32 %v8255, %v8538
    %v8603 = vmax.f32 %v8366, %v8539
    %v8604 = vmax.f32 %v8368, %v8540
    %v8605 = vmax.f32 %v8479, %v8541
    %v8606 = vmax.f32 %v8481, %v8542
    %v8607 = vmax.f32 %v8146, %v8543
    %v8608 = vmax.f32 %v8148, %v8544
    %v8609 = vmax.f32 %v8259, %v8545
    %v8610 = vmax.f32 %v8261, %v8546
    %v8611 = vmax.f32 %v8372, %v8547
    %v8612 = vmax.f32 %v8374, %v8548
    %v8613 = vmax.f32 %v8485, %v8549
    %v8614 = vmax.f32 %v8487, %v8550
    %v8615 = vmax.f32 %v8152, %v8551
    %v8616 = vmax.f32 %v8154, %v8552
    %v8617 = vmax.f32 %v8265, %v8553
    %v8618 = vmax.f32 %v8267, %v8554
    %v8619 = vmax.f32 %v8378, %v8555
    %v8620 = vmax.f32 %v8380, %v8556
    %v8621 = vmax.f32 %v8491, %v8557
    %v8622 = vmax.f32 %v8493, %v8558
    %v8623 = vld [vmem:[%s4] sm:$0x3]
    %v8624 = vld [vmem:[%s5] sm:$0x3]
    %8626 = vset.pattern.permute.xlu0 0
    %8627 = vperm.xlu0 %8626, %v8624
    %v8628 = vpop.permute.xlu0 %8627
    %v8631 = vsel %vm483, %v8623, 0
    %8633 = vmatprep.subr.mxu0 %v8560
    %8634 = vmatpush1.msra.mxu0 %v8559
    %8635 = vmatprep.subr.mxu0 %v8568
    %8636 = vmatpush1.msra.mxu0 %v8567
    %8637 = vmatprep.subr.mxu0 %v8576
    %8638 = vmatpush1.msra.mxu0 %v8575
    %8639 = vmatprep.subr.mxu0 %v8584
    %8640 = vmatpush1.msra.mxu0 %v8583
    %8641 = vmatprep.subr.mxu0 %v8592
    %8642 = vmatpush1.msra.mxu0 %v8591
    %8643 = vmatprep.subr.mxu0 %v8600
    %8644 = vmatpush1.msra.mxu0 %v8599
    %8645 = vmatprep.subr.mxu0 %v8608
    %8646 = vmatpush1.msra.mxu0 %v8607
    %8647 = vmatprep.subr.mxu0 %v8616
    %8648 = vmatpush1.msra.mxu0 %v8615
    %8649 = vmatprep.subr.mxu0 0.0
    %8650 = vmatpush1.msra.mxu0 0.0
    %8651 = vmatprep.subr.mxu0 0.0
    %8652 = vmatpush1.msra.mxu0 0.0
    %8653 = vmatprep.subr.mxu0 0.0
    %8654 = vmatpush1.msra.mxu0 0.0
    %8655 = vmatprep.subr.mxu0 0.0
    %8656 = vmatpush1.msra.mxu0 0.0
    %8657 = vmatprep.subr.mxu0 0.0
    %8658 = vmatpush1.msra.mxu0 0.0
    %8659 = vmatprep.subr.mxu0 0.0
    %8660 = vmatpush1.msra.mxu0 0.0
    %8661 = vmatprep.subr.mxu0 0.0
    %8662 = vmatpush1.msra.mxu0 0.0
    %8663 = vmatprep.subr.mxu0 0.0
    %8664 = vmatpush1.msra.mxu0 0.0
    %8665 = vmatprep.subr.mxu0 0.0
    %8666 = vmatpush1.msra.mxu0 0.0
    %8667 = vmatprep.subr.mxu0 0.0
    %8668 = vmatpush1.msra.mxu0 0.0
    %8669 = vmatprep.subr.mxu0 0.0
    %8670 = vmatpush1.msra.mxu0 0.0
    %8671 = vmatprep.subr.mxu0 0.0
    %8672 = vmatpush1.msra.mxu0 0.0
    %8673 = vmatprep.subr.mxu0 0.0
    %8674 = vmatpush1.msra.mxu0 0.0
    %8675 = vmatprep.subr.mxu0 0.0
    %8676 = vmatpush1.msra.mxu0 0.0
    %8677 = vmatprep.subr.mxu0 0.0
    %8678 = vmatpush1.msra.mxu0 0.0
    %8679 = vmatprep.subr.mxu0 0.0
    %8680 = vmatpush1.msra.mxu0 0.0
    %8681 = vmatprep.subr.mxu0 0.0
    %8682 = vmatpush1.msra.mxu0 0.0
    %8683 = vmatprep.subr.mxu0 0.0
    %8684 = vmatpush1.msra.mxu0 0.0
    %8685 = vmatprep.subr.mxu0 0.0
    %8686 = vmatpush1.msra.mxu0 0.0
    %8687 = vmatprep.subr.mxu0 0.0
    %8688 = vmatpush1.msra.mxu0 0.0
    %8689 = vmatprep.subr.mxu0 0.0
    %8690 = vmatpush1.msra.mxu0 0.0
    %8691 = vmatprep.subr.mxu0 0.0
    %8692 = vmatpush1.msra.mxu0 0.0
    %8693 = vmatprep.subr.mxu0 0.0
    %8694 = vmatpush1.msra.mxu0 0.0
    %8695 = vmatprep.subr.mxu0 0.0
    %8696 = vmatpush1.msra.mxu0 0.0
    %8697 = vmatprep.mubr.f32.mxu0 0.0
    %8698 = vmatmul.mubr.f32.gmra.mrb[0].mxu0 %v8631
    %v8699 = vpop.f32.mrb[0].mxu0
    %v8700 = vadd.f32 %v8628, %v8699
    %v8701 = vpop.f32.mrb[0].mxu0
    %v8702 = vadd.f32 %v8628, %v8701
    %8703 = vdwg.mxu0
    %8704 = vmatprep.subr.mxu0 %v8562
    %8705 = vmatpush1.msra.mxu0 %v8561
    %8706 = vmatprep.subr.mxu0 %v8570
    %8707 = vmatpush1.msra.mxu0 %v8569
    %8708 = vmatprep.subr.mxu0 %v8578
    %8709 = vmatpush1.msra.mxu0 %v8577
    %8710 = vmatprep.subr.mxu0 %v8586
    %8711 = vmatpush1.msra.mxu0 %v8585
    %8712 = vmatprep.subr.mxu0 %v8594
    %8713 = vmatpush1.msra.mxu0 %v8593
    %8714 = vmatprep.subr.mxu0 %v8602
    %8715 = vmatpush1.msra.mxu0 %v8601
    %8716 = vmatprep.subr.mxu0 %v8610
    %8717 = vmatpush1.msra.mxu0 %v8609
    %8718 = vmatprep.subr.mxu0 %v8618
    %8719 = vmatpush1.msra.mxu0 %v8617
    %8720 = vmatprep.subr.mxu0 0.0
    %8721 = vmatpush1.msra.mxu0 0.0
    %8722 = vmatprep.subr.mxu0 0.0
    %8723 = vmatpush1.msra.mxu0 0.0
    %8724 = vmatprep.subr.mxu0 0.0
    %8725 = vmatpush1.msra.mxu0 0.0
    %8726 = vmatprep.subr.mxu0 0.0
    %8727 = vmatpush1.msra.mxu0 0.0
    %8728 = vmatprep.subr.mxu0 0.0
    %8729 = vmatpush1.msra.mxu0 0.0
    %8730 = vmatprep.subr.mxu0 0.0
    %8731 = vmatpush1.msra.mxu0 0.0
    %8732 = vmatprep.subr.mxu0 0.0
    %8733 = vmatpush1.msra.mxu0 0.0
    %8734 = vmatprep.subr.mxu0 0.0
    %8735 = vmatpush1.msra.mxu0 0.0
    %8736 = vmatprep.subr.mxu0 0.0
    %8737 = vmatpush1.msra.mxu0 0.0
    %8738 = vmatprep.subr.mxu0 0.0
    %8739 = vmatpush1.msra.mxu0 0.0
    %8740 = vmatprep.subr.mxu0 0.0
    %8741 = vmatpush1.msra.mxu0 0.0
    %8742 = vmatprep.subr.mxu0 0.0
    %8743 = vmatpush1.msra.mxu0 0.0
    %8744 = vmatprep.subr.mxu0 0.0
    %8745 = vmatpush1.msra.mxu0 0.0
    %8746 = vmatprep.subr.mxu0 0.0
    %8747 = vmatpush1.msra.mxu0 0.0
    %8748 = vmatprep.subr.mxu0 0.0
    %8749 = vmatpush1.msra.mxu0 0.0
    %8750 = vmatprep.subr.mxu0 0.0
    %8751 = vmatpush1.msra.mxu0 0.0
    %8752 = vmatprep.subr.mxu0 0.0
    %8753 = vmatpush1.msra.mxu0 0.0
    %8754 = vmatprep.subr.mxu0 0.0
    %8755 = vmatpush1.msra.mxu0 0.0
    %8756 = vmatprep.subr.mxu0 0.0
    %8757 = vmatpush1.msra.mxu0 0.0
    %8758 = vmatprep.subr.mxu0 0.0
    %8759 = vmatpush1.msra.mxu0 0.0
    %8760 = vmatprep.subr.mxu0 0.0
    %8761 = vmatpush1.msra.mxu0 0.0
    %8762 = vmatprep.subr.mxu0 0.0
    %8763 = vmatpush1.msra.mxu0 0.0
    %8764 = vmatprep.subr.mxu0 0.0
    %8765 = vmatpush1.msra.mxu0 0.0
    %8766 = vmatprep.subr.mxu0 0.0
    %8767 = vmatpush1.msra.mxu0 0.0
    %8768 = vmatprep.mubr.f32.mxu0 0.0
    %8769 = vmatmul.mubr.f32.gmra.mrb[0].mxu0 %v8631
    %v8770 = vpop.f32.mrb[0].mxu0
    %v8771 = vadd.f32 %v8628, %v8770
    %v8772 = vpop.f32.mrb[0].mxu0
    %v8773 = vadd.f32 %v8628, %v8772
    %8774 = vdwg.mxu0
    %8775 = vmatprep.subr.mxu0 %v8564
    %8776 = vmatpush1.msra.mxu0 %v8563
    %8777 = vmatprep.subr.mxu0 %v8572
    %8778 = vmatpush1.msra.mxu0 %v8571
    %8779 = vmatprep.subr.mxu0 %v8580
    %8780 = vmatpush1.msra.mxu0 %v8579
    %8781 = vmatprep.subr.mxu0 %v8588
    %8782 = vmatpush1.msra.mxu0 %v8587
    %8783 = vmatprep.subr.mxu0 %v8596
    %8784 = vmatpush1.msra.mxu0 %v8595
    %8785 = vmatprep.subr.mxu0 %v8604
    %8786 = vmatpush1.msra.mxu0 %v8603
    %8787 = vmatprep.subr.mxu0 %v8612
    %8788 = vmatpush1.msra.mxu0 %v8611
    %8789 = vmatprep.subr.mxu0 %v8620
    %8790 = vmatpush1.msra.mxu0 %v8619
    %8791 = vmatprep.subr.mxu0 0.0
    %8792 = vmatpush1.msra.mxu0 0.0
    %8793 = vmatprep.subr.mxu0 0.0
    %8794 = vmatpush1.msra.mxu0 0.0
    %8795 = vmatprep.subr.mxu0 0.0
    %8796 = vmatpush1.msra.mxu0 0.0
    %8797 = vmatprep.subr.mxu0 0.0
    %8798 = vmatpush1.msra.mxu0 0.0
    %8799 = vmatprep.subr.mxu0 0.0
    %8800 = vmatpush1.msra.mxu0 0.0
    %8801 = vmatprep.subr.mxu0 0.0
    %8802 = vmatpush1.msra.mxu0 0.0
    %8803 = vmatprep.subr.mxu0 0.0
    %8804 = vmatpush1.msra.mxu0 0.0
    %8805 = vmatprep.subr.mxu0 0.0
    %8806 = vmatpush1.msra.mxu0 0.0
    %8807 = vmatprep.subr.mxu0 0.0
    %8808 = vmatpush1.msra.mxu0 0.0
    %8809 = vmatprep.subr.mxu0 0.0
    %8810 = vmatpush1.msra.mxu0 0.0
    %8811 = vmatprep.subr.mxu0 0.0
    %8812 = vmatpush1.msra.mxu0 0.0
    %8813 = vmatprep.subr.mxu0 0.0
    %8814 = vmatpush1.msra.mxu0 0.0
    %8815 = vmatprep.subr.mxu0 0.0
    %8816 = vmatpush1.msra.mxu0 0.0
    %8817 = vmatprep.subr.mxu0 0.0
    %8818 = vmatpush1.msra.mxu0 0.0
    %8819 = vmatprep.subr.mxu0 0.0
    %8820 = vmatpush1.msra.mxu0 0.0
    %8821 = vmatprep.subr.mxu0 0.0
    %8822 = vmatpush1.msra.mxu0 0.0
    %8823 = vmatprep.subr.mxu0 0.0
    %8824 = vmatpush1.msra.mxu0 0.0
    %8825 = vmatprep.subr.mxu0 0.0
    %8826 = vmatpush1.msra.mxu0 0.0
    %8827 = vmatprep.subr.mxu0 0.0
    %8828 = vmatpush1.msra.mxu0 0.0
    %8829 = vmatprep.subr.mxu0 0.0
    %8830 = vmatpush1.msra.mxu0 0.0
    %8831 = vmatprep.subr.mxu0 0.0
    %8832 = vmatpush1.msra.mxu0 0.0
    %8833 = vmatprep.subr.mxu0 0.0
    %8834 = vmatpush1.msra.mxu0 0.0
    %8835 = vmatprep.subr.mxu0 0.0
    %8836 = vmatpush1.msra.mxu0 0.0
    %8837 = vmatprep.subr.mxu0 0.0
    %8838 = vmatpush1.msra.mxu0 0.0
    %8839 = vmatprep.mubr.f32.mxu0 0.0
    %8840 = vmatmul.mubr.f32.gmra.mrb[0].mxu0 %v8631
    %v8841 = vpop.f32.mrb[0].mxu0
    %v8842 = vadd.f32 %v8628, %v8841
    %v8843 = vpop.f32.mrb[0].mxu0
    %v8844 = vadd.f32 %v8628, %v8843
    %8845 = vdwg.mxu0
    %8846 = vmatprep.subr.mxu0 %v8566
    %8847 = vmatpush1.msra.mxu0 %v8565
    %8848 = vmatprep.subr.mxu0 %v8574
    %8849 = vmatpush1.msra.mxu0 %v8573
    %8850 = vmatprep.subr.mxu0 %v8582
    %8851 = vmatpush1.msra.mxu0 %v8581
    %8852 = vmatprep.subr.mxu0 %v8590
    %8853 = vmatpush1.msra.mxu0 %v8589
    %8854 = vmatprep.subr.mxu0 %v8598
    %8855 = vmatpush1.msra.mxu0 %v8597
    %8856 = vmatprep.subr.mxu0 %v8606
    %8857 = vmatpush1.msra.mxu0 %v8605
    %8858 = vmatprep.subr.mxu0 %v8614
    %8859 = vmatpush1.msra.mxu0 %v8613
    %8860 = vmatprep.subr.mxu0 %v8622
    %8861 = vmatpush1.msra.mxu0 %v8621
    %8862 = vmatprep.subr.mxu0 0.0
    %8863 = vmatpush1.msra.mxu0 0.0
    %8864 = vmatprep.subr.mxu0 0.0
    %8865 = vmatpush1.msra.mxu0 0.0
    %8866 = vmatprep.subr.mxu0 0.0
    %8867 = vmatpush1.msra.mxu0 0.0
    %8868 = vmatprep.subr.mxu0 0.0
    %8869 = vmatpush1.msra.mxu0 0.0
    %8870 = vmatprep.subr.mxu0 0.0
    %8871 = vmatpush1.msra.mxu0 0.0
    %8872 = vmatprep.subr.mxu0 0.0
    %8873 = vmatpush1.msra.mxu0 0.0
    %8874 = vmatprep.subr.mxu0 0.0
    %8875 = vmatpush1.msra.mxu0 0.0
    %8876 = vmatprep.subr.mxu0 0.0
    %8877 = vmatpush1.msra.mxu0 0.0
    %8878 = vmatprep.subr.mxu0 0.0
    %8879 = vmatpush1.msra.mxu0 0.0
    %8880 = vmatprep.subr.mxu0 0.0
    %8881 = vmatpush1.msra.mxu0 0.0
    %8882 = vmatprep.subr.mxu0 0.0
    %8883 = vmatpush1.msra.mxu0 0.0
    %8884 = vmatprep.subr.mxu0 0.0
    %8885 = vmatpush1.msra.mxu0 0.0
    %8886 = vmatprep.subr.mxu0 0.0
    %8887 = vmatpush1.msra.mxu0 0.0
    %8888 = vmatprep.subr.mxu0 0.0
    %8889 = vmatpush1.msra.mxu0 0.0
    %8890 = vmatprep.subr.mxu0 0.0
    %8891 = vmatpush1.msra.mxu0 0.0
    %8892 = vmatprep.subr.mxu0 0.0
    %8893 = vmatpush1.msra.mxu0 0.0
    %8894 = vmatprep.subr.mxu0 0.0
    %8895 = vmatpush1.msra.mxu0 0.0
    %8896 = vmatprep.subr.mxu0 0.0
    %8897 = vmatpush1.msra.mxu0 0.0
    %8898 = vmatprep.subr.mxu0 0.0
    %8899 = vmatpush1.msra.mxu0 0.0
    %8900 = vmatprep.subr.mxu0 0.0
    %8901 = vmatpush1.msra.mxu0 0.0
    %8902 = vmatprep.subr.mxu0 0.0
    %8903 = vmatpush1.msra.mxu0 0.0
    %8904 = vmatprep.subr.mxu0 0.0
    %8905 = vmatpush1.msra.mxu0 0.0
    %8906 = vmatprep.subr.mxu0 0.0
    %8907 = vmatpush1.msra.mxu0 0.0
    %8908 = vmatprep.subr.mxu0 0.0
    %8909 = vmatpush1.msra.mxu0 0.0
    %8910 = vmatprep.mubr.f32.mxu0 0.0
    %8911 = vmatmul.mubr.f32.gmra.mrb[0].mxu0 %v8631
    %v8912 = vpop.f32.mrb[0].mxu0
    %v8913 = vadd.f32 %v8628, %v8912
    %v8914 = vpop.f32.mrb[0].mxu0
    %v8915 = vadd.f32 %v8628, %v8914
    %8916 = vdwg.mxu0
    %v8917 = vtanh.pop %v8700
    %v8918 = vtanh.pop %v8702
    %v8919 = vtanh.pop %v8771
    %v8920 = vtanh.pop %v8773
    %v8921 = vtanh.pop %v8842
    %v8922 = vtanh.pop %v8844
    %v8923 = vtanh.pop %v8913
    %v8924 = vtanh.pop %v8915
    %v8933 = vcombine.low %v8700, %v8702
    %v8934 = vcombine.low %v8771, %v8773
    %v8935 = vcombine.low %v8842, %v8844
    %v8936 = vcombine.low %v8913, %v8915
    %v8938 = vunpack.c.l.s4 1966171168
    %v8939 = vunpack.c.0.s8 %v8938
    %v8940 = vlaneseq
    %v8941 = vshrl.u32 %v8940, 7
    %v8942 = vsub.s32 %v8939, %v8941
    %v8943 = vrot.slane %v8933, %v8942
    %v8945 = vunpack.c.l.s4 1966171168
    %v8946 = vunpack.c.0.s8 %v8945
    %v8947 = vlaneseq
    %v8948 = vshrl.u32 %v8947, 7
    %v8949 = vsub.s32 %v8946, %v8948
    %v8950 = vrot.slane %v8934, %v8949
    %v8952 = vunpack.c.l.s4 1966171168
    %v8953 = vunpack.c.0.s8 %v8952
    %v8954 = vlaneseq
    %v8955 = vshrl.u32 %v8954, 7
    %v8956 = vsub.s32 %v8953, %v8955
    %v8957 = vrot.slane %v8935, %v8956
    %v8959 = vunpack.c.l.s4 1966171168
    %v8960 = vunpack.c.0.s8 %v8959
    %v8961 = vlaneseq
    %v8962 = vshrl.u32 %v8961, 7
    %v8963 = vsub.s32 %v8960, %v8962
    %v8964 = vrot.slane %v8936, %v8963
    %v8965 = vcombine.high %v8943, %v8950
    %v8966 = vcombine.high %v8957, %v8964
    %v8968 = vunpack.c.l.s4 1966171168
    %v8969 = vunpack.c.0.s8 %v8968
    %v8970 = vlaneseq
    %v8971 = vshrl.u32 %v8970, 7
    %v8972 = vsub.s32 %v8969, %v8971
    %v8973 = vrot.slane %v8965, %v8972
    %v8975 = vunpack.c.l.s4 1966171168
    %v8976 = vunpack.c.0.s8 %v8975
    %v8977 = vlaneseq
    %v8978 = vshrl.u32 %v8977, 7
    %v8979 = vsub.s32 %v8976, %v8978
    %v8980 = vrot.slane %v8966, %v8979
    %v8981 = vcombine.low %v8973, %v8980
    %v8983 = vsub.f32 %v6050, %v8981
    %v8984 = vsub.f32 0.0, %v8917
    %v8985 = vsub.f32 0.0, %v8918
    %v8986 = vsub.f32 0.0, %v8919
    %v8987 = vsub.f32 0.0, %v8920
    %v8988 = vsub.f32 0.0, %v8921
    %v8989 = vsub.f32 0.0, %v8922
    %v8990 = vsub.f32 0.0, %v8923
    %v8991 = vsub.f32 0.0, %v8924
    %v8992 = vmul.f32 %v8984, 1.442695
    %v8993 = vpow.pop %v8992
    %v8994 = vmul.f32 %v8985, 1.442695
    %v8995 = vpow.pop %v8994
    %v8996 = vmul.f32 %v8986, 1.442695
    %v8997 = vpow.pop %v8996
    %v8998 = vmul.f32 %v8987, 1.442695
    %v8999 = vpow.pop %v8998
    %v9000 = vmul.f32 %v8988, 1.442695
    %v9001 = vpow.pop %v9000
    %v9002 = vmul.f32 %v8989, 1.442695
    %v9003 = vpow.pop %v9002
    %v9004 = vmul.f32 %v8990, 1.442695
    %v9005 = vpow.pop %v9004
    %v9006 = vmul.f32 %v8991, 1.442695
    %v9007 = vpow.pop %v9006
    %v9016 = vcombine.low %v8993, %v8995
    %v9017 = vcombine.low %v8997, %v8999
    %v9018 = vcombine.low %v9001, %v9003
    %v9019 = vcombine.low %v9005, %v9007
    %v9021 = vunpack.c.l.s4 1966171168
    %v9022 = vunpack.c.0.s8 %v9021
    %v9023 = vlaneseq
    %v9024 = vshrl.u32 %v9023, 7
    %v9025 = vsub.s32 %v9022, %v9024
    %v9026 = vrot.slane %v9016, %v9025
    %v9028 = vunpack.c.l.s4 1966171168
    %v9029 = vunpack.c.0.s8 %v9028
    %v9030 = vlaneseq
    %v9031 = vshrl.u32 %v9030, 7
    %v9032 = vsub.s32 %v9029, %v9031
    %v9033 = vrot.slane %v9017, %v9032
    %v9035 = vunpack.c.l.s4 1966171168
    %v9036 = vunpack.c.0.s8 %v9035
    %v9037 = vlaneseq
    %v9038 = vshrl.u32 %v9037, 7
    %v9039 = vsub.s32 %v9036, %v9038
    %v9040 = vrot.slane %v9018, %v9039
    %v9042 = vunpack.c.l.s4 1966171168
    %v9043 = vunpack.c.0.s8 %v9042
    %v9044 = vlaneseq
    %v9045 = vshrl.u32 %v9044, 7
    %v9046 = vsub.s32 %v9043, %v9045
    %v9047 = vrot.slane %v9019, %v9046
    %v9048 = vcombine.low %v9026, %v9033
    %v9049 = vcombine.low %v9040, %v9047
    %v9051 = vunpack.c.l.s4 1966171168
    %v9052 = vunpack.c.0.s8 %v9051
    %v9053 = vlaneseq
    %v9054 = vshrl.u32 %v9053, 7
    %v9055 = vsub.s32 %v9052, %v9054
    %v9056 = vrot.slane %v9048, %v9055
    %v9058 = vunpack.c.l.s4 1966171168
    %v9059 = vunpack.c.0.s8 %v9058
    %v9060 = vlaneseq
    %v9061 = vshrl.u32 %v9060, 7
    %v9062 = vsub.s32 %v9059, %v9061
    %v9063 = vrot.slane %v9049, %v9062
    %v9064 = vcombine.low %v9056, %v9063
    %v9066 = vmul.f32 %v8983, %v9064
    %v9067 = vsub.f32 %v6051, %v8917
    %v9068 = vsub.f32 %v6052, %v8918
    %v9069 = vsub.f32 %v6053, %v8919
    %v9070 = vsub.f32 %v6054, %v8920
    %v9071 = vsub.f32 %v6055, %v8921
    %v9072 = vsub.f32 %v6056, %v8922
    %v9073 = vsub.f32 %v6057, %v8923
    %v9074 = vsub.f32 %v6058, %v8924
    %v9075 = vmul.f32 %v9066, 0.5
    %v9076 = vmul.f32 %v9075, %v9066
    %v9078 = vlaneseq
    %v9079 = vshrl.u32 %v9078, 7
    %v9080 = vsub.s32 0, %v9079
    %v9081 = vrot.slane %v9076, %v9080
    %v9082 = vlaneseq
    %v9083 = vshrl.u32 %v9082, 7
    %v9084 = vsub.s32 1, %v9083
    %v9085 = vrot.slane %v9076, %v9084
    %v9086 = vlaneseq
    %v9087 = vshrl.u32 %v9086, 7
    %v9088 = vsub.s32 2, %v9087
    %v9089 = vrot.slane %v9076, %v9088
    %v9090 = vlaneseq
    %v9091 = vshrl.u32 %v9090, 7
    %v9092 = vsub.s32 3, %v9091
    %v9093 = vrot.slane %v9076, %v9092
    %v9094 = vlaneseq
    %v9095 = vshrl.u32 %v9094, 7
    %v9096 = vsub.s32 4, %v9095
    %v9097 = vrot.slane %v9076, %v9096
    %v9098 = vlaneseq
    %v9099 = vshrl.u32 %v9098, 7
    %v9100 = vsub.s32 5, %v9099
    %v9101 = vrot.slane %v9076, %v9100
    %v9102 = vlaneseq
    %v9103 = vshrl.u32 %v9102, 7
    %v9104 = vsub.s32 6, %v9103
    %v9105 = vrot.slane %v9076, %v9104
    %v9106 = vlaneseq
    %v9107 = vshrl.u32 %v9106, 7
    %v9108 = vsub.s32 7, %v9107
    %v9109 = vrot.slane %v9076, %v9108
    %v9118 = vsub.f32 %v9067, %v9081
    %v9119 = vsub.f32 %v9068, %v9085
    %v9120 = vsub.f32 %v9069, %v9089
    %v9121 = vsub.f32 %v9070, %v9093
    %v9122 = vsub.f32 %v9071, %v9097
    %v9123 = vsub.f32 %v9072, %v9101
    %v9124 = vsub.f32 %v9073, %v9105
    %v9125 = vsub.f32 %v9074, %v9109
    %v9126 = vmul.f32 %v9118, 1.442695
    %v9127 = vpow.pop %v9126
    %v9128 = vmul.f32 %v9119, 1.442695
    %v9129 = vpow.pop %v9128
    %v9130 = vmul.f32 %v9120, 1.442695
    %v9131 = vpow.pop %v9130
    %v9132 = vmul.f32 %v9121, 1.442695
    %v9133 = vpow.pop %v9132
    %v9134 = vmul.f32 %v9122, 1.442695
    %v9135 = vpow.pop %v9134
    %v9136 = vmul.f32 %v9123, 1.442695
    %v9137 = vpow.pop %v9136
    %v9138 = vmul.f32 %v9124, 1.442695
    %v9139 = vpow.pop %v9138
    %v9140 = vmul.f32 %v9125, 1.442695
    %v9141 = vpow.pop %v9140
    %v9142 = vmul.f32 %v9127, 0.3989423
    %v9143 = vmul.f32 %v9129, 0.3989423
    %v9144 = vmul.f32 %v9131, 0.3989423
    %v9145 = vmul.f32 %v9133, 0.3989423
    %v9146 = vmul.f32 %v9135, 0.3989423
    %v9147 = vmul.f32 %v9137, 0.3989423
    %v9148 = vmul.f32 %v9139, 0.3989423
    %v9149 = vmul.f32 %v9141, 0.3989423
    %v9158 = vcombine.low %v9142, %v9143
    %v9159 = vcombine.low %v9144, %v9145
    %v9160 = vcombine.low %v9146, %v9147
    %v9161 = vcombine.low %v9148, %v9149
    %v9163 = vunpack.c.l.s4 1966171168
    %v9164 = vunpack.c.0.s8 %v9163
    %v9165 = vlaneseq
    %v9166 = vshrl.u32 %v9165, 7
    %v9167 = vsub.s32 %v9164, %v9166
    %v9168 = vrot.slane %v9158, %v9167
    %v9170 = vunpack.c.l.s4 1966171168
    %v9171 = vunpack.c.0.s8 %v9170
    %v9172 = vlaneseq
    %v9173 = vshrl.u32 %v9172, 7
    %v9174 = vsub.s32 %v9171, %v9173
    %v9175 = vrot.slane %v9159, %v9174
    %v9177 = vunpack.c.l.s4 1966171168
    %v9178 = vunpack.c.0.s8 %v9177
    %v9179 = vlaneseq
    %v9180 = vshrl.u32 %v9179, 7
    %v9181 = vsub.s32 %v9178, %v9180
    %v9182 = vrot.slane %v9160, %v9181
    %v9184 = vunpack.c.l.s4 1966171168
    %v9185 = vunpack.c.0.s8 %v9184
    %v9186 = vlaneseq
    %v9187 = vshrl.u32 %v9186, 7
    %v9188 = vsub.s32 %v9185, %v9187
    %v9189 = vrot.slane %v9161, %v9188
    %v9190 = vcombine.low %v9168, %v9175
    %v9191 = vcombine.low %v9182, %v9189
    %v9193 = vunpack.c.l.s4 1966171168
    %v9194 = vunpack.c.0.s8 %v9193
    %v9195 = vlaneseq
    %v9196 = vshrl.u32 %v9195, 7
    %v9197 = vsub.s32 %v9194, %v9196
    %v9198 = vrot.slane %v9190, %v9197
    %v9200 = vunpack.c.l.s4 1966171168
    %v9201 = vunpack.c.0.s8 %v9200
    %v9202 = vlaneseq
    %v9203 = vshrl.u32 %v9202, 7
    %v9204 = vsub.s32 %v9201, %v9203
    %v9205 = vrot.slane %v9191, %v9204
    %v9206 = vcombine.low %v9198, %v9205
    %9208 = vst [vmem:[#allocation2] ss:$2 sm:$0xff] %v9206
    %v9209 = vmul.f32 %v7561, 0.5
    %v9210 = vmul.f32 %v9209, %v7561
    %v9212 = vlaneseq
    %v9213 = vshrl.u32 %v9212, 7
    %v9214 = vsub.s32 0, %v9213
    %v9215 = vrot.slane %v9210, %v9214
    %v9216 = vlaneseq
    %v9217 = vshrl.u32 %v9216, 7
    %v9218 = vsub.s32 1, %v9217
    %v9219 = vrot.slane %v9210, %v9218
    %v9220 = vlaneseq
    %v9221 = vshrl.u32 %v9220, 7
    %v9222 = vsub.s32 2, %v9221
    %v9223 = vrot.slane %v9210, %v9222
    %v9224 = vlaneseq
    %v9225 = vshrl.u32 %v9224, 7
    %v9226 = vsub.s32 3, %v9225
    %v9227 = vrot.slane %v9210, %v9226
    %v9228 = vlaneseq
    %v9229 = vshrl.u32 %v9228, 7
    %v9230 = vsub.s32 4, %v9229
    %v9231 = vrot.slane %v9210, %v9230
    %v9232 = vlaneseq
    %v9233 = vshrl.u32 %v9232, 7
    %v9234 = vsub.s32 5, %v9233
    %v9235 = vrot.slane %v9210, %v9234
    %v9236 = vlaneseq
    %v9237 = vshrl.u32 %v9236, 7
    %v9238 = vsub.s32 6, %v9237
    %v9239 = vrot.slane %v9210, %v9238
    %v9240 = vlaneseq
    %v9241 = vshrl.u32 %v9240, 7
    %v9242 = vsub.s32 7, %v9241
    %v9243 = vrot.slane %v9210, %v9242
    %v9252 = vsub.f32 %v7562, %v9215
    %v9253 = vsub.f32 %v7563, %v9219
    %v9254 = vsub.f32 %v7564, %v9223
    %v9255 = vsub.f32 %v7565, %v9227
    %v9256 = vsub.f32 %v7566, %v9231
    %v9257 = vsub.f32 %v7567, %v9235
    %v9258 = vsub.f32 %v7568, %v9239
    %v9259 = vsub.f32 %v7569, %v9243
    %v9260 = vmul.f32 %v9252, 1.442695
    %v9261 = vpow.pop %v9260
    %v9262 = vmul.f32 %v9253, 1.442695
    %v9263 = vpow.pop %v9262
    %v9264 = vmul.f32 %v9254, 1.442695
    %v9265 = vpow.pop %v9264
    %v9266 = vmul.f32 %v9255, 1.442695
    %v9267 = vpow.pop %v9266
    %v9268 = vmul.f32 %v9256, 1.442695
    %v9269 = vpow.pop %v9268
    %v9270 = vmul.f32 %v9257, 1.442695
    %v9271 = vpow.pop %v9270
    %v9272 = vmul.f32 %v9258, 1.442695
    %v9273 = vpow.pop %v9272
    %v9274 = vmul.f32 %v9259, 1.442695
    %v9275 = vpow.pop %v9274
    %v9276 = vmul.f32 %v9261, 0.3989423
    %v9277 = vmul.f32 %v9263, 0.3989423
    %v9278 = vmul.f32 %v9265, 0.3989423
    %v9279 = vmul.f32 %v9267, 0.3989423
    %v9280 = vmul.f32 %v9269, 0.3989423
    %v9281 = vmul.f32 %v9271, 0.3989423
    %v9282 = vmul.f32 %v9273, 0.3989423
    %v9283 = vmul.f32 %v9275, 0.3989423
    %v9292 = vcombine.low %v9276, %v9277
    %v9293 = vcombine.low %v9278, %v9279
    %v9294 = vcombine.low %v9280, %v9281
    %v9295 = vcombine.low %v9282, %v9283
    %v9297 = vunpack.c.l.s4 1966171168
    %v9298 = vunpack.c.0.s8 %v9297
    %v9299 = vlaneseq
    %v9300 = vshrl.u32 %v9299, 7
    %v9301 = vsub.s32 %v9298, %v9300
    %v9302 = vrot.slane %v9292, %v9301
    %v9304 = vunpack.c.l.s4 1966171168
    %v9305 = vunpack.c.0.s8 %v9304
    %v9306 = vlaneseq
    %v9307 = vshrl.u32 %v9306, 7
    %v9308 = vsub.s32 %v9305, %v9307
    %v9309 = vrot.slane %v9293, %v9308
    %v9311 = vunpack.c.l.s4 1966171168
    %v9312 = vunpack.c.0.s8 %v9311
    %v9313 = vlaneseq
    %v9314 = vshrl.u32 %v9313, 7
    %v9315 = vsub.s32 %v9312, %v9314
    %v9316 = vrot.slane %v9294, %v9315
    %v9318 = vunpack.c.l.s4 1966171168
    %v9319 = vunpack.c.0.s8 %v9318
    %v9320 = vlaneseq
    %v9321 = vshrl.u32 %v9320, 7
    %v9322 = vsub.s32 %v9319, %v9321
    %v9323 = vrot.slane %v9295, %v9322
    %v9324 = vcombine.low %v9302, %v9309
    %v9325 = vcombine.low %v9316, %v9323
    %v9327 = vunpack.c.l.s4 1966171168
    %v9328 = vunpack.c.0.s8 %v9327
    %v9329 = vlaneseq
    %v9330 = vshrl.u32 %v9329, 7
    %v9331 = vsub.s32 %v9328, %v9330
    %v9332 = vrot.slane %v9324, %v9331
    %v9334 = vunpack.c.l.s4 1966171168
    %v9335 = vunpack.c.0.s8 %v9334
    %v9336 = vlaneseq
    %v9337 = vshrl.u32 %v9336, 7
    %v9338 = vsub.s32 %v9335, %v9337
    %v9339 = vrot.slane %v9325, %v9338
    %v9340 = vcombine.low %v9332, %v9339
    %s9342 = scalar_lea.vmem [#allocation2], 1
    %9343 = vst [vmem:[%s9342] ss:$2 sm:$0xff] %v9340
    // Predicated region
    $region30: #{tpu_custom_call.1} parent=1 // pred_check
      _
    $region31: #{tpu_custom_call.1} parent=1 // pred_check_branch
      %9345 = sbr.rel (0) target = $region33
    $region32: #{tpu_custom_call.1} parent=1 // pred_region
      %s9347 = ssub.s32 256, 256
      %9348 = vsyncadd [#allocation3], %s9347
      %s9350 = sshll.u32 [#allocation2], 4
      %s9351 = int_to_ptr.vmem [resolvable:$true] %s9350
      %9353 = dma.vmem_to_hbm [thread:$0]  %s9351, 256, %s7, [#allocation3]
    $region33: #{tpu_custom_call.1} parent=1 // pred_fallthru
      _
    // Predicated region
    $region34: #{tpu_custom_call.1} parent=1 // pred_check
      _
    $region35: #{tpu_custom_call.1} parent=1 // pred_check_branch
      %9355 = sbr.rel (0) target = $region37
    $region36: #{tpu_custom_call.1} parent=1 // pred_region
      %9356 = dma.done [#allocation3], 256
    $region37: #{tpu_custom_call.1} parent=1 // pred_fallthru
      _
    %9357 = vsyncpa [#allocation3], 1

</llo_original>
